<compile_context>
chip_gen: v6e
topology: v6e:2x2x1
jax: 0.10.0
libtpu: 0.0.40
codegen_flags: <defaults>
</compile_context>

<pallas_src>
import functools

import jax
import jax.numpy as jnp
from jax.experimental import pallas as pl
from jax.experimental.pallas import tpu as pltpu

LANES = 128


def _round_up(x, m):
    return ((x + m - 1) // m) * m


def _pad2d(a, rows, cols):
    return jnp.pad(a, ((0, rows - a.shape[0]), (0, cols - a.shape[1])))


def _pad_row(v):
    return jnp.pad(v.astype(jnp.float32), (0, LANES - v.shape[0])).reshape(1, LANES)


def _conv_out_hw(h, w, k, s, p):
    return (h + 2 * p - k) // s + 1, (w + 2 * p - k) // s + 1


# -------- kernel 1: fused conv(matmul, bf16->f32 acc) + BN(batch stats) + ReLU --------
def conv_bn_relu_kernel(a_ref, w_ref, g_ref, bt_ref, o_ref, *, m_valid, eps):
    acc = jnp.dot(a_ref[...], w_ref[...], preferred_element_type=jnp.float32)
    row = jax.lax.broadcasted_iota(jnp.int32, acc.shape, 0)
    xm = jnp.where(row < m_valid, acc, 0.0)            # exclude padded rows from stats
    inv_m = 1.0 / float(m_valid)
    mean = jnp.sum(xm, axis=0, keepdims=True) * inv_m
    var = jnp.sum(xm * xm, axis=0, keepdims=True) * inv_m - mean * mean
    var = jnp.maximum(var, 0.0)                         # guard E[x^2]-mean^2 cancellation
    scale = g_ref[...] * jax.lax.rsqrt(var + eps)       # padded gamma == 0 -> scale 0
    shift = bt_ref[...] - mean * scale
    o_ref[...] = jnp.maximum(acc * scale + shift, 0.0).astype(o_ref.dtype)


def conv_bn_relu(patches, w2d, gamma, beta, m_valid, *, eps=1e-5):
    Mp, Kp = patches.shape
    Cp = w2d.shape[1]                                   # 128
    flops = 2 * Mp * Kp * Cp + 10 * Mp * Cp
    bytes_accessed = Mp * Kp * 2 + Kp * Cp * 2 + 2 * Cp * 4 + Mp * Cp * 2
    return pl.pallas_call(
        functools.partial(conv_bn_relu_kernel, m_valid=m_valid, eps=eps),
        out_shape=jax.ShapeDtypeStruct((Mp, Cp), jnp.bfloat16),
        grid=(1,),
        in_specs=[pl.BlockSpec((Mp, Kp), lambda i: (0, 0)),
                  pl.BlockSpec((Kp, Cp), lambda i: (0, 0)),
                  pl.BlockSpec((1, Cp), lambda i: (0, 0)),
                  pl.BlockSpec((1, Cp), lambda i: (0, 0))],
        out_specs=pl.BlockSpec((Mp, Cp), lambda i: (0, 0)),
        compiler_params=pltpu.CompilerParams(
            dimension_semantics=("arbitrary",),
            vmem_limit_bytes=32 * 1024 * 1024),
        cost_estimate=pl.CostEstimate(flops=flops, transcendentals=Cp,
                                      bytes_accessed=bytes_accessed),
    )(patches, w2d, gamma, beta)


# -------- kernel 2: fused fc1 + ReLU + fc3 + lane-masked softmax --------
def fc_head_kernel(x_ref, w1_ref, b1_ref, w2_ref, b2_ref, o_ref, *, n_classes):
    h = jnp.dot(x_ref[...], w1_ref[...], preferred_element_type=jnp.float32) + b1_ref[...]
    h = jnp.maximum(h, 0.0).astype(w2_ref.dtype)
    logits = jnp.dot(h, w2_ref[...], preferred_element_type=jnp.float32) + b2_ref[...]
    col = jax.lax.broadcasted_iota(jnp.int32, logits.shape, 1)
    logits = jnp.where(col < n_classes, logits, -jnp.inf)   # mask lane padding
    m = jnp.max(logits, axis=-1, keepdims=True)
    e = jnp.exp(logits - m)
    o_ref[...] = e / jnp.sum(e, axis=-1, keepdims=True)


def fc_head(x, w1, b1, w2, b2, *, n_classes):
    Np, K = x.shape
    Hp = w1.shape[1]                                    # 128
    Cp = w2.shape[1]                                    # 128
    flops = 2 * Np * K * Hp + 2 * Np * Hp * Cp
    bytes_accessed = Np * K * 2 + K * Hp * 2 + Hp * Cp * 2 + 2 * Cp * 4 + Np * Cp * 4
    return pl.pallas_call(
        functools.partial(fc_head_kernel, n_classes=n_classes),
        out_shape=jax.ShapeDtypeStruct((Np, Cp), jnp.float32),
        grid=(1,),
        in_specs=[pl.BlockSpec((Np, K), lambda i: (0, 0)),
                  pl.BlockSpec((K, Hp), lambda i: (0, 0)),
                  pl.BlockSpec((1, Hp), lambda i: (0, 0)),
                  pl.BlockSpec((Hp, Cp), lambda i: (0, 0)),
                  pl.BlockSpec((1, Cp), lambda i: (0, 0))],
        out_specs=pl.BlockSpec((Np, Cp), lambda i: (0, 0)),
        compiler_params=pltpu.CompilerParams(dimension_semantics=("arbitrary",)),
        cost_estimate=pl.CostEstimate(flops=flops, transcendentals=Np * Cp,
                                      bytes_accessed=bytes_accessed),
    )(x, w1, b1, w2, b2)


# -------- XLA glue: NHWC im2col (tap-major / channel-minor K) --------
def im2col_nhwc(x, kh, kw, stride, pad):
    N, H, W, C = x.shape
    Ho, Wo = _conv_out_hw(H, W, kh, stride, pad)
    xp = jnp.pad(x, ((0, 0), (pad, pad), (pad, pad), (0, 0)))
    cols = [xp[:, di:di + stride * Ho:stride, dj:dj + stride * Wo:stride, :]
            for di in range(kh) for dj in range(kw)]
    patches = jnp.concatenate(cols, axis=-1)            # K index = (di*kw+dj)*C + c
    return patches.reshape(N * Ho * Wo, kh * kw * C), Ho, Wo


def _conv_layer(x_nhwc, w2d, gamma, beta, *, c_out, kh, kw, stride, pad):
    N = x_nhwc.shape[0]
    patches, Ho, Wo = im2col_nhwc(x_nhwc, kh, kw, stride, pad)
    M, K = patches.shape
    Mp, Kp = _round_up(M, 8), _round_up(K, LANES)
    patches = _pad2d(patches, Mp, Kp)
    y = conv_bn_relu(patches, w2d, gamma, beta, M)
    # slice back to REAL rows/channels so the next layer's im2col K stays small
    return y[:M, :c_out].reshape(N, Ho, Wo, c_out), Ho, Wo


# -------- one-time parameter preparation (hoisted out of the jitted forward) --------
def prepare_params(p, *, input_hw, dtype=jnp.bfloat16):
    """Conv weights -> (Kp,128) tap-major/channel-minor bf16; BN params -> (1,128) f32
    rows; fc1 columns permuted to match the NHWC flatten; conv biases dropped because
    training-mode BatchNorm on batch statistics cancels them exactly."""
    def conv_w(w):
        c_out, c_in, kh, kw = w.shape
        k = kh * kw * c_in
        w2d = jnp.transpose(w, (2, 3, 1, 0)).reshape(k, c_out)
        return _pad2d(w2d, _round_up(k, LANES), LANES).astype(dtype)

    h, w = input_hw
    h, w = _conv_out_hw(h, w, 5, 2, 1)
    h, w = _conv_out_hw(h, w, 3, 2, 1)
    h3, w3 = _conv_out_hw(h, w, 3, 3, 1)

    fc1_out, fc_in = p["fcw1"].shape                    # (64, 1024)
    c3 = p["w3"].shape[0]
    # torch flattens NCHW (c*H3*W3 + h*W3 + w); our flat rows are NHWC, so permute cols.
    fcw1 = p["fcw1"].reshape(fc1_out, c3, h3, w3).transpose(0, 2, 3, 1)
    fcw1 = fcw1.reshape(fc1_out, fc_in).T

    return {
        "w1": conv_w(p["w1"]), "g1": _pad_row(p["g1"]), "be1": _pad_row(p["be1"]),
        "w2": conv_w(p["w2"]), "g2": _pad_row(p["g2"]), "be2": _pad_row(p["be2"]),
        "w3": conv_w(p["w3"]), "g3": _pad_row(p["g3"]), "be3": _pad_row(p["be3"]),
        "fcw1": _pad2d(fcw1, _round_up(fc_in, LANES), LANES).astype(dtype),
        "fcb1": _pad_row(p["fcb1"]),
        "fcw3": _pad2d(p["fcw3"].T, LANES, LANES).astype(dtype),
        "fcb3": _pad_row(p["fcb3"]),
    }


def nn_forward(x_nchw, prep):
    # Architecture constants of the torch module (Conv2d(6,16,5,2,1) / (16,32,3,2,1)
    # / (32,32,3,3,1), Linear(1024,64), Linear(64,2)).
    N = x_nchw.shape[0]
    x = jnp.transpose(x_nchw, (0, 2, 3, 1)).astype(jnp.bfloat16)   # NCHW->NHWC once

    a1, _, _ = _conv_layer(x, prep["w1"], prep["g1"], prep["be1"],
                           c_out=16, kh=5, kw=5, stride=2, pad=1)
    a2, _, _ = _conv_layer(a1, prep["w2"], prep["g2"], prep["be2"],
                           c_out=32, kh=3, kw=3, stride=2, pad=1)
    a3, H3, W3 = _conv_layer(a2, prep["w3"], prep["g3"], prep["be3"],
                             c_out=32, kh=3, kw=3, stride=3, pad=1)

    flat = a3.reshape(N, H3 * W3 * 32)                  # NHWC flatten (fcw1 pre-permuted)
    Np = _round_up(N, 8)
    Kf = prep["fcw1"].shape[0]
    flat = _pad2d(flat, Np, Kf)

    out = fc_head(flat, prep["fcw1"], prep["fcb1"], prep["fcw3"], prep["fcb3"],
                  n_classes=2)
    return out[:N, :2]


if __name__ == "__main__":
    key = jax.random.PRNGKey(0)
    ks = jax.random.split(key, 12)

    def init(k, shape, fan_in):
        return jax.random.normal(k, shape, jnp.float32) / jnp.sqrt(float(fan_in))

    params = {
        "w1": init(ks[0], (16, 6, 5, 5), 6 * 25),
        "b1": init(ks[1], (16,), 6 * 25),
        "g1": jnp.ones((16,), jnp.float32), "be1": jnp.zeros((16,), jnp.float32),
        "w2": init(ks[2], (32, 16, 3, 3), 16 * 9),
        "b2": init(ks[3], (32,), 16 * 9),
        "g2": jnp.ones((32,), jnp.float32), "be2": jnp.zeros((32,), jnp.float32),
        "w3": init(ks[4], (32, 32, 3, 3), 32 * 9),
        "b3": init(ks[5], (32,), 32 * 9),
        "g3": jnp.ones((32,), jnp.float32), "be3": jnp.zeros((32,), jnp.float32),
        "fcw1": init(ks[6], (64, 1024), 1024),
        "fcb1": init(ks[7], (64,), 1024),
        "fcw3": init(ks[8], (2, 64), 64),
        "fcb3": init(ks[9], (2,), 64),
    }

    # Input: NCHW, 6 channels. Spatial (96, 48) so that after the three strided convs
    # the flattened features are 32*8*4 = 1024, matching nn.Linear(1024, 64).
    x = jax.random.normal(ks[10], (2, 6, 96, 48), jnp.float32)

    # One-time parameter prep (outside the jitted forward).
    prep = jax.tree_util.tree_map(jax.block_until_ready,
                                  prepare_params(params, input_hw=(96, 48)))

    fwd = jax.jit(nn_forward)
    out = jax.block_until_ready(fwd(x, prep))
    assert out.shape == (2, 2)
    assert bool(jnp.all(jnp.isfinite(out)))
    assert bool(jnp.allclose(jnp.sum(out, axis=1), 1.0, atol=1e-5))
    print("KERNEL_OK")
</pallas_src>

<mosaic_0001>
module attributes {stable_mosaic.version = 11 : i64} {
  func.func @conv_bn_relu_kernel(%arg0: i32, %arg1: memref<2168x256xbf16, #tpu.memory_space<vmem>>, %arg2: memref<256x128xbf16, #tpu.memory_space<vmem>>, %arg3: memref<1x128xf32, #tpu.memory_space<vmem>>, %arg4: memref<1x128xf32, #tpu.memory_space<vmem>>, %arg5: memref<2168x128xbf16, #tpu.memory_space<vmem>>) attributes {dimension_semantics = [#tpu.dimension_semantics<arbitrary>], iteration_bounds = array<i64: 1>, scalar_prefetch = 0 : i64, scratch_operands = 0 : i64, tpu.core_type = #tpu.core_type<tc>, window_params = [{pipeline_mode = #tpu.pipeline_mode<synchronous>, transform_indices = @transform_0, window_bounds = array<i64: 2168, 256>}, {pipeline_mode = #tpu.pipeline_mode<synchronous>, transform_indices = @transform_1, window_bounds = array<i64: 256, 128>}, {pipeline_mode = #tpu.pipeline_mode<synchronous>, transform_indices = @transform_2, window_bounds = array<i64: 1, 128>}, {pipeline_mode = #tpu.pipeline_mode<synchronous>, transform_indices = @transform_3, window_bounds = array<i64: 1, 128>}, {pipeline_mode = #tpu.pipeline_mode<synchronous>, transform_indices = @transform_4, window_bounds = array<i64: 2168, 128>}]} {
    %c0 = arith.constant 0 : index
    %c0_0 = arith.constant 0 : index
    %0 = vector.load %arg1[%c0, %c0_0] : memref<2168x256xbf16, #tpu.memory_space<vmem>>, vector<2168x256xbf16>
    %c0_1 = arith.constant 0 : index
    %c0_2 = arith.constant 0 : index
    %1 = vector.load %arg2[%c0_1, %c0_2] : memref<256x128xbf16, #tpu.memory_space<vmem>>, vector<256x128xbf16>
    %cst = arith.constant dense<0.000000e+00> : vector<2168x128xf32>
    %2 = tpu.matmul %0, %1, %cst {dimension_numbers = #tpu.dot_dimension_numbers<[1], [0], [0], [1], [0, 0, 1, 1], [], []>} : vector<2168x256xbf16>, vector<256x128xbf16>, vector<2168x128xf32> -> vector<2168x128xf32>
    %3 = tpu.iota {dimensions = array<i32: 0>} : vector<2168x128xi32>
    %c2162_i32 = arith.constant 2162 : i32
    %4 = vector.broadcast %c2162_i32 : i32 to vector<2168x128xi32>
    %5 = arith.cmpi slt, %3, %4 : vector<2168x128xi32>
    %cst_3 = arith.constant 0.000000e+00 : f32
    %6 = vector.broadcast %cst_3 : f32 to vector<2168x128xf32>
    %7 = arith.select %5, %2, %6 : vector<2168x128xi1>, vector<2168x128xf32>
    %cst_4 = arith.constant dense<0.000000e+00> : vector<128xf32>
    %8 = vector.multi_reduction <add>, %7, %cst_4 [0] : vector<2168x128xf32> to vector<128xf32>
    %9 = vector.shape_cast %8 : vector<128xf32> to vector<1x128xf32>
    %cst_5 = arith.constant 4.62534692E-4 : f32
    %10 = vector.broadcast %cst_5 : f32 to vector<1x128xf32>
    %11 = arith.mulf %9, %10 : vector<1x128xf32>
    %12 = arith.mulf %7, %7 : vector<2168x128xf32>
    %cst_6 = arith.constant dense<0.000000e+00> : vector<128xf32>
    %13 = vector.multi_reduction <add>, %12, %cst_6 [0] : vector<2168x128xf32> to vector<128xf32>
    %14 = vector.shape_cast %13 : vector<128xf32> to vector<1x128xf32>
    %cst_7 = arith.constant 4.62534692E-4 : f32
    %15 = vector.broadcast %cst_7 : f32 to vector<1x128xf32>
    %16 = arith.mulf %14, %15 : vector<1x128xf32>
    %17 = arith.mulf %11, %11 : vector<1x128xf32>
    %18 = arith.subf %16, %17 : vector<1x128xf32>
    %cst_8 = arith.constant 0.000000e+00 : f32
    %19 = vector.broadcast %cst_8 : f32 to vector<1x128xf32>
    %20 = arith.maximumf %18, %19 : vector<1x128xf32>
    %c0_9 = arith.constant 0 : index
    %c0_10 = arith.constant 0 : index
    %21 = vector.load %arg3[%c0_9, %c0_10] : memref<1x128xf32, #tpu.memory_space<vmem>>, vector<1x128xf32>
    %cst_11 = arith.constant 9.99999974E-6 : f32
    %22 = vector.broadcast %cst_11 : f32 to vector<1x128xf32>
    %23 = arith.addf %20, %22 : vector<1x128xf32>
    %24 = math.rsqrt %23 : vector<1x128xf32>
    %25 = arith.mulf %21, %24 : vector<1x128xf32>
    %c0_12 = arith.constant 0 : index
    %c0_13 = arith.constant 0 : index
    %26 = vector.load %arg4[%c0_12, %c0_13] : memref<1x128xf32, #tpu.memory_space<vmem>>, vector<1x128xf32>
    %27 = arith.mulf %11, %25 : vector<1x128xf32>
    %28 = arith.subf %26, %27 : vector<1x128xf32>
    %29 = vector.broadcast %25 : vector<1x128xf32> to vector<2168x128xf32>
    %30 = arith.mulf %2, %29 : vector<2168x128xf32>
    %31 = vector.broadcast %28 : vector<1x128xf32> to vector<2168x128xf32>
    %32 = arith.addf %30, %31 : vector<2168x128xf32>
    %cst_14 = arith.constant 0.000000e+00 : f32
    %33 = vector.broadcast %cst_14 : f32 to vector<2168x128xf32>
    %34 = arith.maximumf %32, %33 : vector<2168x128xf32>
    %35 = arith.truncf %34 : vector<2168x128xf32> to vector<2168x128xbf16>
    %c0_15 = arith.constant 0 : index
    %c0_16 = arith.constant 0 : index
    %36 = vector.load %arg5[%c0_15, %c0_16] : memref<2168x128xbf16, #tpu.memory_space<vmem>>, vector<2168x128xbf16>
    tpu.vector_store %arg5[%c0_15, %c0_16], %35 {strides = array<i32>} : memref<2168x128xbf16, #tpu.memory_space<vmem>>, vector<2168x128xbf16>,
    return
  }
  func.func @transform_0(%arg0: i32) -> (i32, i32) {
    %c0_i32 = arith.constant 0 : i32
    %c0_i32_0 = arith.constant 0 : i32
    %c0_i32_1 = arith.constant 0 : i32
    return %c0_i32, %c0_i32_0 : i32, i32
  }
  func.func @transform_1(%arg0: i32) -> (i32, i32) {
    %c0_i32 = arith.constant 0 : i32
    %c0_i32_0 = arith.constant 0 : i32
    %c0_i32_1 = arith.constant 0 : i32
    return %c0_i32, %c0_i32_0 : i32, i32
  }
  func.func @transform_2(%arg0: i32) -> (i32, i32) {
    %c0_i32 = arith.constant 0 : i32
    %c0_i32_0 = arith.constant 0 : i32
    %c0_i32_1 = arith.constant 0 : i32
    return %c0_i32, %c0_i32_0 : i32, i32
  }
  func.func @transform_3(%arg0: i32) -> (i32, i32) {
    %c0_i32 = arith.constant 0 : i32
    %c0_i32_0 = arith.constant 0 : i32
    %c0_i32_1 = arith.constant 0 : i32
    return %c0_i32, %c0_i32_0 : i32, i32
  }
  func.func @transform_4(%arg0: i32) -> (i32, i32) {
    %c0_i32 = arith.constant 0 : i32
    %c0_i32_0 = arith.constant 0 : i32
    %c0_i32_1 = arith.constant 0 : i32
    return %c0_i32, %c0_i32_0 : i32, i32
  }
}

module attributes {stable_mosaic.version = 11 : i64} {
  func.func @conv_bn_relu_kernel(%arg0: i32, %arg1: memref<576x256xbf16, #tpu.memory_space<vmem>>, %arg2: memref<256x128xbf16, #tpu.memory_space<vmem>>, %arg3: memref<1x128xf32, #tpu.memory_space<vmem>>, %arg4: memref<1x128xf32, #tpu.memory_space<vmem>>, %arg5: memref<576x128xbf16, #tpu.memory_space<vmem>>) attributes {dimension_semantics = [#tpu.dimension_semantics<arbitrary>], iteration_bounds = array<i64: 1>, scalar_prefetch = 0 : i64, scratch_operands = 0 : i64, tpu.core_type = #tpu.core_type<tc>, window_params = [{pipeline_mode = #tpu.pipeline_mode<synchronous>, transform_indices = @transform_0, window_bounds = array<i64: 576, 256>}, {pipeline_mode = #tpu.pipeline_mode<synchronous>, transform_indices = @transform_1, window_bounds = array<i64: 256, 128>}, {pipeline_mode = #tpu.pipeline_mode<synchronous>, transform_indices = @transform_2, window_bounds = array<i64: 1, 128>}, {pipeline_mode = #tpu.pipeline_mode<synchronous>, transform_indices = @transform_3, window_bounds = array<i64: 1, 128>}, {pipeline_mode = #tpu.pipeline_mode<synchronous>, transform_indices = @transform_4, window_bounds = array<i64: 576, 128>}]} {
    %c0 = arith.constant 0 : index
    %c0_0 = arith.constant 0 : index
    %0 = vector.load %arg1[%c0, %c0_0] : memref<576x256xbf16, #tpu.memory_space<vmem>>, vector<576x256xbf16>
    %c0_1 = arith.constant 0 : index
    %c0_2 = arith.constant 0 : index
    %1 = vector.load %arg2[%c0_1, %c0_2] : memref<256x128xbf16, #tpu.memory_space<vmem>>, vector<256x128xbf16>
    %cst = arith.constant dense<0.000000e+00> : vector<576x128xf32>
    %2 = tpu.matmul %0, %1, %cst {dimension_numbers = #tpu.dot_dimension_numbers<[1], [0], [0], [1], [0, 0, 1, 1], [], []>} : vector<576x256xbf16>, vector<256x128xbf16>, vector<576x128xf32> -> vector<576x128xf32>
    %3 = tpu.iota {dimensions = array<i32: 0>} : vector<576x128xi32>
    %c576_i32 = arith.constant 576 : i32
    %4 = vector.broadcast %c576_i32 : i32 to vector<576x128xi32>
    %5 = arith.cmpi slt, %3, %4 : vector<576x128xi32>
    %cst_3 = arith.constant 0.000000e+00 : f32
    %6 = vector.broadcast %cst_3 : f32 to vector<576x128xf32>
    %7 = arith.select %5, %2, %6 : vector<576x128xi1>, vector<576x128xf32>
    %cst_4 = arith.constant dense<0.000000e+00> : vector<128xf32>
    %8 = vector.multi_reduction <add>, %7, %cst_4 [0] : vector<576x128xf32> to vector<128xf32>
    %9 = vector.shape_cast %8 : vector<128xf32> to vector<1x128xf32>
    %cst_5 = arith.constant 0.00173611112 : f32
    %10 = vector.broadcast %cst_5 : f32 to vector<1x128xf32>
    %11 = arith.mulf %9, %10 : vector<1x128xf32>
    %12 = arith.mulf %7, %7 : vector<576x128xf32>
    %cst_6 = arith.constant dense<0.000000e+00> : vector<128xf32>
    %13 = vector.multi_reduction <add>, %12, %cst_6 [0] : vector<576x128xf32> to vector<128xf32>
    %14 = vector.shape_cast %13 : vector<128xf32> to vector<1x128xf32>
    %cst_7 = arith.constant 0.00173611112 : f32
    %15 = vector.broadcast %cst_7 : f32 to vector<1x128xf32>
    %16 = arith.mulf %14, %15 : vector<1x128xf32>
    %17 = arith.mulf %11, %11 : vector<1x128xf32>
    %18 = arith.subf %16, %17 : vector<1x128xf32>
    %cst_8 = arith.constant 0.000000e+00 : f32
    %19 = vector.broadcast %cst_8 : f32 to vector<1x128xf32>
    %20 = arith.maximumf %18, %19 : vector<1x128xf32>
    %c0_9 = arith.constant 0 : index
    %c0_10 = arith.constant 0 : index
    %21 = vector.load %arg3[%c0_9, %c0_10] : memref<1x128xf32, #tpu.memory_space<vmem>>, vector<1x128xf32>
    %cst_11 = arith.constant 9.99999974E-6 : f32
    %22 = vector.broadcast %cst_11 : f32 to vector<1x128xf32>
    %23 = arith.addf %20, %22 : vector<1x128xf32>
    %24 = math.rsqrt %23 : vector<1x128xf32>
    %25 = arith.mulf %21, %24 : vector<1x128xf32>
    %c0_12 = arith.constant 0 : index
    %c0_13 = arith.constant 0 : index
    %26 = vector.load %arg4[%c0_12, %c0_13] : memref<1x128xf32, #tpu.memory_space<vmem>>, vector<1x128xf32>
    %27 = arith.mulf %11, %25 : vector<1x128xf32>
    %28 = arith.subf %26, %27 : vector<1x128xf32>
    %29 = vector.broadcast %25 : vector<1x128xf32> to vector<576x128xf32>
    %30 = arith.mulf %2, %29 : vector<576x128xf32>
    %31 = vector.broadcast %28 : vector<1x128xf32> to vector<576x128xf32>
    %32 = arith.addf %30, %31 : vector<576x128xf32>
    %cst_14 = arith.constant 0.000000e+00 : f32
    %33 = vector.broadcast %cst_14 : f32 to vector<576x128xf32>
    %34 = arith.maximumf %32, %33 : vector<576x128xf32>
    %35 = arith.truncf %34 : vector<576x128xf32> to vector<576x128xbf16>
    %c0_15 = arith.constant 0 : index
    %c0_16 = arith.constant 0 : index
    %36 = vector.load %arg5[%c0_15, %c0_16] : memref<576x128xbf16, #tpu.memory_space<vmem>>, vector<576x128xbf16>
    tpu.vector_store %arg5[%c0_15, %c0_16], %35 {strides = array<i32>} : memref<576x128xbf16, #tpu.memory_space<vmem>>, vector<576x128xbf16>,
    return
  }
  func.func @transform_0(%arg0: i32) -> (i32, i32) {
    %c0_i32 = arith.constant 0 : i32
    %c0_i32_0 = arith.constant 0 : i32
    %c0_i32_1 = arith.constant 0 : i32
    return %c0_i32, %c0_i32_0 : i32, i32
  }
  func.func @transform_1(%arg0: i32) -> (i32, i32) {
    %c0_i32 = arith.constant 0 : i32
    %c0_i32_0 = arith.constant 0 : i32
    %c0_i32_1 = arith.constant 0 : i32
    return %c0_i32, %c0_i32_0 : i32, i32
  }
  func.func @transform_2(%arg0: i32) -> (i32, i32) {
    %c0_i32 = arith.constant 0 : i32
    %c0_i32_0 = arith.constant 0 : i32
    %c0_i32_1 = arith.constant 0 : i32
    return %c0_i32, %c0_i32_0 : i32, i32
  }
  func.func @transform_3(%arg0: i32) -> (i32, i32) {
    %c0_i32 = arith.constant 0 : i32
    %c0_i32_0 = arith.constant 0 : i32
    %c0_i32_1 = arith.constant 0 : i32
    return %c0_i32, %c0_i32_0 : i32, i32
  }
  func.func @transform_4(%arg0: i32) -> (i32, i32) {
    %c0_i32 = arith.constant 0 : i32
    %c0_i32_0 = arith.constant 0 : i32
    %c0_i32_1 = arith.constant 0 : i32
    return %c0_i32, %c0_i32_0 : i32, i32
  }
}

module attributes {stable_mosaic.version = 11 : i64} {
  func.func @conv_bn_relu_kernel(%arg0: i32, %arg1: memref<64x384xbf16, #tpu.memory_space<vmem>>, %arg2: memref<384x128xbf16, #tpu.memory_space<vmem>>, %arg3: memref<1x128xf32, #tpu.memory_space<vmem>>, %arg4: memref<1x128xf32, #tpu.memory_space<vmem>>, %arg5: memref<64x128xbf16, #tpu.memory_space<vmem>>) attributes {dimension_semantics = [#tpu.dimension_semantics<arbitrary>], iteration_bounds = array<i64: 1>, scalar_prefetch = 0 : i64, scratch_operands = 0 : i64, tpu.core_type = #tpu.core_type<tc>, window_params = [{pipeline_mode = #tpu.pipeline_mode<synchronous>, transform_indices = @transform_0, window_bounds = array<i64: 64, 384>}, {pipeline_mode = #tpu.pipeline_mode<synchronous>, transform_indices = @transform_1, window_bounds = array<i64: 384, 128>}, {pipeline_mode = #tpu.pipeline_mode<synchronous>, transform_indices = @transform_2, window_bounds = array<i64: 1, 128>}, {pipeline_mode = #tpu.pipeline_mode<synchronous>, transform_indices = @transform_3, window_bounds = array<i64: 1, 128>}, {pipeline_mode = #tpu.pipeline_mode<synchronous>, transform_indices = @transform_4, window_bounds = array<i64: 64, 128>}]} {
    %c0 = arith.constant 0 : index
    %c0_0 = arith.constant 0 : index
    %0 = vector.load %arg1[%c0, %c0_0] : memref<64x384xbf16, #tpu.memory_space<vmem>>, vector<64x384xbf16>
    %c0_1 = arith.constant 0 : index
    %c0_2 = arith.constant 0 : index
    %1 = vector.load %arg2[%c0_1, %c0_2] : memref<384x128xbf16, #tpu.memory_space<vmem>>, vector<384x128xbf16>
    %cst = arith.constant dense<0.000000e+00> : vector<64x128xf32>
    %2 = tpu.matmul %0, %1, %cst {dimension_numbers = #tpu.dot_dimension_numbers<[1], [0], [0], [1], [0, 0, 1, 1], [], []>} : vector<64x384xbf16>, vector<384x128xbf16>, vector<64x128xf32> -> vector<64x128xf32>
    %3 = tpu.iota {dimensions = array<i32: 0>} : vector<64x128xi32>
    %c64_i32 = arith.constant 64 : i32
    %4 = vector.broadcast %c64_i32 : i32 to vector<64x128xi32>
    %5 = arith.cmpi slt, %3, %4 : vector<64x128xi32>
    %cst_3 = arith.constant 0.000000e+00 : f32
    %6 = vector.broadcast %cst_3 : f32 to vector<64x128xf32>
    %7 = arith.select %5, %2, %6 : vector<64x128xi1>, vector<64x128xf32>
    %cst_4 = arith.constant dense<0.000000e+00> : vector<128xf32>
    %8 = vector.multi_reduction <add>, %7, %cst_4 [0] : vector<64x128xf32> to vector<128xf32>
    %9 = vector.shape_cast %8 : vector<128xf32> to vector<1x128xf32>
    %cst_5 = arith.constant 1.562500e-02 : f32
    %10 = vector.broadcast %cst_5 : f32 to vector<1x128xf32>
    %11 = arith.mulf %9, %10 : vector<1x128xf32>
    %12 = arith.mulf %7, %7 : vector<64x128xf32>
    %cst_6 = arith.constant dense<0.000000e+00> : vector<128xf32>
    %13 = vector.multi_reduction <add>, %12, %cst_6 [0] : vector<64x128xf32> to vector<128xf32>
    %14 = vector.shape_cast %13 : vector<128xf32> to vector<1x128xf32>
    %cst_7 = arith.constant 1.562500e-02 : f32
    %15 = vector.broadcast %cst_7 : f32 to vector<1x128xf32>
    %16 = arith.mulf %14, %15 : vector<1x128xf32>
    %17 = arith.mulf %11, %11 : vector<1x128xf32>
    %18 = arith.subf %16, %17 : vector<1x128xf32>
    %cst_8 = arith.constant 0.000000e+00 : f32
    %19 = vector.broadcast %cst_8 : f32 to vector<1x128xf32>
    %20 = arith.maximumf %18, %19 : vector<1x128xf32>
    %c0_9 = arith.constant 0 : index
    %c0_10 = arith.constant 0 : index
    %21 = vector.load %arg3[%c0_9, %c0_10] : memref<1x128xf32, #tpu.memory_space<vmem>>, vector<1x128xf32>
    %cst_11 = arith.constant 9.99999974E-6 : f32
    %22 = vector.broadcast %cst_11 : f32 to vector<1x128xf32>
    %23 = arith.addf %20, %22 : vector<1x128xf32>
    %24 = math.rsqrt %23 : vector<1x128xf32>
    %25 = arith.mulf %21, %24 : vector<1x128xf32>
    %c0_12 = arith.constant 0 : index
    %c0_13 = arith.constant 0 : index
    %26 = vector.load %arg4[%c0_12, %c0_13] : memref<1x128xf32, #tpu.memory_space<vmem>>, vector<1x128xf32>
    %27 = arith.mulf %11, %25 : vector<1x128xf32>
    %28 = arith.subf %26, %27 : vector<1x128xf32>
    %29 = vector.broadcast %25 : vector<1x128xf32> to vector<64x128xf32>
    %30 = arith.mulf %2, %29 : vector<64x128xf32>
    %31 = vector.broadcast %28 : vector<1x128xf32> to vector<64x128xf32>
    %32 = arith.addf %30, %31 : vector<64x128xf32>
    %cst_14 = arith.constant 0.000000e+00 : f32
    %33 = vector.broadcast %cst_14 : f32 to vector<64x128xf32>
    %34 = arith.maximumf %32, %33 : vector<64x128xf32>
    %35 = arith.truncf %34 : vector<64x128xf32> to vector<64x128xbf16>
    %c0_15 = arith.constant 0 : index
    %c0_16 = arith.constant 0 : index
    %36 = vector.load %arg5[%c0_15, %c0_16] : memref<64x128xbf16, #tpu.memory_space<vmem>>, vector<64x128xbf16>
    tpu.vector_store %arg5[%c0_15, %c0_16], %35 {strides = array<i32>} : memref<64x128xbf16, #tpu.memory_space<vmem>>, vector<64x128xbf16>,
    return
  }
  func.func @transform_0(%arg0: i32) -> (i32, i32) {
    %c0_i32 = arith.constant 0 : i32
    %c0_i32_0 = arith.constant 0 : i32
    %c0_i32_1 = arith.constant 0 : i32
    return %c0_i32, %c0_i32_0 : i32, i32
  }
  func.func @transform_1(%arg0: i32) -> (i32, i32) {
    %c0_i32 = arith.constant 0 : i32
    %c0_i32_0 = arith.constant 0 : i32
    %c0_i32_1 = arith.constant 0 : i32
    return %c0_i32, %c0_i32_0 : i32, i32
  }
  func.func @transform_2(%arg0: i32) -> (i32, i32) {
    %c0_i32 = arith.constant 0 : i32
    %c0_i32_0 = arith.constant 0 : i32
    %c0_i32_1 = arith.constant 0 : i32
    return %c0_i32, %c0_i32_0 : i32, i32
  }
  func.func @transform_3(%arg0: i32) -> (i32, i32) {
    %c0_i32 = arith.constant 0 : i32
    %c0_i32_0 = arith.constant 0 : i32
    %c0_i32_1 = arith.constant 0 : i32
    return %c0_i32, %c0_i32_0 : i32, i32
  }
  func.func @transform_4(%arg0: i32) -> (i32, i32) {
    %c0_i32 = arith.constant 0 : i32
    %c0_i32_0 = arith.constant 0 : i32
    %c0_i32_1 = arith.constant 0 : i32
    return %c0_i32, %c0_i32_0 : i32, i32
  }
}

module attributes {stable_mosaic.version = 11 : i64} {
  func.func @fc_head_kernel(%arg0: i32, %arg1: memref<8x1024xbf16, #tpu.memory_space<vmem>>, %arg2: memref<1024x128xbf16, #tpu.memory_space<vmem>>, %arg3: memref<1x128xf32, #tpu.memory_space<vmem>>, %arg4: memref<128x128xbf16, #tpu.memory_space<vmem>>, %arg5: memref<1x128xf32, #tpu.memory_space<vmem>>, %arg6: memref<8x128xf32, #tpu.memory_space<vmem>>) attributes {dimension_semantics = [#tpu.dimension_semantics<arbitrary>], iteration_bounds = array<i64: 1>, scalar_prefetch = 0 : i64, scratch_operands = 0 : i64, tpu.core_type = #tpu.core_type<tc>, window_params = [{pipeline_mode = #tpu.pipeline_mode<synchronous>, transform_indices = @transform_0, window_bounds = array<i64: 8, 1024>}, {pipeline_mode = #tpu.pipeline_mode<synchronous>, transform_indices = @transform_1, window_bounds = array<i64: 1024, 128>}, {pipeline_mode = #tpu.pipeline_mode<synchronous>, transform_indices = @transform_2, window_bounds = array<i64: 1, 128>}, {pipeline_mode = #tpu.pipeline_mode<synchronous>, transform_indices = @transform_3, window_bounds = array<i64: 128, 128>}, {pipeline_mode = #tpu.pipeline_mode<synchronous>, transform_indices = @transform_4, window_bounds = array<i64: 1, 128>}, {pipeline_mode = #tpu.pipeline_mode<synchronous>, transform_indices = @transform_5, window_bounds = array<i64: 8, 128>}]} {
    %c0 = arith.constant 0 : index
    %c0_0 = arith.constant 0 : index
    %0 = vector.load %arg1[%c0, %c0_0] : memref<8x1024xbf16, #tpu.memory_space<vmem>>, vector<8x1024xbf16>
    %c0_1 = arith.constant 0 : index
    %c0_2 = arith.constant 0 : index
    %1 = vector.load %arg2[%c0_1, %c0_2] : memref<1024x128xbf16, #tpu.memory_space<vmem>>, vector<1024x128xbf16>
    %cst = arith.constant dense<0.000000e+00> : vector<8x128xf32>
    %2 = tpu.matmul %0, %1, %cst {dimension_numbers = #tpu.dot_dimension_numbers<[1], [0], [0], [1], [0, 0, 1, 1], [], []>} : vector<8x1024xbf16>, vector<1024x128xbf16>, vector<8x128xf32> -> vector<8x128xf32>
    %c0_3 = arith.constant 0 : index
    %c0_4 = arith.constant 0 : index
    %3 = vector.load %arg3[%c0_3, %c0_4] : memref<1x128xf32, #tpu.memory_space<vmem>>, vector<1x128xf32>
    %4 = vector.broadcast %3 : vector<1x128xf32> to vector<8x128xf32>
    %5 = arith.addf %2, %4 : vector<8x128xf32>
    %cst_5 = arith.constant 0.000000e+00 : f32
    %6 = vector.broadcast %cst_5 : f32 to vector<8x128xf32>
    %7 = arith.maximumf %5, %6 : vector<8x128xf32>
    %8 = arith.truncf %7 : vector<8x128xf32> to vector<8x128xbf16>
    %c0_6 = arith.constant 0 : index
    %c0_7 = arith.constant 0 : index
    %9 = vector.load %arg4[%c0_6, %c0_7] : memref<128x128xbf16, #tpu.memory_space<vmem>>, vector<128x128xbf16>
    %cst_8 = arith.constant dense<0.000000e+00> : vector<8x128xf32>
    %10 = tpu.matmul %8, %9, %cst_8 {dimension_numbers = #tpu.dot_dimension_numbers<[1], [0], [0], [1], [0, 0, 1, 1], [], []>} : vector<8x128xbf16>, vector<128x128xbf16>, vector<8x128xf32> -> vector<8x128xf32>
    %c0_9 = arith.constant 0 : index
    %c0_10 = arith.constant 0 : index
    %11 = vector.load %arg5[%c0_9, %c0_10] : memref<1x128xf32, #tpu.memory_space<vmem>>, vector<1x128xf32>
    %12 = vector.broadcast %11 : vector<1x128xf32> to vector<8x128xf32>
    %13 = arith.addf %10, %12 : vector<8x128xf32>
    %14 = tpu.iota {dimensions = array<i32: 1>} : vector<8x128xi32>
    %c2_i32 = arith.constant 2 : i32
    %15 = vector.broadcast %c2_i32 : i32 to vector<8x128xi32>
    %16 = arith.cmpi slt, %14, %15 : vector<8x128xi32>
    %cst_11 = arith.constant 0xFF800000 : f32
    %17 = vector.broadcast %cst_11 : f32 to vector<8x128xf32>
    %18 = arith.select %16, %13, %17 : vector<8x128xi1>, vector<8x128xf32>
    %cst_12 = arith.constant dense<0xFF800000> : vector<8xf32>
    %19 = vector.multi_reduction <maximumf>, %18, %cst_12 [1] : vector<8x128xf32> to vector<8xf32>
    %20 = vector.shape_cast %19 : vector<8xf32> to vector<8x1xf32>
    %21 = vector.broadcast %20 : vector<8x1xf32> to vector<8x128xf32>
    %22 = arith.subf %18, %21 : vector<8x128xf32>
    %23 = math.exp %22 : vector<8x128xf32>
    %cst_13 = arith.constant dense<0.000000e+00> : vector<8xf32>
    %24 = vector.multi_reduction <add>, %23, %cst_13 [1] : vector<8x128xf32> to vector<8xf32>
    %25 = vector.shape_cast %24 : vector<8xf32> to vector<8x1xf32>
    %26 = vector.broadcast %25 : vector<8x1xf32> to vector<8x128xf32>
    %27 = arith.divf %23, %26 : vector<8x128xf32>
    %c0_14 = arith.constant 0 : index
    %c0_15 = arith.constant 0 : index
    %28 = vector.load %arg6[%c0_14, %c0_15] : memref<8x128xf32, #tpu.memory_space<vmem>>, vector<8x128xf32>
    tpu.vector_store %arg6[%c0_14, %c0_15], %27 {strides = array<i32>} : memref<8x128xf32, #tpu.memory_space<vmem>>, vector<8x128xf32>,
    return
  }
  func.func @transform_0(%arg0: i32) -> (i32, i32) {
    %c0_i32 = arith.constant 0 : i32
    %c0_i32_0 = arith.constant 0 : i32
    %c0_i32_1 = arith.constant 0 : i32
    return %c0_i32, %c0_i32_0 : i32, i32
  }
  func.func @transform_1(%arg0: i32) -> (i32, i32) {
    %c0_i32 = arith.constant 0 : i32
    %c0_i32_0 = arith.constant 0 : i32
    %c0_i32_1 = arith.constant 0 : i32
    return %c0_i32, %c0_i32_0 : i32, i32
  }
  func.func @transform_2(%arg0: i32) -> (i32, i32) {
    %c0_i32 = arith.constant 0 : i32
    %c0_i32_0 = arith.constant 0 : i32
    %c0_i32_1 = arith.constant 0 : i32
    return %c0_i32, %c0_i32_0 : i32, i32
  }
  func.func @transform_3(%arg0: i32) -> (i32, i32) {
    %c0_i32 = arith.constant 0 : i32
    %c0_i32_0 = arith.constant 0 : i32
    %c0_i32_1 = arith.constant 0 : i32
    return %c0_i32, %c0_i32_0 : i32, i32
  }
  func.func @transform_4(%arg0: i32) -> (i32, i32) {
    %c0_i32 = arith.constant 0 : i32
    %c0_i32_0 = arith.constant 0 : i32
    %c0_i32_1 = arith.constant 0 : i32
    return %c0_i32, %c0_i32_0 : i32, i32
  }
  func.func @transform_5(%arg0: i32) -> (i32, i32) {
    %c0_i32 = arith.constant 0 : i32
    %c0_i32_0 = arith.constant 0 : i32
    %c0_i32_1 = arith.constant 0 : i32
    return %c0_i32, %c0_i32_0 : i32, i32
  }
}

</mosaic_0001>

<llo_original>
// kernel: nn_forward.4
$region0: #{nn_forward.4}
  #allocation0 [shape = 'u32[]', space=smem, size = 0x4, offset = 0x4, fixed_abs, tag = 'smem constant byte address 0x4 - core index']
  #allocation1 [shape = 'u32[144,128]{1,0:T(1,128)}', space=vmem, size = 0x12000, scoped, tag = 'internal scratch']
  %s0 = inlined_call_operand.vmem [shape: bf16[2168,256], index: 0, kind: input, shape index: {}]
  %s1 = inlined_call_operand.vmem [shape: bf16[256,128], index: 1, kind: input, shape index: {}]
  %s2 = inlined_call_operand.vmem [shape: f32[1,128], index: 2, kind: input, shape index: {}]
  %s3 = inlined_call_operand.vmem [shape: f32[1,128], index: 3, kind: input, shape index: {}]
  %s4 = inlined_call_operand.vmem [shape: bf16[2168,128], index: 4, kind: output, shape index: {}]
  %s5 = sld [smem:[#allocation0]]
  $region26: #{nn_forward.4} parent=0
    _
  %s7 = ssub.s32 1, %s5
  %s8 = scalar_select 0, %s7, %s5
  // Predicated region
  $region2: #{nn_forward.4} parent=0 // pred_check
    _
  $region3: #{nn_forward.4} parent=0 // pred_check_branch
    %10 = sbr.rel (0) target = $region5
  $region4: #{nn_forward.4} parent=0 // pred_region
    _
  $region5: #{nn_forward.4} parent=0 // pred_fallthru
    _
  // Predicated region
  $region6: #{nn_forward.4} parent=0 // pred_check
    _
  $region7: #{nn_forward.4} parent=0 // pred_check_branch
    %12 = sbr.rel (0) target = $region9
  $region8: #{nn_forward.4} parent=0 // pred_region
    _
  $region9: #{nn_forward.4} parent=0 // pred_fallthru
    _
  // Predicated region
  $region10: #{nn_forward.4} parent=0 // pred_check
    _
  $region11: #{nn_forward.4} parent=0 // pred_check_branch
    %14 = sbr.rel (0) target = $region13
  $region12: #{nn_forward.4} parent=0 // pred_region
    _
  $region13: #{nn_forward.4} parent=0 // pred_fallthru
    _
  // Predicated region
  $region14: #{nn_forward.4} parent=0 // pred_check
    _
  $region15: #{nn_forward.4} parent=0 // pred_check_branch
    %16 = sbr.rel (0) target = $region17
  $region16: #{nn_forward.4} parent=0 // pred_region
    _
  $region17: #{nn_forward.4} parent=0 // pred_fallthru
    _
  %v18 = vld [vmem:[%s0] sm:$0xff]
  %v19 = vld [vmem:[%s0 + $0x8] sm:$0xff]
  %v20 = vld [vmem:[%s0 + $0x10] sm:$0xff]
  %v21 = vld [vmem:[%s0 + $0x18] sm:$0xff]
  %v22 = vld [vmem:[%s0 + $0x20] sm:$0xff]
  %v23 = vld [vmem:[%s0 + $0x28] sm:$0xff]
  %v24 = vld [vmem:[%s0 + $0x30] sm:$0xff]
  %v25 = vld [vmem:[%s0 + $0x38] sm:$0xff]
  %v26 = vld [vmem:[%s0 + $0x40] sm:$0xff]
  %v27 = vld [vmem:[%s0 + $0x48] sm:$0xff]
  %v28 = vld [vmem:[%s0 + $0x50] sm:$0xff]
  %v29 = vld [vmem:[%s0 + $0x58] sm:$0xff]
  %v30 = vld [vmem:[%s0 + $0x60] sm:$0xff]
  %v31 = vld [vmem:[%s0 + $0x68] sm:$0xff]
  %v32 = vld [vmem:[%s0 + $0x70] sm:$0xff]
  %v33 = vld [vmem:[%s0 + $0x78] sm:$0xff]
  %v34 = vld [vmem:[%s0 + $0x80] sm:$0xff]
  %v35 = vld [vmem:[%s0 + $0x88] sm:$0xff]
  %v36 = vld [vmem:[%s0 + $0x90] sm:$0xff]
  %v37 = vld [vmem:[%s0 + $0x98] sm:$0xff]
  %v38 = vld [vmem:[%s0 + $0xa0] sm:$0xff]
  %v39 = vld [vmem:[%s0 + $0xa8] sm:$0xff]
  %v40 = vld [vmem:[%s0 + $0xb0] sm:$0xff]
  %v41 = vld [vmem:[%s0 + $0xb8] sm:$0xff]
  %v42 = vld [vmem:[%s0 + $0xc0] sm:$0xff]
  %v43 = vld [vmem:[%s0 + $0xc8] sm:$0xff]
  %v44 = vld [vmem:[%s0 + $0xd0] sm:$0xff]
  %v45 = vld [vmem:[%s0 + $0xd8] sm:$0xff]
  %v46 = vld [vmem:[%s0 + $0xe0] sm:$0xff]
  %v47 = vld [vmem:[%s0 + $0xe8] sm:$0xff]
  %v48 = vld [vmem:[%s0 + $0xf0] sm:$0xff]
  %v49 = vld [vmem:[%s0 + $0xf8] sm:$0xff]
  %v50 = vld [vmem:[%s0 + $0x100] sm:$0xff]
  %v51 = vld [vmem:[%s0 + $0x108] sm:$0xff]
  %v52 = vld [vmem:[%s0 + $0x110] sm:$0xff]
  %v53 = vld [vmem:[%s0 + $0x118] sm:$0xff]
  %v54 = vld [vmem:[%s0 + $0x120] sm:$0xff]
  %v55 = vld [vmem:[%s0 + $0x128] sm:$0xff]
  %v56 = vld [vmem:[%s0 + $0x130] sm:$0xff]
  %v57 = vld [vmem:[%s0 + $0x138] sm:$0xff]
  %v58 = vld [vmem:[%s0 + $0x140] sm:$0xff]
  %v59 = vld [vmem:[%s0 + $0x148] sm:$0xff]
  %v60 = vld [vmem:[%s0 + $0x150] sm:$0xff]
  %v61 = vld [vmem:[%s0 + $0x158] sm:$0xff]
  %v62 = vld [vmem:[%s0 + $0x160] sm:$0xff]
  %v63 = vld [vmem:[%s0 + $0x168] sm:$0xff]
  %v64 = vld [vmem:[%s0 + $0x170] sm:$0xff]
  %v65 = vld [vmem:[%s0 + $0x178] sm:$0xff]
  %v66 = vld [vmem:[%s0 + $0x180] sm:$0xff]
  %v67 = vld [vmem:[%s0 + $0x188] sm:$0xff]
  %v68 = vld [vmem:[%s0 + $0x190] sm:$0xff]
  %v69 = vld [vmem:[%s0 + $0x198] sm:$0xff]
  %v70 = vld [vmem:[%s0 + $0x1a0] sm:$0xff]
  %v71 = vld [vmem:[%s0 + $0x1a8] sm:$0xff]
  %v72 = vld [vmem:[%s0 + $0x1b0] sm:$0xff]
  %v73 = vld [vmem:[%s0 + $0x1b8] sm:$0xff]
  %v74 = vld [vmem:[%s0 + $0x1c0] sm:$0xff]
  %v75 = vld [vmem:[%s0 + $0x1c8] sm:$0xff]
  %v76 = vld [vmem:[%s0 + $0x1d0] sm:$0xff]
  %v77 = vld [vmem:[%s0 + $0x1d8] sm:$0xff]
  %v78 = vld [vmem:[%s0 + $0x1e0] sm:$0xff]
  %v79 = vld [vmem:[%s0 + $0x1e8] sm:$0xff]
  %v80 = vld [vmem:[%s0 + $0x1f0] sm:$0xff]
  %v81 = vld [vmem:[%s0 + $0x1f8] sm:$0xff]
  %v82 = vld [vmem:[%s0 + $0x200] sm:$0xff]
  %v83 = vld [vmem:[%s0 + $0x208] sm:$0xff]
  %v84 = vld [vmem:[%s0 + $0x210] sm:$0xff]
  %v85 = vld [vmem:[%s0 + $0x218] sm:$0xff]
  %v86 = vld [vmem:[%s0 + $0x220] sm:$0xff]
  %v87 = vld [vmem:[%s0 + $0x228] sm:$0xff]
  %v88 = vld [vmem:[%s0 + $0x230] sm:$0xff]
  %v89 = vld [vmem:[%s0 + $0x238] sm:$0xff]
  %v90 = vld [vmem:[%s0 + $0x240] sm:$0xff]
  %v91 = vld [vmem:[%s0 + $0x248] sm:$0xff]
  %v92 = vld [vmem:[%s0 + $0x250] sm:$0xff]
  %v93 = vld [vmem:[%s0 + $0x258] sm:$0xff]
  %v94 = vld [vmem:[%s0 + $0x260] sm:$0xff]
  %v95 = vld [vmem:[%s0 + $0x268] sm:$0xff]
  %v96 = vld [vmem:[%s0 + $0x270] sm:$0xff]
  %v97 = vld [vmem:[%s0 + $0x278] sm:$0xff]
  %v98 = vld [vmem:[%s0 + $0x280] sm:$0xff]
  %v99 = vld [vmem:[%s0 + $0x288] sm:$0xff]
  %v100 = vld [vmem:[%s0 + $0x290] sm:$0xff]
  %v101 = vld [vmem:[%s0 + $0x298] sm:$0xff]
  %v102 = vld [vmem:[%s0 + $0x2a0] sm:$0xff]
  %v103 = vld [vmem:[%s0 + $0x2a8] sm:$0xff]
  %v104 = vld [vmem:[%s0 + $0x2b0] sm:$0xff]
  %v105 = vld [vmem:[%s0 + $0x2b8] sm:$0xff]
  %v106 = vld [vmem:[%s0 + $0x2c0] sm:$0xff]
  %v107 = vld [vmem:[%s0 + $0x2c8] sm:$0xff]
  %v108 = vld [vmem:[%s0 + $0x2d0] sm:$0xff]
  %v109 = vld [vmem:[%s0 + $0x2d8] sm:$0xff]
  %v110 = vld [vmem:[%s0 + $0x2e0] sm:$0xff]
  %v111 = vld [vmem:[%s0 + $0x2e8] sm:$0xff]
  %v112 = vld [vmem:[%s0 + $0x2f0] sm:$0xff]
  %v113 = vld [vmem:[%s0 + $0x2f8] sm:$0xff]
  %v114 = vld [vmem:[%s0 + $0x300] sm:$0xff]
  %v115 = vld [vmem:[%s0 + $0x308] sm:$0xff]
  %v116 = vld [vmem:[%s0 + $0x310] sm:$0xff]
  %v117 = vld [vmem:[%s0 + $0x318] sm:$0xff]
  %v118 = vld [vmem:[%s0 + $0x320] sm:$0xff]
  %v119 = vld [vmem:[%s0 + $0x328] sm:$0xff]
  %v120 = vld [vmem:[%s0 + $0x330] sm:$0xff]
  %v121 = vld [vmem:[%s0 + $0x338] sm:$0xff]
  %v122 = vld [vmem:[%s0 + $0x340] sm:$0xff]
  %v123 = vld [vmem:[%s0 + $0x348] sm:$0xff]
  %v124 = vld [vmem:[%s0 + $0x350] sm:$0xff]
  %v125 = vld [vmem:[%s0 + $0x358] sm:$0xff]
  %v126 = vld [vmem:[%s0 + $0x360] sm:$0xff]
  %v127 = vld [vmem:[%s0 + $0x368] sm:$0xff]
  %v128 = vld [vmem:[%s0 + $0x370] sm:$0xff]
  %v129 = vld [vmem:[%s0 + $0x378] sm:$0xff]
  %v130 = vld [vmem:[%s0 + $0x380] sm:$0xff]
  %v131 = vld [vmem:[%s0 + $0x388] sm:$0xff]
  %v132 = vld [vmem:[%s0 + $0x390] sm:$0xff]
  %v133 = vld [vmem:[%s0 + $0x398] sm:$0xff]
  %v134 = vld [vmem:[%s0 + $0x3a0] sm:$0xff]
  %v135 = vld [vmem:[%s0 + $0x3a8] sm:$0xff]
  %v136 = vld [vmem:[%s0 + $0x3b0] sm:$0xff]
  %v137 = vld [vmem:[%s0 + $0x3b8] sm:$0xff]
  %v138 = vld [vmem:[%s0 + $0x3c0] sm:$0xff]
  %v139 = vld [vmem:[%s0 + $0x3c8] sm:$0xff]
  %v140 = vld [vmem:[%s0 + $0x3d0] sm:$0xff]
  %v141 = vld [vmem:[%s0 + $0x3d8] sm:$0xff]
  %v142 = vld [vmem:[%s0 + $0x3e0] sm:$0xff]
  %v143 = vld [vmem:[%s0 + $0x3e8] sm:$0xff]
  %v144 = vld [vmem:[%s0 + $0x3f0] sm:$0xff]
  %v145 = vld [vmem:[%s0 + $0x3f8] sm:$0xff]
  %v146 = vld [vmem:[%s0 + $0x400] sm:$0xff]
  %v147 = vld [vmem:[%s0 + $0x408] sm:$0xff]
  %v148 = vld [vmem:[%s0 + $0x410] sm:$0xff]
  %v149 = vld [vmem:[%s0 + $0x418] sm:$0xff]
  %v150 = vld [vmem:[%s0 + $0x420] sm:$0xff]
  %v151 = vld [vmem:[%s0 + $0x428] sm:$0xff]
  %v152 = vld [vmem:[%s0 + $0x430] sm:$0xff]
  %v153 = vld [vmem:[%s0 + $0x438] sm:$0xff]
  %v154 = vld [vmem:[%s0 + $0x440] sm:$0xff]
  %v155 = vld [vmem:[%s0 + $0x448] sm:$0xff]
  %v156 = vld [vmem:[%s0 + $0x450] sm:$0xff]
  %v157 = vld [vmem:[%s0 + $0x458] sm:$0xff]
  %v158 = vld [vmem:[%s0 + $0x460] sm:$0xff]
  %v159 = vld [vmem:[%s0 + $0x468] sm:$0xff]
  %v160 = vld [vmem:[%s0 + $0x470] sm:$0xff]
  %v161 = vld [vmem:[%s0 + $0x478] sm:$0xff]
  %v162 = vld [vmem:[%s0 + $0x480] sm:$0xff]
  %v163 = vld [vmem:[%s0 + $0x488] sm:$0xff]
  %v164 = vld [vmem:[%s0 + $0x490] sm:$0xff]
  %v165 = vld [vmem:[%s0 + $0x498] sm:$0xff]
  %v166 = vld [vmem:[%s0 + $0x4a0] sm:$0xff]
  %v167 = vld [vmem:[%s0 + $0x4a8] sm:$0xff]
  %v168 = vld [vmem:[%s0 + $0x4b0] sm:$0xff]
  %v169 = vld [vmem:[%s0 + $0x4b8] sm:$0xff]
  %v170 = vld [vmem:[%s0 + $0x4c0] sm:$0xff]
  %v171 = vld [vmem:[%s0 + $0x4c8] sm:$0xff]
  %v172 = vld [vmem:[%s0 + $0x4d0] sm:$0xff]
  %v173 = vld [vmem:[%s0 + $0x4d8] sm:$0xff]
  %v174 = vld [vmem:[%s0 + $0x4e0] sm:$0xff]
  %v175 = vld [vmem:[%s0 + $0x4e8] sm:$0xff]
  %v176 = vld [vmem:[%s0 + $0x4f0] sm:$0xff]
  %v177 = vld [vmem:[%s0 + $0x4f8] sm:$0xff]
  %v178 = vld [vmem:[%s0 + $0x500] sm:$0xff]
  %v179 = vld [vmem:[%s0 + $0x508] sm:$0xff]
  %v180 = vld [vmem:[%s0 + $0x510] sm:$0xff]
  %v181 = vld [vmem:[%s0 + $0x518] sm:$0xff]
  %v182 = vld [vmem:[%s0 + $0x520] sm:$0xff]
  %v183 = vld [vmem:[%s0 + $0x528] sm:$0xff]
  %v184 = vld [vmem:[%s0 + $0x530] sm:$0xff]
  %v185 = vld [vmem:[%s0 + $0x538] sm:$0xff]
  %v186 = vld [vmem:[%s0 + $0x540] sm:$0xff]
  %v187 = vld [vmem:[%s0 + $0x548] sm:$0xff]
  %v188 = vld [vmem:[%s0 + $0x550] sm:$0xff]
  %v189 = vld [vmem:[%s0 + $0x558] sm:$0xff]
  %v190 = vld [vmem:[%s0 + $0x560] sm:$0xff]
  %v191 = vld [vmem:[%s0 + $0x568] sm:$0xff]
  %v192 = vld [vmem:[%s0 + $0x570] sm:$0xff]
  %v193 = vld [vmem:[%s0 + $0x578] sm:$0xff]
  %v194 = vld [vmem:[%s0 + $0x580] sm:$0xff]
  %v195 = vld [vmem:[%s0 + $0x588] sm:$0xff]
  %v196 = vld [vmem:[%s0 + $0x590] sm:$0xff]
  %v197 = vld [vmem:[%s0 + $0x598] sm:$0xff]
  %v198 = vld [vmem:[%s0 + $0x5a0] sm:$0xff]
  %v199 = vld [vmem:[%s0 + $0x5a8] sm:$0xff]
  %v200 = vld [vmem:[%s0 + $0x5b0] sm:$0xff]
  %v201 = vld [vmem:[%s0 + $0x5b8] sm:$0xff]
  %v202 = vld [vmem:[%s0 + $0x5c0] sm:$0xff]
  %v203 = vld [vmem:[%s0 + $0x5c8] sm:$0xff]
  %v204 = vld [vmem:[%s0 + $0x5d0] sm:$0xff]
  %v205 = vld [vmem:[%s0 + $0x5d8] sm:$0xff]
  %v206 = vld [vmem:[%s0 + $0x5e0] sm:$0xff]
  %v207 = vld [vmem:[%s0 + $0x5e8] sm:$0xff]
  %v208 = vld [vmem:[%s0 + $0x5f0] sm:$0xff]
  %v209 = vld [vmem:[%s0 + $0x5f8] sm:$0xff]
  %v210 = vld [vmem:[%s0 + $0x600] sm:$0xff]
  %v211 = vld [vmem:[%s0 + $0x608] sm:$0xff]
  %v212 = vld [vmem:[%s0 + $0x610] sm:$0xff]
  %v213 = vld [vmem:[%s0 + $0x618] sm:$0xff]
  %v214 = vld [vmem:[%s0 + $0x620] sm:$0xff]
  %v215 = vld [vmem:[%s0 + $0x628] sm:$0xff]
  %v216 = vld [vmem:[%s0 + $0x630] sm:$0xff]
  %v217 = vld [vmem:[%s0 + $0x638] sm:$0xff]
  %v218 = vld [vmem:[%s0 + $0x640] sm:$0xff]
  %v219 = vld [vmem:[%s0 + $0x648] sm:$0xff]
  %v220 = vld [vmem:[%s0 + $0x650] sm:$0xff]
  %v221 = vld [vmem:[%s0 + $0x658] sm:$0xff]
  %v222 = vld [vmem:[%s0 + $0x660] sm:$0xff]
  %v223 = vld [vmem:[%s0 + $0x668] sm:$0xff]
  %v224 = vld [vmem:[%s0 + $0x670] sm:$0xff]
  %v225 = vld [vmem:[%s0 + $0x678] sm:$0xff]
  %v226 = vld [vmem:[%s0 + $0x680] sm:$0xff]
  %v227 = vld [vmem:[%s0 + $0x688] sm:$0xff]
  %v228 = vld [vmem:[%s0 + $0x690] sm:$0xff]
  %v229 = vld [vmem:[%s0 + $0x698] sm:$0xff]
  %v230 = vld [vmem:[%s0 + $0x6a0] sm:$0xff]
  %v231 = vld [vmem:[%s0 + $0x6a8] sm:$0xff]
  %v232 = vld [vmem:[%s0 + $0x6b0] sm:$0xff]
  %v233 = vld [vmem:[%s0 + $0x6b8] sm:$0xff]
  %v234 = vld [vmem:[%s0 + $0x6c0] sm:$0xff]
  %v235 = vld [vmem:[%s0 + $0x6c8] sm:$0xff]
  %v236 = vld [vmem:[%s0 + $0x6d0] sm:$0xff]
  %v237 = vld [vmem:[%s0 + $0x6d8] sm:$0xff]
  %v238 = vld [vmem:[%s0 + $0x6e0] sm:$0xff]
  %v239 = vld [vmem:[%s0 + $0x6e8] sm:$0xff]
  %v240 = vld [vmem:[%s0 + $0x6f0] sm:$0xff]
  %v241 = vld [vmem:[%s0 + $0x6f8] sm:$0xff]
  %v242 = vld [vmem:[%s0 + $0x700] sm:$0xff]
  %v243 = vld [vmem:[%s0 + $0x708] sm:$0xff]
  %v244 = vld [vmem:[%s0 + $0x710] sm:$0xff]
  %v245 = vld [vmem:[%s0 + $0x718] sm:$0xff]
  %v246 = vld [vmem:[%s0 + $0x720] sm:$0xff]
  %v247 = vld [vmem:[%s0 + $0x728] sm:$0xff]
  %v248 = vld [vmem:[%s0 + $0x730] sm:$0xff]
  %v249 = vld [vmem:[%s0 + $0x738] sm:$0xff]
  %v250 = vld [vmem:[%s0 + $0x740] sm:$0xff]
  %v251 = vld [vmem:[%s0 + $0x748] sm:$0xff]
  %v252 = vld [vmem:[%s0 + $0x750] sm:$0xff]
  %v253 = vld [vmem:[%s0 + $0x758] sm:$0xff]
  %v254 = vld [vmem:[%s0 + $0x760] sm:$0xff]
  %v255 = vld [vmem:[%s0 + $0x768] sm:$0xff]
  %v256 = vld [vmem:[%s0 + $0x770] sm:$0xff]
  %v257 = vld [vmem:[%s0 + $0x778] sm:$0xff]
  %v258 = vld [vmem:[%s0 + $0x780] sm:$0xff]
  %v259 = vld [vmem:[%s0 + $0x788] sm:$0xff]
  %v260 = vld [vmem:[%s0 + $0x790] sm:$0xff]
  %v261 = vld [vmem:[%s0 + $0x798] sm:$0xff]
  %v262 = vld [vmem:[%s0 + $0x7a0] sm:$0xff]
  %v263 = vld [vmem:[%s0 + $0x7a8] sm:$0xff]
  %v264 = vld [vmem:[%s0 + $0x7b0] sm:$0xff]
  %v265 = vld [vmem:[%s0 + $0x7b8] sm:$0xff]
  %v266 = vld [vmem:[%s0 + $0x7c0] sm:$0xff]
  %v267 = vld [vmem:[%s0 + $0x7c8] sm:$0xff]
  %v268 = vld [vmem:[%s0 + $0x7d0] sm:$0xff]
  %v269 = vld [vmem:[%s0 + $0x7d8] sm:$0xff]
  %v270 = vld [vmem:[%s0 + $0x7e0] sm:$0xff]
  %v271 = vld [vmem:[%s0 + $0x7e8] sm:$0xff]
  %v272 = vld [vmem:[%s0 + $0x7f0] sm:$0xff]
  %v273 = vld [vmem:[%s0 + $0x7f8] sm:$0xff]
  %v274 = vld [vmem:[%s0 + $0x800] sm:$0xff]
  %v275 = vld [vmem:[%s0 + $0x808] sm:$0xff]
  %v276 = vld [vmem:[%s0 + $0x810] sm:$0xff]
  %v277 = vld [vmem:[%s0 + $0x818] sm:$0xff]
  %v278 = vld [vmem:[%s0 + $0x820] sm:$0xff]
  %v279 = vld [vmem:[%s0 + $0x828] sm:$0xff]
  %v280 = vld [vmem:[%s0 + $0x830] sm:$0xff]
  %v281 = vld [vmem:[%s0 + $0x838] sm:$0xff]
  %v282 = vld [vmem:[%s0 + $0x840] sm:$0xff]
  %v283 = vld [vmem:[%s0 + $0x848] sm:$0xff]
  %v284 = vld [vmem:[%s0 + $0x850] sm:$0xff]
  %v285 = vld [vmem:[%s0 + $0x858] sm:$0xff]
  %v286 = vld [vmem:[%s0 + $0x860] sm:$0xff]
  %v287 = vld [vmem:[%s0 + $0x868] sm:$0xff]
  %v288 = vld [vmem:[%s0 + $0x870] sm:$0xff]
  %v289 = vld [vmem:[%s1] sm:$0xf]
  %v290 = vld [vmem:[%s1 + $0x4] sm:$0xf]
  %v291 = vld [vmem:[%s1 + $0x8] sm:$0xf]
  %v292 = vld [vmem:[%s1 + $0xc] sm:$0xf]
  %v293 = vld [vmem:[%s1 + $0x10] sm:$0xf]
  %v294 = vld [vmem:[%s1 + $0x14] sm:$0xf]
  %v295 = vld [vmem:[%s1 + $0x18] sm:$0xf]
  %v296 = vld [vmem:[%s1 + $0x1c] sm:$0xf]
  %v297 = vld [vmem:[%s1 + $0x20] sm:$0xf]
  %v298 = vld [vmem:[%s1 + $0x24] sm:$0xf]
  %v299 = vld [vmem:[%s1 + $0x28] sm:$0xf]
  %v300 = vld [vmem:[%s1 + $0x2c] sm:$0xf]
  %v301 = vld [vmem:[%s1 + $0x30] sm:$0xf]
  %v302 = vld [vmem:[%s1 + $0x34] sm:$0xf]
  %v303 = vld [vmem:[%s1 + $0x38] sm:$0xf]
  %v304 = vld [vmem:[%s1 + $0x3c] sm:$0xf]
  %v305 = vld [vmem:[%s1 + $0x40] sm:$0xf]
  %v306 = vld [vmem:[%s1 + $0x44] sm:$0xf]
  %v307 = vld [vmem:[%s1 + $0x48] sm:$0xf]
  %v308 = vld [vmem:[%s1 + $0x4c] sm:$0xf]
  %v309 = vld [vmem:[%s1 + $0x50] sm:$0xf]
  %v310 = vld [vmem:[%s1 + $0x54] sm:$0xf]
  %v311 = vld [vmem:[%s1 + $0x58] sm:$0xf]
  %v312 = vld [vmem:[%s1 + $0x5c] sm:$0xf]
  %v313 = vld [vmem:[%s1 + $0x60] sm:$0xf]
  %v314 = vld [vmem:[%s1 + $0x64] sm:$0xf]
  %v315 = vld [vmem:[%s1 + $0x68] sm:$0xf]
  %v316 = vld [vmem:[%s1 + $0x6c] sm:$0xf]
  %v317 = vld [vmem:[%s1 + $0x70] sm:$0xf]
  %v318 = vld [vmem:[%s1 + $0x74] sm:$0xf]
  %v319 = vld [vmem:[%s1 + $0x78] sm:$0xf]
  %v320 = vld [vmem:[%s1 + $0x7c] sm:$0xf]
  %v592 = vunpack.c.l.b16 %v18
  %v593 = vunpack.c.h.b16 %v18
  %v594 = vunpack.c.l.b16 %v19
  %v595 = vunpack.c.h.b16 %v19
  %v596 = vunpack.c.l.b16 %v20
  %v597 = vunpack.c.h.b16 %v20
  %v598 = vunpack.c.l.b16 %v21
  %v599 = vunpack.c.h.b16 %v21
  %v600 = vunpack.c.l.b16 %v22
  %v601 = vunpack.c.h.b16 %v22
  %v602 = vunpack.c.l.b16 %v23
  %v603 = vunpack.c.h.b16 %v23
  %v604 = vunpack.c.l.b16 %v24
  %v605 = vunpack.c.h.b16 %v24
  %v606 = vunpack.c.l.b16 %v25
  %v607 = vunpack.c.h.b16 %v25
  %v608 = vunpack.c.l.b16 %v26
  %v609 = vunpack.c.h.b16 %v26
  %v610 = vunpack.c.l.b16 %v27
  %v611 = vunpack.c.h.b16 %v27
  %v612 = vunpack.c.l.b16 %v28
  %v613 = vunpack.c.h.b16 %v28
  %v614 = vunpack.c.l.b16 %v29
  %v615 = vunpack.c.h.b16 %v29
  %v616 = vunpack.c.l.b16 %v30
  %v617 = vunpack.c.h.b16 %v30
  %v618 = vunpack.c.l.b16 %v31
  %v619 = vunpack.c.h.b16 %v31
  %v620 = vunpack.c.l.b16 %v32
  %v621 = vunpack.c.h.b16 %v32
  %v622 = vunpack.c.l.b16 %v33
  %v623 = vunpack.c.h.b16 %v33
  %v624 = vunpack.c.l.b16 %v34
  %v625 = vunpack.c.h.b16 %v34
  %v626 = vunpack.c.l.b16 %v35
  %v627 = vunpack.c.h.b16 %v35
  %v628 = vunpack.c.l.b16 %v36
  %v629 = vunpack.c.h.b16 %v36
  %v630 = vunpack.c.l.b16 %v37
  %v631 = vunpack.c.h.b16 %v37
  %v632 = vunpack.c.l.b16 %v38
  %v633 = vunpack.c.h.b16 %v38
  %v634 = vunpack.c.l.b16 %v39
  %v635 = vunpack.c.h.b16 %v39
  %v636 = vunpack.c.l.b16 %v40
  %v637 = vunpack.c.h.b16 %v40
  %v638 = vunpack.c.l.b16 %v41
  %v639 = vunpack.c.h.b16 %v41
  %v640 = vunpack.c.l.b16 %v42
  %v641 = vunpack.c.h.b16 %v42
  %v642 = vunpack.c.l.b16 %v43
  %v643 = vunpack.c.h.b16 %v43
  %v644 = vunpack.c.l.b16 %v44
  %v645 = vunpack.c.h.b16 %v44
  %v646 = vunpack.c.l.b16 %v45
  %v647 = vunpack.c.h.b16 %v45
  %v648 = vunpack.c.l.b16 %v46
  %v649 = vunpack.c.h.b16 %v46
  %v650 = vunpack.c.l.b16 %v47
  %v651 = vunpack.c.h.b16 %v47
  %v652 = vunpack.c.l.b16 %v48
  %v653 = vunpack.c.h.b16 %v48
  %v654 = vunpack.c.l.b16 %v49
  %v655 = vunpack.c.h.b16 %v49
  %v656 = vunpack.c.l.b16 %v50
  %v657 = vunpack.c.h.b16 %v50
  %v658 = vunpack.c.l.b16 %v51
  %v659 = vunpack.c.h.b16 %v51
  %v660 = vunpack.c.l.b16 %v52
  %v661 = vunpack.c.h.b16 %v52
  %v662 = vunpack.c.l.b16 %v53
  %v663 = vunpack.c.h.b16 %v53
  %v664 = vunpack.c.l.b16 %v54
  %v665 = vunpack.c.h.b16 %v54
  %v666 = vunpack.c.l.b16 %v55
  %v667 = vunpack.c.h.b16 %v55
  %v668 = vunpack.c.l.b16 %v56
  %v669 = vunpack.c.h.b16 %v56
  %v670 = vunpack.c.l.b16 %v57
  %v671 = vunpack.c.h.b16 %v57
  %v672 = vunpack.c.l.b16 %v58
  %v673 = vunpack.c.h.b16 %v58
  %v674 = vunpack.c.l.b16 %v59
  %v675 = vunpack.c.h.b16 %v59
  %v676 = vunpack.c.l.b16 %v60
  %v677 = vunpack.c.h.b16 %v60
  %v678 = vunpack.c.l.b16 %v61
  %v679 = vunpack.c.h.b16 %v61
  %v680 = vunpack.c.l.b16 %v62
  %v681 = vunpack.c.h.b16 %v62
  %v682 = vunpack.c.l.b16 %v63
  %v683 = vunpack.c.h.b16 %v63
  %v684 = vunpack.c.l.b16 %v64
  %v685 = vunpack.c.h.b16 %v64
  %v686 = vunpack.c.l.b16 %v65
  %v687 = vunpack.c.h.b16 %v65
  %v688 = vunpack.c.l.b16 %v66
  %v689 = vunpack.c.h.b16 %v66
  %v690 = vunpack.c.l.b16 %v67
  %v691 = vunpack.c.h.b16 %v67
  %v692 = vunpack.c.l.b16 %v68
  %v693 = vunpack.c.h.b16 %v68
  %v694 = vunpack.c.l.b16 %v69
  %v695 = vunpack.c.h.b16 %v69
  %v696 = vunpack.c.l.b16 %v70
  %v697 = vunpack.c.h.b16 %v70
  %v698 = vunpack.c.l.b16 %v71
  %v699 = vunpack.c.h.b16 %v71
  %v700 = vunpack.c.l.b16 %v72
  %v701 = vunpack.c.h.b16 %v72
  %v702 = vunpack.c.l.b16 %v73
  %v703 = vunpack.c.h.b16 %v73
  %v704 = vunpack.c.l.b16 %v74
  %v705 = vunpack.c.h.b16 %v74
  %v706 = vunpack.c.l.b16 %v75
  %v707 = vunpack.c.h.b16 %v75
  %v708 = vunpack.c.l.b16 %v76
  %v709 = vunpack.c.h.b16 %v76
  %v710 = vunpack.c.l.b16 %v77
  %v711 = vunpack.c.h.b16 %v77
  %v712 = vunpack.c.l.b16 %v78
  %v713 = vunpack.c.h.b16 %v78
  %v714 = vunpack.c.l.b16 %v79
  %v715 = vunpack.c.h.b16 %v79
  %v716 = vunpack.c.l.b16 %v80
  %v717 = vunpack.c.h.b16 %v80
  %v718 = vunpack.c.l.b16 %v81
  %v719 = vunpack.c.h.b16 %v81
  %v720 = vunpack.c.l.b16 %v82
  %v721 = vunpack.c.h.b16 %v82
  %v722 = vunpack.c.l.b16 %v83
  %v723 = vunpack.c.h.b16 %v83
  %v724 = vunpack.c.l.b16 %v84
  %v725 = vunpack.c.h.b16 %v84
  %v726 = vunpack.c.l.b16 %v85
  %v727 = vunpack.c.h.b16 %v85
  %v728 = vunpack.c.l.b16 %v86
  %v729 = vunpack.c.h.b16 %v86
  %v730 = vunpack.c.l.b16 %v87
  %v731 = vunpack.c.h.b16 %v87
  %v732 = vunpack.c.l.b16 %v88
  %v733 = vunpack.c.h.b16 %v88
  %v734 = vunpack.c.l.b16 %v89
  %v735 = vunpack.c.h.b16 %v89
  %v736 = vunpack.c.l.b16 %v90
  %v737 = vunpack.c.h.b16 %v90
  %v738 = vunpack.c.l.b16 %v91
  %v739 = vunpack.c.h.b16 %v91
  %v740 = vunpack.c.l.b16 %v92
  %v741 = vunpack.c.h.b16 %v92
  %v742 = vunpack.c.l.b16 %v93
  %v743 = vunpack.c.h.b16 %v93
  %v744 = vunpack.c.l.b16 %v94
  %v745 = vunpack.c.h.b16 %v94
  %v746 = vunpack.c.l.b16 %v95
  %v747 = vunpack.c.h.b16 %v95
  %v748 = vunpack.c.l.b16 %v96
  %v749 = vunpack.c.h.b16 %v96
  %v750 = vunpack.c.l.b16 %v97
  %v751 = vunpack.c.h.b16 %v97
  %v752 = vunpack.c.l.b16 %v98
  %v753 = vunpack.c.h.b16 %v98
  %v754 = vunpack.c.l.b16 %v99
  %v755 = vunpack.c.h.b16 %v99
  %v756 = vunpack.c.l.b16 %v100
  %v757 = vunpack.c.h.b16 %v100
  %v758 = vunpack.c.l.b16 %v101
  %v759 = vunpack.c.h.b16 %v101
  %v760 = vunpack.c.l.b16 %v102
  %v761 = vunpack.c.h.b16 %v102
  %v762 = vunpack.c.l.b16 %v103
  %v763 = vunpack.c.h.b16 %v103
  %v764 = vunpack.c.l.b16 %v104
  %v765 = vunpack.c.h.b16 %v104
  %v766 = vunpack.c.l.b16 %v105
  %v767 = vunpack.c.h.b16 %v105
  %v768 = vunpack.c.l.b16 %v106
  %v769 = vunpack.c.h.b16 %v106
  %v770 = vunpack.c.l.b16 %v107
  %v771 = vunpack.c.h.b16 %v107
  %v772 = vunpack.c.l.b16 %v108
  %v773 = vunpack.c.h.b16 %v108
  %v774 = vunpack.c.l.b16 %v109
  %v775 = vunpack.c.h.b16 %v109
  %v776 = vunpack.c.l.b16 %v110
  %v777 = vunpack.c.h.b16 %v110
  %v778 = vunpack.c.l.b16 %v111
  %v779 = vunpack.c.h.b16 %v111
  %v780 = vunpack.c.l.b16 %v112
  %v781 = vunpack.c.h.b16 %v112
  %v782 = vunpack.c.l.b16 %v113
  %v783 = vunpack.c.h.b16 %v113
  %v784 = vunpack.c.l.b16 %v114
  %v785 = vunpack.c.h.b16 %v114
  %v786 = vunpack.c.l.b16 %v115
  %v787 = vunpack.c.h.b16 %v115
  %v788 = vunpack.c.l.b16 %v116
  %v789 = vunpack.c.h.b16 %v116
  %v790 = vunpack.c.l.b16 %v117
  %v791 = vunpack.c.h.b16 %v117
  %v792 = vunpack.c.l.b16 %v118
  %v793 = vunpack.c.h.b16 %v118
  %v794 = vunpack.c.l.b16 %v119
  %v795 = vunpack.c.h.b16 %v119
  %v796 = vunpack.c.l.b16 %v120
  %v797 = vunpack.c.h.b16 %v120
  %v798 = vunpack.c.l.b16 %v121
  %v799 = vunpack.c.h.b16 %v121
  %v800 = vunpack.c.l.b16 %v122
  %v801 = vunpack.c.h.b16 %v122
  %v802 = vunpack.c.l.b16 %v123
  %v803 = vunpack.c.h.b16 %v123
  %v804 = vunpack.c.l.b16 %v124
  %v805 = vunpack.c.h.b16 %v124
  %v806 = vunpack.c.l.b16 %v125
  %v807 = vunpack.c.h.b16 %v125
  %v808 = vunpack.c.l.b16 %v126
  %v809 = vunpack.c.h.b16 %v126
  %v810 = vunpack.c.l.b16 %v127
  %v811 = vunpack.c.h.b16 %v127
  %v812 = vunpack.c.l.b16 %v128
  %v813 = vunpack.c.h.b16 %v128
  %v814 = vunpack.c.l.b16 %v129
  %v815 = vunpack.c.h.b16 %v129
  %v816 = vunpack.c.l.b16 %v130
  %v817 = vunpack.c.h.b16 %v130
  %v818 = vunpack.c.l.b16 %v131
  %v819 = vunpack.c.h.b16 %v131
  %v820 = vunpack.c.l.b16 %v132
  %v821 = vunpack.c.h.b16 %v132
  %v822 = vunpack.c.l.b16 %v133
  %v823 = vunpack.c.h.b16 %v133
  %v824 = vunpack.c.l.b16 %v134
  %v825 = vunpack.c.h.b16 %v134
  %v826 = vunpack.c.l.b16 %v135
  %v827 = vunpack.c.h.b16 %v135
  %v828 = vunpack.c.l.b16 %v136
  %v829 = vunpack.c.h.b16 %v136
  %v830 = vunpack.c.l.b16 %v137
  %v831 = vunpack.c.h.b16 %v137
  %v832 = vunpack.c.l.b16 %v138
  %v833 = vunpack.c.h.b16 %v138
  %v834 = vunpack.c.l.b16 %v139
  %v835 = vunpack.c.h.b16 %v139
  %v836 = vunpack.c.l.b16 %v140
  %v837 = vunpack.c.h.b16 %v140
  %v838 = vunpack.c.l.b16 %v141
  %v839 = vunpack.c.h.b16 %v141
  %v840 = vunpack.c.l.b16 %v142
  %v841 = vunpack.c.h.b16 %v142
  %v842 = vunpack.c.l.b16 %v143
  %v843 = vunpack.c.h.b16 %v143
  %v844 = vunpack.c.l.b16 %v144
  %v845 = vunpack.c.h.b16 %v144
  %v846 = vunpack.c.l.b16 %v145
  %v847 = vunpack.c.h.b16 %v145
  %v848 = vunpack.c.l.b16 %v146
  %v849 = vunpack.c.h.b16 %v146
  %v850 = vunpack.c.l.b16 %v147
  %v851 = vunpack.c.h.b16 %v147
  %v852 = vunpack.c.l.b16 %v148
  %v853 = vunpack.c.h.b16 %v148
  %v854 = vunpack.c.l.b16 %v149
  %v855 = vunpack.c.h.b16 %v149
  %v856 = vunpack.c.l.b16 %v150
  %v857 = vunpack.c.h.b16 %v150
  %v858 = vunpack.c.l.b16 %v151
  %v859 = vunpack.c.h.b16 %v151
  %v860 = vunpack.c.l.b16 %v152
  %v861 = vunpack.c.h.b16 %v152
  %v862 = vunpack.c.l.b16 %v153
  %v863 = vunpack.c.h.b16 %v153
  %v864 = vunpack.c.l.b16 %v154
  %v865 = vunpack.c.h.b16 %v154
  %v866 = vunpack.c.l.b16 %v155
  %v867 = vunpack.c.h.b16 %v155
  %v868 = vunpack.c.l.b16 %v156
  %v869 = vunpack.c.h.b16 %v156
  %v870 = vunpack.c.l.b16 %v157
  %v871 = vunpack.c.h.b16 %v157
  %v872 = vunpack.c.l.b16 %v158
  %v873 = vunpack.c.h.b16 %v158
  %v874 = vunpack.c.l.b16 %v159
  %v875 = vunpack.c.h.b16 %v159
  %v876 = vunpack.c.l.b16 %v160
  %v877 = vunpack.c.h.b16 %v160
  %v878 = vunpack.c.l.b16 %v161
  %v879 = vunpack.c.h.b16 %v161
  %v880 = vunpack.c.l.b16 %v162
  %v881 = vunpack.c.h.b16 %v162
  %v882 = vunpack.c.l.b16 %v163
  %v883 = vunpack.c.h.b16 %v163
  %v884 = vunpack.c.l.b16 %v164
  %v885 = vunpack.c.h.b16 %v164
  %v886 = vunpack.c.l.b16 %v165
  %v887 = vunpack.c.h.b16 %v165
  %v888 = vunpack.c.l.b16 %v166
  %v889 = vunpack.c.h.b16 %v166
  %v890 = vunpack.c.l.b16 %v167
  %v891 = vunpack.c.h.b16 %v167
  %v892 = vunpack.c.l.b16 %v168
  %v893 = vunpack.c.h.b16 %v168
  %v894 = vunpack.c.l.b16 %v169
  %v895 = vunpack.c.h.b16 %v169
  %v896 = vunpack.c.l.b16 %v170
  %v897 = vunpack.c.h.b16 %v170
  %v898 = vunpack.c.l.b16 %v171
  %v899 = vunpack.c.h.b16 %v171
  %v900 = vunpack.c.l.b16 %v172
  %v901 = vunpack.c.h.b16 %v172
  %v902 = vunpack.c.l.b16 %v173
  %v903 = vunpack.c.h.b16 %v173
  %v904 = vunpack.c.l.b16 %v174
  %v905 = vunpack.c.h.b16 %v174
  %v906 = vunpack.c.l.b16 %v175
  %v907 = vunpack.c.h.b16 %v175
  %v908 = vunpack.c.l.b16 %v176
  %v909 = vunpack.c.h.b16 %v176
  %v910 = vunpack.c.l.b16 %v177
  %v911 = vunpack.c.h.b16 %v177
  %v912 = vunpack.c.l.b16 %v178
  %v913 = vunpack.c.h.b16 %v178
  %v914 = vunpack.c.l.b16 %v179
  %v915 = vunpack.c.h.b16 %v179
  %v916 = vunpack.c.l.b16 %v180
  %v917 = vunpack.c.h.b16 %v180
  %v918 = vunpack.c.l.b16 %v181
  %v919 = vunpack.c.h.b16 %v181
  %v920 = vunpack.c.l.b16 %v182
  %v921 = vunpack.c.h.b16 %v182
  %v922 = vunpack.c.l.b16 %v183
  %v923 = vunpack.c.h.b16 %v183
  %v924 = vunpack.c.l.b16 %v184
  %v925 = vunpack.c.h.b16 %v184
  %v926 = vunpack.c.l.b16 %v185
  %v927 = vunpack.c.h.b16 %v185
  %v928 = vunpack.c.l.b16 %v186
  %v929 = vunpack.c.h.b16 %v186
  %v930 = vunpack.c.l.b16 %v187
  %v931 = vunpack.c.h.b16 %v187
  %v932 = vunpack.c.l.b16 %v188
  %v933 = vunpack.c.h.b16 %v188
  %v934 = vunpack.c.l.b16 %v189
  %v935 = vunpack.c.h.b16 %v189
  %v936 = vunpack.c.l.b16 %v190
  %v937 = vunpack.c.h.b16 %v190
  %v938 = vunpack.c.l.b16 %v191
  %v939 = vunpack.c.h.b16 %v191
  %v940 = vunpack.c.l.b16 %v192
  %v941 = vunpack.c.h.b16 %v192
  %v942 = vunpack.c.l.b16 %v193
  %v943 = vunpack.c.h.b16 %v193
  %v944 = vunpack.c.l.b16 %v194
  %v945 = vunpack.c.h.b16 %v194
  %v946 = vunpack.c.l.b16 %v195
  %v947 = vunpack.c.h.b16 %v195
  %v948 = vunpack.c.l.b16 %v196
  %v949 = vunpack.c.h.b16 %v196
  %v950 = vunpack.c.l.b16 %v197
  %v951 = vunpack.c.h.b16 %v197
  %v952 = vunpack.c.l.b16 %v198
  %v953 = vunpack.c.h.b16 %v198
  %v954 = vunpack.c.l.b16 %v199
  %v955 = vunpack.c.h.b16 %v199
  %v956 = vunpack.c.l.b16 %v200
  %v957 = vunpack.c.h.b16 %v200
  %v958 = vunpack.c.l.b16 %v201
  %v959 = vunpack.c.h.b16 %v201
  %v960 = vunpack.c.l.b16 %v202
  %v961 = vunpack.c.h.b16 %v202
  %v962 = vunpack.c.l.b16 %v203
  %v963 = vunpack.c.h.b16 %v203
  %v964 = vunpack.c.l.b16 %v204
  %v965 = vunpack.c.h.b16 %v204
  %v966 = vunpack.c.l.b16 %v205
  %v967 = vunpack.c.h.b16 %v205
  %v968 = vunpack.c.l.b16 %v206
  %v969 = vunpack.c.h.b16 %v206
  %v970 = vunpack.c.l.b16 %v207
  %v971 = vunpack.c.h.b16 %v207
  %v972 = vunpack.c.l.b16 %v208
  %v973 = vunpack.c.h.b16 %v208
  %v974 = vunpack.c.l.b16 %v209
  %v975 = vunpack.c.h.b16 %v209
  %v976 = vunpack.c.l.b16 %v210
  %v977 = vunpack.c.h.b16 %v210
  %v978 = vunpack.c.l.b16 %v211
  %v979 = vunpack.c.h.b16 %v211
  %v980 = vunpack.c.l.b16 %v212
  %v981 = vunpack.c.h.b16 %v212
  %v982 = vunpack.c.l.b16 %v213
  %v983 = vunpack.c.h.b16 %v213
  %v984 = vunpack.c.l.b16 %v214
  %v985 = vunpack.c.h.b16 %v214
  %v986 = vunpack.c.l.b16 %v215
  %v987 = vunpack.c.h.b16 %v215
  %v988 = vunpack.c.l.b16 %v216
  %v989 = vunpack.c.h.b16 %v216
  %v990 = vunpack.c.l.b16 %v217
  %v991 = vunpack.c.h.b16 %v217
  %v992 = vunpack.c.l.b16 %v218
  %v993 = vunpack.c.h.b16 %v218
  %v994 = vunpack.c.l.b16 %v219
  %v995 = vunpack.c.h.b16 %v219
  %v996 = vunpack.c.l.b16 %v220
  %v997 = vunpack.c.h.b16 %v220
  %v998 = vunpack.c.l.b16 %v221
  %v999 = vunpack.c.h.b16 %v221
  %v1000 = vunpack.c.l.b16 %v222
  %v1001 = vunpack.c.h.b16 %v222
  %v1002 = vunpack.c.l.b16 %v223
  %v1003 = vunpack.c.h.b16 %v223
  %v1004 = vunpack.c.l.b16 %v224
  %v1005 = vunpack.c.h.b16 %v224
  %v1006 = vunpack.c.l.b16 %v225
  %v1007 = vunpack.c.h.b16 %v225
  %v1008 = vunpack.c.l.b16 %v226
  %v1009 = vunpack.c.h.b16 %v226
  %v1010 = vunpack.c.l.b16 %v227
  %v1011 = vunpack.c.h.b16 %v227
  %v1012 = vunpack.c.l.b16 %v228
  %v1013 = vunpack.c.h.b16 %v228
  %v1014 = vunpack.c.l.b16 %v229
  %v1015 = vunpack.c.h.b16 %v229
  %v1016 = vunpack.c.l.b16 %v230
  %v1017 = vunpack.c.h.b16 %v230
  %v1018 = vunpack.c.l.b16 %v231
  %v1019 = vunpack.c.h.b16 %v231
  %v1020 = vunpack.c.l.b16 %v232
  %v1021 = vunpack.c.h.b16 %v232
  %v1022 = vunpack.c.l.b16 %v233
  %v1023 = vunpack.c.h.b16 %v233
  %v1024 = vunpack.c.l.b16 %v234
  %v1025 = vunpack.c.h.b16 %v234
  %v1026 = vunpack.c.l.b16 %v235
  %v1027 = vunpack.c.h.b16 %v235
  %v1028 = vunpack.c.l.b16 %v236
  %v1029 = vunpack.c.h.b16 %v236
  %v1030 = vunpack.c.l.b16 %v237
  %v1031 = vunpack.c.h.b16 %v237
  %v1032 = vunpack.c.l.b16 %v238
  %v1033 = vunpack.c.h.b16 %v238
  %v1034 = vunpack.c.l.b16 %v239
  %v1035 = vunpack.c.h.b16 %v239
  %v1036 = vunpack.c.l.b16 %v240
  %v1037 = vunpack.c.h.b16 %v240
  %v1038 = vunpack.c.l.b16 %v241
  %v1039 = vunpack.c.h.b16 %v241
  %v1040 = vunpack.c.l.b16 %v242
  %v1041 = vunpack.c.h.b16 %v242
  %v1042 = vunpack.c.l.b16 %v243
  %v1043 = vunpack.c.h.b16 %v243
  %v1044 = vunpack.c.l.b16 %v244
  %v1045 = vunpack.c.h.b16 %v244
  %v1046 = vunpack.c.l.b16 %v245
  %v1047 = vunpack.c.h.b16 %v245
  %v1048 = vunpack.c.l.b16 %v246
  %v1049 = vunpack.c.h.b16 %v246
  %v1050 = vunpack.c.l.b16 %v247
  %v1051 = vunpack.c.h.b16 %v247
  %v1052 = vunpack.c.l.b16 %v248
  %v1053 = vunpack.c.h.b16 %v248
  %v1054 = vunpack.c.l.b16 %v249
  %v1055 = vunpack.c.h.b16 %v249
  %v1056 = vunpack.c.l.b16 %v250
  %v1057 = vunpack.c.h.b16 %v250
  %v1058 = vunpack.c.l.b16 %v251
  %v1059 = vunpack.c.h.b16 %v251
  %v1060 = vunpack.c.l.b16 %v252
  %v1061 = vunpack.c.h.b16 %v252
  %v1062 = vunpack.c.l.b16 %v253
  %v1063 = vunpack.c.h.b16 %v253
  %v1064 = vunpack.c.l.b16 %v254
  %v1065 = vunpack.c.h.b16 %v254
  %v1066 = vunpack.c.l.b16 %v255
  %v1067 = vunpack.c.h.b16 %v255
  %v1068 = vunpack.c.l.b16 %v256
  %v1069 = vunpack.c.h.b16 %v256
  %v1070 = vunpack.c.l.b16 %v257
  %v1071 = vunpack.c.h.b16 %v257
  %v1072 = vunpack.c.l.b16 %v258
  %v1073 = vunpack.c.h.b16 %v258
  %v1074 = vunpack.c.l.b16 %v259
  %v1075 = vunpack.c.h.b16 %v259
  %v1076 = vunpack.c.l.b16 %v260
  %v1077 = vunpack.c.h.b16 %v260
  %v1078 = vunpack.c.l.b16 %v261
  %v1079 = vunpack.c.h.b16 %v261
  %v1080 = vunpack.c.l.b16 %v262
  %v1081 = vunpack.c.h.b16 %v262
  %v1082 = vunpack.c.l.b16 %v263
  %v1083 = vunpack.c.h.b16 %v263
  %v1084 = vunpack.c.l.b16 %v264
  %v1085 = vunpack.c.h.b16 %v264
  %v1086 = vunpack.c.l.b16 %v265
  %v1087 = vunpack.c.h.b16 %v265
  %v1088 = vunpack.c.l.b16 %v266
  %v1089 = vunpack.c.h.b16 %v266
  %v1090 = vunpack.c.l.b16 %v267
  %v1091 = vunpack.c.h.b16 %v267
  %v1092 = vunpack.c.l.b16 %v268
  %v1093 = vunpack.c.h.b16 %v268
  %v1094 = vunpack.c.l.b16 %v269
  %v1095 = vunpack.c.h.b16 %v269
  %v1096 = vunpack.c.l.b16 %v270
  %v1097 = vunpack.c.h.b16 %v270
  %v1098 = vunpack.c.l.b16 %v271
  %v1099 = vunpack.c.h.b16 %v271
  %v1100 = vunpack.c.l.b16 %v272
  %v1101 = vunpack.c.h.b16 %v272
  %v1102 = vunpack.c.l.b16 %v273
  %v1103 = vunpack.c.h.b16 %v273
  %v1104 = vunpack.c.l.b16 %v274
  %v1105 = vunpack.c.h.b16 %v274
  %v1106 = vunpack.c.l.b16 %v275
  %v1107 = vunpack.c.h.b16 %v275
  %v1108 = vunpack.c.l.b16 %v276
  %v1109 = vunpack.c.h.b16 %v276
  %v1110 = vunpack.c.l.b16 %v277
  %v1111 = vunpack.c.h.b16 %v277
  %v1112 = vunpack.c.l.b16 %v278
  %v1113 = vunpack.c.h.b16 %v278
  %v1114 = vunpack.c.l.b16 %v279
  %v1115 = vunpack.c.h.b16 %v279
  %v1116 = vunpack.c.l.b16 %v280
  %v1117 = vunpack.c.h.b16 %v280
  %v1118 = vunpack.c.l.b16 %v281
  %v1119 = vunpack.c.h.b16 %v281
  %v1120 = vunpack.c.l.b16 %v282
  %v1121 = vunpack.c.h.b16 %v282
  %v1122 = vunpack.c.l.b16 %v283
  %v1123 = vunpack.c.h.b16 %v283
  %v1124 = vunpack.c.l.b16 %v284
  %v1125 = vunpack.c.h.b16 %v284
  %v1126 = vunpack.c.l.b16 %v285
  %v1127 = vunpack.c.h.b16 %v285
  %v1128 = vunpack.c.l.b16 %v286
  %v1129 = vunpack.c.h.b16 %v286
  %v1130 = vunpack.c.l.b16 %v287
  %v1131 = vunpack.c.h.b16 %v287
  %v1132 = vunpack.c.l.b16 %v288
  %v1133 = vunpack.c.h.b16 %v288
  %v1134 = vpack.c.b16 %v594, %v592
  %v1135 = vpack.c.b16 %v595, %v593
  %v1136 = vpack.c.b16 %v598, %v596
  %v1137 = vpack.c.b16 %v599, %v597
  %v1138 = vpack.c.b16 %v602, %v600
  %v1139 = vpack.c.b16 %v603, %v601
  %v1140 = vpack.c.b16 %v606, %v604
  %v1141 = vpack.c.b16 %v607, %v605
  %v1142 = vpack.c.b16 %v610, %v608
  %v1143 = vpack.c.b16 %v611, %v609
  %v1144 = vpack.c.b16 %v614, %v612
  %v1145 = vpack.c.b16 %v615, %v613
  %v1146 = vpack.c.b16 %v618, %v616
  %v1147 = vpack.c.b16 %v619, %v617
  %v1148 = vpack.c.b16 %v622, %v620
  %v1149 = vpack.c.b16 %v623, %v621
  %v1150 = vpack.c.b16 %v626, %v624
  %v1151 = vpack.c.b16 %v627, %v625
  %v1152 = vpack.c.b16 %v630, %v628
  %v1153 = vpack.c.b16 %v631, %v629
  %v1154 = vpack.c.b16 %v634, %v632
  %v1155 = vpack.c.b16 %v635, %v633
  %v1156 = vpack.c.b16 %v638, %v636
  %v1157 = vpack.c.b16 %v639, %v637
  %v1158 = vpack.c.b16 %v642, %v640
  %v1159 = vpack.c.b16 %v643, %v641
  %v1160 = vpack.c.b16 %v646, %v644
  %v1161 = vpack.c.b16 %v647, %v645
  %v1162 = vpack.c.b16 %v650, %v648
  %v1163 = vpack.c.b16 %v651, %v649
  %v1164 = vpack.c.b16 %v654, %v652
  %v1165 = vpack.c.b16 %v655, %v653
  %v1166 = vpack.c.b16 %v658, %v656
  %v1167 = vpack.c.b16 %v659, %v657
  %v1168 = vpack.c.b16 %v662, %v660
  %v1169 = vpack.c.b16 %v663, %v661
  %v1170 = vpack.c.b16 %v666, %v664
  %v1171 = vpack.c.b16 %v667, %v665
  %v1172 = vpack.c.b16 %v670, %v668
  %v1173 = vpack.c.b16 %v671, %v669
  %v1174 = vpack.c.b16 %v674, %v672
  %v1175 = vpack.c.b16 %v675, %v673
  %v1176 = vpack.c.b16 %v678, %v676
  %v1177 = vpack.c.b16 %v679, %v677
  %v1178 = vpack.c.b16 %v682, %v680
  %v1179 = vpack.c.b16 %v683, %v681
  %v1180 = vpack.c.b16 %v686, %v684
  %v1181 = vpack.c.b16 %v687, %v685
  %v1182 = vpack.c.b16 %v690, %v688
  %v1183 = vpack.c.b16 %v691, %v689
  %v1184 = vpack.c.b16 %v694, %v692
  %v1185 = vpack.c.b16 %v695, %v693
  %v1186 = vpack.c.b16 %v698, %v696
  %v1187 = vpack.c.b16 %v699, %v697
  %v1188 = vpack.c.b16 %v702, %v700
  %v1189 = vpack.c.b16 %v703, %v701
  %v1190 = vpack.c.b16 %v706, %v704
  %v1191 = vpack.c.b16 %v707, %v705
  %v1192 = vpack.c.b16 %v710, %v708
  %v1193 = vpack.c.b16 %v711, %v709
  %v1194 = vpack.c.b16 %v714, %v712
  %v1195 = vpack.c.b16 %v715, %v713
  %v1196 = vpack.c.b16 %v718, %v716
  %v1197 = vpack.c.b16 %v719, %v717
  %v1198 = vpack.c.b16 %v722, %v720
  %v1199 = vpack.c.b16 %v723, %v721
  %v1200 = vpack.c.b16 %v726, %v724
  %v1201 = vpack.c.b16 %v727, %v725
  %v1202 = vpack.c.b16 %v730, %v728
  %v1203 = vpack.c.b16 %v731, %v729
  %v1204 = vpack.c.b16 %v734, %v732
  %v1205 = vpack.c.b16 %v735, %v733
  %v1206 = vpack.c.b16 %v738, %v736
  %v1207 = vpack.c.b16 %v739, %v737
  %v1208 = vpack.c.b16 %v742, %v740
  %v1209 = vpack.c.b16 %v743, %v741
  %v1210 = vpack.c.b16 %v746, %v744
  %v1211 = vpack.c.b16 %v747, %v745
  %v1212 = vpack.c.b16 %v750, %v748
  %v1213 = vpack.c.b16 %v751, %v749
  %v1214 = vpack.c.b16 %v754, %v752
  %v1215 = vpack.c.b16 %v755, %v753
  %v1216 = vpack.c.b16 %v758, %v756
  %v1217 = vpack.c.b16 %v759, %v757
  %v1218 = vpack.c.b16 %v762, %v760
  %v1219 = vpack.c.b16 %v763, %v761
  %v1220 = vpack.c.b16 %v766, %v764
  %v1221 = vpack.c.b16 %v767, %v765
  %v1222 = vpack.c.b16 %v770, %v768
  %v1223 = vpack.c.b16 %v771, %v769
  %v1224 = vpack.c.b16 %v774, %v772
  %v1225 = vpack.c.b16 %v775, %v773
  %v1226 = vpack.c.b16 %v778, %v776
  %v1227 = vpack.c.b16 %v779, %v777
  %v1228 = vpack.c.b16 %v782, %v780
  %v1229 = vpack.c.b16 %v783, %v781
  %v1230 = vpack.c.b16 %v786, %v784
  %v1231 = vpack.c.b16 %v787, %v785
  %v1232 = vpack.c.b16 %v790, %v788
  %v1233 = vpack.c.b16 %v791, %v789
  %v1234 = vpack.c.b16 %v794, %v792
  %v1235 = vpack.c.b16 %v795, %v793
  %v1236 = vpack.c.b16 %v798, %v796
  %v1237 = vpack.c.b16 %v799, %v797
  %v1238 = vpack.c.b16 %v802, %v800
  %v1239 = vpack.c.b16 %v803, %v801
  %v1240 = vpack.c.b16 %v806, %v804
  %v1241 = vpack.c.b16 %v807, %v805
  %v1242 = vpack.c.b16 %v810, %v808
  %v1243 = vpack.c.b16 %v811, %v809
  %v1244 = vpack.c.b16 %v814, %v812
  %v1245 = vpack.c.b16 %v815, %v813
  %v1246 = vpack.c.b16 %v818, %v816
  %v1247 = vpack.c.b16 %v819, %v817
  %v1248 = vpack.c.b16 %v822, %v820
  %v1249 = vpack.c.b16 %v823, %v821
  %v1250 = vpack.c.b16 %v826, %v824
  %v1251 = vpack.c.b16 %v827, %v825
  %v1252 = vpack.c.b16 %v830, %v828
  %v1253 = vpack.c.b16 %v831, %v829
  %v1254 = vpack.c.b16 %v834, %v832
  %v1255 = vpack.c.b16 %v835, %v833
  %v1256 = vpack.c.b16 %v838, %v836
  %v1257 = vpack.c.b16 %v839, %v837
  %v1258 = vpack.c.b16 %v842, %v840
  %v1259 = vpack.c.b16 %v843, %v841
  %v1260 = vpack.c.b16 %v846, %v844
  %v1261 = vpack.c.b16 %v847, %v845
  %v1262 = vpack.c.b16 %v850, %v848
  %v1263 = vpack.c.b16 %v851, %v849
  %v1264 = vpack.c.b16 %v854, %v852
  %v1265 = vpack.c.b16 %v855, %v853
  %v1266 = vpack.c.b16 %v858, %v856
  %v1267 = vpack.c.b16 %v859, %v857
  %v1268 = vpack.c.b16 %v862, %v860
  %v1269 = vpack.c.b16 %v863, %v861
  %v1270 = vpack.c.b16 %v866, %v864
  %v1271 = vpack.c.b16 %v867, %v865
  %v1272 = vpack.c.b16 %v870, %v868
  %v1273 = vpack.c.b16 %v871, %v869
  %v1274 = vpack.c.b16 %v874, %v872
  %v1275 = vpack.c.b16 %v875, %v873
  %v1276 = vpack.c.b16 %v878, %v876
  %v1277 = vpack.c.b16 %v879, %v877
  %v1278 = vpack.c.b16 %v882, %v880
  %v1279 = vpack.c.b16 %v883, %v881
  %v1280 = vpack.c.b16 %v886, %v884
  %v1281 = vpack.c.b16 %v887, %v885
  %v1282 = vpack.c.b16 %v890, %v888
  %v1283 = vpack.c.b16 %v891, %v889
  %v1284 = vpack.c.b16 %v894, %v892
  %v1285 = vpack.c.b16 %v895, %v893
  %v1286 = vpack.c.b16 %v898, %v896
  %v1287 = vpack.c.b16 %v899, %v897
  %v1288 = vpack.c.b16 %v902, %v900
  %v1289 = vpack.c.b16 %v903, %v901
  %v1290 = vpack.c.b16 %v906, %v904
  %v1291 = vpack.c.b16 %v907, %v905
  %v1292 = vpack.c.b16 %v910, %v908
  %v1293 = vpack.c.b16 %v911, %v909
  %v1294 = vpack.c.b16 %v914, %v912
  %v1295 = vpack.c.b16 %v915, %v913
  %v1296 = vpack.c.b16 %v918, %v916
  %v1297 = vpack.c.b16 %v919, %v917
  %v1298 = vpack.c.b16 %v922, %v920
  %v1299 = vpack.c.b16 %v923, %v921
  %v1300 = vpack.c.b16 %v926, %v924
  %v1301 = vpack.c.b16 %v927, %v925
  %v1302 = vpack.c.b16 %v930, %v928
  %v1303 = vpack.c.b16 %v931, %v929
  %v1304 = vpack.c.b16 %v934, %v932
  %v1305 = vpack.c.b16 %v935, %v933
  %v1306 = vpack.c.b16 %v938, %v936
  %v1307 = vpack.c.b16 %v939, %v937
  %v1308 = vpack.c.b16 %v942, %v940
  %v1309 = vpack.c.b16 %v943, %v941
  %v1310 = vpack.c.b16 %v946, %v944
  %v1311 = vpack.c.b16 %v947, %v945
  %v1312 = vpack.c.b16 %v950, %v948
  %v1313 = vpack.c.b16 %v951, %v949
  %v1314 = vpack.c.b16 %v954, %v952
  %v1315 = vpack.c.b16 %v955, %v953
  %v1316 = vpack.c.b16 %v958, %v956
  %v1317 = vpack.c.b16 %v959, %v957
  %v1318 = vpack.c.b16 %v962, %v960
  %v1319 = vpack.c.b16 %v963, %v961
  %v1320 = vpack.c.b16 %v966, %v964
  %v1321 = vpack.c.b16 %v967, %v965
  %v1322 = vpack.c.b16 %v970, %v968
  %v1323 = vpack.c.b16 %v971, %v969
  %v1324 = vpack.c.b16 %v974, %v972
  %v1325 = vpack.c.b16 %v975, %v973
  %v1326 = vpack.c.b16 %v978, %v976
  %v1327 = vpack.c.b16 %v979, %v977
  %v1328 = vpack.c.b16 %v982, %v980
  %v1329 = vpack.c.b16 %v983, %v981
  %v1330 = vpack.c.b16 %v986, %v984
  %v1331 = vpack.c.b16 %v987, %v985
  %v1332 = vpack.c.b16 %v990, %v988
  %v1333 = vpack.c.b16 %v991, %v989
  %v1334 = vpack.c.b16 %v994, %v992
  %v1335 = vpack.c.b16 %v995, %v993
  %v1336 = vpack.c.b16 %v998, %v996
  %v1337 = vpack.c.b16 %v999, %v997
  %v1338 = vpack.c.b16 %v1002, %v1000
  %v1339 = vpack.c.b16 %v1003, %v1001
  %v1340 = vpack.c.b16 %v1006, %v1004
  %v1341 = vpack.c.b16 %v1007, %v1005
  %v1342 = vpack.c.b16 %v1010, %v1008
  %v1343 = vpack.c.b16 %v1011, %v1009
  %v1344 = vpack.c.b16 %v1014, %v1012
  %v1345 = vpack.c.b16 %v1015, %v1013
  %v1346 = vpack.c.b16 %v1018, %v1016
  %v1347 = vpack.c.b16 %v1019, %v1017
  %v1348 = vpack.c.b16 %v1022, %v1020
  %v1349 = vpack.c.b16 %v1023, %v1021
  %v1350 = vpack.c.b16 %v1026, %v1024
  %v1351 = vpack.c.b16 %v1027, %v1025
  %v1352 = vpack.c.b16 %v1030, %v1028
  %v1353 = vpack.c.b16 %v1031, %v1029
  %v1354 = vpack.c.b16 %v1034, %v1032
  %v1355 = vpack.c.b16 %v1035, %v1033
  %v1356 = vpack.c.b16 %v1038, %v1036
  %v1357 = vpack.c.b16 %v1039, %v1037
  %v1358 = vpack.c.b16 %v1042, %v1040
  %v1359 = vpack.c.b16 %v1043, %v1041
  %v1360 = vpack.c.b16 %v1046, %v1044
  %v1361 = vpack.c.b16 %v1047, %v1045
  %v1362 = vpack.c.b16 %v1050, %v1048
  %v1363 = vpack.c.b16 %v1051, %v1049
  %v1364 = vpack.c.b16 %v1054, %v1052
  %v1365 = vpack.c.b16 %v1055, %v1053
  %v1366 = vpack.c.b16 %v1058, %v1056
  %v1367 = vpack.c.b16 %v1059, %v1057
  %v1368 = vpack.c.b16 %v1062, %v1060
  %v1369 = vpack.c.b16 %v1063, %v1061
  %v1370 = vpack.c.b16 %v1066, %v1064
  %v1371 = vpack.c.b16 %v1067, %v1065
  %v1372 = vpack.c.b16 %v1070, %v1068
  %v1373 = vpack.c.b16 %v1071, %v1069
  %v1374 = vpack.c.b16 %v1074, %v1072
  %v1375 = vpack.c.b16 %v1075, %v1073
  %v1376 = vpack.c.b16 %v1078, %v1076
  %v1377 = vpack.c.b16 %v1079, %v1077
  %v1378 = vpack.c.b16 %v1082, %v1080
  %v1379 = vpack.c.b16 %v1083, %v1081
  %v1380 = vpack.c.b16 %v1086, %v1084
  %v1381 = vpack.c.b16 %v1087, %v1085
  %v1382 = vpack.c.b16 %v1090, %v1088
  %v1383 = vpack.c.b16 %v1091, %v1089
  %v1384 = vpack.c.b16 %v1094, %v1092
  %v1385 = vpack.c.b16 %v1095, %v1093
  %v1386 = vpack.c.b16 %v1098, %v1096
  %v1387 = vpack.c.b16 %v1099, %v1097
  %v1388 = vpack.c.b16 %v1102, %v1100
  %v1389 = vpack.c.b16 %v1103, %v1101
  %v1390 = vpack.c.b16 %v1106, %v1104
  %v1391 = vpack.c.b16 %v1107, %v1105
  %v1392 = vpack.c.b16 %v1110, %v1108
  %v1393 = vpack.c.b16 %v1111, %v1109
  %v1394 = vpack.c.b16 %v1114, %v1112
  %v1395 = vpack.c.b16 %v1115, %v1113
  %v1396 = vpack.c.b16 %v1118, %v1116
  %v1397 = vpack.c.b16 %v1119, %v1117
  %v1398 = vpack.c.b16 %v1122, %v1120
  %v1399 = vpack.c.b16 %v1123, %v1121
  %v1400 = vpack.c.b16 %v1126, %v1124
  %v1401 = vpack.c.b16 %v1127, %v1125
  %v1402 = vpack.c.b16 %v1130, %v1128
  %v1403 = vpack.c.b16 %v1131, %v1129
  %v1404 = vpack.c.b16 %v1132, %v1132
  %v1405 = vpack.c.b16 %v1133, %v1133
  %v1710 = vunpack.c.l.b16 %v289
  %v1711 = vunpack.c.l.b16 %v290
  %v1712 = vunpack.c.l.b16 %v291
  %v1713 = vunpack.c.l.b16 %v292
  %v1714 = vunpack.c.l.b16 %v293
  %v1715 = vunpack.c.l.b16 %v294
  %v1716 = vunpack.c.l.b16 %v295
  %v1717 = vunpack.c.l.b16 %v296
  %v1718 = vunpack.c.l.b16 %v297
  %v1719 = vunpack.c.l.b16 %v298
  %v1720 = vunpack.c.l.b16 %v299
  %v1721 = vunpack.c.l.b16 %v300
  %v1722 = vunpack.c.l.b16 %v301
  %v1723 = vunpack.c.l.b16 %v302
  %v1724 = vunpack.c.l.b16 %v303
  %v1725 = vunpack.c.l.b16 %v304
  %v1726 = vunpack.c.l.b16 %v305
  %v1727 = vunpack.c.l.b16 %v306
  %v1728 = vunpack.c.l.b16 %v307
  %v1729 = vunpack.c.l.b16 %v308
  %v1730 = vunpack.c.l.b16 %v309
  %v1731 = vunpack.c.l.b16 %v310
  %v1732 = vunpack.c.l.b16 %v311
  %v1733 = vunpack.c.l.b16 %v312
  %v1734 = vunpack.c.l.b16 %v313
  %v1735 = vunpack.c.l.b16 %v314
  %v1736 = vunpack.c.l.b16 %v315
  %v1737 = vunpack.c.l.b16 %v316
  %v1738 = vunpack.c.l.b16 %v317
  %v1739 = vunpack.c.l.b16 %v318
  %v1740 = vunpack.c.l.b16 %v319
  %v1741 = vunpack.c.l.b16 %v320
  %v1742 = vpack.c.b16 %v1711, %v1710
  %v1743 = vpack.c.b16 %v1713, %v1712
  %v1744 = vpack.c.b16 %v1715, %v1714
  %v1745 = vpack.c.b16 %v1717, %v1716
  %v1746 = vpack.c.b16 %v1719, %v1718
  %v1747 = vpack.c.b16 %v1721, %v1720
  %v1748 = vpack.c.b16 %v1723, %v1722
  %v1749 = vpack.c.b16 %v1725, %v1724
  %v1750 = vpack.c.b16 %v1727, %v1726
  %v1751 = vpack.c.b16 %v1729, %v1728
  %v1752 = vpack.c.b16 %v1731, %v1730
  %v1753 = vpack.c.b16 %v1733, %v1732
  %v1754 = vpack.c.b16 %v1735, %v1734
  %v1755 = vpack.c.b16 %v1737, %v1736
  %v1756 = vpack.c.b16 %v1739, %v1738
  %v1757 = vpack.c.b16 %v1741, %v1740
  %1774 = vmatprep.subr.bf16.mxu0 0
  %1775 = vmatpush1.bf16.msra.mxu0 %v1749
  %1776 = vmatprep.subr.bf16.mxu0 0
  %1777 = vmatpush1.bf16.msra.mxu0 %v1748
  %1778 = vmatprep.subr.bf16.mxu0 0
  %1779 = vmatpush1.bf16.msra.mxu0 %v1747
  %1780 = vmatprep.subr.bf16.mxu0 0
  %1781 = vmatpush1.bf16.msra.mxu0 %v1746
  %1782 = vmatprep.subr.bf16.mxu0 0
  %1783 = vmatpush1.bf16.msra.mxu0 %v1745
  %1784 = vmatprep.subr.bf16.mxu0 0
  %1785 = vmatpush1.bf16.msra.mxu0 %v1744
  %1786 = vmatprep.subr.bf16.mxu0 0
  %1787 = vmatpush1.bf16.msra.mxu0 %v1743
  %1788 = vmatprep.subr.bf16.mxu0 0
  %1789 = vmatpush1.bf16.msra.mxu0 %v1742
  %1790 = vmatprep.subr.bf16.mxu0 0
  %1791 = vmatpush2.bf16.msra.mxu0 %v1757
  %1792 = vmatprep.subr.bf16.mxu0 0
  %1793 = vmatpush2.bf16.msra.mxu0 %v1756
  %1794 = vmatprep.subr.bf16.mxu0 0
  %1795 = vmatpush2.bf16.msra.mxu0 %v1755
  %1796 = vmatprep.subr.bf16.mxu0 0
  %1797 = vmatpush2.bf16.msra.mxu0 %v1754
  %1798 = vmatprep.subr.bf16.mxu0 0
  %1799 = vmatpush2.bf16.msra.mxu0 %v1753
  %1800 = vmatprep.subr.bf16.mxu0 0
  %1801 = vmatpush2.bf16.msra.mxu0 %v1752
  %1802 = vmatprep.subr.bf16.mxu0 0
  %1803 = vmatpush2.bf16.msra.mxu0 %v1751
  %1804 = vmatprep.subr.bf16.mxu0 0
  %1805 = vmatpush2.bf16.msra.mxu0 %v1750
  %1806 = vmatprep.mubr.bf16.mxu0 %v1135
  %1807 = vmatmul.mubr.bf16.gmra.mxu0 %v1134
  %v1808 = vpop.f32.mrf.mxu0
  %v1809 = vadd.f32 0.0, %v1808
  %v1810 = vpop.f32.mrf.mxu0
  %v1811 = vpop.f32.mrf.mxu0
  %v1812 = vadd.f32 0.0, %v1811
  %v1813 = vpop.f32.mrf.mxu0
  %1814 = vmatprep.mubr.bf16.mxu0 %v1137
  %1815 = vmatmul.mubr.bf16.gmra.mxu0 %v1136
  %v1816 = vpop.f32.mrf.mxu0
  %v1817 = vadd.f32 0.0, %v1816
  %v1818 = vpop.f32.mrf.mxu0
  %v1819 = vpop.f32.mrf.mxu0
  %v1820 = vadd.f32 0.0, %v1819
  %v1821 = vpop.f32.mrf.mxu0
  %1822 = vmatprep.mubr.bf16.mxu0 %v1139
  %1823 = vmatmul.mubr.bf16.gmra.mxu0 %v1138
  %v1824 = vpop.f32.mrf.mxu0
  %v1825 = vadd.f32 0.0, %v1824
  %v1826 = vpop.f32.mrf.mxu0
  %v1827 = vpop.f32.mrf.mxu0
  %v1828 = vadd.f32 0.0, %v1827
  %v1829 = vpop.f32.mrf.mxu0
  %1830 = vmatprep.mubr.bf16.mxu0 %v1141
  %1831 = vmatmul.mubr.bf16.gmra.mxu0 %v1140
  %v1832 = vpop.f32.mrf.mxu0
  %v1833 = vadd.f32 0.0, %v1832
  %v1834 = vpop.f32.mrf.mxu0
  %v1835 = vpop.f32.mrf.mxu0
  %v1836 = vadd.f32 0.0, %v1835
  %v1837 = vpop.f32.mrf.mxu0
  %1838 = vmatprep.mubr.bf16.mxu0 %v1143
  %1839 = vmatmul.mubr.bf16.gmra.mxu0 %v1142
  %v1840 = vpop.f32.mrf.mxu0
  %v1841 = vadd.f32 0.0, %v1840
  %v1842 = vpop.f32.mrf.mxu0
  %v1843 = vpop.f32.mrf.mxu0
  %v1844 = vadd.f32 0.0, %v1843
  %v1845 = vpop.f32.mrf.mxu0
  %1846 = vmatprep.mubr.bf16.mxu0 %v1145
  %1847 = vmatmul.mubr.bf16.gmra.mxu0 %v1144
  %v1848 = vpop.f32.mrf.mxu0
  %v1849 = vadd.f32 0.0, %v1848
  %v1850 = vpop.f32.mrf.mxu0
  %v1851 = vpop.f32.mrf.mxu0
  %v1852 = vadd.f32 0.0, %v1851
  %v1853 = vpop.f32.mrf.mxu0
  %1854 = vmatprep.mubr.bf16.mxu0 %v1147
  %1855 = vmatmul.mubr.bf16.gmra.mxu0 %v1146
  %v1856 = vpop.f32.mrf.mxu0
  %v1857 = vadd.f32 0.0, %v1856
  %v1858 = vpop.f32.mrf.mxu0
  %v1859 = vpop.f32.mrf.mxu0
  %v1860 = vadd.f32 0.0, %v1859
  %v1861 = vpop.f32.mrf.mxu0
  %1862 = vmatprep.mubr.bf16.mxu0 %v1149
  %1863 = vmatmul.mubr.bf16.gmra.mxu0 %v1148
  %v1864 = vpop.f32.mrf.mxu0
  %v1865 = vadd.f32 0.0, %v1864
  %v1866 = vpop.f32.mrf.mxu0
  %v1867 = vpop.f32.mrf.mxu0
  %v1868 = vadd.f32 0.0, %v1867
  %v1869 = vpop.f32.mrf.mxu0
  %1870 = vmatprep.mubr.bf16.mxu0 %v1151
  %1871 = vmatmul.mubr.bf16.gmra.mxu0 %v1150
  %v1872 = vpop.f32.mrf.mxu0
  %v1873 = vadd.f32 0.0, %v1872
  %v1874 = vpop.f32.mrf.mxu0
  %v1875 = vpop.f32.mrf.mxu0
  %v1876 = vadd.f32 0.0, %v1875
  %v1877 = vpop.f32.mrf.mxu0
  %1878 = vmatprep.mubr.bf16.mxu0 %v1153
  %1879 = vmatmul.mubr.bf16.gmra.mxu0 %v1152
  %v1880 = vpop.f32.mrf.mxu0
  %v1881 = vadd.f32 0.0, %v1880
  %v1882 = vpop.f32.mrf.mxu0
  %v1883 = vpop.f32.mrf.mxu0
  %v1884 = vadd.f32 0.0, %v1883
  %v1885 = vpop.f32.mrf.mxu0
  %1886 = vmatprep.mubr.bf16.mxu0 %v1155
  %1887 = vmatmul.mubr.bf16.gmra.mxu0 %v1154
  %v1888 = vpop.f32.mrf.mxu0
  %v1889 = vadd.f32 0.0, %v1888
  %v1890 = vpop.f32.mrf.mxu0
  %v1891 = vpop.f32.mrf.mxu0
  %v1892 = vadd.f32 0.0, %v1891
  %v1893 = vpop.f32.mrf.mxu0
  %1894 = vmatprep.mubr.bf16.mxu0 %v1157
  %1895 = vmatmul.mubr.bf16.gmra.mxu0 %v1156
  %v1896 = vpop.f32.mrf.mxu0
  %v1897 = vadd.f32 0.0, %v1896
  %v1898 = vpop.f32.mrf.mxu0
  %v1899 = vpop.f32.mrf.mxu0
  %v1900 = vadd.f32 0.0, %v1899
  %v1901 = vpop.f32.mrf.mxu0
  %1902 = vmatprep.mubr.bf16.mxu0 %v1159
  %1903 = vmatmul.mubr.bf16.gmra.mxu0 %v1158
  %v1904 = vpop.f32.mrf.mxu0
  %v1905 = vadd.f32 0.0, %v1904
  %v1906 = vpop.f32.mrf.mxu0
  %v1907 = vpop.f32.mrf.mxu0
  %v1908 = vadd.f32 0.0, %v1907
  %v1909 = vpop.f32.mrf.mxu0
  %1910 = vmatprep.mubr.bf16.mxu0 %v1161
  %1911 = vmatmul.mubr.bf16.gmra.mxu0 %v1160
  %v1912 = vpop.f32.mrf.mxu0
  %v1913 = vadd.f32 0.0, %v1912
  %v1914 = vpop.f32.mrf.mxu0
  %v1915 = vpop.f32.mrf.mxu0
  %v1916 = vadd.f32 0.0, %v1915
  %v1917 = vpop.f32.mrf.mxu0
  %1918 = vmatprep.mubr.bf16.mxu0 %v1163
  %1919 = vmatmul.mubr.bf16.gmra.mxu0 %v1162
  %v1920 = vpop.f32.mrf.mxu0
  %v1921 = vadd.f32 0.0, %v1920
  %v1922 = vpop.f32.mrf.mxu0
  %v1923 = vpop.f32.mrf.mxu0
  %v1924 = vadd.f32 0.0, %v1923
  %v1925 = vpop.f32.mrf.mxu0
  %1926 = vmatprep.mubr.bf16.mxu0 %v1165
  %1927 = vmatmul.mubr.bf16.gmra.mxu0 %v1164
  %v1928 = vpop.f32.mrf.mxu0
  %v1929 = vadd.f32 0.0, %v1928
  %v1930 = vpop.f32.mrf.mxu0
  %v1931 = vpop.f32.mrf.mxu0
  %v1932 = vadd.f32 0.0, %v1931
  %v1933 = vpop.f32.mrf.mxu0
  %1934 = vmatprep.mubr.bf16.mxu0 %v1167
  %1935 = vmatmul.mubr.bf16.gmra.mxu0 %v1166
  %v1936 = vpop.f32.mrf.mxu0
  %v1937 = vadd.f32 0.0, %v1936
  %v1938 = vpop.f32.mrf.mxu0
  %v1939 = vpop.f32.mrf.mxu0
  %v1940 = vadd.f32 0.0, %v1939
  %v1941 = vpop.f32.mrf.mxu0
  %1942 = vmatprep.mubr.bf16.mxu0 %v1169
  %1943 = vmatmul.mubr.bf16.gmra.mxu0 %v1168
  %v1944 = vpop.f32.mrf.mxu0
  %v1945 = vadd.f32 0.0, %v1944
  %v1946 = vpop.f32.mrf.mxu0
  %v1947 = vpop.f32.mrf.mxu0
  %v1948 = vadd.f32 0.0, %v1947
  %v1949 = vpop.f32.mrf.mxu0
  %1950 = vmatprep.mubr.bf16.mxu0 %v1171
  %1951 = vmatmul.mubr.bf16.gmra.mxu0 %v1170
  %v1952 = vpop.f32.mrf.mxu0
  %v1953 = vadd.f32 0.0, %v1952
  %v1954 = vpop.f32.mrf.mxu0
  %v1955 = vpop.f32.mrf.mxu0
  %v1956 = vadd.f32 0.0, %v1955
  %v1957 = vpop.f32.mrf.mxu0
  %1958 = vmatprep.mubr.bf16.mxu0 %v1173
  %1959 = vmatmul.mubr.bf16.gmra.mxu0 %v1172
  %v1960 = vpop.f32.mrf.mxu0
  %v1961 = vadd.f32 0.0, %v1960
  %v1962 = vpop.f32.mrf.mxu0
  %v1963 = vpop.f32.mrf.mxu0
  %v1964 = vadd.f32 0.0, %v1963
  %v1965 = vpop.f32.mrf.mxu0
  %1966 = vmatprep.mubr.bf16.mxu0 %v1175
  %1967 = vmatmul.mubr.bf16.gmra.mxu0 %v1174
  %v1968 = vpop.f32.mrf.mxu0
  %v1969 = vadd.f32 0.0, %v1968
  %v1970 = vpop.f32.mrf.mxu0
  %v1971 = vpop.f32.mrf.mxu0
  %v1972 = vadd.f32 0.0, %v1971
  %v1973 = vpop.f32.mrf.mxu0
  %1974 = vmatprep.mubr.bf16.mxu0 %v1177
  %1975 = vmatmul.mubr.bf16.gmra.mxu0 %v1176
  %v1976 = vpop.f32.mrf.mxu0
  %v1977 = vadd.f32 0.0, %v1976
  %v1978 = vpop.f32.mrf.mxu0
  %v1979 = vpop.f32.mrf.mxu0
  %v1980 = vadd.f32 0.0, %v1979
  %v1981 = vpop.f32.mrf.mxu0
  %1982 = vmatprep.mubr.bf16.mxu0 %v1179
  %1983 = vmatmul.mubr.bf16.gmra.mxu0 %v1178
  %v1984 = vpop.f32.mrf.mxu0
  %v1985 = vadd.f32 0.0, %v1984
  %v1986 = vpop.f32.mrf.mxu0
  %v1987 = vpop.f32.mrf.mxu0
  %v1988 = vadd.f32 0.0, %v1987
  %v1989 = vpop.f32.mrf.mxu0
  %1990 = vmatprep.mubr.bf16.mxu0 %v1181
  %1991 = vmatmul.mubr.bf16.gmra.mxu0 %v1180
  %v1992 = vpop.f32.mrf.mxu0
  %v1993 = vadd.f32 0.0, %v1992
  %v1994 = vpop.f32.mrf.mxu0
  %v1995 = vpop.f32.mrf.mxu0
  %v1996 = vadd.f32 0.0, %v1995
  %v1997 = vpop.f32.mrf.mxu0
  %1998 = vmatprep.mubr.bf16.mxu0 %v1183
  %1999 = vmatmul.mubr.bf16.gmra.mxu0 %v1182
  %v2000 = vpop.f32.mrf.mxu0
  %v2001 = vadd.f32 0.0, %v2000
  %v2002 = vpop.f32.mrf.mxu0
  %v2003 = vpop.f32.mrf.mxu0
  %v2004 = vadd.f32 0.0, %v2003
  %v2005 = vpop.f32.mrf.mxu0
  %2006 = vmatprep.mubr.bf16.mxu0 %v1185
  %2007 = vmatmul.mubr.bf16.gmra.mxu0 %v1184
  %v2008 = vpop.f32.mrf.mxu0
  %v2009 = vadd.f32 0.0, %v2008
  %v2010 = vpop.f32.mrf.mxu0
  %v2011 = vpop.f32.mrf.mxu0
  %v2012 = vadd.f32 0.0, %v2011
  %v2013 = vpop.f32.mrf.mxu0
  %2014 = vmatprep.mubr.bf16.mxu0 %v1187
  %2015 = vmatmul.mubr.bf16.gmra.mxu0 %v1186
  %v2016 = vpop.f32.mrf.mxu0
  %v2017 = vadd.f32 0.0, %v2016
  %v2018 = vpop.f32.mrf.mxu0
  %v2019 = vpop.f32.mrf.mxu0
  %v2020 = vadd.f32 0.0, %v2019
  %v2021 = vpop.f32.mrf.mxu0
  %2022 = vmatprep.mubr.bf16.mxu0 %v1189
  %2023 = vmatmul.mubr.bf16.gmra.mxu0 %v1188
  %v2024 = vpop.f32.mrf.mxu0
  %v2025 = vadd.f32 0.0, %v2024
  %v2026 = vpop.f32.mrf.mxu0
  %v2027 = vpop.f32.mrf.mxu0
  %v2028 = vadd.f32 0.0, %v2027
  %v2029 = vpop.f32.mrf.mxu0
  %2030 = vmatprep.mubr.bf16.mxu0 %v1191
  %2031 = vmatmul.mubr.bf16.gmra.mxu0 %v1190
  %v2032 = vpop.f32.mrf.mxu0
  %v2033 = vadd.f32 0.0, %v2032
  %v2034 = vpop.f32.mrf.mxu0
  %v2035 = vpop.f32.mrf.mxu0
  %v2036 = vadd.f32 0.0, %v2035
  %v2037 = vpop.f32.mrf.mxu0
  %2038 = vmatprep.mubr.bf16.mxu0 %v1193
  %2039 = vmatmul.mubr.bf16.gmra.mxu0 %v1192
  %v2040 = vpop.f32.mrf.mxu0
  %v2041 = vadd.f32 0.0, %v2040
  %v2042 = vpop.f32.mrf.mxu0
  %v2043 = vpop.f32.mrf.mxu0
  %v2044 = vadd.f32 0.0, %v2043
  %v2045 = vpop.f32.mrf.mxu0
  %2046 = vmatprep.mubr.bf16.mxu0 %v1195
  %2047 = vmatmul.mubr.bf16.gmra.mxu0 %v1194
  %v2048 = vpop.f32.mrf.mxu0
  %v2049 = vadd.f32 0.0, %v2048
  %v2050 = vpop.f32.mrf.mxu0
  %v2051 = vpop.f32.mrf.mxu0
  %v2052 = vadd.f32 0.0, %v2051
  %v2053 = vpop.f32.mrf.mxu0
  %2054 = vmatprep.mubr.bf16.mxu0 %v1197
  %2055 = vmatmul.mubr.bf16.gmra.mxu0 %v1196
  %v2056 = vpop.f32.mrf.mxu0
  %v2057 = vadd.f32 0.0, %v2056
  %v2058 = vpop.f32.mrf.mxu0
  %v2059 = vpop.f32.mrf.mxu0
  %v2060 = vadd.f32 0.0, %v2059
  %v2061 = vpop.f32.mrf.mxu0
  %2062 = vmatprep.mubr.bf16.mxu0 %v1199
  %2063 = vmatmul.mubr.bf16.gmra.mxu0 %v1198
  %v2064 = vpop.f32.mrf.mxu0
  %v2065 = vadd.f32 0.0, %v2064
  %v2066 = vpop.f32.mrf.mxu0
  %v2067 = vpop.f32.mrf.mxu0
  %v2068 = vadd.f32 0.0, %v2067
  %v2069 = vpop.f32.mrf.mxu0
  %2070 = vmatprep.mubr.bf16.mxu0 %v1201
  %2071 = vmatmul.mubr.bf16.gmra.mxu0 %v1200
  %v2072 = vpop.f32.mrf.mxu0
  %v2073 = vadd.f32 0.0, %v2072
  %v2074 = vpop.f32.mrf.mxu0
  %v2075 = vpop.f32.mrf.mxu0
  %v2076 = vadd.f32 0.0, %v2075
  %v2077 = vpop.f32.mrf.mxu0
  %2078 = vmatprep.mubr.bf16.mxu0 %v1203
  %2079 = vmatmul.mubr.bf16.gmra.mxu0 %v1202
  %v2080 = vpop.f32.mrf.mxu0
  %v2081 = vadd.f32 0.0, %v2080
  %v2082 = vpop.f32.mrf.mxu0
  %v2083 = vpop.f32.mrf.mxu0
  %v2084 = vadd.f32 0.0, %v2083
  %v2085 = vpop.f32.mrf.mxu0
  %2086 = vmatprep.mubr.bf16.mxu0 %v1205
  %2087 = vmatmul.mubr.bf16.gmra.mxu0 %v1204
  %v2088 = vpop.f32.mrf.mxu0
  %v2089 = vadd.f32 0.0, %v2088
  %v2090 = vpop.f32.mrf.mxu0
  %v2091 = vpop.f32.mrf.mxu0
  %v2092 = vadd.f32 0.0, %v2091
  %v2093 = vpop.f32.mrf.mxu0
  %2094 = vmatprep.mubr.bf16.mxu0 %v1207
  %2095 = vmatmul.mubr.bf16.gmra.mxu0 %v1206
  %v2096 = vpop.f32.mrf.mxu0
  %v2097 = vadd.f32 0.0, %v2096
  %v2098 = vpop.f32.mrf.mxu0
  %v2099 = vpop.f32.mrf.mxu0
  %v2100 = vadd.f32 0.0, %v2099
  %v2101 = vpop.f32.mrf.mxu0
  %2102 = vmatprep.mubr.bf16.mxu0 %v1209
  %2103 = vmatmul.mubr.bf16.gmra.mxu0 %v1208
  %v2104 = vpop.f32.mrf.mxu0
  %v2105 = vadd.f32 0.0, %v2104
  %v2106 = vpop.f32.mrf.mxu0
  %v2107 = vpop.f32.mrf.mxu0
  %v2108 = vadd.f32 0.0, %v2107
  %v2109 = vpop.f32.mrf.mxu0
  %2110 = vmatprep.mubr.bf16.mxu0 %v1211
  %2111 = vmatmul.mubr.bf16.gmra.mxu0 %v1210
  %v2112 = vpop.f32.mrf.mxu0
  %v2113 = vadd.f32 0.0, %v2112
  %v2114 = vpop.f32.mrf.mxu0
  %v2115 = vpop.f32.mrf.mxu0
  %v2116 = vadd.f32 0.0, %v2115
  %v2117 = vpop.f32.mrf.mxu0
  %2118 = vmatprep.mubr.bf16.mxu0 %v1213
  %2119 = vmatmul.mubr.bf16.gmra.mxu0 %v1212
  %v2120 = vpop.f32.mrf.mxu0
  %v2121 = vadd.f32 0.0, %v2120
  %v2122 = vpop.f32.mrf.mxu0
  %v2123 = vpop.f32.mrf.mxu0
  %v2124 = vadd.f32 0.0, %v2123
  %v2125 = vpop.f32.mrf.mxu0
  %2126 = vmatprep.mubr.bf16.mxu0 %v1215
  %2127 = vmatmul.mubr.bf16.gmra.mxu0 %v1214
  %v2128 = vpop.f32.mrf.mxu0
  %v2129 = vadd.f32 0.0, %v2128
  %v2130 = vpop.f32.mrf.mxu0
  %v2131 = vpop.f32.mrf.mxu0
  %v2132 = vadd.f32 0.0, %v2131
  %v2133 = vpop.f32.mrf.mxu0
  %2134 = vmatprep.mubr.bf16.mxu0 %v1217
  %2135 = vmatmul.mubr.bf16.gmra.mxu0 %v1216
  %v2136 = vpop.f32.mrf.mxu0
  %v2137 = vadd.f32 0.0, %v2136
  %v2138 = vpop.f32.mrf.mxu0
  %v2139 = vpop.f32.mrf.mxu0
  %v2140 = vadd.f32 0.0, %v2139
  %v2141 = vpop.f32.mrf.mxu0
  %2142 = vmatprep.mubr.bf16.mxu0 %v1219
  %2143 = vmatmul.mubr.bf16.gmra.mxu0 %v1218
  %v2144 = vpop.f32.mrf.mxu0
  %v2145 = vadd.f32 0.0, %v2144
  %v2146 = vpop.f32.mrf.mxu0
  %v2147 = vpop.f32.mrf.mxu0
  %v2148 = vadd.f32 0.0, %v2147
  %v2149 = vpop.f32.mrf.mxu0
  %2150 = vmatprep.mubr.bf16.mxu0 %v1221
  %2151 = vmatmul.mubr.bf16.gmra.mxu0 %v1220
  %v2152 = vpop.f32.mrf.mxu0
  %v2153 = vadd.f32 0.0, %v2152
  %v2154 = vpop.f32.mrf.mxu0
  %v2155 = vpop.f32.mrf.mxu0
  %v2156 = vadd.f32 0.0, %v2155
  %v2157 = vpop.f32.mrf.mxu0
  %2158 = vmatprep.mubr.bf16.mxu0 %v1223
  %2159 = vmatmul.mubr.bf16.gmra.mxu0 %v1222
  %v2160 = vpop.f32.mrf.mxu0
  %v2161 = vadd.f32 0.0, %v2160
  %v2162 = vpop.f32.mrf.mxu0
  %v2163 = vpop.f32.mrf.mxu0
  %v2164 = vadd.f32 0.0, %v2163
  %v2165 = vpop.f32.mrf.mxu0
  %2166 = vmatprep.mubr.bf16.mxu0 %v1225
  %2167 = vmatmul.mubr.bf16.gmra.mxu0 %v1224
  %v2168 = vpop.f32.mrf.mxu0
  %v2169 = vadd.f32 0.0, %v2168
  %v2170 = vpop.f32.mrf.mxu0
  %v2171 = vpop.f32.mrf.mxu0
  %v2172 = vadd.f32 0.0, %v2171
  %v2173 = vpop.f32.mrf.mxu0
  %2174 = vmatprep.mubr.bf16.mxu0 %v1227
  %2175 = vmatmul.mubr.bf16.gmra.mxu0 %v1226
  %v2176 = vpop.f32.mrf.mxu0
  %v2177 = vadd.f32 0.0, %v2176
  %v2178 = vpop.f32.mrf.mxu0
  %v2179 = vpop.f32.mrf.mxu0
  %v2180 = vadd.f32 0.0, %v2179
  %v2181 = vpop.f32.mrf.mxu0
  %2182 = vmatprep.mubr.bf16.mxu0 %v1229
  %2183 = vmatmul.mubr.bf16.gmra.mxu0 %v1228
  %v2184 = vpop.f32.mrf.mxu0
  %v2185 = vadd.f32 0.0, %v2184
  %v2186 = vpop.f32.mrf.mxu0
  %v2187 = vpop.f32.mrf.mxu0
  %v2188 = vadd.f32 0.0, %v2187
  %v2189 = vpop.f32.mrf.mxu0
  %2190 = vmatprep.mubr.bf16.mxu0 %v1231
  %2191 = vmatmul.mubr.bf16.gmra.mxu0 %v1230
  %v2192 = vpop.f32.mrf.mxu0
  %v2193 = vadd.f32 0.0, %v2192
  %v2194 = vpop.f32.mrf.mxu0
  %v2195 = vpop.f32.mrf.mxu0
  %v2196 = vadd.f32 0.0, %v2195
  %v2197 = vpop.f32.mrf.mxu0
  %2198 = vmatprep.mubr.bf16.mxu0 %v1233
  %2199 = vmatmul.mubr.bf16.gmra.mxu0 %v1232
  %v2200 = vpop.f32.mrf.mxu0
  %v2201 = vadd.f32 0.0, %v2200
  %v2202 = vpop.f32.mrf.mxu0
  %v2203 = vpop.f32.mrf.mxu0
  %v2204 = vadd.f32 0.0, %v2203
  %v2205 = vpop.f32.mrf.mxu0
  %2206 = vmatprep.mubr.bf16.mxu0 %v1235
  %2207 = vmatmul.mubr.bf16.gmra.mxu0 %v1234
  %v2208 = vpop.f32.mrf.mxu0
  %v2209 = vadd.f32 0.0, %v2208
  %v2210 = vpop.f32.mrf.mxu0
  %v2211 = vpop.f32.mrf.mxu0
  %v2212 = vadd.f32 0.0, %v2211
  %v2213 = vpop.f32.mrf.mxu0
  %2214 = vmatprep.mubr.bf16.mxu0 %v1237
  %2215 = vmatmul.mubr.bf16.gmra.mxu0 %v1236
  %v2216 = vpop.f32.mrf.mxu0
  %v2217 = vadd.f32 0.0, %v2216
  %v2218 = vpop.f32.mrf.mxu0
  %v2219 = vpop.f32.mrf.mxu0
  %v2220 = vadd.f32 0.0, %v2219
  %v2221 = vpop.f32.mrf.mxu0
  %2222 = vmatprep.mubr.bf16.mxu0 %v1239
  %2223 = vmatmul.mubr.bf16.gmra.mxu0 %v1238
  %v2224 = vpop.f32.mrf.mxu0
  %v2225 = vadd.f32 0.0, %v2224
  %v2226 = vpop.f32.mrf.mxu0
  %v2227 = vpop.f32.mrf.mxu0
  %v2228 = vadd.f32 0.0, %v2227
  %v2229 = vpop.f32.mrf.mxu0
  %2230 = vmatprep.mubr.bf16.mxu0 %v1241
  %2231 = vmatmul.mubr.bf16.gmra.mxu0 %v1240
  %v2232 = vpop.f32.mrf.mxu0
  %v2233 = vadd.f32 0.0, %v2232
  %v2234 = vpop.f32.mrf.mxu0
  %v2235 = vpop.f32.mrf.mxu0
  %v2236 = vadd.f32 0.0, %v2235
  %v2237 = vpop.f32.mrf.mxu0
  %2238 = vmatprep.mubr.bf16.mxu0 %v1243
  %2239 = vmatmul.mubr.bf16.gmra.mxu0 %v1242
  %v2240 = vpop.f32.mrf.mxu0
  %v2241 = vadd.f32 0.0, %v2240
  %v2242 = vpop.f32.mrf.mxu0
  %v2243 = vpop.f32.mrf.mxu0
  %v2244 = vadd.f32 0.0, %v2243
  %v2245 = vpop.f32.mrf.mxu0
  %2246 = vmatprep.mubr.bf16.mxu0 %v1245
  %2247 = vmatmul.mubr.bf16.gmra.mxu0 %v1244
  %v2248 = vpop.f32.mrf.mxu0
  %v2249 = vadd.f32 0.0, %v2248
  %v2250 = vpop.f32.mrf.mxu0
  %v2251 = vpop.f32.mrf.mxu0
  %v2252 = vadd.f32 0.0, %v2251
  %v2253 = vpop.f32.mrf.mxu0
  %2254 = vmatprep.mubr.bf16.mxu0 %v1247
  %2255 = vmatmul.mubr.bf16.gmra.mxu0 %v1246
  %v2256 = vpop.f32.mrf.mxu0
  %v2257 = vadd.f32 0.0, %v2256
  %v2258 = vpop.f32.mrf.mxu0
  %v2259 = vpop.f32.mrf.mxu0
  %v2260 = vadd.f32 0.0, %v2259
  %v2261 = vpop.f32.mrf.mxu0
  %2262 = vmatprep.mubr.bf16.mxu0 %v1249
  %2263 = vmatmul.mubr.bf16.gmra.mxu0 %v1248
  %v2264 = vpop.f32.mrf.mxu0
  %v2265 = vadd.f32 0.0, %v2264
  %v2266 = vpop.f32.mrf.mxu0
  %v2267 = vpop.f32.mrf.mxu0
  %v2268 = vadd.f32 0.0, %v2267
  %v2269 = vpop.f32.mrf.mxu0
  %2270 = vmatprep.mubr.bf16.mxu0 %v1251
  %2271 = vmatmul.mubr.bf16.gmra.mxu0 %v1250
  %v2272 = vpop.f32.mrf.mxu0
  %v2273 = vadd.f32 0.0, %v2272
  %v2274 = vpop.f32.mrf.mxu0
  %v2275 = vpop.f32.mrf.mxu0
  %v2276 = vadd.f32 0.0, %v2275
  %v2277 = vpop.f32.mrf.mxu0
  %2278 = vmatprep.mubr.bf16.mxu0 %v1253
  %2279 = vmatmul.mubr.bf16.gmra.mxu0 %v1252
  %v2280 = vpop.f32.mrf.mxu0
  %v2281 = vadd.f32 0.0, %v2280
  %v2282 = vpop.f32.mrf.mxu0
  %v2283 = vpop.f32.mrf.mxu0
  %v2284 = vadd.f32 0.0, %v2283
  %v2285 = vpop.f32.mrf.mxu0
  %2286 = vmatprep.mubr.bf16.mxu0 %v1255
  %2287 = vmatmul.mubr.bf16.gmra.mxu0 %v1254
  %v2288 = vpop.f32.mrf.mxu0
  %v2289 = vadd.f32 0.0, %v2288
  %v2290 = vpop.f32.mrf.mxu0
  %v2291 = vpop.f32.mrf.mxu0
  %v2292 = vadd.f32 0.0, %v2291
  %v2293 = vpop.f32.mrf.mxu0
  %2294 = vmatprep.mubr.bf16.mxu0 %v1257
  %2295 = vmatmul.mubr.bf16.gmra.mxu0 %v1256
  %v2296 = vpop.f32.mrf.mxu0
  %v2297 = vadd.f32 0.0, %v2296
  %v2298 = vpop.f32.mrf.mxu0
  %v2299 = vpop.f32.mrf.mxu0
  %v2300 = vadd.f32 0.0, %v2299
  %v2301 = vpop.f32.mrf.mxu0
  %2302 = vmatprep.mubr.bf16.mxu0 %v1259
  %2303 = vmatmul.mubr.bf16.gmra.mxu0 %v1258
  %v2304 = vpop.f32.mrf.mxu0
  %v2305 = vadd.f32 0.0, %v2304
  %v2306 = vpop.f32.mrf.mxu0
  %v2307 = vpop.f32.mrf.mxu0
  %v2308 = vadd.f32 0.0, %v2307
  %v2309 = vpop.f32.mrf.mxu0
  %2310 = vmatprep.mubr.bf16.mxu0 %v1261
  %2311 = vmatmul.mubr.bf16.gmra.mxu0 %v1260
  %v2312 = vpop.f32.mrf.mxu0
  %v2313 = vadd.f32 0.0, %v2312
  %v2314 = vpop.f32.mrf.mxu0
  %v2315 = vpop.f32.mrf.mxu0
  %v2316 = vadd.f32 0.0, %v2315
  %v2317 = vpop.f32.mrf.mxu0
  %2318 = vmatprep.mubr.bf16.mxu0 %v1263
  %2319 = vmatmul.mubr.bf16.gmra.mxu0 %v1262
  %v2320 = vpop.f32.mrf.mxu0
  %v2321 = vadd.f32 0.0, %v2320
  %v2322 = vpop.f32.mrf.mxu0
  %v2323 = vpop.f32.mrf.mxu0
  %v2324 = vadd.f32 0.0, %v2323
  %v2325 = vpop.f32.mrf.mxu0
  %2326 = vmatprep.mubr.bf16.mxu0 %v1265
  %2327 = vmatmul.mubr.bf16.gmra.mxu0 %v1264
  %v2328 = vpop.f32.mrf.mxu0
  %v2329 = vadd.f32 0.0, %v2328
  %v2330 = vpop.f32.mrf.mxu0
  %v2331 = vpop.f32.mrf.mxu0
  %v2332 = vadd.f32 0.0, %v2331
  %v2333 = vpop.f32.mrf.mxu0
  %2334 = vmatprep.mubr.bf16.mxu0 %v1267
  %2335 = vmatmul.mubr.bf16.gmra.mxu0 %v1266
  %v2336 = vpop.f32.mrf.mxu0
  %v2337 = vadd.f32 0.0, %v2336
  %v2338 = vpop.f32.mrf.mxu0
  %v2339 = vpop.f32.mrf.mxu0
  %v2340 = vadd.f32 0.0, %v2339
  %v2341 = vpop.f32.mrf.mxu0
  %2342 = vmatprep.mubr.bf16.mxu0 %v1269
  %2343 = vmatmul.mubr.bf16.gmra.mxu0 %v1268
  %v2344 = vpop.f32.mrf.mxu0
  %v2345 = vadd.f32 0.0, %v2344
  %v2346 = vpop.f32.mrf.mxu0
  %v2347 = vpop.f32.mrf.mxu0
  %v2348 = vadd.f32 0.0, %v2347
  %v2349 = vpop.f32.mrf.mxu0
  %2350 = vmatprep.mubr.bf16.mxu0 %v1271
  %2351 = vmatmul.mubr.bf16.gmra.mxu0 %v1270
  %v2352 = vpop.f32.mrf.mxu0
  %v2353 = vadd.f32 0.0, %v2352
  %v2354 = vpop.f32.mrf.mxu0
  %v2355 = vpop.f32.mrf.mxu0
  %v2356 = vadd.f32 0.0, %v2355
  %v2357 = vpop.f32.mrf.mxu0
  %2358 = vmatprep.mubr.bf16.mxu0 %v1273
  %2359 = vmatmul.mubr.bf16.gmra.mxu0 %v1272
  %v2360 = vpop.f32.mrf.mxu0
  %v2361 = vadd.f32 0.0, %v2360
  %v2362 = vpop.f32.mrf.mxu0
  %v2363 = vpop.f32.mrf.mxu0
  %v2364 = vadd.f32 0.0, %v2363
  %v2365 = vpop.f32.mrf.mxu0
  %2366 = vmatprep.mubr.bf16.mxu0 %v1275
  %2367 = vmatmul.mubr.bf16.gmra.mxu0 %v1274
  %v2368 = vpop.f32.mrf.mxu0
  %v2369 = vadd.f32 0.0, %v2368
  %v2370 = vpop.f32.mrf.mxu0
  %v2371 = vpop.f32.mrf.mxu0
  %v2372 = vadd.f32 0.0, %v2371
  %v2373 = vpop.f32.mrf.mxu0
  %2374 = vmatprep.mubr.bf16.mxu0 %v1277
  %2375 = vmatmul.mubr.bf16.gmra.mxu0 %v1276
  %v2376 = vpop.f32.mrf.mxu0
  %v2377 = vadd.f32 0.0, %v2376
  %v2378 = vpop.f32.mrf.mxu0
  %v2379 = vpop.f32.mrf.mxu0
  %v2380 = vadd.f32 0.0, %v2379
  %v2381 = vpop.f32.mrf.mxu0
  %2382 = vmatprep.mubr.bf16.mxu0 %v1279
  %2383 = vmatmul.mubr.bf16.gmra.mxu0 %v1278
  %v2384 = vpop.f32.mrf.mxu0
  %v2385 = vadd.f32 0.0, %v2384
  %v2386 = vpop.f32.mrf.mxu0
  %v2387 = vpop.f32.mrf.mxu0
  %v2388 = vadd.f32 0.0, %v2387
  %v2389 = vpop.f32.mrf.mxu0
  %2390 = vmatprep.mubr.bf16.mxu0 %v1281
  %2391 = vmatmul.mubr.bf16.gmra.mxu0 %v1280
  %v2392 = vpop.f32.mrf.mxu0
  %v2393 = vadd.f32 0.0, %v2392
  %v2394 = vpop.f32.mrf.mxu0
  %v2395 = vpop.f32.mrf.mxu0
  %v2396 = vadd.f32 0.0, %v2395
  %v2397 = vpop.f32.mrf.mxu0
  %2398 = vmatprep.mubr.bf16.mxu0 %v1283
  %2399 = vmatmul.mubr.bf16.gmra.mxu0 %v1282
  %v2400 = vpop.f32.mrf.mxu0
  %v2401 = vadd.f32 0.0, %v2400
  %v2402 = vpop.f32.mrf.mxu0
  %v2403 = vpop.f32.mrf.mxu0
  %v2404 = vadd.f32 0.0, %v2403
  %v2405 = vpop.f32.mrf.mxu0
  %2406 = vmatprep.mubr.bf16.mxu0 %v1285
  %2407 = vmatmul.mubr.bf16.gmra.mxu0 %v1284
  %v2408 = vpop.f32.mrf.mxu0
  %v2409 = vadd.f32 0.0, %v2408
  %v2410 = vpop.f32.mrf.mxu0
  %v2411 = vpop.f32.mrf.mxu0
  %v2412 = vadd.f32 0.0, %v2411
  %v2413 = vpop.f32.mrf.mxu0
  %2414 = vmatprep.mubr.bf16.mxu0 %v1287
  %2415 = vmatmul.mubr.bf16.gmra.mxu0 %v1286
  %v2416 = vpop.f32.mrf.mxu0
  %v2417 = vadd.f32 0.0, %v2416
  %v2418 = vpop.f32.mrf.mxu0
  %v2419 = vpop.f32.mrf.mxu0
  %v2420 = vadd.f32 0.0, %v2419
  %v2421 = vpop.f32.mrf.mxu0
  %2422 = vmatprep.mubr.bf16.mxu0 %v1289
  %2423 = vmatmul.mubr.bf16.gmra.mxu0 %v1288
  %v2424 = vpop.f32.mrf.mxu0
  %v2425 = vadd.f32 0.0, %v2424
  %v2426 = vpop.f32.mrf.mxu0
  %v2427 = vpop.f32.mrf.mxu0
  %v2428 = vadd.f32 0.0, %v2427
  %v2429 = vpop.f32.mrf.mxu0
  %2430 = vmatprep.mubr.bf16.mxu0 %v1291
  %2431 = vmatmul.mubr.bf16.gmra.mxu0 %v1290
  %v2432 = vpop.f32.mrf.mxu0
  %v2433 = vadd.f32 0.0, %v2432
  %v2434 = vpop.f32.mrf.mxu0
  %v2435 = vpop.f32.mrf.mxu0
  %v2436 = vadd.f32 0.0, %v2435
  %v2437 = vpop.f32.mrf.mxu0
  %2438 = vmatprep.mubr.bf16.mxu0 %v1293
  %2439 = vmatmul.mubr.bf16.gmra.mxu0 %v1292
  %v2440 = vpop.f32.mrf.mxu0
  %v2441 = vadd.f32 0.0, %v2440
  %v2442 = vpop.f32.mrf.mxu0
  %v2443 = vpop.f32.mrf.mxu0
  %v2444 = vadd.f32 0.0, %v2443
  %v2445 = vpop.f32.mrf.mxu0
  %2446 = vmatprep.mubr.bf16.mxu0 %v1295
  %2447 = vmatmul.mubr.bf16.gmra.mxu0 %v1294
  %v2448 = vpop.f32.mrf.mxu0
  %v2449 = vadd.f32 0.0, %v2448
  %v2450 = vpop.f32.mrf.mxu0
  %v2451 = vpop.f32.mrf.mxu0
  %v2452 = vadd.f32 0.0, %v2451
  %v2453 = vpop.f32.mrf.mxu0
  %2454 = vmatprep.mubr.bf16.mxu0 %v1297
  %2455 = vmatmul.mubr.bf16.gmra.mxu0 %v1296
  %v2456 = vpop.f32.mrf.mxu0
  %v2457 = vadd.f32 0.0, %v2456
  %v2458 = vpop.f32.mrf.mxu0
  %v2459 = vpop.f32.mrf.mxu0
  %v2460 = vadd.f32 0.0, %v2459
  %v2461 = vpop.f32.mrf.mxu0
  %2462 = vmatprep.mubr.bf16.mxu0 %v1299
  %2463 = vmatmul.mubr.bf16.gmra.mxu0 %v1298
  %v2464 = vpop.f32.mrf.mxu0
  %v2465 = vadd.f32 0.0, %v2464
  %v2466 = vpop.f32.mrf.mxu0
  %v2467 = vpop.f32.mrf.mxu0
  %v2468 = vadd.f32 0.0, %v2467
  %v2469 = vpop.f32.mrf.mxu0
  %2470 = vmatprep.mubr.bf16.mxu0 %v1301
  %2471 = vmatmul.mubr.bf16.gmra.mxu0 %v1300
  %v2472 = vpop.f32.mrf.mxu0
  %v2473 = vadd.f32 0.0, %v2472
  %v2474 = vpop.f32.mrf.mxu0
  %v2475 = vpop.f32.mrf.mxu0
  %v2476 = vadd.f32 0.0, %v2475
  %v2477 = vpop.f32.mrf.mxu0
  %2478 = vmatprep.mubr.bf16.mxu0 %v1303
  %2479 = vmatmul.mubr.bf16.gmra.mxu0 %v1302
  %v2480 = vpop.f32.mrf.mxu0
  %v2481 = vadd.f32 0.0, %v2480
  %v2482 = vpop.f32.mrf.mxu0
  %v2483 = vpop.f32.mrf.mxu0
  %v2484 = vadd.f32 0.0, %v2483
  %v2485 = vpop.f32.mrf.mxu0
  %2486 = vmatprep.mubr.bf16.mxu0 %v1305
  %2487 = vmatmul.mubr.bf16.gmra.mxu0 %v1304
  %v2488 = vpop.f32.mrf.mxu0
  %v2489 = vadd.f32 0.0, %v2488
  %v2490 = vpop.f32.mrf.mxu0
  %v2491 = vpop.f32.mrf.mxu0
  %v2492 = vadd.f32 0.0, %v2491
  %v2493 = vpop.f32.mrf.mxu0
  %2494 = vmatprep.mubr.bf16.mxu0 %v1307
  %2495 = vmatmul.mubr.bf16.gmra.mxu0 %v1306
  %v2496 = vpop.f32.mrf.mxu0
  %v2497 = vadd.f32 0.0, %v2496
  %v2498 = vpop.f32.mrf.mxu0
  %v2499 = vpop.f32.mrf.mxu0
  %v2500 = vadd.f32 0.0, %v2499
  %v2501 = vpop.f32.mrf.mxu0
  %2502 = vmatprep.mubr.bf16.mxu0 %v1309
  %2503 = vmatmul.mubr.bf16.gmra.mxu0 %v1308
  %v2504 = vpop.f32.mrf.mxu0
  %v2505 = vadd.f32 0.0, %v2504
  %v2506 = vpop.f32.mrf.mxu0
  %v2507 = vpop.f32.mrf.mxu0
  %v2508 = vadd.f32 0.0, %v2507
  %v2509 = vpop.f32.mrf.mxu0
  %2510 = vmatprep.mubr.bf16.mxu0 %v1311
  %2511 = vmatmul.mubr.bf16.gmra.mxu0 %v1310
  %v2512 = vpop.f32.mrf.mxu0
  %v2513 = vadd.f32 0.0, %v2512
  %v2514 = vpop.f32.mrf.mxu0
  %v2515 = vpop.f32.mrf.mxu0
  %v2516 = vadd.f32 0.0, %v2515
  %v2517 = vpop.f32.mrf.mxu0
  %2518 = vmatprep.mubr.bf16.mxu0 %v1313
  %2519 = vmatmul.mubr.bf16.gmra.mxu0 %v1312
  %v2520 = vpop.f32.mrf.mxu0
  %v2521 = vadd.f32 0.0, %v2520
  %v2522 = vpop.f32.mrf.mxu0
  %v2523 = vpop.f32.mrf.mxu0
  %v2524 = vadd.f32 0.0, %v2523
  %v2525 = vpop.f32.mrf.mxu0
  %2526 = vmatprep.mubr.bf16.mxu0 %v1315
  %2527 = vmatmul.mubr.bf16.gmra.mxu0 %v1314
  %v2528 = vpop.f32.mrf.mxu0
  %v2529 = vadd.f32 0.0, %v2528
  %v2530 = vpop.f32.mrf.mxu0
  %v2531 = vpop.f32.mrf.mxu0
  %v2532 = vadd.f32 0.0, %v2531
  %v2533 = vpop.f32.mrf.mxu0
  %2534 = vmatprep.mubr.bf16.mxu0 %v1317
  %2535 = vmatmul.mubr.bf16.gmra.mxu0 %v1316
  %v2536 = vpop.f32.mrf.mxu0
  %v2537 = vadd.f32 0.0, %v2536
  %v2538 = vpop.f32.mrf.mxu0
  %v2539 = vpop.f32.mrf.mxu0
  %v2540 = vadd.f32 0.0, %v2539
  %v2541 = vpop.f32.mrf.mxu0
  %2542 = vmatprep.mubr.bf16.mxu0 %v1319
  %2543 = vmatmul.mubr.bf16.gmra.mxu0 %v1318
  %v2544 = vpop.f32.mrf.mxu0
  %v2545 = vadd.f32 0.0, %v2544
  %v2546 = vpop.f32.mrf.mxu0
  %v2547 = vpop.f32.mrf.mxu0
  %v2548 = vadd.f32 0.0, %v2547
  %v2549 = vpop.f32.mrf.mxu0
  %2550 = vmatprep.mubr.bf16.mxu0 %v1321
  %2551 = vmatmul.mubr.bf16.gmra.mxu0 %v1320
  %v2552 = vpop.f32.mrf.mxu0
  %v2553 = vadd.f32 0.0, %v2552
  %v2554 = vpop.f32.mrf.mxu0
  %v2555 = vpop.f32.mrf.mxu0
  %v2556 = vadd.f32 0.0, %v2555
  %v2557 = vpop.f32.mrf.mxu0
  %2558 = vmatprep.mubr.bf16.mxu0 %v1323
  %2559 = vmatmul.mubr.bf16.gmra.mxu0 %v1322
  %v2560 = vpop.f32.mrf.mxu0
  %v2561 = vadd.f32 0.0, %v2560
  %v2562 = vpop.f32.mrf.mxu0
  %v2563 = vpop.f32.mrf.mxu0
  %v2564 = vadd.f32 0.0, %v2563
  %v2565 = vpop.f32.mrf.mxu0
  %2566 = vmatprep.mubr.bf16.mxu0 %v1325
  %2567 = vmatmul.mubr.bf16.gmra.mxu0 %v1324
  %v2568 = vpop.f32.mrf.mxu0
  %v2569 = vadd.f32 0.0, %v2568
  %v2570 = vpop.f32.mrf.mxu0
  %v2571 = vpop.f32.mrf.mxu0
  %v2572 = vadd.f32 0.0, %v2571
  %v2573 = vpop.f32.mrf.mxu0
  %2574 = vmatprep.mubr.bf16.mxu0 %v1327
  %2575 = vmatmul.mubr.bf16.gmra.mxu0 %v1326
  %v2576 = vpop.f32.mrf.mxu0
  %v2577 = vadd.f32 0.0, %v2576
  %v2578 = vpop.f32.mrf.mxu0
  %v2579 = vpop.f32.mrf.mxu0
  %v2580 = vadd.f32 0.0, %v2579
  %v2581 = vpop.f32.mrf.mxu0
  %2582 = vmatprep.mubr.bf16.mxu0 %v1329
  %2583 = vmatmul.mubr.bf16.gmra.mxu0 %v1328
  %v2584 = vpop.f32.mrf.mxu0
  %v2585 = vadd.f32 0.0, %v2584
  %v2586 = vpop.f32.mrf.mxu0
  %v2587 = vpop.f32.mrf.mxu0
  %v2588 = vadd.f32 0.0, %v2587
  %v2589 = vpop.f32.mrf.mxu0
  %2590 = vmatprep.mubr.bf16.mxu0 %v1331
  %2591 = vmatmul.mubr.bf16.gmra.mxu0 %v1330
  %v2592 = vpop.f32.mrf.mxu0
  %v2593 = vadd.f32 0.0, %v2592
  %v2594 = vpop.f32.mrf.mxu0
  %v2595 = vpop.f32.mrf.mxu0
  %v2596 = vadd.f32 0.0, %v2595
  %v2597 = vpop.f32.mrf.mxu0
  %2598 = vmatprep.mubr.bf16.mxu0 %v1333
  %2599 = vmatmul.mubr.bf16.gmra.mxu0 %v1332
  %v2600 = vpop.f32.mrf.mxu0
  %v2601 = vadd.f32 0.0, %v2600
  %v2602 = vpop.f32.mrf.mxu0
  %v2603 = vpop.f32.mrf.mxu0
  %v2604 = vadd.f32 0.0, %v2603
  %v2605 = vpop.f32.mrf.mxu0
  %2606 = vmatprep.mubr.bf16.mxu0 %v1335
  %2607 = vmatmul.mubr.bf16.gmra.mxu0 %v1334
  %v2608 = vpop.f32.mrf.mxu0
  %v2609 = vadd.f32 0.0, %v2608
  %v2610 = vpop.f32.mrf.mxu0
  %v2611 = vpop.f32.mrf.mxu0
  %v2612 = vadd.f32 0.0, %v2611
  %v2613 = vpop.f32.mrf.mxu0
  %2614 = vmatprep.mubr.bf16.mxu0 %v1337
  %2615 = vmatmul.mubr.bf16.gmra.mxu0 %v1336
  %v2616 = vpop.f32.mrf.mxu0
  %v2617 = vadd.f32 0.0, %v2616
  %v2618 = vpop.f32.mrf.mxu0
  %v2619 = vpop.f32.mrf.mxu0
  %v2620 = vadd.f32 0.0, %v2619
  %v2621 = vpop.f32.mrf.mxu0
  %2622 = vmatprep.mubr.bf16.mxu0 %v1339
  %2623 = vmatmul.mubr.bf16.gmra.mxu0 %v1338
  %v2624 = vpop.f32.mrf.mxu0
  %v2625 = vadd.f32 0.0, %v2624
  %v2626 = vpop.f32.mrf.mxu0
  %v2627 = vpop.f32.mrf.mxu0
  %v2628 = vadd.f32 0.0, %v2627
  %v2629 = vpop.f32.mrf.mxu0
  %2630 = vmatprep.mubr.bf16.mxu0 %v1341
  %2631 = vmatmul.mubr.bf16.gmra.mxu0 %v1340
  %v2632 = vpop.f32.mrf.mxu0
  %v2633 = vadd.f32 0.0, %v2632
  %v2634 = vpop.f32.mrf.mxu0
  %v2635 = vpop.f32.mrf.mxu0
  %v2636 = vadd.f32 0.0, %v2635
  %v2637 = vpop.f32.mrf.mxu0
  %2638 = vmatprep.mubr.bf16.mxu0 %v1343
  %2639 = vmatmul.mubr.bf16.gmra.mxu0 %v1342
  %v2640 = vpop.f32.mrf.mxu0
  %v2641 = vadd.f32 0.0, %v2640
  %v2642 = vpop.f32.mrf.mxu0
  %v2643 = vpop.f32.mrf.mxu0
  %v2644 = vadd.f32 0.0, %v2643
  %v2645 = vpop.f32.mrf.mxu0
  %2646 = vmatprep.mubr.bf16.mxu0 %v1345
  %2647 = vmatmul.mubr.bf16.gmra.mxu0 %v1344
  %v2648 = vpop.f32.mrf.mxu0
  %v2649 = vadd.f32 0.0, %v2648
  %v2650 = vpop.f32.mrf.mxu0
  %v2651 = vpop.f32.mrf.mxu0
  %v2652 = vadd.f32 0.0, %v2651
  %v2653 = vpop.f32.mrf.mxu0
  %2654 = vmatprep.mubr.bf16.mxu0 %v1347
  %2655 = vmatmul.mubr.bf16.gmra.mxu0 %v1346
  %v2656 = vpop.f32.mrf.mxu0
  %v2657 = vadd.f32 0.0, %v2656
  %v2658 = vpop.f32.mrf.mxu0
  %v2659 = vpop.f32.mrf.mxu0
  %v2660 = vadd.f32 0.0, %v2659
  %v2661 = vpop.f32.mrf.mxu0
  %2662 = vmatprep.mubr.bf16.mxu0 %v1349
  %2663 = vmatmul.mubr.bf16.gmra.mxu0 %v1348
  %v2664 = vpop.f32.mrf.mxu0
  %v2665 = vadd.f32 0.0, %v2664
  %v2666 = vpop.f32.mrf.mxu0
  %v2667 = vpop.f32.mrf.mxu0
  %v2668 = vadd.f32 0.0, %v2667
  %v2669 = vpop.f32.mrf.mxu0
  %2670 = vmatprep.mubr.bf16.mxu0 %v1351
  %2671 = vmatmul.mubr.bf16.gmra.mxu0 %v1350
  %v2672 = vpop.f32.mrf.mxu0
  %v2673 = vadd.f32 0.0, %v2672
  %v2674 = vpop.f32.mrf.mxu0
  %v2675 = vpop.f32.mrf.mxu0
  %v2676 = vadd.f32 0.0, %v2675
  %v2677 = vpop.f32.mrf.mxu0
  %2678 = vmatprep.mubr.bf16.mxu0 %v1353
  %2679 = vmatmul.mubr.bf16.gmra.mxu0 %v1352
  %v2680 = vpop.f32.mrf.mxu0
  %v2681 = vadd.f32 0.0, %v2680
  %v2682 = vpop.f32.mrf.mxu0
  %v2683 = vpop.f32.mrf.mxu0
  %v2684 = vadd.f32 0.0, %v2683
  %v2685 = vpop.f32.mrf.mxu0
  %2686 = vmatprep.mubr.bf16.mxu0 %v1355
  %2687 = vmatmul.mubr.bf16.gmra.mxu0 %v1354
  %v2688 = vpop.f32.mrf.mxu0
  %v2689 = vadd.f32 0.0, %v2688
  %v2690 = vpop.f32.mrf.mxu0
  %v2691 = vpop.f32.mrf.mxu0
  %v2692 = vadd.f32 0.0, %v2691
  %v2693 = vpop.f32.mrf.mxu0
  %2694 = vmatprep.mubr.bf16.mxu0 %v1357
  %2695 = vmatmul.mubr.bf16.gmra.mxu0 %v1356
  %v2696 = vpop.f32.mrf.mxu0
  %v2697 = vadd.f32 0.0, %v2696
  %v2698 = vpop.f32.mrf.mxu0
  %v2699 = vpop.f32.mrf.mxu0
  %v2700 = vadd.f32 0.0, %v2699
  %v2701 = vpop.f32.mrf.mxu0
  %2702 = vmatprep.mubr.bf16.mxu0 %v1359
  %2703 = vmatmul.mubr.bf16.gmra.mxu0 %v1358
  %v2704 = vpop.f32.mrf.mxu0
  %v2705 = vadd.f32 0.0, %v2704
  %v2706 = vpop.f32.mrf.mxu0
  %v2707 = vpop.f32.mrf.mxu0
  %v2708 = vadd.f32 0.0, %v2707
  %v2709 = vpop.f32.mrf.mxu0
  %2710 = vmatprep.mubr.bf16.mxu0 %v1361
  %2711 = vmatmul.mubr.bf16.gmra.mxu0 %v1360
  %v2712 = vpop.f32.mrf.mxu0
  %v2713 = vadd.f32 0.0, %v2712
  %v2714 = vpop.f32.mrf.mxu0
  %v2715 = vpop.f32.mrf.mxu0
  %v2716 = vadd.f32 0.0, %v2715
  %v2717 = vpop.f32.mrf.mxu0
  %2718 = vmatprep.mubr.bf16.mxu0 %v1363
  %2719 = vmatmul.mubr.bf16.gmra.mxu0 %v1362
  %v2720 = vpop.f32.mrf.mxu0
  %v2721 = vadd.f32 0.0, %v2720
  %v2722 = vpop.f32.mrf.mxu0
  %v2723 = vpop.f32.mrf.mxu0
  %v2724 = vadd.f32 0.0, %v2723
  %v2725 = vpop.f32.mrf.mxu0
  %2726 = vmatprep.mubr.bf16.mxu0 %v1365
  %2727 = vmatmul.mubr.bf16.gmra.mxu0 %v1364
  %v2728 = vpop.f32.mrf.mxu0
  %v2729 = vadd.f32 0.0, %v2728
  %v2730 = vpop.f32.mrf.mxu0
  %v2731 = vpop.f32.mrf.mxu0
  %v2732 = vadd.f32 0.0, %v2731
  %v2733 = vpop.f32.mrf.mxu0
  %2734 = vmatprep.mubr.bf16.mxu0 %v1367
  %2735 = vmatmul.mubr.bf16.gmra.mxu0 %v1366
  %v2736 = vpop.f32.mrf.mxu0
  %v2737 = vadd.f32 0.0, %v2736
  %v2738 = vpop.f32.mrf.mxu0
  %v2739 = vpop.f32.mrf.mxu0
  %v2740 = vadd.f32 0.0, %v2739
  %v2741 = vpop.f32.mrf.mxu0
  %2742 = vmatprep.mubr.bf16.mxu0 %v1369
  %2743 = vmatmul.mubr.bf16.gmra.mxu0 %v1368
  %v2744 = vpop.f32.mrf.mxu0
  %v2745 = vadd.f32 0.0, %v2744
  %v2746 = vpop.f32.mrf.mxu0
  %v2747 = vpop.f32.mrf.mxu0
  %v2748 = vadd.f32 0.0, %v2747
  %v2749 = vpop.f32.mrf.mxu0
  %2750 = vmatprep.mubr.bf16.mxu0 %v1371
  %2751 = vmatmul.mubr.bf16.gmra.mxu0 %v1370
  %v2752 = vpop.f32.mrf.mxu0
  %v2753 = vadd.f32 0.0, %v2752
  %v2754 = vpop.f32.mrf.mxu0
  %v2755 = vpop.f32.mrf.mxu0
  %v2756 = vadd.f32 0.0, %v2755
  %v2757 = vpop.f32.mrf.mxu0
  %2758 = vmatprep.mubr.bf16.mxu0 %v1373
  %2759 = vmatmul.mubr.bf16.gmra.mxu0 %v1372
  %v2760 = vpop.f32.mrf.mxu0
  %v2761 = vadd.f32 0.0, %v2760
  %v2762 = vpop.f32.mrf.mxu0
  %v2763 = vpop.f32.mrf.mxu0
  %v2764 = vadd.f32 0.0, %v2763
  %v2765 = vpop.f32.mrf.mxu0
  %2766 = vmatprep.mubr.bf16.mxu0 %v1375
  %2767 = vmatmul.mubr.bf16.gmra.mxu0 %v1374
  %v2768 = vpop.f32.mrf.mxu0
  %v2769 = vadd.f32 0.0, %v2768
  %v2770 = vpop.f32.mrf.mxu0
  %v2771 = vpop.f32.mrf.mxu0
  %v2772 = vadd.f32 0.0, %v2771
  %v2773 = vpop.f32.mrf.mxu0
  %2774 = vmatprep.mubr.bf16.mxu0 %v1377
  %2775 = vmatmul.mubr.bf16.gmra.mxu0 %v1376
  %v2776 = vpop.f32.mrf.mxu0
  %v2777 = vadd.f32 0.0, %v2776
  %v2778 = vpop.f32.mrf.mxu0
  %v2779 = vpop.f32.mrf.mxu0
  %v2780 = vadd.f32 0.0, %v2779
  %v2781 = vpop.f32.mrf.mxu0
  %2782 = vmatprep.mubr.bf16.mxu0 %v1379
  %2783 = vmatmul.mubr.bf16.gmra.mxu0 %v1378
  %v2784 = vpop.f32.mrf.mxu0
  %v2785 = vadd.f32 0.0, %v2784
  %v2786 = vpop.f32.mrf.mxu0
  %v2787 = vpop.f32.mrf.mxu0
  %v2788 = vadd.f32 0.0, %v2787
  %v2789 = vpop.f32.mrf.mxu0
  %2790 = vmatprep.mubr.bf16.mxu0 %v1381
  %2791 = vmatmul.mubr.bf16.gmra.mxu0 %v1380
  %v2792 = vpop.f32.mrf.mxu0
  %v2793 = vadd.f32 0.0, %v2792
  %v2794 = vpop.f32.mrf.mxu0
  %v2795 = vpop.f32.mrf.mxu0
  %v2796 = vadd.f32 0.0, %v2795
  %v2797 = vpop.f32.mrf.mxu0
  %2798 = vmatprep.mubr.bf16.mxu0 %v1383
  %2799 = vmatmul.mubr.bf16.gmra.mxu0 %v1382
  %v2800 = vpop.f32.mrf.mxu0
  %v2801 = vadd.f32 0.0, %v2800
  %v2802 = vpop.f32.mrf.mxu0
  %v2803 = vpop.f32.mrf.mxu0
  %v2804 = vadd.f32 0.0, %v2803
  %v2805 = vpop.f32.mrf.mxu0
  %2806 = vmatprep.mubr.bf16.mxu0 %v1385
  %2807 = vmatmul.mubr.bf16.gmra.mxu0 %v1384
  %v2808 = vpop.f32.mrf.mxu0
  %v2809 = vadd.f32 0.0, %v2808
  %v2810 = vpop.f32.mrf.mxu0
  %v2811 = vpop.f32.mrf.mxu0
  %v2812 = vadd.f32 0.0, %v2811
  %v2813 = vpop.f32.mrf.mxu0
  %2814 = vmatprep.mubr.bf16.mxu0 %v1387
  %2815 = vmatmul.mubr.bf16.gmra.mxu0 %v1386
  %v2816 = vpop.f32.mrf.mxu0
  %v2817 = vadd.f32 0.0, %v2816
  %v2818 = vpop.f32.mrf.mxu0
  %v2819 = vpop.f32.mrf.mxu0
  %v2820 = vadd.f32 0.0, %v2819
  %v2821 = vpop.f32.mrf.mxu0
  %2822 = vmatprep.mubr.bf16.mxu0 %v1389
  %2823 = vmatmul.mubr.bf16.gmra.mxu0 %v1388
  %v2824 = vpop.f32.mrf.mxu0
  %v2825 = vadd.f32 0.0, %v2824
  %v2826 = vpop.f32.mrf.mxu0
  %v2827 = vpop.f32.mrf.mxu0
  %v2828 = vadd.f32 0.0, %v2827
  %v2829 = vpop.f32.mrf.mxu0
  %2830 = vmatprep.mubr.bf16.mxu0 %v1391
  %2831 = vmatmul.mubr.bf16.gmra.mxu0 %v1390
  %v2832 = vpop.f32.mrf.mxu0
  %v2833 = vadd.f32 0.0, %v2832
  %v2834 = vpop.f32.mrf.mxu0
  %v2835 = vpop.f32.mrf.mxu0
  %v2836 = vadd.f32 0.0, %v2835
  %v2837 = vpop.f32.mrf.mxu0
  %2838 = vmatprep.mubr.bf16.mxu0 %v1393
  %2839 = vmatmul.mubr.bf16.gmra.mxu0 %v1392
  %v2840 = vpop.f32.mrf.mxu0
  %v2841 = vadd.f32 0.0, %v2840
  %v2842 = vpop.f32.mrf.mxu0
  %v2843 = vpop.f32.mrf.mxu0
  %v2844 = vadd.f32 0.0, %v2843
  %v2845 = vpop.f32.mrf.mxu0
  %2846 = vmatprep.mubr.bf16.mxu0 %v1395
  %2847 = vmatmul.mubr.bf16.gmra.mxu0 %v1394
  %v2848 = vpop.f32.mrf.mxu0
  %v2849 = vadd.f32 0.0, %v2848
  %v2850 = vpop.f32.mrf.mxu0
  %v2851 = vpop.f32.mrf.mxu0
  %v2852 = vadd.f32 0.0, %v2851
  %v2853 = vpop.f32.mrf.mxu0
  %2854 = vmatprep.mubr.bf16.mxu0 %v1397
  %2855 = vmatmul.mubr.bf16.gmra.mxu0 %v1396
  %v2856 = vpop.f32.mrf.mxu0
  %v2857 = vadd.f32 0.0, %v2856
  %v2858 = vpop.f32.mrf.mxu0
  %v2859 = vpop.f32.mrf.mxu0
  %v2860 = vadd.f32 0.0, %v2859
  %v2861 = vpop.f32.mrf.mxu0
  %2862 = vmatprep.mubr.bf16.mxu0 %v1399
  %2863 = vmatmul.mubr.bf16.gmra.mxu0 %v1398
  %v2864 = vpop.f32.mrf.mxu0
  %v2865 = vadd.f32 0.0, %v2864
  %v2866 = vpop.f32.mrf.mxu0
  %v2867 = vpop.f32.mrf.mxu0
  %v2868 = vadd.f32 0.0, %v2867
  %v2869 = vpop.f32.mrf.mxu0
  %2870 = vmatprep.mubr.bf16.mxu0 %v1401
  %2871 = vmatmul.mubr.bf16.gmra.mxu0 %v1400
  %v2872 = vpop.f32.mrf.mxu0
  %v2873 = vadd.f32 0.0, %v2872
  %v2874 = vpop.f32.mrf.mxu0
  %v2875 = vpop.f32.mrf.mxu0
  %v2876 = vadd.f32 0.0, %v2875
  %v2877 = vpop.f32.mrf.mxu0
  %2878 = vmatprep.mubr.bf16.mxu0 %v1403
  %2879 = vmatmul.mubr.bf16.gmra.mxu0 %v1402
  %v2880 = vpop.f32.mrf.mxu0
  %v2881 = vadd.f32 0.0, %v2880
  %v2882 = vpop.f32.mrf.mxu0
  %v2883 = vpop.f32.mrf.mxu0
  %v2884 = vadd.f32 0.0, %v2883
  %v2885 = vpop.f32.mrf.mxu0
  %2886 = vmatprep.mubr.bf16.mxu0 %v1405
  %2887 = vmatmul.mubr.bf16.gmra.mxu0 %v1404
  %v2888 = vpop.f32.mrf.mxu0
  %v2889 = vadd.f32 0.0, %v2888
  %v2890 = vpop.f32.mrf.mxu0
  %v2891 = vpop.f32.mrf.mxu0
  %v2892 = vpop.f32.mrf.mxu0
  %2893 = vdwg.mxu0
  %v2894 = vlaneseq
  %v2895 = vshrl.u32 %v2894, 7
  %v2896 = vadd.s32 %v2895, 8
  %v2897 = vadd.s32 %v2895, 16
  %v2898 = vadd.s32 %v2895, 24
  %v2899 = vadd.s32 %v2895, 32
  %v2900 = vadd.s32 %v2895, 40
  %v2901 = vadd.s32 %v2895, 48
  %v2902 = vadd.s32 %v2895, 56
  %v2903 = vadd.s32 %v2895, 64
  %v2904 = vadd.s32 %v2895, 72
  %v2905 = vadd.s32 %v2895, 80
  %v2906 = vadd.s32 %v2895, 88
  %v2907 = vadd.s32 %v2895, 96
  %v2908 = vadd.s32 %v2895, 104
  %v2909 = vadd.s32 %v2895, 112
  %v2910 = vadd.s32 %v2895, 120
  %v2911 = vadd.s32 %v2895, 128
  %v2912 = vadd.s32 %v2895, 136
  %v2913 = vadd.s32 %v2895, 144
  %v2914 = vadd.s32 %v2895, 152
  %v2915 = vadd.s32 %v2895, 160
  %v2916 = vadd.s32 %v2895, 168
  %v2917 = vadd.s32 %v2895, 176
  %v2918 = vadd.s32 %v2895, 184
  %v2919 = vadd.s32 %v2895, 192
  %v2920 = vadd.s32 %v2895, 200
  %v2921 = vadd.s32 %v2895, 208
  %v2922 = vadd.s32 %v2895, 216
  %v2923 = vadd.s32 %v2895, 224
  %v2924 = vadd.s32 %v2895, 232
  %v2925 = vadd.s32 %v2895, 240
  %v2926 = vadd.s32 %v2895, 248
  %v2927 = vadd.s32 %v2895, 256
  %v2928 = vadd.s32 %v2895, 264
  %v2929 = vadd.s32 %v2895, 272
  %v2930 = vadd.s32 %v2895, 280
  %v2931 = vadd.s32 %v2895, 288
  %v2932 = vadd.s32 %v2895, 296
  %v2933 = vadd.s32 %v2895, 304
  %v2934 = vadd.s32 %v2895, 312
  %v2935 = vadd.s32 %v2895, 320
  %v2936 = vadd.s32 %v2895, 328
  %v2937 = vadd.s32 %v2895, 336
  %v2938 = vadd.s32 %v2895, 344
  %v2939 = vadd.s32 %v2895, 352
  %v2940 = vadd.s32 %v2895, 360
  %v2941 = vadd.s32 %v2895, 368
  %v2942 = vadd.s32 %v2895, 376
  %v2943 = vadd.s32 %v2895, 384
  %v2944 = vadd.s32 %v2895, 392
  %v2945 = vadd.s32 %v2895, 400
  %v2946 = vadd.s32 %v2895, 408
  %v2947 = vadd.s32 %v2895, 416
  %v2948 = vadd.s32 %v2895, 424
  %v2949 = vadd.s32 %v2895, 432
  %v2950 = vadd.s32 %v2895, 440
  %v2951 = vadd.s32 %v2895, 448
  %v2952 = vadd.s32 %v2895, 456
  %v2953 = vadd.s32 %v2895, 464
  %v2954 = vadd.s32 %v2895, 472
  %v2955 = vadd.s32 %v2895, 480
  %v2956 = vadd.s32 %v2895, 488
  %v2957 = vadd.s32 %v2895, 496
  %v2958 = vadd.s32 %v2895, 504
  %v2959 = vadd.s32 %v2895, 512
  %v2960 = vadd.s32 %v2895, 520
  %v2961 = vadd.s32 %v2895, 528
  %v2962 = vadd.s32 %v2895, 536
  %v2963 = vadd.s32 %v2895, 544
  %v2964 = vadd.s32 %v2895, 552
  %v2965 = vadd.s32 %v2895, 560
  %v2966 = vadd.s32 %v2895, 568
  %v2967 = vadd.s32 %v2895, 576
  %v2968 = vadd.s32 %v2895, 584
  %v2969 = vadd.s32 %v2895, 592
  %v2970 = vadd.s32 %v2895, 600
  %v2971 = vadd.s32 %v2895, 608
  %v2972 = vadd.s32 %v2895, 616
  %v2973 = vadd.s32 %v2895, 624
  %v2974 = vadd.s32 %v2895, 632
  %v2975 = vadd.s32 %v2895, 640
  %v2976 = vadd.s32 %v2895, 648
  %v2977 = vadd.s32 %v2895, 656
  %v2978 = vadd.s32 %v2895, 664
  %v2979 = vadd.s32 %v2895, 672
  %v2980 = vadd.s32 %v2895, 680
  %v2981 = vadd.s32 %v2895, 688
  %v2982 = vadd.s32 %v2895, 696
  %v2983 = vadd.s32 %v2895, 704
  %v2984 = vadd.s32 %v2895, 712
  %v2985 = vadd.s32 %v2895, 720
  %v2986 = vadd.s32 %v2895, 728
  %v2987 = vadd.s32 %v2895, 736
  %v2988 = vadd.s32 %v2895, 744
  %v2989 = vadd.s32 %v2895, 752
  %v2990 = vadd.s32 %v2895, 760
  %v2991 = vadd.s32 %v2895, 768
  %v2992 = vadd.s32 %v2895, 776
  %v2993 = vadd.s32 %v2895, 784
  %v2994 = vadd.s32 %v2895, 792
  %v2995 = vadd.s32 %v2895, 800
  %v2996 = vadd.s32 %v2895, 808
  %v2997 = vadd.s32 %v2895, 816
  %v2998 = vadd.s32 %v2895, 824
  %v2999 = vadd.s32 %v2895, 832
  %v3000 = vadd.s32 %v2895, 840
  %v3001 = vadd.s32 %v2895, 848
  %v3002 = vadd.s32 %v2895, 856
  %v3003 = vadd.s32 %v2895, 864
  %v3004 = vadd.s32 %v2895, 872
  %v3005 = vadd.s32 %v2895, 880
  %v3006 = vadd.s32 %v2895, 888
  %v3007 = vadd.s32 %v2895, 896
  %v3008 = vadd.s32 %v2895, 904
  %v3009 = vadd.s32 %v2895, 912
  %v3010 = vadd.s32 %v2895, 920
  %v3011 = vadd.s32 %v2895, 928
  %v3012 = vadd.s32 %v2895, 936
  %v3013 = vadd.s32 %v2895, 944
  %v3014 = vadd.s32 %v2895, 952
  %v3015 = vadd.s32 %v2895, 960
  %v3016 = vadd.s32 %v2895, 968
  %v3017 = vadd.s32 %v2895, 976
  %v3018 = vadd.s32 %v2895, 984
  %v3019 = vadd.s32 %v2895, 992
  %v3020 = vadd.s32 %v2895, 1000
  %v3021 = vadd.s32 %v2895, 1008
  %v3022 = vadd.s32 %v2895, 1016
  %v3023 = vadd.s32 %v2895, 1024
  %v3024 = vadd.s32 %v2895, 1032
  %v3025 = vadd.s32 %v2895, 1040
  %v3026 = vadd.s32 %v2895, 1048
  %v3027 = vadd.s32 %v2895, 1056
  %v3028 = vadd.s32 %v2895, 1064
  %v3029 = vadd.s32 %v2895, 1072
  %v3030 = vadd.s32 %v2895, 1080
  %v3031 = vadd.s32 %v2895, 1088
  %v3032 = vadd.s32 %v2895, 1096
  %v3033 = vadd.s32 %v2895, 1104
  %v3034 = vadd.s32 %v2895, 1112
  %v3035 = vadd.s32 %v2895, 1120
  %v3036 = vadd.s32 %v2895, 1128
  %v3037 = vadd.s32 %v2895, 1136
  %v3038 = vadd.s32 %v2895, 1144
  %v3039 = vadd.s32 %v2895, 1152
  %v3040 = vadd.s32 %v2895, 1160
  %v3041 = vadd.s32 %v2895, 1168
  %v3042 = vadd.s32 %v2895, 1176
  %v3043 = vadd.s32 %v2895, 1184
  %v3044 = vadd.s32 %v2895, 1192
  %v3045 = vadd.s32 %v2895, 1200
  %v3046 = vadd.s32 %v2895, 1208
  %v3047 = vadd.s32 %v2895, 1216
  %v3048 = vadd.s32 %v2895, 1224
  %v3049 = vadd.s32 %v2895, 1232
  %v3050 = vadd.s32 %v2895, 1240
  %v3051 = vadd.s32 %v2895, 1248
  %v3052 = vadd.s32 %v2895, 1256
  %v3053 = vadd.s32 %v2895, 1264
  %v3054 = vadd.s32 %v2895, 1272
  %v3055 = vadd.s32 %v2895, 1280
  %v3056 = vadd.s32 %v2895, 1288
  %v3057 = vadd.s32 %v2895, 1296
  %v3058 = vadd.s32 %v2895, 1304
  %v3059 = vadd.s32 %v2895, 1312
  %v3060 = vadd.s32 %v2895, 1320
  %v3061 = vadd.s32 %v2895, 1328
  %v3062 = vadd.s32 %v2895, 1336
  %v3063 = vadd.s32 %v2895, 1344
  %v3064 = vadd.s32 %v2895, 1352
  %v3065 = vadd.s32 %v2895, 1360
  %v3066 = vadd.s32 %v2895, 1368
  %v3067 = vadd.s32 %v2895, 1376
  %v3068 = vadd.s32 %v2895, 1384
  %v3069 = vadd.s32 %v2895, 1392
  %v3070 = vadd.s32 %v2895, 1400
  %v3071 = vadd.s32 %v2895, 1408
  %v3072 = vadd.s32 %v2895, 1416
  %v3073 = vadd.s32 %v2895, 1424
  %v3074 = vadd.s32 %v2895, 1432
  %v3075 = vadd.s32 %v2895, 1440
  %v3076 = vadd.s32 %v2895, 1448
  %v3077 = vadd.s32 %v2895, 1456
  %v3078 = vadd.s32 %v2895, 1464
  %v3079 = vadd.s32 %v2895, 1472
  %v3080 = vadd.s32 %v2895, 1480
  %v3081 = vadd.s32 %v2895, 1488
  %v3082 = vadd.s32 %v2895, 1496
  %v3083 = vadd.s32 %v2895, 1504
  %v3084 = vadd.s32 %v2895, 1512
  %v3085 = vadd.s32 %v2895, 1520
  %v3086 = vadd.s32 %v2895, 1528
  %v3087 = vadd.s32 %v2895, 1536
  %v3088 = vadd.s32 %v2895, 1544
  %v3089 = vadd.s32 %v2895, 1552
  %v3090 = vadd.s32 %v2895, 1560
  %v3091 = vadd.s32 %v2895, 1568
  %v3092 = vadd.s32 %v2895, 1576
  %v3093 = vadd.s32 %v2895, 1584
  %v3094 = vadd.s32 %v2895, 1592
  %v3095 = vadd.s32 %v2895, 1600
  %v3096 = vadd.s32 %v2895, 1608
  %v3097 = vadd.s32 %v2895, 1616
  %v3098 = vadd.s32 %v2895, 1624
  %v3099 = vadd.s32 %v2895, 1632
  %v3100 = vadd.s32 %v2895, 1640
  %v3101 = vadd.s32 %v2895, 1648
  %v3102 = vadd.s32 %v2895, 1656
  %v3103 = vadd.s32 %v2895, 1664
  %v3104 = vadd.s32 %v2895, 1672
  %v3105 = vadd.s32 %v2895, 1680
  %v3106 = vadd.s32 %v2895, 1688
  %v3107 = vadd.s32 %v2895, 1696
  %v3108 = vadd.s32 %v2895, 1704
  %v3109 = vadd.s32 %v2895, 1712
  %v3110 = vadd.s32 %v2895, 1720
  %v3111 = vadd.s32 %v2895, 1728
  %v3112 = vadd.s32 %v2895, 1736
  %v3113 = vadd.s32 %v2895, 1744
  %v3114 = vadd.s32 %v2895, 1752
  %v3115 = vadd.s32 %v2895, 1760
  %v3116 = vadd.s32 %v2895, 1768
  %v3117 = vadd.s32 %v2895, 1776
  %v3118 = vadd.s32 %v2895, 1784
  %v3119 = vadd.s32 %v2895, 1792
  %v3120 = vadd.s32 %v2895, 1800
  %v3121 = vadd.s32 %v2895, 1808
  %v3122 = vadd.s32 %v2895, 1816
  %v3123 = vadd.s32 %v2895, 1824
  %v3124 = vadd.s32 %v2895, 1832
  %v3125 = vadd.s32 %v2895, 1840
  %v3126 = vadd.s32 %v2895, 1848
  %v3127 = vadd.s32 %v2895, 1856
  %v3128 = vadd.s32 %v2895, 1864
  %v3129 = vadd.s32 %v2895, 1872
  %v3130 = vadd.s32 %v2895, 1880
  %v3131 = vadd.s32 %v2895, 1888
  %v3132 = vadd.s32 %v2895, 1896
  %v3133 = vadd.s32 %v2895, 1904
  %v3134 = vadd.s32 %v2895, 1912
  %v3135 = vadd.s32 %v2895, 1920
  %v3136 = vadd.s32 %v2895, 1928
  %v3137 = vadd.s32 %v2895, 1936
  %v3138 = vadd.s32 %v2895, 1944
  %v3139 = vadd.s32 %v2895, 1952
  %v3140 = vadd.s32 %v2895, 1960
  %v3141 = vadd.s32 %v2895, 1968
  %v3142 = vadd.s32 %v2895, 1976
  %v3143 = vadd.s32 %v2895, 1984
  %v3144 = vadd.s32 %v2895, 1992
  %v3145 = vadd.s32 %v2895, 2000
  %v3146 = vadd.s32 %v2895, 2008
  %v3147 = vadd.s32 %v2895, 2016
  %v3148 = vadd.s32 %v2895, 2024
  %v3149 = vadd.s32 %v2895, 2032
  %v3150 = vadd.s32 %v2895, 2040
  %v3151 = vadd.s32 %v2895, 2048
  %v3152 = vadd.s32 %v2895, 2056
  %v3153 = vadd.s32 %v2895, 2064
  %v3154 = vadd.s32 %v2895, 2072
  %v3155 = vadd.s32 %v2895, 2080
  %v3156 = vadd.s32 %v2895, 2088
  %v3157 = vadd.s32 %v2895, 2096
  %v3158 = vadd.s32 %v2895, 2104
  %v3159 = vadd.s32 %v2895, 2112
  %v3160 = vadd.s32 %v2895, 2120
  %v3161 = vadd.s32 %v2895, 2128
  %v3162 = vadd.s32 %v2895, 2136
  %v3163 = vadd.s32 %v2895, 2144
  %v3164 = vadd.s32 %v2895, 2152
  %v3165 = vadd.s32 %v2895, 2160
  %vm3166 = vcmp.lt.s32.totalorder %v2895, 2162
  %vm3167 = vcmp.lt.s32.totalorder %v2896, 2162
  %vm3168 = vcmp.lt.s32.totalorder %v2897, 2162
  %vm3169 = vcmp.lt.s32.totalorder %v2898, 2162
  %vm3170 = vcmp.lt.s32.totalorder %v2899, 2162
  %vm3171 = vcmp.lt.s32.totalorder %v2900, 2162
  %vm3172 = vcmp.lt.s32.totalorder %v2901, 2162
  %vm3173 = vcmp.lt.s32.totalorder %v2902, 2162
  %vm3174 = vcmp.lt.s32.totalorder %v2903, 2162
  %vm3175 = vcmp.lt.s32.totalorder %v2904, 2162
  %vm3176 = vcmp.lt.s32.totalorder %v2905, 2162
  %vm3177 = vcmp.lt.s32.totalorder %v2906, 2162
  %vm3178 = vcmp.lt.s32.totalorder %v2907, 2162
  %vm3179 = vcmp.lt.s32.totalorder %v2908, 2162
  %vm3180 = vcmp.lt.s32.totalorder %v2909, 2162
  %vm3181 = vcmp.lt.s32.totalorder %v2910, 2162
  %vm3182 = vcmp.lt.s32.totalorder %v2911, 2162
  %vm3183 = vcmp.lt.s32.totalorder %v2912, 2162
  %vm3184 = vcmp.lt.s32.totalorder %v2913, 2162
  %vm3185 = vcmp.lt.s32.totalorder %v2914, 2162
  %vm3186 = vcmp.lt.s32.totalorder %v2915, 2162
  %vm3187 = vcmp.lt.s32.totalorder %v2916, 2162
  %vm3188 = vcmp.lt.s32.totalorder %v2917, 2162
  %vm3189 = vcmp.lt.s32.totalorder %v2918, 2162
  %vm3190 = vcmp.lt.s32.totalorder %v2919, 2162
  %vm3191 = vcmp.lt.s32.totalorder %v2920, 2162
  %vm3192 = vcmp.lt.s32.totalorder %v2921, 2162
  %vm3193 = vcmp.lt.s32.totalorder %v2922, 2162
  %vm3194 = vcmp.lt.s32.totalorder %v2923, 2162
  %vm3195 = vcmp.lt.s32.totalorder %v2924, 2162
  %vm3196 = vcmp.lt.s32.totalorder %v2925, 2162
  %vm3197 = vcmp.lt.s32.totalorder %v2926, 2162
  %vm3198 = vcmp.lt.s32.totalorder %v2927, 2162
  %vm3199 = vcmp.lt.s32.totalorder %v2928, 2162
  %vm3200 = vcmp.lt.s32.totalorder %v2929, 2162
  %vm3201 = vcmp.lt.s32.totalorder %v2930, 2162
  %vm3202 = vcmp.lt.s32.totalorder %v2931, 2162
  %vm3203 = vcmp.lt.s32.totalorder %v2932, 2162
  %vm3204 = vcmp.lt.s32.totalorder %v2933, 2162
  %vm3205 = vcmp.lt.s32.totalorder %v2934, 2162
  %vm3206 = vcmp.lt.s32.totalorder %v2935, 2162
  %vm3207 = vcmp.lt.s32.totalorder %v2936, 2162
  %vm3208 = vcmp.lt.s32.totalorder %v2937, 2162
  %vm3209 = vcmp.lt.s32.totalorder %v2938, 2162
  %vm3210 = vcmp.lt.s32.totalorder %v2939, 2162
  %vm3211 = vcmp.lt.s32.totalorder %v2940, 2162
  %vm3212 = vcmp.lt.s32.totalorder %v2941, 2162
  %vm3213 = vcmp.lt.s32.totalorder %v2942, 2162
  %vm3214 = vcmp.lt.s32.totalorder %v2943, 2162
  %vm3215 = vcmp.lt.s32.totalorder %v2944, 2162
  %vm3216 = vcmp.lt.s32.totalorder %v2945, 2162
  %vm3217 = vcmp.lt.s32.totalorder %v2946, 2162
  %vm3218 = vcmp.lt.s32.totalorder %v2947, 2162
  %vm3219 = vcmp.lt.s32.totalorder %v2948, 2162
  %vm3220 = vcmp.lt.s32.totalorder %v2949, 2162
  %vm3221 = vcmp.lt.s32.totalorder %v2950, 2162
  %vm3222 = vcmp.lt.s32.totalorder %v2951, 2162
  %vm3223 = vcmp.lt.s32.totalorder %v2952, 2162
  %vm3224 = vcmp.lt.s32.totalorder %v2953, 2162
  %vm3225 = vcmp.lt.s32.totalorder %v2954, 2162
  %vm3226 = vcmp.lt.s32.totalorder %v2955, 2162
  %vm3227 = vcmp.lt.s32.totalorder %v2956, 2162
  %vm3228 = vcmp.lt.s32.totalorder %v2957, 2162
  %vm3229 = vcmp.lt.s32.totalorder %v2958, 2162
  %vm3230 = vcmp.lt.s32.totalorder %v2959, 2162
  %vm3231 = vcmp.lt.s32.totalorder %v2960, 2162
  %vm3232 = vcmp.lt.s32.totalorder %v2961, 2162
  %vm3233 = vcmp.lt.s32.totalorder %v2962, 2162
  %vm3234 = vcmp.lt.s32.totalorder %v2963, 2162
  %vm3235 = vcmp.lt.s32.totalorder %v2964, 2162
  %vm3236 = vcmp.lt.s32.totalorder %v2965, 2162
  %vm3237 = vcmp.lt.s32.totalorder %v2966, 2162
  %vm3238 = vcmp.lt.s32.totalorder %v2967, 2162
  %vm3239 = vcmp.lt.s32.totalorder %v2968, 2162
  %vm3240 = vcmp.lt.s32.totalorder %v2969, 2162
  %vm3241 = vcmp.lt.s32.totalorder %v2970, 2162
  %vm3242 = vcmp.lt.s32.totalorder %v2971, 2162
  %vm3243 = vcmp.lt.s32.totalorder %v2972, 2162
  %vm3244 = vcmp.lt.s32.totalorder %v2973, 2162
  %vm3245 = vcmp.lt.s32.totalorder %v2974, 2162
  %vm3246 = vcmp.lt.s32.totalorder %v2975, 2162
  %vm3247 = vcmp.lt.s32.totalorder %v2976, 2162
  %vm3248 = vcmp.lt.s32.totalorder %v2977, 2162
  %vm3249 = vcmp.lt.s32.totalorder %v2978, 2162
  %vm3250 = vcmp.lt.s32.totalorder %v2979, 2162
  %vm3251 = vcmp.lt.s32.totalorder %v2980, 2162
  %vm3252 = vcmp.lt.s32.totalorder %v2981, 2162
  %vm3253 = vcmp.lt.s32.totalorder %v2982, 2162
  %vm3254 = vcmp.lt.s32.totalorder %v2983, 2162
  %vm3255 = vcmp.lt.s32.totalorder %v2984, 2162
  %vm3256 = vcmp.lt.s32.totalorder %v2985, 2162
  %vm3257 = vcmp.lt.s32.totalorder %v2986, 2162
  %vm3258 = vcmp.lt.s32.totalorder %v2987, 2162
  %vm3259 = vcmp.lt.s32.totalorder %v2988, 2162
  %vm3260 = vcmp.lt.s32.totalorder %v2989, 2162
  %vm3261 = vcmp.lt.s32.totalorder %v2990, 2162
  %vm3262 = vcmp.lt.s32.totalorder %v2991, 2162
  %vm3263 = vcmp.lt.s32.totalorder %v2992, 2162
  %vm3264 = vcmp.lt.s32.totalorder %v2993, 2162
  %vm3265 = vcmp.lt.s32.totalorder %v2994, 2162
  %vm3266 = vcmp.lt.s32.totalorder %v2995, 2162
  %vm3267 = vcmp.lt.s32.totalorder %v2996, 2162
  %vm3268 = vcmp.lt.s32.totalorder %v2997, 2162
  %vm3269 = vcmp.lt.s32.totalorder %v2998, 2162
  %vm3270 = vcmp.lt.s32.totalorder %v2999, 2162
  %vm3271 = vcmp.lt.s32.totalorder %v3000, 2162
  %vm3272 = vcmp.lt.s32.totalorder %v3001, 2162
  %vm3273 = vcmp.lt.s32.totalorder %v3002, 2162
  %vm3274 = vcmp.lt.s32.totalorder %v3003, 2162
  %vm3275 = vcmp.lt.s32.totalorder %v3004, 2162
  %vm3276 = vcmp.lt.s32.totalorder %v3005, 2162
  %vm3277 = vcmp.lt.s32.totalorder %v3006, 2162
  %vm3278 = vcmp.lt.s32.totalorder %v3007, 2162
  %vm3279 = vcmp.lt.s32.totalorder %v3008, 2162
  %vm3280 = vcmp.lt.s32.totalorder %v3009, 2162
  %vm3281 = vcmp.lt.s32.totalorder %v3010, 2162
  %vm3282 = vcmp.lt.s32.totalorder %v3011, 2162
  %vm3283 = vcmp.lt.s32.totalorder %v3012, 2162
  %vm3284 = vcmp.lt.s32.totalorder %v3013, 2162
  %vm3285 = vcmp.lt.s32.totalorder %v3014, 2162
  %vm3286 = vcmp.lt.s32.totalorder %v3015, 2162
  %vm3287 = vcmp.lt.s32.totalorder %v3016, 2162
  %vm3288 = vcmp.lt.s32.totalorder %v3017, 2162
  %vm3289 = vcmp.lt.s32.totalorder %v3018, 2162
  %vm3290 = vcmp.lt.s32.totalorder %v3019, 2162
  %vm3291 = vcmp.lt.s32.totalorder %v3020, 2162
  %vm3292 = vcmp.lt.s32.totalorder %v3021, 2162
  %vm3293 = vcmp.lt.s32.totalorder %v3022, 2162
  %vm3294 = vcmp.lt.s32.totalorder %v3023, 2162
  %vm3295 = vcmp.lt.s32.totalorder %v3024, 2162
  %vm3296 = vcmp.lt.s32.totalorder %v3025, 2162
  %vm3297 = vcmp.lt.s32.totalorder %v3026, 2162
  %vm3298 = vcmp.lt.s32.totalorder %v3027, 2162
  %vm3299 = vcmp.lt.s32.totalorder %v3028, 2162
  %vm3300 = vcmp.lt.s32.totalorder %v3029, 2162
  %vm3301 = vcmp.lt.s32.totalorder %v3030, 2162
  %vm3302 = vcmp.lt.s32.totalorder %v3031, 2162
  %vm3303 = vcmp.lt.s32.totalorder %v3032, 2162
  %vm3304 = vcmp.lt.s32.totalorder %v3033, 2162
  %vm3305 = vcmp.lt.s32.totalorder %v3034, 2162
  %vm3306 = vcmp.lt.s32.totalorder %v3035, 2162
  %vm3307 = vcmp.lt.s32.totalorder %v3036, 2162
  %vm3308 = vcmp.lt.s32.totalorder %v3037, 2162
  %vm3309 = vcmp.lt.s32.totalorder %v3038, 2162
  %vm3310 = vcmp.lt.s32.totalorder %v3039, 2162
  %vm3311 = vcmp.lt.s32.totalorder %v3040, 2162
  %vm3312 = vcmp.lt.s32.totalorder %v3041, 2162
  %vm3313 = vcmp.lt.s32.totalorder %v3042, 2162
  %vm3314 = vcmp.lt.s32.totalorder %v3043, 2162
  %vm3315 = vcmp.lt.s32.totalorder %v3044, 2162
  %vm3316 = vcmp.lt.s32.totalorder %v3045, 2162
  %vm3317 = vcmp.lt.s32.totalorder %v3046, 2162
  %vm3318 = vcmp.lt.s32.totalorder %v3047, 2162
  %vm3319 = vcmp.lt.s32.totalorder %v3048, 2162
  %vm3320 = vcmp.lt.s32.totalorder %v3049, 2162
  %vm3321 = vcmp.lt.s32.totalorder %v3050, 2162
  %vm3322 = vcmp.lt.s32.totalorder %v3051, 2162
  %vm3323 = vcmp.lt.s32.totalorder %v3052, 2162
  %vm3324 = vcmp.lt.s32.totalorder %v3053, 2162
  %vm3325 = vcmp.lt.s32.totalorder %v3054, 2162
  %vm3326 = vcmp.lt.s32.totalorder %v3055, 2162
  %vm3327 = vcmp.lt.s32.totalorder %v3056, 2162
  %vm3328 = vcmp.lt.s32.totalorder %v3057, 2162
  %vm3329 = vcmp.lt.s32.totalorder %v3058, 2162
  %vm3330 = vcmp.lt.s32.totalorder %v3059, 2162
  %vm3331 = vcmp.lt.s32.totalorder %v3060, 2162
  %vm3332 = vcmp.lt.s32.totalorder %v3061, 2162
  %vm3333 = vcmp.lt.s32.totalorder %v3062, 2162
  %vm3334 = vcmp.lt.s32.totalorder %v3063, 2162
  %vm3335 = vcmp.lt.s32.totalorder %v3064, 2162
  %vm3336 = vcmp.lt.s32.totalorder %v3065, 2162
  %vm3337 = vcmp.lt.s32.totalorder %v3066, 2162
  %vm3338 = vcmp.lt.s32.totalorder %v3067, 2162
  %vm3339 = vcmp.lt.s32.totalorder %v3068, 2162
  %vm3340 = vcmp.lt.s32.totalorder %v3069, 2162
  %vm3341 = vcmp.lt.s32.totalorder %v3070, 2162
  %vm3342 = vcmp.lt.s32.totalorder %v3071, 2162
  %vm3343 = vcmp.lt.s32.totalorder %v3072, 2162
  %vm3344 = vcmp.lt.s32.totalorder %v3073, 2162
  %vm3345 = vcmp.lt.s32.totalorder %v3074, 2162
  %vm3346 = vcmp.lt.s32.totalorder %v3075, 2162
  %vm3347 = vcmp.lt.s32.totalorder %v3076, 2162
  %vm3348 = vcmp.lt.s32.totalorder %v3077, 2162
  %vm3349 = vcmp.lt.s32.totalorder %v3078, 2162
  %vm3350 = vcmp.lt.s32.totalorder %v3079, 2162
  %vm3351 = vcmp.lt.s32.totalorder %v3080, 2162
  %vm3352 = vcmp.lt.s32.totalorder %v3081, 2162
  %vm3353 = vcmp.lt.s32.totalorder %v3082, 2162
  %vm3354 = vcmp.lt.s32.totalorder %v3083, 2162
  %vm3355 = vcmp.lt.s32.totalorder %v3084, 2162
  %vm3356 = vcmp.lt.s32.totalorder %v3085, 2162
  %vm3357 = vcmp.lt.s32.totalorder %v3086, 2162
  %vm3358 = vcmp.lt.s32.totalorder %v3087, 2162
  %vm3359 = vcmp.lt.s32.totalorder %v3088, 2162
  %vm3360 = vcmp.lt.s32.totalorder %v3089, 2162
  %vm3361 = vcmp.lt.s32.totalorder %v3090, 2162
  %vm3362 = vcmp.lt.s32.totalorder %v3091, 2162
  %vm3363 = vcmp.lt.s32.totalorder %v3092, 2162
  %vm3364 = vcmp.lt.s32.totalorder %v3093, 2162
  %vm3365 = vcmp.lt.s32.totalorder %v3094, 2162
  %vm3366 = vcmp.lt.s32.totalorder %v3095, 2162
  %vm3367 = vcmp.lt.s32.totalorder %v3096, 2162
  %vm3368 = vcmp.lt.s32.totalorder %v3097, 2162
  %vm3369 = vcmp.lt.s32.totalorder %v3098, 2162
  %vm3370 = vcmp.lt.s32.totalorder %v3099, 2162
  %vm3371 = vcmp.lt.s32.totalorder %v3100, 2162
  %vm3372 = vcmp.lt.s32.totalorder %v3101, 2162
  %vm3373 = vcmp.lt.s32.totalorder %v3102, 2162
  %vm3374 = vcmp.lt.s32.totalorder %v3103, 2162
  %vm3375 = vcmp.lt.s32.totalorder %v3104, 2162
  %vm3376 = vcmp.lt.s32.totalorder %v3105, 2162
  %vm3377 = vcmp.lt.s32.totalorder %v3106, 2162
  %vm3378 = vcmp.lt.s32.totalorder %v3107, 2162
  %vm3379 = vcmp.lt.s32.totalorder %v3108, 2162
  %vm3380 = vcmp.lt.s32.totalorder %v3109, 2162
  %vm3381 = vcmp.lt.s32.totalorder %v3110, 2162
  %vm3382 = vcmp.lt.s32.totalorder %v3111, 2162
  %vm3383 = vcmp.lt.s32.totalorder %v3112, 2162
  %vm3384 = vcmp.lt.s32.totalorder %v3113, 2162
  %vm3385 = vcmp.lt.s32.totalorder %v3114, 2162
  %vm3386 = vcmp.lt.s32.totalorder %v3115, 2162
  %vm3387 = vcmp.lt.s32.totalorder %v3116, 2162
  %vm3388 = vcmp.lt.s32.totalorder %v3117, 2162
  %vm3389 = vcmp.lt.s32.totalorder %v3118, 2162
  %vm3390 = vcmp.lt.s32.totalorder %v3119, 2162
  %vm3391 = vcmp.lt.s32.totalorder %v3120, 2162
  %vm3392 = vcmp.lt.s32.totalorder %v3121, 2162
  %vm3393 = vcmp.lt.s32.totalorder %v3122, 2162
  %vm3394 = vcmp.lt.s32.totalorder %v3123, 2162
  %vm3395 = vcmp.lt.s32.totalorder %v3124, 2162
  %vm3396 = vcmp.lt.s32.totalorder %v3125, 2162
  %vm3397 = vcmp.lt.s32.totalorder %v3126, 2162
  %vm3398 = vcmp.lt.s32.totalorder %v3127, 2162
  %vm3399 = vcmp.lt.s32.totalorder %v3128, 2162
  %vm3400 = vcmp.lt.s32.totalorder %v3129, 2162
  %vm3401 = vcmp.lt.s32.totalorder %v3130, 2162
  %vm3402 = vcmp.lt.s32.totalorder %v3131, 2162
  %vm3403 = vcmp.lt.s32.totalorder %v3132, 2162
  %vm3404 = vcmp.lt.s32.totalorder %v3133, 2162
  %vm3405 = vcmp.lt.s32.totalorder %v3134, 2162
  %vm3406 = vcmp.lt.s32.totalorder %v3135, 2162
  %vm3407 = vcmp.lt.s32.totalorder %v3136, 2162
  %vm3408 = vcmp.lt.s32.totalorder %v3137, 2162
  %vm3409 = vcmp.lt.s32.totalorder %v3138, 2162
  %vm3410 = vcmp.lt.s32.totalorder %v3139, 2162
  %vm3411 = vcmp.lt.s32.totalorder %v3140, 2162
  %vm3412 = vcmp.lt.s32.totalorder %v3141, 2162
  %vm3413 = vcmp.lt.s32.totalorder %v3142, 2162
  %vm3414 = vcmp.lt.s32.totalorder %v3143, 2162
  %vm3415 = vcmp.lt.s32.totalorder %v3144, 2162
  %vm3416 = vcmp.lt.s32.totalorder %v3145, 2162
  %vm3417 = vcmp.lt.s32.totalorder %v3146, 2162
  %vm3418 = vcmp.lt.s32.totalorder %v3147, 2162
  %vm3419 = vcmp.lt.s32.totalorder %v3148, 2162
  %vm3420 = vcmp.lt.s32.totalorder %v3149, 2162
  %vm3421 = vcmp.lt.s32.totalorder %v3150, 2162
  %vm3422 = vcmp.lt.s32.totalorder %v3151, 2162
  %vm3423 = vcmp.lt.s32.totalorder %v3152, 2162
  %vm3424 = vcmp.lt.s32.totalorder %v3153, 2162
  %vm3425 = vcmp.lt.s32.totalorder %v3154, 2162
  %vm3426 = vcmp.lt.s32.totalorder %v3155, 2162
  %vm3427 = vcmp.lt.s32.totalorder %v3156, 2162
  %vm3428 = vcmp.lt.s32.totalorder %v3157, 2162
  %vm3429 = vcmp.lt.s32.totalorder %v3158, 2162
  %vm3430 = vcmp.lt.s32.totalorder %v3159, 2162
  %vm3431 = vcmp.lt.s32.totalorder %v3160, 2162
  %vm3432 = vcmp.lt.s32.totalorder %v3161, 2162
  %vm3433 = vcmp.lt.s32.totalorder %v3162, 2162
  %vm3434 = vcmp.lt.s32.totalorder %v3163, 2162
  %vm3435 = vcmp.lt.s32.totalorder %v3164, 2162
  %vm3436 = vcmp.lt.s32.totalorder %v3165, 2162
  %v3437 = vsel %vm3166, %v1809, 0.0
  %v3438 = vsel %vm3167, %v1812, 0.0
  %v3439 = vsel %vm3168, %v1817, 0.0
  %v3440 = vsel %vm3169, %v1820, 0.0
  %v3441 = vsel %vm3170, %v1825, 0.0
  %v3442 = vsel %vm3171, %v1828, 0.0
  %v3443 = vsel %vm3172, %v1833, 0.0
  %v3444 = vsel %vm3173, %v1836, 0.0
  %v3445 = vsel %vm3174, %v1841, 0.0
  %v3446 = vsel %vm3175, %v1844, 0.0
  %v3447 = vsel %vm3176, %v1849, 0.0
  %v3448 = vsel %vm3177, %v1852, 0.0
  %v3449 = vsel %vm3178, %v1857, 0.0
  %v3450 = vsel %vm3179, %v1860, 0.0
  %v3451 = vsel %vm3180, %v1865, 0.0
  %v3452 = vsel %vm3181, %v1868, 0.0
  %v3453 = vsel %vm3182, %v1873, 0.0
  %v3454 = vsel %vm3183, %v1876, 0.0
  %v3455 = vsel %vm3184, %v1881, 0.0
  %v3456 = vsel %vm3185, %v1884, 0.0
  %v3457 = vsel %vm3186, %v1889, 0.0
  %v3458 = vsel %vm3187, %v1892, 0.0
  %v3459 = vsel %vm3188, %v1897, 0.0
  %v3460 = vsel %vm3189, %v1900, 0.0
  %v3461 = vsel %vm3190, %v1905, 0.0
  %v3462 = vsel %vm3191, %v1908, 0.0
  %v3463 = vsel %vm3192, %v1913, 0.0
  %v3464 = vsel %vm3193, %v1916, 0.0
  %v3465 = vsel %vm3194, %v1921, 0.0
  %v3466 = vsel %vm3195, %v1924, 0.0
  %v3467 = vsel %vm3196, %v1929, 0.0
  %v3468 = vsel %vm3197, %v1932, 0.0
  %v3469 = vsel %vm3198, %v1937, 0.0
  %v3470 = vsel %vm3199, %v1940, 0.0
  %v3471 = vsel %vm3200, %v1945, 0.0
  %v3472 = vsel %vm3201, %v1948, 0.0
  %v3473 = vsel %vm3202, %v1953, 0.0
  %v3474 = vsel %vm3203, %v1956, 0.0
  %v3475 = vsel %vm3204, %v1961, 0.0
  %v3476 = vsel %vm3205, %v1964, 0.0
  %v3477 = vsel %vm3206, %v1969, 0.0
  %v3478 = vsel %vm3207, %v1972, 0.0
  %v3479 = vsel %vm3208, %v1977, 0.0
  %v3480 = vsel %vm3209, %v1980, 0.0
  %v3481 = vsel %vm3210, %v1985, 0.0
  %v3482 = vsel %vm3211, %v1988, 0.0
  %v3483 = vsel %vm3212, %v1993, 0.0
  %v3484 = vsel %vm3213, %v1996, 0.0
  %v3485 = vsel %vm3214, %v2001, 0.0
  %v3486 = vsel %vm3215, %v2004, 0.0
  %v3487 = vsel %vm3216, %v2009, 0.0
  %v3488 = vsel %vm3217, %v2012, 0.0
  %v3489 = vsel %vm3218, %v2017, 0.0
  %v3490 = vsel %vm3219, %v2020, 0.0
  %v3491 = vsel %vm3220, %v2025, 0.0
  %v3492 = vsel %vm3221, %v2028, 0.0
  %v3493 = vsel %vm3222, %v2033, 0.0
  %v3494 = vsel %vm3223, %v2036, 0.0
  %v3495 = vsel %vm3224, %v2041, 0.0
  %v3496 = vsel %vm3225, %v2044, 0.0
  %v3497 = vsel %vm3226, %v2049, 0.0
  %v3498 = vsel %vm3227, %v2052, 0.0
  %v3499 = vsel %vm3228, %v2057, 0.0
  %v3500 = vsel %vm3229, %v2060, 0.0
  %v3501 = vsel %vm3230, %v2065, 0.0
  %v3502 = vsel %vm3231, %v2068, 0.0
  %v3503 = vsel %vm3232, %v2073, 0.0
  %v3504 = vsel %vm3233, %v2076, 0.0
  %v3505 = vsel %vm3234, %v2081, 0.0
  %v3506 = vsel %vm3235, %v2084, 0.0
  %v3507 = vsel %vm3236, %v2089, 0.0
  %v3508 = vsel %vm3237, %v2092, 0.0
  %v3509 = vsel %vm3238, %v2097, 0.0
  %v3510 = vsel %vm3239, %v2100, 0.0
  %v3511 = vsel %vm3240, %v2105, 0.0
  %v3512 = vsel %vm3241, %v2108, 0.0
  %v3513 = vsel %vm3242, %v2113, 0.0
  %v3514 = vsel %vm3243, %v2116, 0.0
  %v3515 = vsel %vm3244, %v2121, 0.0
  %v3516 = vsel %vm3245, %v2124, 0.0
  %v3517 = vsel %vm3246, %v2129, 0.0
  %v3518 = vsel %vm3247, %v2132, 0.0
  %v3519 = vsel %vm3248, %v2137, 0.0
  %v3520 = vsel %vm3249, %v2140, 0.0
  %v3521 = vsel %vm3250, %v2145, 0.0
  %v3522 = vsel %vm3251, %v2148, 0.0
  %v3523 = vsel %vm3252, %v2153, 0.0
  %v3524 = vsel %vm3253, %v2156, 0.0
  %v3525 = vsel %vm3254, %v2161, 0.0
  %v3526 = vsel %vm3255, %v2164, 0.0
  %v3527 = vsel %vm3256, %v2169, 0.0
  %v3528 = vsel %vm3257, %v2172, 0.0
  %v3529 = vsel %vm3258, %v2177, 0.0
  %v3530 = vsel %vm3259, %v2180, 0.0
  %v3531 = vsel %vm3260, %v2185, 0.0
  %v3532 = vsel %vm3261, %v2188, 0.0
  %v3533 = vsel %vm3262, %v2193, 0.0
  %v3534 = vsel %vm3263, %v2196, 0.0
  %v3535 = vsel %vm3264, %v2201, 0.0
  %v3536 = vsel %vm3265, %v2204, 0.0
  %v3537 = vsel %vm3266, %v2209, 0.0
  %v3538 = vsel %vm3267, %v2212, 0.0
  %v3539 = vsel %vm3268, %v2217, 0.0
  %v3540 = vsel %vm3269, %v2220, 0.0
  %v3541 = vsel %vm3270, %v2225, 0.0
  %v3542 = vsel %vm3271, %v2228, 0.0
  %v3543 = vsel %vm3272, %v2233, 0.0
  %v3544 = vsel %vm3273, %v2236, 0.0
  %v3545 = vsel %vm3274, %v2241, 0.0
  %v3546 = vsel %vm3275, %v2244, 0.0
  %v3547 = vsel %vm3276, %v2249, 0.0
  %v3548 = vsel %vm3277, %v2252, 0.0
  %v3549 = vsel %vm3278, %v2257, 0.0
  %v3550 = vsel %vm3279, %v2260, 0.0
  %v3551 = vsel %vm3280, %v2265, 0.0
  %v3552 = vsel %vm3281, %v2268, 0.0
  %v3553 = vsel %vm3282, %v2273, 0.0
  %v3554 = vsel %vm3283, %v2276, 0.0
  %v3555 = vsel %vm3284, %v2281, 0.0
  %v3556 = vsel %vm3285, %v2284, 0.0
  %v3557 = vsel %vm3286, %v2289, 0.0
  %v3558 = vsel %vm3287, %v2292, 0.0
  %v3559 = vsel %vm3288, %v2297, 0.0
  %v3560 = vsel %vm3289, %v2300, 0.0
  %v3561 = vsel %vm3290, %v2305, 0.0
  %v3562 = vsel %vm3291, %v2308, 0.0
  %v3563 = vsel %vm3292, %v2313, 0.0
  %v3564 = vsel %vm3293, %v2316, 0.0
  %v3565 = vsel %vm3294, %v2321, 0.0
  %v3566 = vsel %vm3295, %v2324, 0.0
  %v3567 = vsel %vm3296, %v2329, 0.0
  %v3568 = vsel %vm3297, %v2332, 0.0
  %v3569 = vsel %vm3298, %v2337, 0.0
  %v3570 = vsel %vm3299, %v2340, 0.0
  %v3571 = vsel %vm3300, %v2345, 0.0
  %v3572 = vsel %vm3301, %v2348, 0.0
  %v3573 = vsel %vm3302, %v2353, 0.0
  %v3574 = vsel %vm3303, %v2356, 0.0
  %v3575 = vsel %vm3304, %v2361, 0.0
  %v3576 = vsel %vm3305, %v2364, 0.0
  %v3577 = vsel %vm3306, %v2369, 0.0
  %v3578 = vsel %vm3307, %v2372, 0.0
  %v3579 = vsel %vm3308, %v2377, 0.0
  %v3580 = vsel %vm3309, %v2380, 0.0
  %v3581 = vsel %vm3310, %v2385, 0.0
  %v3582 = vsel %vm3311, %v2388, 0.0
  %v3583 = vsel %vm3312, %v2393, 0.0
  %v3584 = vsel %vm3313, %v2396, 0.0
  %v3585 = vsel %vm3314, %v2401, 0.0
  %v3586 = vsel %vm3315, %v2404, 0.0
  %v3587 = vsel %vm3316, %v2409, 0.0
  %v3588 = vsel %vm3317, %v2412, 0.0
  %v3589 = vsel %vm3318, %v2417, 0.0
  %v3590 = vsel %vm3319, %v2420, 0.0
  %v3591 = vsel %vm3320, %v2425, 0.0
  %v3592 = vsel %vm3321, %v2428, 0.0
  %v3593 = vsel %vm3322, %v2433, 0.0
  %v3594 = vsel %vm3323, %v2436, 0.0
  %v3595 = vsel %vm3324, %v2441, 0.0
  %v3596 = vsel %vm3325, %v2444, 0.0
  %v3597 = vsel %vm3326, %v2449, 0.0
  %v3598 = vsel %vm3327, %v2452, 0.0
  %v3599 = vsel %vm3328, %v2457, 0.0
  %v3600 = vsel %vm3329, %v2460, 0.0
  %v3601 = vsel %vm3330, %v2465, 0.0
  %v3602 = vsel %vm3331, %v2468, 0.0
  %v3603 = vsel %vm3332, %v2473, 0.0
  %v3604 = vsel %vm3333, %v2476, 0.0
  %v3605 = vsel %vm3334, %v2481, 0.0
  %v3606 = vsel %vm3335, %v2484, 0.0
  %v3607 = vsel %vm3336, %v2489, 0.0
  %v3608 = vsel %vm3337, %v2492, 0.0
  %v3609 = vsel %vm3338, %v2497, 0.0
  %v3610 = vsel %vm3339, %v2500, 0.0
  %v3611 = vsel %vm3340, %v2505, 0.0
  %v3612 = vsel %vm3341, %v2508, 0.0
  %v3613 = vsel %vm3342, %v2513, 0.0
  %v3614 = vsel %vm3343, %v2516, 0.0
  %v3615 = vsel %vm3344, %v2521, 0.0
  %v3616 = vsel %vm3345, %v2524, 0.0
  %v3617 = vsel %vm3346, %v2529, 0.0
  %v3618 = vsel %vm3347, %v2532, 0.0
  %v3619 = vsel %vm3348, %v2537, 0.0
  %v3620 = vsel %vm3349, %v2540, 0.0
  %v3621 = vsel %vm3350, %v2545, 0.0
  %v3622 = vsel %vm3351, %v2548, 0.0
  %v3623 = vsel %vm3352, %v2553, 0.0
  %v3624 = vsel %vm3353, %v2556, 0.0
  %v3625 = vsel %vm3354, %v2561, 0.0
  %v3626 = vsel %vm3355, %v2564, 0.0
  %v3627 = vsel %vm3356, %v2569, 0.0
  %v3628 = vsel %vm3357, %v2572, 0.0
  %v3629 = vsel %vm3358, %v2577, 0.0
  %v3630 = vsel %vm3359, %v2580, 0.0
  %v3631 = vsel %vm3360, %v2585, 0.0
  %v3632 = vsel %vm3361, %v2588, 0.0
  %v3633 = vsel %vm3362, %v2593, 0.0
  %v3634 = vsel %vm3363, %v2596, 0.0
  %v3635 = vsel %vm3364, %v2601, 0.0
  %v3636 = vsel %vm3365, %v2604, 0.0
  %v3637 = vsel %vm3366, %v2609, 0.0
  %v3638 = vsel %vm3367, %v2612, 0.0
  %v3639 = vsel %vm3368, %v2617, 0.0
  %v3640 = vsel %vm3369, %v2620, 0.0
  %v3641 = vsel %vm3370, %v2625, 0.0
  %v3642 = vsel %vm3371, %v2628, 0.0
  %v3643 = vsel %vm3372, %v2633, 0.0
  %v3644 = vsel %vm3373, %v2636, 0.0
  %v3645 = vsel %vm3374, %v2641, 0.0
  %v3646 = vsel %vm3375, %v2644, 0.0
  %v3647 = vsel %vm3376, %v2649, 0.0
  %v3648 = vsel %vm3377, %v2652, 0.0
  %v3649 = vsel %vm3378, %v2657, 0.0
  %v3650 = vsel %vm3379, %v2660, 0.0
  %v3651 = vsel %vm3380, %v2665, 0.0
  %v3652 = vsel %vm3381, %v2668, 0.0
  %v3653 = vsel %vm3382, %v2673, 0.0
  %v3654 = vsel %vm3383, %v2676, 0.0
  %v3655 = vsel %vm3384, %v2681, 0.0
  %v3656 = vsel %vm3385, %v2684, 0.0
  %v3657 = vsel %vm3386, %v2689, 0.0
  %v3658 = vsel %vm3387, %v2692, 0.0
  %v3659 = vsel %vm3388, %v2697, 0.0
  %v3660 = vsel %vm3389, %v2700, 0.0
  %v3661 = vsel %vm3390, %v2705, 0.0
  %v3662 = vsel %vm3391, %v2708, 0.0
  %v3663 = vsel %vm3392, %v2713, 0.0
  %v3664 = vsel %vm3393, %v2716, 0.0
  %v3665 = vsel %vm3394, %v2721, 0.0
  %v3666 = vsel %vm3395, %v2724, 0.0
  %v3667 = vsel %vm3396, %v2729, 0.0
  %v3668 = vsel %vm3397, %v2732, 0.0
  %v3669 = vsel %vm3398, %v2737, 0.0
  %v3670 = vsel %vm3399, %v2740, 0.0
  %v3671 = vsel %vm3400, %v2745, 0.0
  %v3672 = vsel %vm3401, %v2748, 0.0
  %v3673 = vsel %vm3402, %v2753, 0.0
  %v3674 = vsel %vm3403, %v2756, 0.0
  %v3675 = vsel %vm3404, %v2761, 0.0
  %v3676 = vsel %vm3405, %v2764, 0.0
  %v3677 = vsel %vm3406, %v2769, 0.0
  %v3678 = vsel %vm3407, %v2772, 0.0
  %v3679 = vsel %vm3408, %v2777, 0.0
  %v3680 = vsel %vm3409, %v2780, 0.0
  %v3681 = vsel %vm3410, %v2785, 0.0
  %v3682 = vsel %vm3411, %v2788, 0.0
  %v3683 = vsel %vm3412, %v2793, 0.0
  %v3684 = vsel %vm3413, %v2796, 0.0
  %v3685 = vsel %vm3414, %v2801, 0.0
  %v3686 = vsel %vm3415, %v2804, 0.0
  %v3687 = vsel %vm3416, %v2809, 0.0
  %v3688 = vsel %vm3417, %v2812, 0.0
  %v3689 = vsel %vm3418, %v2817, 0.0
  %v3690 = vsel %vm3419, %v2820, 0.0
  %v3691 = vsel %vm3420, %v2825, 0.0
  %v3692 = vsel %vm3421, %v2828, 0.0
  %v3693 = vsel %vm3422, %v2833, 0.0
  %v3694 = vsel %vm3423, %v2836, 0.0
  %v3695 = vsel %vm3424, %v2841, 0.0
  %v3696 = vsel %vm3425, %v2844, 0.0
  %v3697 = vsel %vm3426, %v2849, 0.0
  %v3698 = vsel %vm3427, %v2852, 0.0
  %v3699 = vsel %vm3428, %v2857, 0.0
  %v3700 = vsel %vm3429, %v2860, 0.0
  %v3701 = vsel %vm3430, %v2865, 0.0
  %v3702 = vsel %vm3431, %v2868, 0.0
  %v3703 = vsel %vm3432, %v2873, 0.0
  %v3704 = vsel %vm3433, %v2876, 0.0
  %v3705 = vsel %vm3434, %v2881, 0.0
  %v3706 = vsel %vm3435, %v2884, 0.0
  %v3707 = vsel %vm3436, %v2889, 0.0
  %v3708 = vadd.f32 %v3437, %v3438
  %v3709 = vadd.f32 %v3708, %v3439
  %v3710 = vadd.f32 %v3709, %v3440
  %v3711 = vadd.f32 %v3710, %v3441
  %v3712 = vadd.f32 %v3711, %v3442
  %v3713 = vadd.f32 %v3712, %v3443
  %v3714 = vadd.f32 %v3713, %v3444
  %v3715 = vadd.f32 %v3714, %v3445
  %v3716 = vadd.f32 %v3715, %v3446
  %v3717 = vadd.f32 %v3716, %v3447
  %v3718 = vadd.f32 %v3717, %v3448
  %v3719 = vadd.f32 %v3718, %v3449
  %v3720 = vadd.f32 %v3719, %v3450
  %v3721 = vadd.f32 %v3720, %v3451
  %v3722 = vadd.f32 %v3721, %v3452
  %v3723 = vadd.f32 %v3722, %v3453
  %v3724 = vadd.f32 %v3723, %v3454
  %v3725 = vadd.f32 %v3724, %v3455
  %v3726 = vadd.f32 %v3725, %v3456
  %v3727 = vadd.f32 %v3726, %v3457
  %v3728 = vadd.f32 %v3727, %v3458
  %v3729 = vadd.f32 %v3728, %v3459
  %v3730 = vadd.f32 %v3729, %v3460
  %v3731 = vadd.f32 %v3730, %v3461
  %v3732 = vadd.f32 %v3731, %v3462
  %v3733 = vadd.f32 %v3732, %v3463
  %v3734 = vadd.f32 %v3733, %v3464
  %v3735 = vadd.f32 %v3734, %v3465
  %v3736 = vadd.f32 %v3735, %v3466
  %v3737 = vadd.f32 %v3736, %v3467
  %v3738 = vadd.f32 %v3737, %v3468
  %v3739 = vadd.f32 %v3738, %v3469
  %v3740 = vadd.f32 %v3739, %v3470
  %v3741 = vadd.f32 %v3740, %v3471
  %v3742 = vadd.f32 %v3741, %v3472
  %v3743 = vadd.f32 %v3742, %v3473
  %v3744 = vadd.f32 %v3743, %v3474
  %v3745 = vadd.f32 %v3744, %v3475
  %v3746 = vadd.f32 %v3745, %v3476
  %v3747 = vadd.f32 %v3746, %v3477
  %v3748 = vadd.f32 %v3747, %v3478
  %v3749 = vadd.f32 %v3748, %v3479
  %v3750 = vadd.f32 %v3749, %v3480
  %v3751 = vadd.f32 %v3750, %v3481
  %v3752 = vadd.f32 %v3751, %v3482
  %v3753 = vadd.f32 %v3752, %v3483
  %v3754 = vadd.f32 %v3753, %v3484
  %v3755 = vadd.f32 %v3754, %v3485
  %v3756 = vadd.f32 %v3755, %v3486
  %v3757 = vadd.f32 %v3756, %v3487
  %v3758 = vadd.f32 %v3757, %v3488
  %v3759 = vadd.f32 %v3758, %v3489
  %v3760 = vadd.f32 %v3759, %v3490
  %v3761 = vadd.f32 %v3760, %v3491
  %v3762 = vadd.f32 %v3761, %v3492
  %v3763 = vadd.f32 %v3762, %v3493
  %v3764 = vadd.f32 %v3763, %v3494
  %v3765 = vadd.f32 %v3764, %v3495
  %v3766 = vadd.f32 %v3765, %v3496
  %v3767 = vadd.f32 %v3766, %v3497
  %v3768 = vadd.f32 %v3767, %v3498
  %v3769 = vadd.f32 %v3768, %v3499
  %v3770 = vadd.f32 %v3769, %v3500
  %v3771 = vadd.f32 %v3770, %v3501
  %v3772 = vadd.f32 %v3771, %v3502
  %v3773 = vadd.f32 %v3772, %v3503
  %v3774 = vadd.f32 %v3773, %v3504
  %v3775 = vadd.f32 %v3774, %v3505
  %v3776 = vadd.f32 %v3775, %v3506
  %v3777 = vadd.f32 %v3776, %v3507
  %v3778 = vadd.f32 %v3777, %v3508
  %v3779 = vadd.f32 %v3778, %v3509
  %v3780 = vadd.f32 %v3779, %v3510
  %v3781 = vadd.f32 %v3780, %v3511
  %v3782 = vadd.f32 %v3781, %v3512
  %v3783 = vadd.f32 %v3782, %v3513
  %v3784 = vadd.f32 %v3783, %v3514
  %v3785 = vadd.f32 %v3784, %v3515
  %v3786 = vadd.f32 %v3785, %v3516
  %v3787 = vadd.f32 %v3786, %v3517
  %v3788 = vadd.f32 %v3787, %v3518
  %v3789 = vadd.f32 %v3788, %v3519
  %v3790 = vadd.f32 %v3789, %v3520
  %v3791 = vadd.f32 %v3790, %v3521
  %v3792 = vadd.f32 %v3791, %v3522
  %v3793 = vadd.f32 %v3792, %v3523
  %v3794 = vadd.f32 %v3793, %v3524
  %v3795 = vadd.f32 %v3794, %v3525
  %v3796 = vadd.f32 %v3795, %v3526
  %v3797 = vadd.f32 %v3796, %v3527
  %v3798 = vadd.f32 %v3797, %v3528
  %v3799 = vadd.f32 %v3798, %v3529
  %v3800 = vadd.f32 %v3799, %v3530
  %v3801 = vadd.f32 %v3800, %v3531
  %v3802 = vadd.f32 %v3801, %v3532
  %v3803 = vadd.f32 %v3802, %v3533
  %v3804 = vadd.f32 %v3803, %v3534
  %v3805 = vadd.f32 %v3804, %v3535
  %v3806 = vadd.f32 %v3805, %v3536
  %v3807 = vadd.f32 %v3806, %v3537
  %v3808 = vadd.f32 %v3807, %v3538
  %v3809 = vadd.f32 %v3808, %v3539
  %v3810 = vadd.f32 %v3809, %v3540
  %v3811 = vadd.f32 %v3810, %v3541
  %v3812 = vadd.f32 %v3811, %v3542
  %v3813 = vadd.f32 %v3812, %v3543
  %v3814 = vadd.f32 %v3813, %v3544
  %v3815 = vadd.f32 %v3814, %v3545
  %v3816 = vadd.f32 %v3815, %v3546
  %v3817 = vadd.f32 %v3816, %v3547
  %v3818 = vadd.f32 %v3817, %v3548
  %v3819 = vadd.f32 %v3818, %v3549
  %v3820 = vadd.f32 %v3819, %v3550
  %v3821 = vadd.f32 %v3820, %v3551
  %v3822 = vadd.f32 %v3821, %v3552
  %v3823 = vadd.f32 %v3822, %v3553
  %v3824 = vadd.f32 %v3823, %v3554
  %v3825 = vadd.f32 %v3824, %v3555
  %v3826 = vadd.f32 %v3825, %v3556
  %v3827 = vadd.f32 %v3826, %v3557
  %v3828 = vadd.f32 %v3827, %v3558
  %v3829 = vadd.f32 %v3828, %v3559
  %v3830 = vadd.f32 %v3829, %v3560
  %v3831 = vadd.f32 %v3830, %v3561
  %v3832 = vadd.f32 %v3831, %v3562
  %v3833 = vadd.f32 %v3832, %v3563
  %v3834 = vadd.f32 %v3833, %v3564
  %v3835 = vadd.f32 %v3834, %v3565
  %v3836 = vadd.f32 %v3835, %v3566
  %v3837 = vadd.f32 %v3836, %v3567
  %v3838 = vadd.f32 %v3837, %v3568
  %v3839 = vadd.f32 %v3838, %v3569
  %v3840 = vadd.f32 %v3839, %v3570
  %v3841 = vadd.f32 %v3840, %v3571
  %v3842 = vadd.f32 %v3841, %v3572
  %v3843 = vadd.f32 %v3842, %v3573
  %v3844 = vadd.f32 %v3843, %v3574
  %v3845 = vadd.f32 %v3844, %v3575
  %v3846 = vadd.f32 %v3845, %v3576
  %v3847 = vadd.f32 %v3846, %v3577
  %v3848 = vadd.f32 %v3847, %v3578
  %v3849 = vadd.f32 %v3848, %v3579
  %v3850 = vadd.f32 %v3849, %v3580
  %v3851 = vadd.f32 %v3850, %v3581
  %v3852 = vadd.f32 %v3851, %v3582
  %v3853 = vadd.f32 %v3852, %v3583
  %v3854 = vadd.f32 %v3853, %v3584
  %v3855 = vadd.f32 %v3854, %v3585
  %v3856 = vadd.f32 %v3855, %v3586
  %v3857 = vadd.f32 %v3856, %v3587
  %v3858 = vadd.f32 %v3857, %v3588
  %v3859 = vadd.f32 %v3858, %v3589
  %v3860 = vadd.f32 %v3859, %v3590
  %v3861 = vadd.f32 %v3860, %v3591
  %v3862 = vadd.f32 %v3861, %v3592
  %v3863 = vadd.f32 %v3862, %v3593
  %v3864 = vadd.f32 %v3863, %v3594
  %v3865 = vadd.f32 %v3864, %v3595
  %v3866 = vadd.f32 %v3865, %v3596
  %v3867 = vadd.f32 %v3866, %v3597
  %v3868 = vadd.f32 %v3867, %v3598
  %v3869 = vadd.f32 %v3868, %v3599
  %v3870 = vadd.f32 %v3869, %v3600
  %v3871 = vadd.f32 %v3870, %v3601
  %v3872 = vadd.f32 %v3871, %v3602
  %v3873 = vadd.f32 %v3872, %v3603
  %v3874 = vadd.f32 %v3873, %v3604
  %v3875 = vadd.f32 %v3874, %v3605
  %v3876 = vadd.f32 %v3875, %v3606
  %v3877 = vadd.f32 %v3876, %v3607
  %v3878 = vadd.f32 %v3877, %v3608
  %v3879 = vadd.f32 %v3878, %v3609
  %v3880 = vadd.f32 %v3879, %v3610
  %v3881 = vadd.f32 %v3880, %v3611
  %v3882 = vadd.f32 %v3881, %v3612
  %v3883 = vadd.f32 %v3882, %v3613
  %v3884 = vadd.f32 %v3883, %v3614
  %v3885 = vadd.f32 %v3884, %v3615
  %v3886 = vadd.f32 %v3885, %v3616
  %v3887 = vadd.f32 %v3886, %v3617
  %v3888 = vadd.f32 %v3887, %v3618
  %v3889 = vadd.f32 %v3888, %v3619
  %v3890 = vadd.f32 %v3889, %v3620
  %v3891 = vadd.f32 %v3890, %v3621
  %v3892 = vadd.f32 %v3891, %v3622
  %v3893 = vadd.f32 %v3892, %v3623
  %v3894 = vadd.f32 %v3893, %v3624
  %v3895 = vadd.f32 %v3894, %v3625
  %v3896 = vadd.f32 %v3895, %v3626
  %v3897 = vadd.f32 %v3896, %v3627
  %v3898 = vadd.f32 %v3897, %v3628
  %v3899 = vadd.f32 %v3898, %v3629
  %v3900 = vadd.f32 %v3899, %v3630
  %v3901 = vadd.f32 %v3900, %v3631
  %v3902 = vadd.f32 %v3901, %v3632
  %v3903 = vadd.f32 %v3902, %v3633
  %v3904 = vadd.f32 %v3903, %v3634
  %v3905 = vadd.f32 %v3904, %v3635
  %v3906 = vadd.f32 %v3905, %v3636
  %v3907 = vadd.f32 %v3906, %v3637
  %v3908 = vadd.f32 %v3907, %v3638
  %v3909 = vadd.f32 %v3908, %v3639
  %v3910 = vadd.f32 %v3909, %v3640
  %v3911 = vadd.f32 %v3910, %v3641
  %v3912 = vadd.f32 %v3911, %v3642
  %v3913 = vadd.f32 %v3912, %v3643
  %v3914 = vadd.f32 %v3913, %v3644
  %v3915 = vadd.f32 %v3914, %v3645
  %v3916 = vadd.f32 %v3915, %v3646
  %v3917 = vadd.f32 %v3916, %v3647
  %v3918 = vadd.f32 %v3917, %v3648
  %v3919 = vadd.f32 %v3918, %v3649
  %v3920 = vadd.f32 %v3919, %v3650
  %v3921 = vadd.f32 %v3920, %v3651
  %v3922 = vadd.f32 %v3921, %v3652
  %v3923 = vadd.f32 %v3922, %v3653
  %v3924 = vadd.f32 %v3923, %v3654
  %v3925 = vadd.f32 %v3924, %v3655
  %v3926 = vadd.f32 %v3925, %v3656
  %v3927 = vadd.f32 %v3926, %v3657
  %v3928 = vadd.f32 %v3927, %v3658
  %v3929 = vadd.f32 %v3928, %v3659
  %v3930 = vadd.f32 %v3929, %v3660
  %v3931 = vadd.f32 %v3930, %v3661
  %v3932 = vadd.f32 %v3931, %v3662
  %v3933 = vadd.f32 %v3932, %v3663
  %v3934 = vadd.f32 %v3933, %v3664
  %v3935 = vadd.f32 %v3934, %v3665
  %v3936 = vadd.f32 %v3935, %v3666
  %v3937 = vadd.f32 %v3936, %v3667
  %v3938 = vadd.f32 %v3937, %v3668
  %v3939 = vadd.f32 %v3938, %v3669
  %v3940 = vadd.f32 %v3939, %v3670
  %v3941 = vadd.f32 %v3940, %v3671
  %v3942 = vadd.f32 %v3941, %v3672
  %v3943 = vadd.f32 %v3942, %v3673
  %v3944 = vadd.f32 %v3943, %v3674
  %v3945 = vadd.f32 %v3944, %v3675
  %v3946 = vadd.f32 %v3945, %v3676
  %v3947 = vadd.f32 %v3946, %v3677
  %v3948 = vadd.f32 %v3947, %v3678
  %v3949 = vadd.f32 %v3948, %v3679
  %v3950 = vadd.f32 %v3949, %v3680
  %v3951 = vadd.f32 %v3950, %v3681
  %v3952 = vadd.f32 %v3951, %v3682
  %v3953 = vadd.f32 %v3952, %v3683
  %v3954 = vadd.f32 %v3953, %v3684
  %v3955 = vadd.f32 %v3954, %v3685
  %v3956 = vadd.f32 %v3955, %v3686
  %v3957 = vadd.f32 %v3956, %v3687
  %v3958 = vadd.f32 %v3957, %v3688
  %v3959 = vadd.f32 %v3958, %v3689
  %v3960 = vadd.f32 %v3959, %v3690
  %v3961 = vadd.f32 %v3960, %v3691
  %v3962 = vadd.f32 %v3961, %v3692
  %v3963 = vadd.f32 %v3962, %v3693
  %v3964 = vadd.f32 %v3963, %v3694
  %v3965 = vadd.f32 %v3964, %v3695
  %v3966 = vadd.f32 %v3965, %v3696
  %v3967 = vadd.f32 %v3966, %v3697
  %v3968 = vadd.f32 %v3967, %v3698
  %v3969 = vadd.f32 %v3968, %v3699
  %v3970 = vadd.f32 %v3969, %v3700
  %v3971 = vadd.f32 %v3970, %v3701
  %v3972 = vadd.f32 %v3971, %v3702
  %v3973 = vadd.f32 %v3972, %v3703
  %v3974 = vadd.f32 %v3973, %v3704
  %v3975 = vadd.f32 %v3974, %v3705
  %v3976 = vadd.f32 %v3975, %v3706
  %v3977 = vadd.f32 %v3976, %v3707
  %v3978 = vrot.slane %v3977, 4
  %v3979 = vadd.f32 %v3977, %v3978
  %v3980 = vrot.slane %v3979, 2
  %v3981 = vadd.f32 %v3979, %v3980
  %v3982 = vrot.slane %v3981, 1
  %v3983 = vadd.f32 %v3981, %v3982
  %v3984 = vmul.f32 %v3983, 0.0004625347
  %v3985 = vmul.f32 %v3437, %v3437
  %v3986 = vmul.f32 %v3438, %v3438
  %v3987 = vmul.f32 %v3439, %v3439
  %v3988 = vmul.f32 %v3440, %v3440
  %v3989 = vmul.f32 %v3441, %v3441
  %v3990 = vmul.f32 %v3442, %v3442
  %v3991 = vmul.f32 %v3443, %v3443
  %v3992 = vmul.f32 %v3444, %v3444
  %v3993 = vmul.f32 %v3445, %v3445
  %v3994 = vmul.f32 %v3446, %v3446
  %v3995 = vmul.f32 %v3447, %v3447
  %v3996 = vmul.f32 %v3448, %v3448
  %v3997 = vmul.f32 %v3449, %v3449
  %v3998 = vmul.f32 %v3450, %v3450
  %v3999 = vmul.f32 %v3451, %v3451
  %v4000 = vmul.f32 %v3452, %v3452
  %v4001 = vmul.f32 %v3453, %v3453
  %v4002 = vmul.f32 %v3454, %v3454
  %v4003 = vmul.f32 %v3455, %v3455
  %v4004 = vmul.f32 %v3456, %v3456
  %v4005 = vmul.f32 %v3457, %v3457
  %v4006 = vmul.f32 %v3458, %v3458
  %v4007 = vmul.f32 %v3459, %v3459
  %v4008 = vmul.f32 %v3460, %v3460
  %v4009 = vmul.f32 %v3461, %v3461
  %v4010 = vmul.f32 %v3462, %v3462
  %v4011 = vmul.f32 %v3463, %v3463
  %v4012 = vmul.f32 %v3464, %v3464
  %v4013 = vmul.f32 %v3465, %v3465
  %v4014 = vmul.f32 %v3466, %v3466
  %v4015 = vmul.f32 %v3467, %v3467
  %v4016 = vmul.f32 %v3468, %v3468
  %v4017 = vmul.f32 %v3469, %v3469
  %v4018 = vmul.f32 %v3470, %v3470
  %v4019 = vmul.f32 %v3471, %v3471
  %v4020 = vmul.f32 %v3472, %v3472
  %v4021 = vmul.f32 %v3473, %v3473
  %v4022 = vmul.f32 %v3474, %v3474
  %v4023 = vmul.f32 %v3475, %v3475
  %v4024 = vmul.f32 %v3476, %v3476
  %v4025 = vmul.f32 %v3477, %v3477
  %v4026 = vmul.f32 %v3478, %v3478
  %v4027 = vmul.f32 %v3479, %v3479
  %v4028 = vmul.f32 %v3480, %v3480
  %v4029 = vmul.f32 %v3481, %v3481
  %v4030 = vmul.f32 %v3482, %v3482
  %v4031 = vmul.f32 %v3483, %v3483
  %v4032 = vmul.f32 %v3484, %v3484
  %v4033 = vmul.f32 %v3485, %v3485
  %v4034 = vmul.f32 %v3486, %v3486
  %v4035 = vmul.f32 %v3487, %v3487
  %v4036 = vmul.f32 %v3488, %v3488
  %v4037 = vmul.f32 %v3489, %v3489
  %v4038 = vmul.f32 %v3490, %v3490
  %v4039 = vmul.f32 %v3491, %v3491
  %v4040 = vmul.f32 %v3492, %v3492
  %v4041 = vmul.f32 %v3493, %v3493
  %v4042 = vmul.f32 %v3494, %v3494
  %v4043 = vmul.f32 %v3495, %v3495
  %v4044 = vmul.f32 %v3496, %v3496
  %v4045 = vmul.f32 %v3497, %v3497
  %v4046 = vmul.f32 %v3498, %v3498
  %v4047 = vmul.f32 %v3499, %v3499
  %v4048 = vmul.f32 %v3500, %v3500
  %v4049 = vmul.f32 %v3501, %v3501
  %v4050 = vmul.f32 %v3502, %v3502
  %v4051 = vmul.f32 %v3503, %v3503
  %v4052 = vmul.f32 %v3504, %v3504
  %v4053 = vmul.f32 %v3505, %v3505
  %v4054 = vmul.f32 %v3506, %v3506
  %v4055 = vmul.f32 %v3507, %v3507
  %v4056 = vmul.f32 %v3508, %v3508
  %v4057 = vmul.f32 %v3509, %v3509
  %v4058 = vmul.f32 %v3510, %v3510
  %v4059 = vmul.f32 %v3511, %v3511
  %v4060 = vmul.f32 %v3512, %v3512
  %v4061 = vmul.f32 %v3513, %v3513
  %v4062 = vmul.f32 %v3514, %v3514
  %v4063 = vmul.f32 %v3515, %v3515
  %v4064 = vmul.f32 %v3516, %v3516
  %v4065 = vmul.f32 %v3517, %v3517
  %v4066 = vmul.f32 %v3518, %v3518
  %v4067 = vmul.f32 %v3519, %v3519
  %v4068 = vmul.f32 %v3520, %v3520
  %v4069 = vmul.f32 %v3521, %v3521
  %v4070 = vmul.f32 %v3522, %v3522
  %v4071 = vmul.f32 %v3523, %v3523
  %v4072 = vmul.f32 %v3524, %v3524
  %v4073 = vmul.f32 %v3525, %v3525
  %v4074 = vmul.f32 %v3526, %v3526
  %v4075 = vmul.f32 %v3527, %v3527
  %v4076 = vmul.f32 %v3528, %v3528
  %v4077 = vmul.f32 %v3529, %v3529
  %v4078 = vmul.f32 %v3530, %v3530
  %v4079 = vmul.f32 %v3531, %v3531
  %v4080 = vmul.f32 %v3532, %v3532
  %v4081 = vmul.f32 %v3533, %v3533
  %v4082 = vmul.f32 %v3534, %v3534
  %v4083 = vmul.f32 %v3535, %v3535
  %v4084 = vmul.f32 %v3536, %v3536
  %v4085 = vmul.f32 %v3537, %v3537
  %v4086 = vmul.f32 %v3538, %v3538
  %v4087 = vmul.f32 %v3539, %v3539
  %v4088 = vmul.f32 %v3540, %v3540
  %v4089 = vmul.f32 %v3541, %v3541
  %v4090 = vmul.f32 %v3542, %v3542
  %v4091 = vmul.f32 %v3543, %v3543
  %v4092 = vmul.f32 %v3544, %v3544
  %v4093 = vmul.f32 %v3545, %v3545
  %v4094 = vmul.f32 %v3546, %v3546
  %v4095 = vmul.f32 %v3547, %v3547
  %v4096 = vmul.f32 %v3548, %v3548
  %v4097 = vmul.f32 %v3549, %v3549
  %v4098 = vmul.f32 %v3550, %v3550
  %v4099 = vmul.f32 %v3551, %v3551
  %v4100 = vmul.f32 %v3552, %v3552
  %v4101 = vmul.f32 %v3553, %v3553
  %v4102 = vmul.f32 %v3554, %v3554
  %v4103 = vmul.f32 %v3555, %v3555
  %v4104 = vmul.f32 %v3556, %v3556
  %v4105 = vmul.f32 %v3557, %v3557
  %v4106 = vmul.f32 %v3558, %v3558
  %v4107 = vmul.f32 %v3559, %v3559
  %v4108 = vmul.f32 %v3560, %v3560
  %v4109 = vmul.f32 %v3561, %v3561
  %v4110 = vmul.f32 %v3562, %v3562
  %v4111 = vmul.f32 %v3563, %v3563
  %v4112 = vmul.f32 %v3564, %v3564
  %v4113 = vmul.f32 %v3565, %v3565
  %v4114 = vmul.f32 %v3566, %v3566
  %v4115 = vmul.f32 %v3567, %v3567
  %v4116 = vmul.f32 %v3568, %v3568
  %v4117 = vmul.f32 %v3569, %v3569
  %v4118 = vmul.f32 %v3570, %v3570
  %v4119 = vmul.f32 %v3571, %v3571
  %v4120 = vmul.f32 %v3572, %v3572
  %v4121 = vmul.f32 %v3573, %v3573
  %v4122 = vmul.f32 %v3574, %v3574
  %v4123 = vmul.f32 %v3575, %v3575
  %v4124 = vmul.f32 %v3576, %v3576
  %v4125 = vmul.f32 %v3577, %v3577
  %v4126 = vmul.f32 %v3578, %v3578
  %v4127 = vmul.f32 %v3579, %v3579
  %v4128 = vmul.f32 %v3580, %v3580
  %v4129 = vmul.f32 %v3581, %v3581
  %v4130 = vmul.f32 %v3582, %v3582
  %v4131 = vmul.f32 %v3583, %v3583
  %v4132 = vmul.f32 %v3584, %v3584
  %v4133 = vmul.f32 %v3585, %v3585
  %v4134 = vmul.f32 %v3586, %v3586
  %v4135 = vmul.f32 %v3587, %v3587
  %v4136 = vmul.f32 %v3588, %v3588
  %v4137 = vmul.f32 %v3589, %v3589
  %v4138 = vmul.f32 %v3590, %v3590
  %v4139 = vmul.f32 %v3591, %v3591
  %v4140 = vmul.f32 %v3592, %v3592
  %v4141 = vmul.f32 %v3593, %v3593
  %v4142 = vmul.f32 %v3594, %v3594
  %v4143 = vmul.f32 %v3595, %v3595
  %v4144 = vmul.f32 %v3596, %v3596
  %v4145 = vmul.f32 %v3597, %v3597
  %v4146 = vmul.f32 %v3598, %v3598
  %v4147 = vmul.f32 %v3599, %v3599
  %v4148 = vmul.f32 %v3600, %v3600
  %v4149 = vmul.f32 %v3601, %v3601
  %v4150 = vmul.f32 %v3602, %v3602
  %v4151 = vmul.f32 %v3603, %v3603
  %v4152 = vmul.f32 %v3604, %v3604
  %v4153 = vmul.f32 %v3605, %v3605
  %v4154 = vmul.f32 %v3606, %v3606
  %v4155 = vmul.f32 %v3607, %v3607
  %v4156 = vmul.f32 %v3608, %v3608
  %v4157 = vmul.f32 %v3609, %v3609
  %v4158 = vmul.f32 %v3610, %v3610
  %v4159 = vmul.f32 %v3611, %v3611
  %v4160 = vmul.f32 %v3612, %v3612
  %v4161 = vmul.f32 %v3613, %v3613
  %v4162 = vmul.f32 %v3614, %v3614
  %v4163 = vmul.f32 %v3615, %v3615
  %v4164 = vmul.f32 %v3616, %v3616
  %v4165 = vmul.f32 %v3617, %v3617
  %v4166 = vmul.f32 %v3618, %v3618
  %v4167 = vmul.f32 %v3619, %v3619
  %v4168 = vmul.f32 %v3620, %v3620
  %v4169 = vmul.f32 %v3621, %v3621
  %v4170 = vmul.f32 %v3622, %v3622
  %v4171 = vmul.f32 %v3623, %v3623
  %v4172 = vmul.f32 %v3624, %v3624
  %v4173 = vmul.f32 %v3625, %v3625
  %v4174 = vmul.f32 %v3626, %v3626
  %v4175 = vmul.f32 %v3627, %v3627
  %v4176 = vmul.f32 %v3628, %v3628
  %v4177 = vmul.f32 %v3629, %v3629
  %v4178 = vmul.f32 %v3630, %v3630
  %v4179 = vmul.f32 %v3631, %v3631
  %v4180 = vmul.f32 %v3632, %v3632
  %v4181 = vmul.f32 %v3633, %v3633
  %v4182 = vmul.f32 %v3634, %v3634
  %v4183 = vmul.f32 %v3635, %v3635
  %v4184 = vmul.f32 %v3636, %v3636
  %v4185 = vmul.f32 %v3637, %v3637
  %v4186 = vmul.f32 %v3638, %v3638
  %v4187 = vmul.f32 %v3639, %v3639
  %v4188 = vmul.f32 %v3640, %v3640
  %v4189 = vmul.f32 %v3641, %v3641
  %v4190 = vmul.f32 %v3642, %v3642
  %v4191 = vmul.f32 %v3643, %v3643
  %v4192 = vmul.f32 %v3644, %v3644
  %v4193 = vmul.f32 %v3645, %v3645
  %v4194 = vmul.f32 %v3646, %v3646
  %v4195 = vmul.f32 %v3647, %v3647
  %v4196 = vmul.f32 %v3648, %v3648
  %v4197 = vmul.f32 %v3649, %v3649
  %v4198 = vmul.f32 %v3650, %v3650
  %v4199 = vmul.f32 %v3651, %v3651
  %v4200 = vmul.f32 %v3652, %v3652
  %v4201 = vmul.f32 %v3653, %v3653
  %v4202 = vmul.f32 %v3654, %v3654
  %v4203 = vmul.f32 %v3655, %v3655
  %v4204 = vmul.f32 %v3656, %v3656
  %v4205 = vmul.f32 %v3657, %v3657
  %v4206 = vmul.f32 %v3658, %v3658
  %v4207 = vmul.f32 %v3659, %v3659
  %v4208 = vmul.f32 %v3660, %v3660
  %v4209 = vmul.f32 %v3661, %v3661
  %v4210 = vmul.f32 %v3662, %v3662
  %v4211 = vmul.f32 %v3663, %v3663
  %v4212 = vmul.f32 %v3664, %v3664
  %v4213 = vmul.f32 %v3665, %v3665
  %v4214 = vmul.f32 %v3666, %v3666
  %v4215 = vmul.f32 %v3667, %v3667
  %v4216 = vmul.f32 %v3668, %v3668
  %v4217 = vmul.f32 %v3669, %v3669
  %v4218 = vmul.f32 %v3670, %v3670
  %v4219 = vmul.f32 %v3671, %v3671
  %v4220 = vmul.f32 %v3672, %v3672
  %v4221 = vmul.f32 %v3673, %v3673
  %v4222 = vmul.f32 %v3674, %v3674
  %v4223 = vmul.f32 %v3675, %v3675
  %v4224 = vmul.f32 %v3676, %v3676
  %v4225 = vmul.f32 %v3677, %v3677
  %v4226 = vmul.f32 %v3678, %v3678
  %v4227 = vmul.f32 %v3679, %v3679
  %v4228 = vmul.f32 %v3680, %v3680
  %v4229 = vmul.f32 %v3681, %v3681
  %v4230 = vmul.f32 %v3682, %v3682
  %v4231 = vmul.f32 %v3683, %v3683
  %v4232 = vmul.f32 %v3684, %v3684
  %v4233 = vmul.f32 %v3685, %v3685
  %v4234 = vmul.f32 %v3686, %v3686
  %v4235 = vmul.f32 %v3687, %v3687
  %v4236 = vmul.f32 %v3688, %v3688
  %v4237 = vmul.f32 %v3689, %v3689
  %v4238 = vmul.f32 %v3690, %v3690
  %v4239 = vmul.f32 %v3691, %v3691
  %v4240 = vmul.f32 %v3692, %v3692
  %v4241 = vmul.f32 %v3693, %v3693
  %v4242 = vmul.f32 %v3694, %v3694
  %v4243 = vmul.f32 %v3695, %v3695
  %v4244 = vmul.f32 %v3696, %v3696
  %v4245 = vmul.f32 %v3697, %v3697
  %v4246 = vmul.f32 %v3698, %v3698
  %v4247 = vmul.f32 %v3699, %v3699
  %v4248 = vmul.f32 %v3700, %v3700
  %v4249 = vmul.f32 %v3701, %v3701
  %v4250 = vmul.f32 %v3702, %v3702
  %v4251 = vmul.f32 %v3703, %v3703
  %v4252 = vmul.f32 %v3704, %v3704
  %v4253 = vmul.f32 %v3705, %v3705
  %v4254 = vmul.f32 %v3706, %v3706
  %v4255 = vmul.f32 %v3707, %v3707
  %v4256 = vadd.f32 %v3985, %v3986
  %v4257 = vadd.f32 %v4256, %v3987
  %v4258 = vadd.f32 %v4257, %v3988
  %v4259 = vadd.f32 %v4258, %v3989
  %v4260 = vadd.f32 %v4259, %v3990
  %v4261 = vadd.f32 %v4260, %v3991
  %v4262 = vadd.f32 %v4261, %v3992
  %v4263 = vadd.f32 %v4262, %v3993
  %v4264 = vadd.f32 %v4263, %v3994
  %v4265 = vadd.f32 %v4264, %v3995
  %v4266 = vadd.f32 %v4265, %v3996
  %v4267 = vadd.f32 %v4266, %v3997
  %v4268 = vadd.f32 %v4267, %v3998
  %v4269 = vadd.f32 %v4268, %v3999
  %v4270 = vadd.f32 %v4269, %v4000
  %v4271 = vadd.f32 %v4270, %v4001
  %v4272 = vadd.f32 %v4271, %v4002
  %v4273 = vadd.f32 %v4272, %v4003
  %v4274 = vadd.f32 %v4273, %v4004
  %v4275 = vadd.f32 %v4274, %v4005
  %v4276 = vadd.f32 %v4275, %v4006
  %v4277 = vadd.f32 %v4276, %v4007
  %v4278 = vadd.f32 %v4277, %v4008
  %v4279 = vadd.f32 %v4278, %v4009
  %v4280 = vadd.f32 %v4279, %v4010
  %v4281 = vadd.f32 %v4280, %v4011
  %v4282 = vadd.f32 %v4281, %v4012
  %v4283 = vadd.f32 %v4282, %v4013
  %v4284 = vadd.f32 %v4283, %v4014
  %v4285 = vadd.f32 %v4284, %v4015
  %v4286 = vadd.f32 %v4285, %v4016
  %v4287 = vadd.f32 %v4286, %v4017
  %v4288 = vadd.f32 %v4287, %v4018
  %v4289 = vadd.f32 %v4288, %v4019
  %v4290 = vadd.f32 %v4289, %v4020
  %v4291 = vadd.f32 %v4290, %v4021
  %v4292 = vadd.f32 %v4291, %v4022
  %v4293 = vadd.f32 %v4292, %v4023
  %v4294 = vadd.f32 %v4293, %v4024
  %v4295 = vadd.f32 %v4294, %v4025
  %v4296 = vadd.f32 %v4295, %v4026
  %v4297 = vadd.f32 %v4296, %v4027
  %v4298 = vadd.f32 %v4297, %v4028
  %v4299 = vadd.f32 %v4298, %v4029
  %v4300 = vadd.f32 %v4299, %v4030
  %v4301 = vadd.f32 %v4300, %v4031
  %v4302 = vadd.f32 %v4301, %v4032
  %v4303 = vadd.f32 %v4302, %v4033
  %v4304 = vadd.f32 %v4303, %v4034
  %v4305 = vadd.f32 %v4304, %v4035
  %v4306 = vadd.f32 %v4305, %v4036
  %v4307 = vadd.f32 %v4306, %v4037
  %v4308 = vadd.f32 %v4307, %v4038
  %v4309 = vadd.f32 %v4308, %v4039
  %v4310 = vadd.f32 %v4309, %v4040
  %v4311 = vadd.f32 %v4310, %v4041
  %v4312 = vadd.f32 %v4311, %v4042
  %v4313 = vadd.f32 %v4312, %v4043
  %v4314 = vadd.f32 %v4313, %v4044
  %v4315 = vadd.f32 %v4314, %v4045
  %v4316 = vadd.f32 %v4315, %v4046
  %v4317 = vadd.f32 %v4316, %v4047
  %v4318 = vadd.f32 %v4317, %v4048
  %v4319 = vadd.f32 %v4318, %v4049
  %v4320 = vadd.f32 %v4319, %v4050
  %v4321 = vadd.f32 %v4320, %v4051
  %v4322 = vadd.f32 %v4321, %v4052
  %v4323 = vadd.f32 %v4322, %v4053
  %v4324 = vadd.f32 %v4323, %v4054
  %v4325 = vadd.f32 %v4324, %v4055
  %v4326 = vadd.f32 %v4325, %v4056
  %v4327 = vadd.f32 %v4326, %v4057
  %v4328 = vadd.f32 %v4327, %v4058
  %v4329 = vadd.f32 %v4328, %v4059
  %v4330 = vadd.f32 %v4329, %v4060
  %v4331 = vadd.f32 %v4330, %v4061
  %v4332 = vadd.f32 %v4331, %v4062
  %v4333 = vadd.f32 %v4332, %v4063
  %v4334 = vadd.f32 %v4333, %v4064
  %v4335 = vadd.f32 %v4334, %v4065
  %v4336 = vadd.f32 %v4335, %v4066
  %v4337 = vadd.f32 %v4336, %v4067
  %v4338 = vadd.f32 %v4337, %v4068
  %v4339 = vadd.f32 %v4338, %v4069
  %v4340 = vadd.f32 %v4339, %v4070
  %v4341 = vadd.f32 %v4340, %v4071
  %v4342 = vadd.f32 %v4341, %v4072
  %v4343 = vadd.f32 %v4342, %v4073
  %v4344 = vadd.f32 %v4343, %v4074
  %v4345 = vadd.f32 %v4344, %v4075
  %v4346 = vadd.f32 %v4345, %v4076
  %v4347 = vadd.f32 %v4346, %v4077
  %v4348 = vadd.f32 %v4347, %v4078
  %v4349 = vadd.f32 %v4348, %v4079
  %v4350 = vadd.f32 %v4349, %v4080
  %v4351 = vadd.f32 %v4350, %v4081
  %v4352 = vadd.f32 %v4351, %v4082
  %v4353 = vadd.f32 %v4352, %v4083
  %v4354 = vadd.f32 %v4353, %v4084
  %v4355 = vadd.f32 %v4354, %v4085
  %v4356 = vadd.f32 %v4355, %v4086
  %v4357 = vadd.f32 %v4356, %v4087
  %v4358 = vadd.f32 %v4357, %v4088
  %v4359 = vadd.f32 %v4358, %v4089
  %v4360 = vadd.f32 %v4359, %v4090
  %v4361 = vadd.f32 %v4360, %v4091
  %v4362 = vadd.f32 %v4361, %v4092
  %v4363 = vadd.f32 %v4362, %v4093
  %v4364 = vadd.f32 %v4363, %v4094
  %v4365 = vadd.f32 %v4364, %v4095
  %v4366 = vadd.f32 %v4365, %v4096
  %v4367 = vadd.f32 %v4366, %v4097
  %v4368 = vadd.f32 %v4367, %v4098
  %v4369 = vadd.f32 %v4368, %v4099
  %v4370 = vadd.f32 %v4369, %v4100
  %v4371 = vadd.f32 %v4370, %v4101
  %v4372 = vadd.f32 %v4371, %v4102
  %v4373 = vadd.f32 %v4372, %v4103
  %v4374 = vadd.f32 %v4373, %v4104
  %v4375 = vadd.f32 %v4374, %v4105
  %v4376 = vadd.f32 %v4375, %v4106
  %v4377 = vadd.f32 %v4376, %v4107
  %v4378 = vadd.f32 %v4377, %v4108
  %v4379 = vadd.f32 %v4378, %v4109
  %v4380 = vadd.f32 %v4379, %v4110
  %v4381 = vadd.f32 %v4380, %v4111
  %v4382 = vadd.f32 %v4381, %v4112
  %v4383 = vadd.f32 %v4382, %v4113
  %v4384 = vadd.f32 %v4383, %v4114
  %v4385 = vadd.f32 %v4384, %v4115
  %v4386 = vadd.f32 %v4385, %v4116
  %v4387 = vadd.f32 %v4386, %v4117
  %v4388 = vadd.f32 %v4387, %v4118
  %v4389 = vadd.f32 %v4388, %v4119
  %v4390 = vadd.f32 %v4389, %v4120
  %v4391 = vadd.f32 %v4390, %v4121
  %v4392 = vadd.f32 %v4391, %v4122
  %v4393 = vadd.f32 %v4392, %v4123
  %v4394 = vadd.f32 %v4393, %v4124
  %v4395 = vadd.f32 %v4394, %v4125
  %v4396 = vadd.f32 %v4395, %v4126
  %v4397 = vadd.f32 %v4396, %v4127
  %v4398 = vadd.f32 %v4397, %v4128
  %v4399 = vadd.f32 %v4398, %v4129
  %v4400 = vadd.f32 %v4399, %v4130
  %v4401 = vadd.f32 %v4400, %v4131
  %v4402 = vadd.f32 %v4401, %v4132
  %v4403 = vadd.f32 %v4402, %v4133
  %v4404 = vadd.f32 %v4403, %v4134
  %v4405 = vadd.f32 %v4404, %v4135
  %v4406 = vadd.f32 %v4405, %v4136
  %v4407 = vadd.f32 %v4406, %v4137
  %v4408 = vadd.f32 %v4407, %v4138
  %v4409 = vadd.f32 %v4408, %v4139
  %v4410 = vadd.f32 %v4409, %v4140
  %v4411 = vadd.f32 %v4410, %v4141
  %v4412 = vadd.f32 %v4411, %v4142
  %v4413 = vadd.f32 %v4412, %v4143
  %v4414 = vadd.f32 %v4413, %v4144
  %v4415 = vadd.f32 %v4414, %v4145
  %v4416 = vadd.f32 %v4415, %v4146
  %v4417 = vadd.f32 %v4416, %v4147
  %v4418 = vadd.f32 %v4417, %v4148
  %v4419 = vadd.f32 %v4418, %v4149
  %v4420 = vadd.f32 %v4419, %v4150
  %v4421 = vadd.f32 %v4420, %v4151
  %v4422 = vadd.f32 %v4421, %v4152
  %v4423 = vadd.f32 %v4422, %v4153
  %v4424 = vadd.f32 %v4423, %v4154
  %v4425 = vadd.f32 %v4424, %v4155
  %v4426 = vadd.f32 %v4425, %v4156
  %v4427 = vadd.f32 %v4426, %v4157
  %v4428 = vadd.f32 %v4427, %v4158
  %v4429 = vadd.f32 %v4428, %v4159
  %v4430 = vadd.f32 %v4429, %v4160
  %v4431 = vadd.f32 %v4430, %v4161
  %v4432 = vadd.f32 %v4431, %v4162
  %v4433 = vadd.f32 %v4432, %v4163
  %v4434 = vadd.f32 %v4433, %v4164
  %v4435 = vadd.f32 %v4434, %v4165
  %v4436 = vadd.f32 %v4435, %v4166
  %v4437 = vadd.f32 %v4436, %v4167
  %v4438 = vadd.f32 %v4437, %v4168
  %v4439 = vadd.f32 %v4438, %v4169
  %v4440 = vadd.f32 %v4439, %v4170
  %v4441 = vadd.f32 %v4440, %v4171
  %v4442 = vadd.f32 %v4441, %v4172
  %v4443 = vadd.f32 %v4442, %v4173
  %v4444 = vadd.f32 %v4443, %v4174
  %v4445 = vadd.f32 %v4444, %v4175
  %v4446 = vadd.f32 %v4445, %v4176
  %v4447 = vadd.f32 %v4446, %v4177
  %v4448 = vadd.f32 %v4447, %v4178
  %v4449 = vadd.f32 %v4448, %v4179
  %v4450 = vadd.f32 %v4449, %v4180
  %v4451 = vadd.f32 %v4450, %v4181
  %v4452 = vadd.f32 %v4451, %v4182
  %v4453 = vadd.f32 %v4452, %v4183
  %v4454 = vadd.f32 %v4453, %v4184
  %v4455 = vadd.f32 %v4454, %v4185
  %v4456 = vadd.f32 %v4455, %v4186
  %v4457 = vadd.f32 %v4456, %v4187
  %v4458 = vadd.f32 %v4457, %v4188
  %v4459 = vadd.f32 %v4458, %v4189
  %v4460 = vadd.f32 %v4459, %v4190
  %v4461 = vadd.f32 %v4460, %v4191
  %v4462 = vadd.f32 %v4461, %v4192
  %v4463 = vadd.f32 %v4462, %v4193
  %v4464 = vadd.f32 %v4463, %v4194
  %v4465 = vadd.f32 %v4464, %v4195
  %v4466 = vadd.f32 %v4465, %v4196
  %v4467 = vadd.f32 %v4466, %v4197
  %v4468 = vadd.f32 %v4467, %v4198
  %v4469 = vadd.f32 %v4468, %v4199
  %v4470 = vadd.f32 %v4469, %v4200
  %v4471 = vadd.f32 %v4470, %v4201
  %v4472 = vadd.f32 %v4471, %v4202
  %v4473 = vadd.f32 %v4472, %v4203
  %v4474 = vadd.f32 %v4473, %v4204
  %v4475 = vadd.f32 %v4474, %v4205
  %v4476 = vadd.f32 %v4475, %v4206
  %v4477 = vadd.f32 %v4476, %v4207
  %v4478 = vadd.f32 %v4477, %v4208
  %v4479 = vadd.f32 %v4478, %v4209
  %v4480 = vadd.f32 %v4479, %v4210
  %v4481 = vadd.f32 %v4480, %v4211
  %v4482 = vadd.f32 %v4481, %v4212
  %v4483 = vadd.f32 %v4482, %v4213
  %v4484 = vadd.f32 %v4483, %v4214
  %v4485 = vadd.f32 %v4484, %v4215
  %v4486 = vadd.f32 %v4485, %v4216
  %v4487 = vadd.f32 %v4486, %v4217
  %v4488 = vadd.f32 %v4487, %v4218
  %v4489 = vadd.f32 %v4488, %v4219
  %v4490 = vadd.f32 %v4489, %v4220
  %v4491 = vadd.f32 %v4490, %v4221
  %v4492 = vadd.f32 %v4491, %v4222
  %v4493 = vadd.f32 %v4492, %v4223
  %v4494 = vadd.f32 %v4493, %v4224
  %v4495 = vadd.f32 %v4494, %v4225
  %v4496 = vadd.f32 %v4495, %v4226
  %v4497 = vadd.f32 %v4496, %v4227
  %v4498 = vadd.f32 %v4497, %v4228
  %v4499 = vadd.f32 %v4498, %v4229
  %v4500 = vadd.f32 %v4499, %v4230
  %v4501 = vadd.f32 %v4500, %v4231
  %v4502 = vadd.f32 %v4501, %v4232
  %v4503 = vadd.f32 %v4502, %v4233
  %v4504 = vadd.f32 %v4503, %v4234
  %v4505 = vadd.f32 %v4504, %v4235
  %v4506 = vadd.f32 %v4505, %v4236
  %v4507 = vadd.f32 %v4506, %v4237
  %v4508 = vadd.f32 %v4507, %v4238
  %v4509 = vadd.f32 %v4508, %v4239
  %v4510 = vadd.f32 %v4509, %v4240
  %v4511 = vadd.f32 %v4510, %v4241
  %v4512 = vadd.f32 %v4511, %v4242
  %v4513 = vadd.f32 %v4512, %v4243
  %v4514 = vadd.f32 %v4513, %v4244
  %v4515 = vadd.f32 %v4514, %v4245
  %v4516 = vadd.f32 %v4515, %v4246
  %v4517 = vadd.f32 %v4516, %v4247
  %v4518 = vadd.f32 %v4517, %v4248
  %v4519 = vadd.f32 %v4518, %v4249
  %v4520 = vadd.f32 %v4519, %v4250
  %v4521 = vadd.f32 %v4520, %v4251
  %v4522 = vadd.f32 %v4521, %v4252
  %v4523 = vadd.f32 %v4522, %v4253
  %v4524 = vadd.f32 %v4523, %v4254
  %v4525 = vadd.f32 %v4524, %v4255
  %v4526 = vrot.slane %v4525, 4
  %v4527 = vadd.f32 %v4525, %v4526
  %v4528 = vrot.slane %v4527, 2
  %v4529 = vadd.f32 %v4527, %v4528
  %v4530 = vrot.slane %v4529, 1
  %v4531 = vadd.f32 %v4529, %v4530
  %v4532 = vmul.f32 %v4531, 0.0004625347
  %v4533 = vmul.f32 %v3984, %v3984
  %v4534 = vsub.f32 %v4532, %v4533
  %v4535 = vmax.f32 %v4534, 0.0
  %v4536 = vld [vmem:[%s2] sm:$0x1]
  %v4537 = vadd.f32 %v4535, 1e-05
  %v4538 = vrsqrt.pop %v4537
  %v4539 = vmul.f32 %v4536, %v4538
  %v4540 = vld [vmem:[%s3] sm:$0x1]
  %v4541 = vmul.f32 %v3984, %v4539
  %v4542 = vsub.f32 %v4540, %v4541
  %v4544 = vlaneseq
  %v4545 = vshrl.u32 %v4544, 7
  %v4546 = vsub.s32 0, %v4545
  %v4547 = vrot.slane %v4539, %v4546
  %v4549 = vmul.f32 %v1809, %v4547
  %v4550 = vmul.f32 %v1812, %v4547
  %v4551 = vmul.f32 %v1817, %v4547
  %v4552 = vmul.f32 %v1820, %v4547
  %v4553 = vmul.f32 %v1825, %v4547
  %v4554 = vmul.f32 %v1828, %v4547
  %v4555 = vmul.f32 %v1833, %v4547
  %v4556 = vmul.f32 %v1836, %v4547
  %v4557 = vmul.f32 %v1841, %v4547
  %v4558 = vmul.f32 %v1844, %v4547
  %v4559 = vmul.f32 %v1849, %v4547
  %v4560 = vmul.f32 %v1852, %v4547
  %v4561 = vmul.f32 %v1857, %v4547
  %v4562 = vmul.f32 %v1860, %v4547
  %v4563 = vmul.f32 %v1865, %v4547
  %v4564 = vmul.f32 %v1868, %v4547
  %v4565 = vmul.f32 %v1873, %v4547
  %v4566 = vmul.f32 %v1876, %v4547
  %v4567 = vmul.f32 %v1881, %v4547
  %v4568 = vmul.f32 %v1884, %v4547
  %v4569 = vmul.f32 %v1889, %v4547
  %v4570 = vmul.f32 %v1892, %v4547
  %v4571 = vmul.f32 %v1897, %v4547
  %v4572 = vmul.f32 %v1900, %v4547
  %v4573 = vmul.f32 %v1905, %v4547
  %v4574 = vmul.f32 %v1908, %v4547
  %v4575 = vmul.f32 %v1913, %v4547
  %v4576 = vmul.f32 %v1916, %v4547
  %v4577 = vmul.f32 %v1921, %v4547
  %v4578 = vmul.f32 %v1924, %v4547
  %v4579 = vmul.f32 %v1929, %v4547
  %v4580 = vmul.f32 %v1932, %v4547
  %v4581 = vmul.f32 %v1937, %v4547
  %v4582 = vmul.f32 %v1940, %v4547
  %v4583 = vmul.f32 %v1945, %v4547
  %v4584 = vmul.f32 %v1948, %v4547
  %v4585 = vmul.f32 %v1953, %v4547
  %v4586 = vmul.f32 %v1956, %v4547
  %v4587 = vmul.f32 %v1961, %v4547
  %v4588 = vmul.f32 %v1964, %v4547
  %v4589 = vmul.f32 %v1969, %v4547
  %v4590 = vmul.f32 %v1972, %v4547
  %v4591 = vmul.f32 %v1977, %v4547
  %v4592 = vmul.f32 %v1980, %v4547
  %v4593 = vmul.f32 %v1985, %v4547
  %v4594 = vmul.f32 %v1988, %v4547
  %v4595 = vmul.f32 %v1993, %v4547
  %v4596 = vmul.f32 %v1996, %v4547
  %v4597 = vmul.f32 %v2001, %v4547
  %v4598 = vmul.f32 %v2004, %v4547
  %v4599 = vmul.f32 %v2009, %v4547
  %v4600 = vmul.f32 %v2012, %v4547
  %v4601 = vmul.f32 %v2017, %v4547
  %v4602 = vmul.f32 %v2020, %v4547
  %v4603 = vmul.f32 %v2025, %v4547
  %v4604 = vmul.f32 %v2028, %v4547
  %v4605 = vmul.f32 %v2033, %v4547
  %v4606 = vmul.f32 %v2036, %v4547
  %v4607 = vmul.f32 %v2041, %v4547
  %v4608 = vmul.f32 %v2044, %v4547
  %v4609 = vmul.f32 %v2049, %v4547
  %v4610 = vmul.f32 %v2052, %v4547
  %v4611 = vmul.f32 %v2057, %v4547
  %v4612 = vmul.f32 %v2060, %v4547
  %v4613 = vmul.f32 %v2065, %v4547
  %v4614 = vmul.f32 %v2068, %v4547
  %v4615 = vmul.f32 %v2073, %v4547
  %v4616 = vmul.f32 %v2076, %v4547
  %v4617 = vmul.f32 %v2081, %v4547
  %v4618 = vmul.f32 %v2084, %v4547
  %v4619 = vmul.f32 %v2089, %v4547
  %v4620 = vmul.f32 %v2092, %v4547
  %v4621 = vmul.f32 %v2097, %v4547
  %v4622 = vmul.f32 %v2100, %v4547
  %v4623 = vmul.f32 %v2105, %v4547
  %v4624 = vmul.f32 %v2108, %v4547
  %v4625 = vmul.f32 %v2113, %v4547
  %v4626 = vmul.f32 %v2116, %v4547
  %v4627 = vmul.f32 %v2121, %v4547
  %v4628 = vmul.f32 %v2124, %v4547
  %v4629 = vmul.f32 %v2129, %v4547
  %v4630 = vmul.f32 %v2132, %v4547
  %v4631 = vmul.f32 %v2137, %v4547
  %v4632 = vmul.f32 %v2140, %v4547
  %v4633 = vmul.f32 %v2145, %v4547
  %v4634 = vmul.f32 %v2148, %v4547
  %v4635 = vmul.f32 %v2153, %v4547
  %v4636 = vmul.f32 %v2156, %v4547
  %v4637 = vmul.f32 %v2161, %v4547
  %v4638 = vmul.f32 %v2164, %v4547
  %v4639 = vmul.f32 %v2169, %v4547
  %v4640 = vmul.f32 %v2172, %v4547
  %v4641 = vmul.f32 %v2177, %v4547
  %v4642 = vmul.f32 %v2180, %v4547
  %v4643 = vmul.f32 %v2185, %v4547
  %v4644 = vmul.f32 %v2188, %v4547
  %v4645 = vmul.f32 %v2193, %v4547
  %v4646 = vmul.f32 %v2196, %v4547
  %v4647 = vmul.f32 %v2201, %v4547
  %v4648 = vmul.f32 %v2204, %v4547
  %v4649 = vmul.f32 %v2209, %v4547
  %v4650 = vmul.f32 %v2212, %v4547
  %v4651 = vmul.f32 %v2217, %v4547
  %v4652 = vmul.f32 %v2220, %v4547
  %v4653 = vmul.f32 %v2225, %v4547
  %v4654 = vmul.f32 %v2228, %v4547
  %v4655 = vmul.f32 %v2233, %v4547
  %v4656 = vmul.f32 %v2236, %v4547
  %v4657 = vmul.f32 %v2241, %v4547
  %v4658 = vmul.f32 %v2244, %v4547
  %v4659 = vmul.f32 %v2249, %v4547
  %v4660 = vmul.f32 %v2252, %v4547
  %v4661 = vmul.f32 %v2257, %v4547
  %v4662 = vmul.f32 %v2260, %v4547
  %v4663 = vmul.f32 %v2265, %v4547
  %v4664 = vmul.f32 %v2268, %v4547
  %v4665 = vmul.f32 %v2273, %v4547
  %v4666 = vmul.f32 %v2276, %v4547
  %v4667 = vmul.f32 %v2281, %v4547
  %v4668 = vmul.f32 %v2284, %v4547
  %v4669 = vmul.f32 %v2289, %v4547
  %v4670 = vmul.f32 %v2292, %v4547
  %v4671 = vmul.f32 %v2297, %v4547
  %v4672 = vmul.f32 %v2300, %v4547
  %v4673 = vmul.f32 %v2305, %v4547
  %v4674 = vmul.f32 %v2308, %v4547
  %v4675 = vmul.f32 %v2313, %v4547
  %v4676 = vmul.f32 %v2316, %v4547
  %v4677 = vmul.f32 %v2321, %v4547
  %v4678 = vmul.f32 %v2324, %v4547
  %v4679 = vmul.f32 %v2329, %v4547
  %v4680 = vmul.f32 %v2332, %v4547
  %v4681 = vmul.f32 %v2337, %v4547
  %v4682 = vmul.f32 %v2340, %v4547
  %v4683 = vmul.f32 %v2345, %v4547
  %v4684 = vmul.f32 %v2348, %v4547
  %v4685 = vmul.f32 %v2353, %v4547
  %v4686 = vmul.f32 %v2356, %v4547
  %v4687 = vmul.f32 %v2361, %v4547
  %v4688 = vmul.f32 %v2364, %v4547
  %v4689 = vmul.f32 %v2369, %v4547
  %v4690 = vmul.f32 %v2372, %v4547
  %v4691 = vmul.f32 %v2377, %v4547
  %v4692 = vmul.f32 %v2380, %v4547
  %v4693 = vmul.f32 %v2385, %v4547
  %v4694 = vmul.f32 %v2388, %v4547
  %v4695 = vmul.f32 %v2393, %v4547
  %v4696 = vmul.f32 %v2396, %v4547
  %v4697 = vmul.f32 %v2401, %v4547
  %v4698 = vmul.f32 %v2404, %v4547
  %v4699 = vmul.f32 %v2409, %v4547
  %v4700 = vmul.f32 %v2412, %v4547
  %v4701 = vmul.f32 %v2417, %v4547
  %v4702 = vmul.f32 %v2420, %v4547
  %v4703 = vmul.f32 %v2425, %v4547
  %v4704 = vmul.f32 %v2428, %v4547
  %v4705 = vmul.f32 %v2433, %v4547
  %v4706 = vmul.f32 %v2436, %v4547
  %v4707 = vmul.f32 %v2441, %v4547
  %v4708 = vmul.f32 %v2444, %v4547
  %v4709 = vmul.f32 %v2449, %v4547
  %v4710 = vmul.f32 %v2452, %v4547
  %v4711 = vmul.f32 %v2457, %v4547
  %v4712 = vmul.f32 %v2460, %v4547
  %v4713 = vmul.f32 %v2465, %v4547
  %v4714 = vmul.f32 %v2468, %v4547
  %v4715 = vmul.f32 %v2473, %v4547
  %v4716 = vmul.f32 %v2476, %v4547
  %v4717 = vmul.f32 %v2481, %v4547
  %v4718 = vmul.f32 %v2484, %v4547
  %v4719 = vmul.f32 %v2489, %v4547
  %v4720 = vmul.f32 %v2492, %v4547
  %v4721 = vmul.f32 %v2497, %v4547
  %v4722 = vmul.f32 %v2500, %v4547
  %v4723 = vmul.f32 %v2505, %v4547
  %v4724 = vmul.f32 %v2508, %v4547
  %v4725 = vmul.f32 %v2513, %v4547
  %v4726 = vmul.f32 %v2516, %v4547
  %v4727 = vmul.f32 %v2521, %v4547
  %v4728 = vmul.f32 %v2524, %v4547
  %v4729 = vmul.f32 %v2529, %v4547
  %v4730 = vmul.f32 %v2532, %v4547
  %v4731 = vmul.f32 %v2537, %v4547
  %v4732 = vmul.f32 %v2540, %v4547
  %v4733 = vmul.f32 %v2545, %v4547
  %v4734 = vmul.f32 %v2548, %v4547
  %v4735 = vmul.f32 %v2553, %v4547
  %v4736 = vmul.f32 %v2556, %v4547
  %v4737 = vmul.f32 %v2561, %v4547
  %v4738 = vmul.f32 %v2564, %v4547
  %v4739 = vmul.f32 %v2569, %v4547
  %v4740 = vmul.f32 %v2572, %v4547
  %v4741 = vmul.f32 %v2577, %v4547
  %v4742 = vmul.f32 %v2580, %v4547
  %v4743 = vmul.f32 %v2585, %v4547
  %v4744 = vmul.f32 %v2588, %v4547
  %v4745 = vmul.f32 %v2593, %v4547
  %v4746 = vmul.f32 %v2596, %v4547
  %v4747 = vmul.f32 %v2601, %v4547
  %v4748 = vmul.f32 %v2604, %v4547
  %v4749 = vmul.f32 %v2609, %v4547
  %v4750 = vmul.f32 %v2612, %v4547
  %v4751 = vmul.f32 %v2617, %v4547
  %v4752 = vmul.f32 %v2620, %v4547
  %v4753 = vmul.f32 %v2625, %v4547
  %v4754 = vmul.f32 %v2628, %v4547
  %v4755 = vmul.f32 %v2633, %v4547
  %v4756 = vmul.f32 %v2636, %v4547
  %v4757 = vmul.f32 %v2641, %v4547
  %v4758 = vmul.f32 %v2644, %v4547
  %v4759 = vmul.f32 %v2649, %v4547
  %v4760 = vmul.f32 %v2652, %v4547
  %v4761 = vmul.f32 %v2657, %v4547
  %v4762 = vmul.f32 %v2660, %v4547
  %v4763 = vmul.f32 %v2665, %v4547
  %v4764 = vmul.f32 %v2668, %v4547
  %v4765 = vmul.f32 %v2673, %v4547
  %v4766 = vmul.f32 %v2676, %v4547
  %v4767 = vmul.f32 %v2681, %v4547
  %v4768 = vmul.f32 %v2684, %v4547
  %v4769 = vmul.f32 %v2689, %v4547
  %v4770 = vmul.f32 %v2692, %v4547
  %v4771 = vmul.f32 %v2697, %v4547
  %v4772 = vmul.f32 %v2700, %v4547
  %v4773 = vmul.f32 %v2705, %v4547
  %v4774 = vmul.f32 %v2708, %v4547
  %v4775 = vmul.f32 %v2713, %v4547
  %v4776 = vmul.f32 %v2716, %v4547
  %v4777 = vmul.f32 %v2721, %v4547
  %v4778 = vmul.f32 %v2724, %v4547
  %v4779 = vmul.f32 %v2729, %v4547
  %v4780 = vmul.f32 %v2732, %v4547
  %v4781 = vmul.f32 %v2737, %v4547
  %v4782 = vmul.f32 %v2740, %v4547
  %v4783 = vmul.f32 %v2745, %v4547
  %v4784 = vmul.f32 %v2748, %v4547
  %v4785 = vmul.f32 %v2753, %v4547
  %v4786 = vmul.f32 %v2756, %v4547
  %v4787 = vmul.f32 %v2761, %v4547
  %v4788 = vmul.f32 %v2764, %v4547
  %v4789 = vmul.f32 %v2769, %v4547
  %v4790 = vmul.f32 %v2772, %v4547
  %v4791 = vmul.f32 %v2777, %v4547
  %v4792 = vmul.f32 %v2780, %v4547
  %v4793 = vmul.f32 %v2785, %v4547
  %v4794 = vmul.f32 %v2788, %v4547
  %v4795 = vmul.f32 %v2793, %v4547
  %v4796 = vmul.f32 %v2796, %v4547
  %v4797 = vmul.f32 %v2801, %v4547
  %v4798 = vmul.f32 %v2804, %v4547
  %v4799 = vmul.f32 %v2809, %v4547
  %v4800 = vmul.f32 %v2812, %v4547
  %v4801 = vmul.f32 %v2817, %v4547
  %v4802 = vmul.f32 %v2820, %v4547
  %v4803 = vmul.f32 %v2825, %v4547
  %v4804 = vmul.f32 %v2828, %v4547
  %v4805 = vmul.f32 %v2833, %v4547
  %v4806 = vmul.f32 %v2836, %v4547
  %v4807 = vmul.f32 %v2841, %v4547
  %v4808 = vmul.f32 %v2844, %v4547
  %v4809 = vmul.f32 %v2849, %v4547
  %v4810 = vmul.f32 %v2852, %v4547
  %v4811 = vmul.f32 %v2857, %v4547
  %v4812 = vmul.f32 %v2860, %v4547
  %v4813 = vmul.f32 %v2865, %v4547
  %v4814 = vmul.f32 %v2868, %v4547
  %v4815 = vmul.f32 %v2873, %v4547
  %v4816 = vmul.f32 %v2876, %v4547
  %v4817 = vmul.f32 %v2881, %v4547
  %v4818 = vmul.f32 %v2884, %v4547
  %v4819 = vmul.f32 %v2889, %v4547
  %v4821 = vlaneseq
  %v4822 = vshrl.u32 %v4821, 7
  %v4823 = vsub.s32 0, %v4822
  %v4824 = vrot.slane %v4542, %v4823
  %v4826 = vadd.f32 %v4549, %v4824
  %v4827 = vadd.f32 %v4550, %v4824
  %v4828 = vadd.f32 %v4551, %v4824
  %v4829 = vadd.f32 %v4552, %v4824
  %v4830 = vadd.f32 %v4553, %v4824
  %v4831 = vadd.f32 %v4554, %v4824
  %v4832 = vadd.f32 %v4555, %v4824
  %v4833 = vadd.f32 %v4556, %v4824
  %v4834 = vadd.f32 %v4557, %v4824
  %v4835 = vadd.f32 %v4558, %v4824
  %v4836 = vadd.f32 %v4559, %v4824
  %v4837 = vadd.f32 %v4560, %v4824
  %v4838 = vadd.f32 %v4561, %v4824
  %v4839 = vadd.f32 %v4562, %v4824
  %v4840 = vadd.f32 %v4563, %v4824
  %v4841 = vadd.f32 %v4564, %v4824
  %v4842 = vadd.f32 %v4565, %v4824
  %v4843 = vadd.f32 %v4566, %v4824
  %v4844 = vadd.f32 %v4567, %v4824
  %v4845 = vadd.f32 %v4568, %v4824
  %v4846 = vadd.f32 %v4569, %v4824
  %v4847 = vadd.f32 %v4570, %v4824
  %v4848 = vadd.f32 %v4571, %v4824
  %v4849 = vadd.f32 %v4572, %v4824
  %v4850 = vadd.f32 %v4573, %v4824
  %v4851 = vadd.f32 %v4574, %v4824
  %v4852 = vadd.f32 %v4575, %v4824
  %v4853 = vadd.f32 %v4576, %v4824
  %v4854 = vadd.f32 %v4577, %v4824
  %v4855 = vadd.f32 %v4578, %v4824
  %v4856 = vadd.f32 %v4579, %v4824
  %v4857 = vadd.f32 %v4580, %v4824
  %v4858 = vadd.f32 %v4581, %v4824
  %v4859 = vadd.f32 %v4582, %v4824
  %v4860 = vadd.f32 %v4583, %v4824
  %v4861 = vadd.f32 %v4584, %v4824
  %v4862 = vadd.f32 %v4585, %v4824
  %v4863 = vadd.f32 %v4586, %v4824
  %v4864 = vadd.f32 %v4587, %v4824
  %v4865 = vadd.f32 %v4588, %v4824
  %v4866 = vadd.f32 %v4589, %v4824
  %v4867 = vadd.f32 %v4590, %v4824
  %v4868 = vadd.f32 %v4591, %v4824
  %v4869 = vadd.f32 %v4592, %v4824
  %v4870 = vadd.f32 %v4593, %v4824
  %v4871 = vadd.f32 %v4594, %v4824
  %v4872 = vadd.f32 %v4595, %v4824
  %v4873 = vadd.f32 %v4596, %v4824
  %v4874 = vadd.f32 %v4597, %v4824
  %v4875 = vadd.f32 %v4598, %v4824
  %v4876 = vadd.f32 %v4599, %v4824
  %v4877 = vadd.f32 %v4600, %v4824
  %v4878 = vadd.f32 %v4601, %v4824
  %v4879 = vadd.f32 %v4602, %v4824
  %v4880 = vadd.f32 %v4603, %v4824
  %v4881 = vadd.f32 %v4604, %v4824
  %v4882 = vadd.f32 %v4605, %v4824
  %v4883 = vadd.f32 %v4606, %v4824
  %v4884 = vadd.f32 %v4607, %v4824
  %v4885 = vadd.f32 %v4608, %v4824
  %v4886 = vadd.f32 %v4609, %v4824
  %v4887 = vadd.f32 %v4610, %v4824
  %v4888 = vadd.f32 %v4611, %v4824
  %v4889 = vadd.f32 %v4612, %v4824
  %v4890 = vadd.f32 %v4613, %v4824
  %v4891 = vadd.f32 %v4614, %v4824
  %v4892 = vadd.f32 %v4615, %v4824
  %v4893 = vadd.f32 %v4616, %v4824
  %v4894 = vadd.f32 %v4617, %v4824
  %v4895 = vadd.f32 %v4618, %v4824
  %v4896 = vadd.f32 %v4619, %v4824
  %v4897 = vadd.f32 %v4620, %v4824
  %v4898 = vadd.f32 %v4621, %v4824
  %v4899 = vadd.f32 %v4622, %v4824
  %v4900 = vadd.f32 %v4623, %v4824
  %v4901 = vadd.f32 %v4624, %v4824
  %v4902 = vadd.f32 %v4625, %v4824
  %v4903 = vadd.f32 %v4626, %v4824
  %v4904 = vadd.f32 %v4627, %v4824
  %v4905 = vadd.f32 %v4628, %v4824
  %v4906 = vadd.f32 %v4629, %v4824
  %v4907 = vadd.f32 %v4630, %v4824
  %v4908 = vadd.f32 %v4631, %v4824
  %v4909 = vadd.f32 %v4632, %v4824
  %v4910 = vadd.f32 %v4633, %v4824
  %v4911 = vadd.f32 %v4634, %v4824
  %v4912 = vadd.f32 %v4635, %v4824
  %v4913 = vadd.f32 %v4636, %v4824
  %v4914 = vadd.f32 %v4637, %v4824
  %v4915 = vadd.f32 %v4638, %v4824
  %v4916 = vadd.f32 %v4639, %v4824
  %v4917 = vadd.f32 %v4640, %v4824
  %v4918 = vadd.f32 %v4641, %v4824
  %v4919 = vadd.f32 %v4642, %v4824
  %v4920 = vadd.f32 %v4643, %v4824
  %v4921 = vadd.f32 %v4644, %v4824
  %v4922 = vadd.f32 %v4645, %v4824
  %v4923 = vadd.f32 %v4646, %v4824
  %v4924 = vadd.f32 %v4647, %v4824
  %v4925 = vadd.f32 %v4648, %v4824
  %v4926 = vadd.f32 %v4649, %v4824
  %v4927 = vadd.f32 %v4650, %v4824
  %v4928 = vadd.f32 %v4651, %v4824
  %v4929 = vadd.f32 %v4652, %v4824
  %v4930 = vadd.f32 %v4653, %v4824
  %v4931 = vadd.f32 %v4654, %v4824
  %v4932 = vadd.f32 %v4655, %v4824
  %v4933 = vadd.f32 %v4656, %v4824
  %v4934 = vadd.f32 %v4657, %v4824
  %v4935 = vadd.f32 %v4658, %v4824
  %v4936 = vadd.f32 %v4659, %v4824
  %v4937 = vadd.f32 %v4660, %v4824
  %v4938 = vadd.f32 %v4661, %v4824
  %v4939 = vadd.f32 %v4662, %v4824
  %v4940 = vadd.f32 %v4663, %v4824
  %v4941 = vadd.f32 %v4664, %v4824
  %v4942 = vadd.f32 %v4665, %v4824
  %v4943 = vadd.f32 %v4666, %v4824
  %v4944 = vadd.f32 %v4667, %v4824
  %v4945 = vadd.f32 %v4668, %v4824
  %v4946 = vadd.f32 %v4669, %v4824
  %v4947 = vadd.f32 %v4670, %v4824
  %v4948 = vadd.f32 %v4671, %v4824
  %v4949 = vadd.f32 %v4672, %v4824
  %v4950 = vadd.f32 %v4673, %v4824
  %v4951 = vadd.f32 %v4674, %v4824
  %v4952 = vadd.f32 %v4675, %v4824
  %v4953 = vadd.f32 %v4676, %v4824
  %v4954 = vadd.f32 %v4677, %v4824
  %v4955 = vadd.f32 %v4678, %v4824
  %v4956 = vadd.f32 %v4679, %v4824
  %v4957 = vadd.f32 %v4680, %v4824
  %v4958 = vadd.f32 %v4681, %v4824
  %v4959 = vadd.f32 %v4682, %v4824
  %v4960 = vadd.f32 %v4683, %v4824
  %v4961 = vadd.f32 %v4684, %v4824
  %v4962 = vadd.f32 %v4685, %v4824
  %v4963 = vadd.f32 %v4686, %v4824
  %v4964 = vadd.f32 %v4687, %v4824
  %v4965 = vadd.f32 %v4688, %v4824
  %v4966 = vadd.f32 %v4689, %v4824
  %v4967 = vadd.f32 %v4690, %v4824
  %v4968 = vadd.f32 %v4691, %v4824
  %v4969 = vadd.f32 %v4692, %v4824
  %v4970 = vadd.f32 %v4693, %v4824
  %v4971 = vadd.f32 %v4694, %v4824
  %v4972 = vadd.f32 %v4695, %v4824
  %v4973 = vadd.f32 %v4696, %v4824
  %v4974 = vadd.f32 %v4697, %v4824
  %v4975 = vadd.f32 %v4698, %v4824
  %v4976 = vadd.f32 %v4699, %v4824
  %v4977 = vadd.f32 %v4700, %v4824
  %v4978 = vadd.f32 %v4701, %v4824
  %v4979 = vadd.f32 %v4702, %v4824
  %v4980 = vadd.f32 %v4703, %v4824
  %v4981 = vadd.f32 %v4704, %v4824
  %v4982 = vadd.f32 %v4705, %v4824
  %v4983 = vadd.f32 %v4706, %v4824
  %v4984 = vadd.f32 %v4707, %v4824
  %v4985 = vadd.f32 %v4708, %v4824
  %v4986 = vadd.f32 %v4709, %v4824
  %v4987 = vadd.f32 %v4710, %v4824
  %v4988 = vadd.f32 %v4711, %v4824
  %v4989 = vadd.f32 %v4712, %v4824
  %v4990 = vadd.f32 %v4713, %v4824
  %v4991 = vadd.f32 %v4714, %v4824
  %v4992 = vadd.f32 %v4715, %v4824
  %v4993 = vadd.f32 %v4716, %v4824
  %v4994 = vadd.f32 %v4717, %v4824
  %v4995 = vadd.f32 %v4718, %v4824
  %v4996 = vadd.f32 %v4719, %v4824
  %v4997 = vadd.f32 %v4720, %v4824
  %v4998 = vadd.f32 %v4721, %v4824
  %v4999 = vadd.f32 %v4722, %v4824
  %v5000 = vadd.f32 %v4723, %v4824
  %v5001 = vadd.f32 %v4724, %v4824
  %v5002 = vadd.f32 %v4725, %v4824
  %v5003 = vadd.f32 %v4726, %v4824
  %v5004 = vadd.f32 %v4727, %v4824
  %v5005 = vadd.f32 %v4728, %v4824
  %v5006 = vadd.f32 %v4729, %v4824
  %v5007 = vadd.f32 %v4730, %v4824
  %v5008 = vadd.f32 %v4731, %v4824
  %v5009 = vadd.f32 %v4732, %v4824
  %v5010 = vadd.f32 %v4733, %v4824
  %v5011 = vadd.f32 %v4734, %v4824
  %v5012 = vadd.f32 %v4735, %v4824
  %v5013 = vadd.f32 %v4736, %v4824
  %v5014 = vadd.f32 %v4737, %v4824
  %v5015 = vadd.f32 %v4738, %v4824
  %v5016 = vadd.f32 %v4739, %v4824
  %v5017 = vadd.f32 %v4740, %v4824
  %v5018 = vadd.f32 %v4741, %v4824
  %v5019 = vadd.f32 %v4742, %v4824
  %v5020 = vadd.f32 %v4743, %v4824
  %v5021 = vadd.f32 %v4744, %v4824
  %v5022 = vadd.f32 %v4745, %v4824
  %v5023 = vadd.f32 %v4746, %v4824
  %v5024 = vadd.f32 %v4747, %v4824
  %v5025 = vadd.f32 %v4748, %v4824
  %v5026 = vadd.f32 %v4749, %v4824
  %v5027 = vadd.f32 %v4750, %v4824
  %v5028 = vadd.f32 %v4751, %v4824
  %v5029 = vadd.f32 %v4752, %v4824
  %v5030 = vadd.f32 %v4753, %v4824
  %v5031 = vadd.f32 %v4754, %v4824
  %v5032 = vadd.f32 %v4755, %v4824
  %v5033 = vadd.f32 %v4756, %v4824
  %v5034 = vadd.f32 %v4757, %v4824
  %v5035 = vadd.f32 %v4758, %v4824
  %v5036 = vadd.f32 %v4759, %v4824
  %v5037 = vadd.f32 %v4760, %v4824
  %v5038 = vadd.f32 %v4761, %v4824
  %v5039 = vadd.f32 %v4762, %v4824
  %v5040 = vadd.f32 %v4763, %v4824
  %v5041 = vadd.f32 %v4764, %v4824
  %v5042 = vadd.f32 %v4765, %v4824
  %v5043 = vadd.f32 %v4766, %v4824
  %v5044 = vadd.f32 %v4767, %v4824
  %v5045 = vadd.f32 %v4768, %v4824
  %v5046 = vadd.f32 %v4769, %v4824
  %v5047 = vadd.f32 %v4770, %v4824
  %v5048 = vadd.f32 %v4771, %v4824
  %v5049 = vadd.f32 %v4772, %v4824
  %v5050 = vadd.f32 %v4773, %v4824
  %v5051 = vadd.f32 %v4774, %v4824
  %v5052 = vadd.f32 %v4775, %v4824
  %v5053 = vadd.f32 %v4776, %v4824
  %v5054 = vadd.f32 %v4777, %v4824
  %v5055 = vadd.f32 %v4778, %v4824
  %v5056 = vadd.f32 %v4779, %v4824
  %v5057 = vadd.f32 %v4780, %v4824
  %v5058 = vadd.f32 %v4781, %v4824
  %v5059 = vadd.f32 %v4782, %v4824
  %v5060 = vadd.f32 %v4783, %v4824
  %v5061 = vadd.f32 %v4784, %v4824
  %v5062 = vadd.f32 %v4785, %v4824
  %v5063 = vadd.f32 %v4786, %v4824
  %v5064 = vadd.f32 %v4787, %v4824
  %v5065 = vadd.f32 %v4788, %v4824
  %v5066 = vadd.f32 %v4789, %v4824
  %v5067 = vadd.f32 %v4790, %v4824
  %v5068 = vadd.f32 %v4791, %v4824
  %v5069 = vadd.f32 %v4792, %v4824
  %v5070 = vadd.f32 %v4793, %v4824
  %v5071 = vadd.f32 %v4794, %v4824
  %v5072 = vadd.f32 %v4795, %v4824
  %v5073 = vadd.f32 %v4796, %v4824
  %v5074 = vadd.f32 %v4797, %v4824
  %v5075 = vadd.f32 %v4798, %v4824
  %v5076 = vadd.f32 %v4799, %v4824
  %v5077 = vadd.f32 %v4800, %v4824
  %v5078 = vadd.f32 %v4801, %v4824
  %v5079 = vadd.f32 %v4802, %v4824
  %v5080 = vadd.f32 %v4803, %v4824
  %v5081 = vadd.f32 %v4804, %v4824
  %v5082 = vadd.f32 %v4805, %v4824
  %v5083 = vadd.f32 %v4806, %v4824
  %v5084 = vadd.f32 %v4807, %v4824
  %v5085 = vadd.f32 %v4808, %v4824
  %v5086 = vadd.f32 %v4809, %v4824
  %v5087 = vadd.f32 %v4810, %v4824
  %v5088 = vadd.f32 %v4811, %v4824
  %v5089 = vadd.f32 %v4812, %v4824
  %v5090 = vadd.f32 %v4813, %v4824
  %v5091 = vadd.f32 %v4814, %v4824
  %v5092 = vadd.f32 %v4815, %v4824
  %v5093 = vadd.f32 %v4816, %v4824
  %v5094 = vadd.f32 %v4817, %v4824
  %v5095 = vadd.f32 %v4818, %v4824
  %v5096 = vadd.f32 %v4819, %v4824
  %v5097 = vmax.f32 %v4826, 0.0
  %v5098 = vmax.f32 %v4827, 0.0
  %v5099 = vmax.f32 %v4828, 0.0
  %v5100 = vmax.f32 %v4829, 0.0
  %v5101 = vmax.f32 %v4830, 0.0
  %v5102 = vmax.f32 %v4831, 0.0
  %v5103 = vmax.f32 %v4832, 0.0
  %v5104 = vmax.f32 %v4833, 0.0
  %v5105 = vmax.f32 %v4834, 0.0
  %v5106 = vmax.f32 %v4835, 0.0
  %v5107 = vmax.f32 %v4836, 0.0
  %v5108 = vmax.f32 %v4837, 0.0
  %v5109 = vmax.f32 %v4838, 0.0
  %v5110 = vmax.f32 %v4839, 0.0
  %v5111 = vmax.f32 %v4840, 0.0
  %v5112 = vmax.f32 %v4841, 0.0
  %v5113 = vmax.f32 %v4842, 0.0
  %v5114 = vmax.f32 %v4843, 0.0
  %v5115 = vmax.f32 %v4844, 0.0
  %v5116 = vmax.f32 %v4845, 0.0
  %v5117 = vmax.f32 %v4846, 0.0
  %v5118 = vmax.f32 %v4847, 0.0
  %v5119 = vmax.f32 %v4848, 0.0
  %v5120 = vmax.f32 %v4849, 0.0
  %v5121 = vmax.f32 %v4850, 0.0
  %v5122 = vmax.f32 %v4851, 0.0
  %v5123 = vmax.f32 %v4852, 0.0
  %v5124 = vmax.f32 %v4853, 0.0
  %v5125 = vmax.f32 %v4854, 0.0
  %v5126 = vmax.f32 %v4855, 0.0
  %v5127 = vmax.f32 %v4856, 0.0
  %v5128 = vmax.f32 %v4857, 0.0
  %v5129 = vmax.f32 %v4858, 0.0
  %v5130 = vmax.f32 %v4859, 0.0
  %v5131 = vmax.f32 %v4860, 0.0
  %v5132 = vmax.f32 %v4861, 0.0
  %v5133 = vmax.f32 %v4862, 0.0
  %v5134 = vmax.f32 %v4863, 0.0
  %v5135 = vmax.f32 %v4864, 0.0
  %v5136 = vmax.f32 %v4865, 0.0
  %v5137 = vmax.f32 %v4866, 0.0
  %v5138 = vmax.f32 %v4867, 0.0
  %v5139 = vmax.f32 %v4868, 0.0
  %v5140 = vmax.f32 %v4869, 0.0
  %v5141 = vmax.f32 %v4870, 0.0
  %v5142 = vmax.f32 %v4871, 0.0
  %v5143 = vmax.f32 %v4872, 0.0
  %v5144 = vmax.f32 %v4873, 0.0
  %v5145 = vmax.f32 %v4874, 0.0
  %v5146 = vmax.f32 %v4875, 0.0
  %v5147 = vmax.f32 %v4876, 0.0
  %v5148 = vmax.f32 %v4877, 0.0
  %v5149 = vmax.f32 %v4878, 0.0
  %v5150 = vmax.f32 %v4879, 0.0
  %v5151 = vmax.f32 %v4880, 0.0
  %v5152 = vmax.f32 %v4881, 0.0
  %v5153 = vmax.f32 %v4882, 0.0
  %v5154 = vmax.f32 %v4883, 0.0
  %v5155 = vmax.f32 %v4884, 0.0
  %v5156 = vmax.f32 %v4885, 0.0
  %v5157 = vmax.f32 %v4886, 0.0
  %v5158 = vmax.f32 %v4887, 0.0
  %v5159 = vmax.f32 %v4888, 0.0
  %v5160 = vmax.f32 %v4889, 0.0
  %v5161 = vmax.f32 %v4890, 0.0
  %v5162 = vmax.f32 %v4891, 0.0
  %v5163 = vmax.f32 %v4892, 0.0
  %v5164 = vmax.f32 %v4893, 0.0
  %v5165 = vmax.f32 %v4894, 0.0
  %v5166 = vmax.f32 %v4895, 0.0
  %v5167 = vmax.f32 %v4896, 0.0
  %v5168 = vmax.f32 %v4897, 0.0
  %v5169 = vmax.f32 %v4898, 0.0
  %v5170 = vmax.f32 %v4899, 0.0
  %v5171 = vmax.f32 %v4900, 0.0
  %v5172 = vmax.f32 %v4901, 0.0
  %v5173 = vmax.f32 %v4902, 0.0
  %v5174 = vmax.f32 %v4903, 0.0
  %v5175 = vmax.f32 %v4904, 0.0
  %v5176 = vmax.f32 %v4905, 0.0
  %v5177 = vmax.f32 %v4906, 0.0
  %v5178 = vmax.f32 %v4907, 0.0
  %v5179 = vmax.f32 %v4908, 0.0
  %v5180 = vmax.f32 %v4909, 0.0
  %v5181 = vmax.f32 %v4910, 0.0
  %v5182 = vmax.f32 %v4911, 0.0
  %v5183 = vmax.f32 %v4912, 0.0
  %v5184 = vmax.f32 %v4913, 0.0
  %v5185 = vmax.f32 %v4914, 0.0
  %v5186 = vmax.f32 %v4915, 0.0
  %v5187 = vmax.f32 %v4916, 0.0
  %v5188 = vmax.f32 %v4917, 0.0
  %v5189 = vmax.f32 %v4918, 0.0
  %v5190 = vmax.f32 %v4919, 0.0
  %v5191 = vmax.f32 %v4920, 0.0
  %v5192 = vmax.f32 %v4921, 0.0
  %v5193 = vmax.f32 %v4922, 0.0
  %v5194 = vmax.f32 %v4923, 0.0
  %v5195 = vmax.f32 %v4924, 0.0
  %v5196 = vmax.f32 %v4925, 0.0
  %v5197 = vmax.f32 %v4926, 0.0
  %v5198 = vmax.f32 %v4927, 0.0
  %v5199 = vmax.f32 %v4928, 0.0
  %v5200 = vmax.f32 %v4929, 0.0
  %v5201 = vmax.f32 %v4930, 0.0
  %v5202 = vmax.f32 %v4931, 0.0
  %v5203 = vmax.f32 %v4932, 0.0
  %v5204 = vmax.f32 %v4933, 0.0
  %v5205 = vmax.f32 %v4934, 0.0
  %v5206 = vmax.f32 %v4935, 0.0
  %v5207 = vmax.f32 %v4936, 0.0
  %v5208 = vmax.f32 %v4937, 0.0
  %v5209 = vmax.f32 %v4938, 0.0
  %v5210 = vmax.f32 %v4939, 0.0
  %v5211 = vmax.f32 %v4940, 0.0
  %v5212 = vmax.f32 %v4941, 0.0
  %v5213 = vmax.f32 %v4942, 0.0
  %v5214 = vmax.f32 %v4943, 0.0
  %v5215 = vmax.f32 %v4944, 0.0
  %v5216 = vmax.f32 %v4945, 0.0
  %v5217 = vmax.f32 %v4946, 0.0
  %v5218 = vmax.f32 %v4947, 0.0
  %v5219 = vmax.f32 %v4948, 0.0
  %v5220 = vmax.f32 %v4949, 0.0
  %v5221 = vmax.f32 %v4950, 0.0
  %v5222 = vmax.f32 %v4951, 0.0
  %v5223 = vmax.f32 %v4952, 0.0
  %v5224 = vmax.f32 %v4953, 0.0
  %v5225 = vmax.f32 %v4954, 0.0
  %v5226 = vmax.f32 %v4955, 0.0
  %v5227 = vmax.f32 %v4956, 0.0
  %v5228 = vmax.f32 %v4957, 0.0
  %v5229 = vmax.f32 %v4958, 0.0
  %v5230 = vmax.f32 %v4959, 0.0
  %v5231 = vmax.f32 %v4960, 0.0
  %v5232 = vmax.f32 %v4961, 0.0
  %v5233 = vmax.f32 %v4962, 0.0
  %v5234 = vmax.f32 %v4963, 0.0
  %v5235 = vmax.f32 %v4964, 0.0
  %v5236 = vmax.f32 %v4965, 0.0
  %v5237 = vmax.f32 %v4966, 0.0
  %v5238 = vmax.f32 %v4967, 0.0
  %v5239 = vmax.f32 %v4968, 0.0
  %v5240 = vmax.f32 %v4969, 0.0
  %v5241 = vmax.f32 %v4970, 0.0
  %v5242 = vmax.f32 %v4971, 0.0
  %v5243 = vmax.f32 %v4972, 0.0
  %v5244 = vmax.f32 %v4973, 0.0
  %v5245 = vmax.f32 %v4974, 0.0
  %v5246 = vmax.f32 %v4975, 0.0
  %v5247 = vmax.f32 %v4976, 0.0
  %v5248 = vmax.f32 %v4977, 0.0
  %v5249 = vmax.f32 %v4978, 0.0
  %v5250 = vmax.f32 %v4979, 0.0
  %v5251 = vmax.f32 %v4980, 0.0
  %v5252 = vmax.f32 %v4981, 0.0
  %v5253 = vmax.f32 %v4982, 0.0
  %v5254 = vmax.f32 %v4983, 0.0
  %v5255 = vmax.f32 %v4984, 0.0
  %v5256 = vmax.f32 %v4985, 0.0
  %v5257 = vmax.f32 %v4986, 0.0
  %v5258 = vmax.f32 %v4987, 0.0
  %v5259 = vmax.f32 %v4988, 0.0
  %v5260 = vmax.f32 %v4989, 0.0
  %v5261 = vmax.f32 %v4990, 0.0
  %v5262 = vmax.f32 %v4991, 0.0
  %v5263 = vmax.f32 %v4992, 0.0
  %v5264 = vmax.f32 %v4993, 0.0
  %v5265 = vmax.f32 %v4994, 0.0
  %v5266 = vmax.f32 %v4995, 0.0
  %v5267 = vmax.f32 %v4996, 0.0
  %v5268 = vmax.f32 %v4997, 0.0
  %v5269 = vmax.f32 %v4998, 0.0
  %v5270 = vmax.f32 %v4999, 0.0
  %v5271 = vmax.f32 %v5000, 0.0
  %v5272 = vmax.f32 %v5001, 0.0
  %v5273 = vmax.f32 %v5002, 0.0
  %v5274 = vmax.f32 %v5003, 0.0
  %v5275 = vmax.f32 %v5004, 0.0
  %v5276 = vmax.f32 %v5005, 0.0
  %v5277 = vmax.f32 %v5006, 0.0
  %v5278 = vmax.f32 %v5007, 0.0
  %v5279 = vmax.f32 %v5008, 0.0
  %v5280 = vmax.f32 %v5009, 0.0
  %v5281 = vmax.f32 %v5010, 0.0
  %v5282 = vmax.f32 %v5011, 0.0
  %v5283 = vmax.f32 %v5012, 0.0
  %v5284 = vmax.f32 %v5013, 0.0
  %v5285 = vmax.f32 %v5014, 0.0
  %v5286 = vmax.f32 %v5015, 0.0
  %v5287 = vmax.f32 %v5016, 0.0
  %v5288 = vmax.f32 %v5017, 0.0
  %v5289 = vmax.f32 %v5018, 0.0
  %v5290 = vmax.f32 %v5019, 0.0
  %v5291 = vmax.f32 %v5020, 0.0
  %v5292 = vmax.f32 %v5021, 0.0
  %v5293 = vmax.f32 %v5022, 0.0
  %v5294 = vmax.f32 %v5023, 0.0
  %v5295 = vmax.f32 %v5024, 0.0
  %v5296 = vmax.f32 %v5025, 0.0
  %v5297 = vmax.f32 %v5026, 0.0
  %v5298 = vmax.f32 %v5027, 0.0
  %v5299 = vmax.f32 %v5028, 0.0
  %v5300 = vmax.f32 %v5029, 0.0
  %v5301 = vmax.f32 %v5030, 0.0
  %v5302 = vmax.f32 %v5031, 0.0
  %v5303 = vmax.f32 %v5032, 0.0
  %v5304 = vmax.f32 %v5033, 0.0
  %v5305 = vmax.f32 %v5034, 0.0
  %v5306 = vmax.f32 %v5035, 0.0
  %v5307 = vmax.f32 %v5036, 0.0
  %v5308 = vmax.f32 %v5037, 0.0
  %v5309 = vmax.f32 %v5038, 0.0
  %v5310 = vmax.f32 %v5039, 0.0
  %v5311 = vmax.f32 %v5040, 0.0
  %v5312 = vmax.f32 %v5041, 0.0
  %v5313 = vmax.f32 %v5042, 0.0
  %v5314 = vmax.f32 %v5043, 0.0
  %v5315 = vmax.f32 %v5044, 0.0
  %v5316 = vmax.f32 %v5045, 0.0
  %v5317 = vmax.f32 %v5046, 0.0
  %v5318 = vmax.f32 %v5047, 0.0
  %v5319 = vmax.f32 %v5048, 0.0
  %v5320 = vmax.f32 %v5049, 0.0
  %v5321 = vmax.f32 %v5050, 0.0
  %v5322 = vmax.f32 %v5051, 0.0
  %v5323 = vmax.f32 %v5052, 0.0
  %v5324 = vmax.f32 %v5053, 0.0
  %v5325 = vmax.f32 %v5054, 0.0
  %v5326 = vmax.f32 %v5055, 0.0
  %v5327 = vmax.f32 %v5056, 0.0
  %v5328 = vmax.f32 %v5057, 0.0
  %v5329 = vmax.f32 %v5058, 0.0
  %v5330 = vmax.f32 %v5059, 0.0
  %v5331 = vmax.f32 %v5060, 0.0
  %v5332 = vmax.f32 %v5061, 0.0
  %v5333 = vmax.f32 %v5062, 0.0
  %v5334 = vmax.f32 %v5063, 0.0
  %v5335 = vmax.f32 %v5064, 0.0
  %v5336 = vmax.f32 %v5065, 0.0
  %v5337 = vmax.f32 %v5066, 0.0
  %v5338 = vmax.f32 %v5067, 0.0
  %v5339 = vmax.f32 %v5068, 0.0
  %v5340 = vmax.f32 %v5069, 0.0
  %v5341 = vmax.f32 %v5070, 0.0
  %v5342 = vmax.f32 %v5071, 0.0
  %v5343 = vmax.f32 %v5072, 0.0
  %v5344 = vmax.f32 %v5073, 0.0
  %v5345 = vmax.f32 %v5074, 0.0
  %v5346 = vmax.f32 %v5075, 0.0
  %v5347 = vmax.f32 %v5076, 0.0
  %v5348 = vmax.f32 %v5077, 0.0
  %v5349 = vmax.f32 %v5078, 0.0
  %v5350 = vmax.f32 %v5079, 0.0
  %v5351 = vmax.f32 %v5080, 0.0
  %v5352 = vmax.f32 %v5081, 0.0
  %v5353 = vmax.f32 %v5082, 0.0
  %v5354 = vmax.f32 %v5083, 0.0
  %v5355 = vmax.f32 %v5084, 0.0
  %v5356 = vmax.f32 %v5085, 0.0
  %v5357 = vmax.f32 %v5086, 0.0
  %v5358 = vmax.f32 %v5087, 0.0
  %v5359 = vmax.f32 %v5088, 0.0
  %v5360 = vmax.f32 %v5089, 0.0
  %v5361 = vmax.f32 %v5090, 0.0
  %v5362 = vmax.f32 %v5091, 0.0
  %v5363 = vmax.f32 %v5092, 0.0
  %v5364 = vmax.f32 %v5093, 0.0
  %v5365 = vmax.f32 %v5094, 0.0
  %v5366 = vmax.f32 %v5095, 0.0
  %v5367 = vmax.f32 %v5096, 0.0
  %v5368 = vpack.c.bf16 %v5098, %v5097
  %v5369 = vpack.c.bf16 %v5100, %v5099
  %v5370 = vpack.c.bf16 %v5102, %v5101
  %v5371 = vpack.c.bf16 %v5104, %v5103
  %v5372 = vpack.c.bf16 %v5106, %v5105
  %v5373 = vpack.c.bf16 %v5108, %v5107
  %v5374 = vpack.c.bf16 %v5110, %v5109
  %v5375 = vpack.c.bf16 %v5112, %v5111
  %v5376 = vpack.c.bf16 %v5114, %v5113
  %v5377 = vpack.c.bf16 %v5116, %v5115
  %v5378 = vpack.c.bf16 %v5118, %v5117
  %v5379 = vpack.c.bf16 %v5120, %v5119
  %v5380 = vpack.c.bf16 %v5122, %v5121
  %v5381 = vpack.c.bf16 %v5124, %v5123
  %v5382 = vpack.c.bf16 %v5126, %v5125
  %v5383 = vpack.c.bf16 %v5128, %v5127
  %v5384 = vpack.c.bf16 %v5130, %v5129
  %v5385 = vpack.c.bf16 %v5132, %v5131
  %v5386 = vpack.c.bf16 %v5134, %v5133
  %v5387 = vpack.c.bf16 %v5136, %v5135
  %v5388 = vpack.c.bf16 %v5138, %v5137
  %v5389 = vpack.c.bf16 %v5140, %v5139
  %v5390 = vpack.c.bf16 %v5142, %v5141
  %v5391 = vpack.c.bf16 %v5144, %v5143
  %v5392 = vpack.c.bf16 %v5146, %v5145
  %v5393 = vpack.c.bf16 %v5148, %v5147
  %v5394 = vpack.c.bf16 %v5150, %v5149
  %v5395 = vpack.c.bf16 %v5152, %v5151
  %v5396 = vpack.c.bf16 %v5154, %v5153
  %v5397 = vpack.c.bf16 %v5156, %v5155
  %v5398 = vpack.c.bf16 %v5158, %v5157
  %v5399 = vpack.c.bf16 %v5160, %v5159
  %v5400 = vpack.c.bf16 %v5162, %v5161
  %v5401 = vpack.c.bf16 %v5164, %v5163
  %v5402 = vpack.c.bf16 %v5166, %v5165
  %v5403 = vpack.c.bf16 %v5168, %v5167
  %v5404 = vpack.c.bf16 %v5170, %v5169
  %v5405 = vpack.c.bf16 %v5172, %v5171
  %v5406 = vpack.c.bf16 %v5174, %v5173
  %v5407 = vpack.c.bf16 %v5176, %v5175
  %v5408 = vpack.c.bf16 %v5178, %v5177
  %v5409 = vpack.c.bf16 %v5180, %v5179
  %v5410 = vpack.c.bf16 %v5182, %v5181
  %v5411 = vpack.c.bf16 %v5184, %v5183
  %v5412 = vpack.c.bf16 %v5186, %v5185
  %v5413 = vpack.c.bf16 %v5188, %v5187
  %v5414 = vpack.c.bf16 %v5190, %v5189
  %v5415 = vpack.c.bf16 %v5192, %v5191
  %v5416 = vpack.c.bf16 %v5194, %v5193
  %v5417 = vpack.c.bf16 %v5196, %v5195
  %v5418 = vpack.c.bf16 %v5198, %v5197
  %v5419 = vpack.c.bf16 %v5200, %v5199
  %v5420 = vpack.c.bf16 %v5202, %v5201
  %v5421 = vpack.c.bf16 %v5204, %v5203
  %v5422 = vpack.c.bf16 %v5206, %v5205
  %v5423 = vpack.c.bf16 %v5208, %v5207
  %v5424 = vpack.c.bf16 %v5210, %v5209
  %v5425 = vpack.c.bf16 %v5212, %v5211
  %v5426 = vpack.c.bf16 %v5214, %v5213
  %v5427 = vpack.c.bf16 %v5216, %v5215
  %v5428 = vpack.c.bf16 %v5218, %v5217
  %v5429 = vpack.c.bf16 %v5220, %v5219
  %v5430 = vpack.c.bf16 %v5222, %v5221
  %v5431 = vpack.c.bf16 %v5224, %v5223
  %v5432 = vpack.c.bf16 %v5226, %v5225
  %v5433 = vpack.c.bf16 %v5228, %v5227
  %v5434 = vpack.c.bf16 %v5230, %v5229
  %v5435 = vpack.c.bf16 %v5232, %v5231
  %v5436 = vpack.c.bf16 %v5234, %v5233
  %v5437 = vpack.c.bf16 %v5236, %v5235
  %v5438 = vpack.c.bf16 %v5238, %v5237
  %v5439 = vpack.c.bf16 %v5240, %v5239
  %v5440 = vpack.c.bf16 %v5242, %v5241
  %v5441 = vpack.c.bf16 %v5244, %v5243
  %v5442 = vpack.c.bf16 %v5246, %v5245
  %v5443 = vpack.c.bf16 %v5248, %v5247
  %v5444 = vpack.c.bf16 %v5250, %v5249
  %v5445 = vpack.c.bf16 %v5252, %v5251
  %v5446 = vpack.c.bf16 %v5254, %v5253
  %v5447 = vpack.c.bf16 %v5256, %v5255
  %v5448 = vpack.c.bf16 %v5258, %v5257
  %v5449 = vpack.c.bf16 %v5260, %v5259
  %v5450 = vpack.c.bf16 %v5262, %v5261
  %v5451 = vpack.c.bf16 %v5264, %v5263
  %v5452 = vpack.c.bf16 %v5266, %v5265
  %v5453 = vpack.c.bf16 %v5268, %v5267
  %v5454 = vpack.c.bf16 %v5270, %v5269
  %v5455 = vpack.c.bf16 %v5272, %v5271
  %v5456 = vpack.c.bf16 %v5274, %v5273
  %v5457 = vpack.c.bf16 %v5276, %v5275
  %v5458 = vpack.c.bf16 %v5278, %v5277
  %v5459 = vpack.c.bf16 %v5280, %v5279
  %v5460 = vpack.c.bf16 %v5282, %v5281
  %v5461 = vpack.c.bf16 %v5284, %v5283
  %v5462 = vpack.c.bf16 %v5286, %v5285
  %v5463 = vpack.c.bf16 %v5288, %v5287
  %v5464 = vpack.c.bf16 %v5290, %v5289
  %v5465 = vpack.c.bf16 %v5292, %v5291
  %v5466 = vpack.c.bf16 %v5294, %v5293
  %v5467 = vpack.c.bf16 %v5296, %v5295
  %v5468 = vpack.c.bf16 %v5298, %v5297
  %v5469 = vpack.c.bf16 %v5300, %v5299
  %v5470 = vpack.c.bf16 %v5302, %v5301
  %v5471 = vpack.c.bf16 %v5304, %v5303
  %v5472 = vpack.c.bf16 %v5306, %v5305
  %v5473 = vpack.c.bf16 %v5308, %v5307
  %v5474 = vpack.c.bf16 %v5310, %v5309
  %v5475 = vpack.c.bf16 %v5312, %v5311
  %v5476 = vpack.c.bf16 %v5314, %v5313
  %v5477 = vpack.c.bf16 %v5316, %v5315
  %v5478 = vpack.c.bf16 %v5318, %v5317
  %v5479 = vpack.c.bf16 %v5320, %v5319
  %v5480 = vpack.c.bf16 %v5322, %v5321
  %v5481 = vpack.c.bf16 %v5324, %v5323
  %v5482 = vpack.c.bf16 %v5326, %v5325
  %v5483 = vpack.c.bf16 %v5328, %v5327
  %v5484 = vpack.c.bf16 %v5330, %v5329
  %v5485 = vpack.c.bf16 %v5332, %v5331
  %v5486 = vpack.c.bf16 %v5334, %v5333
  %v5487 = vpack.c.bf16 %v5336, %v5335
  %v5488 = vpack.c.bf16 %v5338, %v5337
  %v5489 = vpack.c.bf16 %v5340, %v5339
  %v5490 = vpack.c.bf16 %v5342, %v5341
  %v5491 = vpack.c.bf16 %v5344, %v5343
  %v5492 = vpack.c.bf16 %v5346, %v5345
  %v5493 = vpack.c.bf16 %v5348, %v5347
  %v5494 = vpack.c.bf16 %v5350, %v5349
  %v5495 = vpack.c.bf16 %v5352, %v5351
  %v5496 = vpack.c.bf16 %v5354, %v5353
  %v5497 = vpack.c.bf16 %v5356, %v5355
  %v5498 = vpack.c.bf16 %v5358, %v5357
  %v5499 = vpack.c.bf16 %v5360, %v5359
  %v5500 = vpack.c.bf16 %v5362, %v5361
  %v5501 = vpack.c.bf16 %v5364, %v5363
  %v5502 = vpack.c.bf16 %v5366, %v5365
  %v5503 = vpack.c.bf16 %v5367, %v5367
  %v5640 = vunpack.c.l.b16 %v5368
  %v5641 = vunpack.c.h.b16 %v5368
  %v5642 = vunpack.c.l.b16 %v5369
  %v5643 = vunpack.c.h.b16 %v5369
  %v5644 = vunpack.c.l.b16 %v5370
  %v5645 = vunpack.c.h.b16 %v5370
  %v5646 = vunpack.c.l.b16 %v5371
  %v5647 = vunpack.c.h.b16 %v5371
  %v5648 = vunpack.c.l.b16 %v5372
  %v5649 = vunpack.c.h.b16 %v5372
  %v5650 = vunpack.c.l.b16 %v5373
  %v5651 = vunpack.c.h.b16 %v5373
  %v5652 = vunpack.c.l.b16 %v5374
  %v5653 = vunpack.c.h.b16 %v5374
  %v5654 = vunpack.c.l.b16 %v5375
  %v5655 = vunpack.c.h.b16 %v5375
  %v5656 = vunpack.c.l.b16 %v5376
  %v5657 = vunpack.c.h.b16 %v5376
  %v5658 = vunpack.c.l.b16 %v5377
  %v5659 = vunpack.c.h.b16 %v5377
  %v5660 = vunpack.c.l.b16 %v5378
  %v5661 = vunpack.c.h.b16 %v5378
  %v5662 = vunpack.c.l.b16 %v5379
  %v5663 = vunpack.c.h.b16 %v5379
  %v5664 = vunpack.c.l.b16 %v5380
  %v5665 = vunpack.c.h.b16 %v5380
  %v5666 = vunpack.c.l.b16 %v5381
  %v5667 = vunpack.c.h.b16 %v5381
  %v5668 = vunpack.c.l.b16 %v5382
  %v5669 = vunpack.c.h.b16 %v5382
  %v5670 = vunpack.c.l.b16 %v5383
  %v5671 = vunpack.c.h.b16 %v5383
  %v5672 = vunpack.c.l.b16 %v5384
  %v5673 = vunpack.c.h.b16 %v5384
  %v5674 = vunpack.c.l.b16 %v5385
  %v5675 = vunpack.c.h.b16 %v5385
  %v5676 = vunpack.c.l.b16 %v5386
  %v5677 = vunpack.c.h.b16 %v5386
  %v5678 = vunpack.c.l.b16 %v5387
  %v5679 = vunpack.c.h.b16 %v5387
  %v5680 = vunpack.c.l.b16 %v5388
  %v5681 = vunpack.c.h.b16 %v5388
  %v5682 = vunpack.c.l.b16 %v5389
  %v5683 = vunpack.c.h.b16 %v5389
  %v5684 = vunpack.c.l.b16 %v5390
  %v5685 = vunpack.c.h.b16 %v5390
  %v5686 = vunpack.c.l.b16 %v5391
  %v5687 = vunpack.c.h.b16 %v5391
  %v5688 = vunpack.c.l.b16 %v5392
  %v5689 = vunpack.c.h.b16 %v5392
  %v5690 = vunpack.c.l.b16 %v5393
  %v5691 = vunpack.c.h.b16 %v5393
  %v5692 = vunpack.c.l.b16 %v5394
  %v5693 = vunpack.c.h.b16 %v5394
  %v5694 = vunpack.c.l.b16 %v5395
  %v5695 = vunpack.c.h.b16 %v5395
  %v5696 = vunpack.c.l.b16 %v5396
  %v5697 = vunpack.c.h.b16 %v5396
  %v5698 = vunpack.c.l.b16 %v5397
  %v5699 = vunpack.c.h.b16 %v5397
  %v5700 = vunpack.c.l.b16 %v5398
  %v5701 = vunpack.c.h.b16 %v5398
  %v5702 = vunpack.c.l.b16 %v5399
  %v5703 = vunpack.c.h.b16 %v5399
  %v5704 = vunpack.c.l.b16 %v5400
  %v5705 = vunpack.c.h.b16 %v5400
  %v5706 = vunpack.c.l.b16 %v5401
  %v5707 = vunpack.c.h.b16 %v5401
  %v5708 = vunpack.c.l.b16 %v5402
  %v5709 = vunpack.c.h.b16 %v5402
  %v5710 = vunpack.c.l.b16 %v5403
  %v5711 = vunpack.c.h.b16 %v5403
  %v5712 = vunpack.c.l.b16 %v5404
  %v5713 = vunpack.c.h.b16 %v5404
  %v5714 = vunpack.c.l.b16 %v5405
  %v5715 = vunpack.c.h.b16 %v5405
  %v5716 = vunpack.c.l.b16 %v5406
  %v5717 = vunpack.c.h.b16 %v5406
  %v5718 = vunpack.c.l.b16 %v5407
  %v5719 = vunpack.c.h.b16 %v5407
  %v5720 = vunpack.c.l.b16 %v5408
  %v5721 = vunpack.c.h.b16 %v5408
  %v5722 = vunpack.c.l.b16 %v5409
  %v5723 = vunpack.c.h.b16 %v5409
  %v5724 = vunpack.c.l.b16 %v5410
  %v5725 = vunpack.c.h.b16 %v5410
  %v5726 = vunpack.c.l.b16 %v5411
  %v5727 = vunpack.c.h.b16 %v5411
  %v5728 = vunpack.c.l.b16 %v5412
  %v5729 = vunpack.c.h.b16 %v5412
  %v5730 = vunpack.c.l.b16 %v5413
  %v5731 = vunpack.c.h.b16 %v5413
  %v5732 = vunpack.c.l.b16 %v5414
  %v5733 = vunpack.c.h.b16 %v5414
  %v5734 = vunpack.c.l.b16 %v5415
  %v5735 = vunpack.c.h.b16 %v5415
  %v5736 = vunpack.c.l.b16 %v5416
  %v5737 = vunpack.c.h.b16 %v5416
  %v5738 = vunpack.c.l.b16 %v5417
  %v5739 = vunpack.c.h.b16 %v5417
  %v5740 = vunpack.c.l.b16 %v5418
  %v5741 = vunpack.c.h.b16 %v5418
  %v5742 = vunpack.c.l.b16 %v5419
  %v5743 = vunpack.c.h.b16 %v5419
  %v5744 = vunpack.c.l.b16 %v5420
  %v5745 = vunpack.c.h.b16 %v5420
  %v5746 = vunpack.c.l.b16 %v5421
  %v5747 = vunpack.c.h.b16 %v5421
  %v5748 = vunpack.c.l.b16 %v5422
  %v5749 = vunpack.c.h.b16 %v5422
  %v5750 = vunpack.c.l.b16 %v5423
  %v5751 = vunpack.c.h.b16 %v5423
  %v5752 = vunpack.c.l.b16 %v5424
  %v5753 = vunpack.c.h.b16 %v5424
  %v5754 = vunpack.c.l.b16 %v5425
  %v5755 = vunpack.c.h.b16 %v5425
  %v5756 = vunpack.c.l.b16 %v5426
  %v5757 = vunpack.c.h.b16 %v5426
  %v5758 = vunpack.c.l.b16 %v5427
  %v5759 = vunpack.c.h.b16 %v5427
  %v5760 = vunpack.c.l.b16 %v5428
  %v5761 = vunpack.c.h.b16 %v5428
  %v5762 = vunpack.c.l.b16 %v5429
  %v5763 = vunpack.c.h.b16 %v5429
  %v5764 = vunpack.c.l.b16 %v5430
  %v5765 = vunpack.c.h.b16 %v5430
  %v5766 = vunpack.c.l.b16 %v5431
  %v5767 = vunpack.c.h.b16 %v5431
  %v5768 = vunpack.c.l.b16 %v5432
  %v5769 = vunpack.c.h.b16 %v5432
  %v5770 = vunpack.c.l.b16 %v5433
  %v5771 = vunpack.c.h.b16 %v5433
  %v5772 = vunpack.c.l.b16 %v5434
  %v5773 = vunpack.c.h.b16 %v5434
  %v5774 = vunpack.c.l.b16 %v5435
  %v5775 = vunpack.c.h.b16 %v5435
  %v5776 = vunpack.c.l.b16 %v5436
  %v5777 = vunpack.c.h.b16 %v5436
  %v5778 = vunpack.c.l.b16 %v5437
  %v5779 = vunpack.c.h.b16 %v5437
  %v5780 = vunpack.c.l.b16 %v5438
  %v5781 = vunpack.c.h.b16 %v5438
  %v5782 = vunpack.c.l.b16 %v5439
  %v5783 = vunpack.c.h.b16 %v5439
  %v5784 = vunpack.c.l.b16 %v5440
  %v5785 = vunpack.c.h.b16 %v5440
  %v5786 = vunpack.c.l.b16 %v5441
  %v5787 = vunpack.c.h.b16 %v5441
  %v5788 = vunpack.c.l.b16 %v5442
  %v5789 = vunpack.c.h.b16 %v5442
  %v5790 = vunpack.c.l.b16 %v5443
  %v5791 = vunpack.c.h.b16 %v5443
  %v5792 = vunpack.c.l.b16 %v5444
  %v5793 = vunpack.c.h.b16 %v5444
  %v5794 = vunpack.c.l.b16 %v5445
  %v5795 = vunpack.c.h.b16 %v5445
  %v5796 = vunpack.c.l.b16 %v5446
  %v5797 = vunpack.c.h.b16 %v5446
  %v5798 = vunpack.c.l.b16 %v5447
  %v5799 = vunpack.c.h.b16 %v5447
  %v5800 = vunpack.c.l.b16 %v5448
  %v5801 = vunpack.c.h.b16 %v5448
  %v5802 = vunpack.c.l.b16 %v5449
  %v5803 = vunpack.c.h.b16 %v5449
  %v5804 = vunpack.c.l.b16 %v5450
  %v5805 = vunpack.c.h.b16 %v5450
  %v5806 = vunpack.c.l.b16 %v5451
  %v5807 = vunpack.c.h.b16 %v5451
  %v5808 = vunpack.c.l.b16 %v5452
  %v5809 = vunpack.c.h.b16 %v5452
  %v5810 = vunpack.c.l.b16 %v5453
  %v5811 = vunpack.c.h.b16 %v5453
  %v5812 = vunpack.c.l.b16 %v5454
  %v5813 = vunpack.c.h.b16 %v5454
  %v5814 = vunpack.c.l.b16 %v5455
  %v5815 = vunpack.c.h.b16 %v5455
  %v5816 = vunpack.c.l.b16 %v5456
  %v5817 = vunpack.c.h.b16 %v5456
  %v5818 = vunpack.c.l.b16 %v5457
  %v5819 = vunpack.c.h.b16 %v5457
  %v5820 = vunpack.c.l.b16 %v5458
  %v5821 = vunpack.c.h.b16 %v5458
  %v5822 = vunpack.c.l.b16 %v5459
  %v5823 = vunpack.c.h.b16 %v5459
  %v5824 = vunpack.c.l.b16 %v5460
  %v5825 = vunpack.c.h.b16 %v5460
  %v5826 = vunpack.c.l.b16 %v5461
  %v5827 = vunpack.c.h.b16 %v5461
  %v5828 = vunpack.c.l.b16 %v5462
  %v5829 = vunpack.c.h.b16 %v5462
  %v5830 = vunpack.c.l.b16 %v5463
  %v5831 = vunpack.c.h.b16 %v5463
  %v5832 = vunpack.c.l.b16 %v5464
  %v5833 = vunpack.c.h.b16 %v5464
  %v5834 = vunpack.c.l.b16 %v5465
  %v5835 = vunpack.c.h.b16 %v5465
  %v5836 = vunpack.c.l.b16 %v5466
  %v5837 = vunpack.c.h.b16 %v5466
  %v5838 = vunpack.c.l.b16 %v5467
  %v5839 = vunpack.c.h.b16 %v5467
  %v5840 = vunpack.c.l.b16 %v5468
  %v5841 = vunpack.c.h.b16 %v5468
  %v5842 = vunpack.c.l.b16 %v5469
  %v5843 = vunpack.c.h.b16 %v5469
  %v5844 = vunpack.c.l.b16 %v5470
  %v5845 = vunpack.c.h.b16 %v5470
  %v5846 = vunpack.c.l.b16 %v5471
  %v5847 = vunpack.c.h.b16 %v5471
  %v5848 = vunpack.c.l.b16 %v5472
  %v5849 = vunpack.c.h.b16 %v5472
  %v5850 = vunpack.c.l.b16 %v5473
  %v5851 = vunpack.c.h.b16 %v5473
  %v5852 = vunpack.c.l.b16 %v5474
  %v5853 = vunpack.c.h.b16 %v5474
  %v5854 = vunpack.c.l.b16 %v5475
  %v5855 = vunpack.c.h.b16 %v5475
  %v5856 = vunpack.c.l.b16 %v5476
  %v5857 = vunpack.c.h.b16 %v5476
  %v5858 = vunpack.c.l.b16 %v5477
  %v5859 = vunpack.c.h.b16 %v5477
  %v5860 = vunpack.c.l.b16 %v5478
  %v5861 = vunpack.c.h.b16 %v5478
  %v5862 = vunpack.c.l.b16 %v5479
  %v5863 = vunpack.c.h.b16 %v5479
  %v5864 = vunpack.c.l.b16 %v5480
  %v5865 = vunpack.c.h.b16 %v5480
  %v5866 = vunpack.c.l.b16 %v5481
  %v5867 = vunpack.c.h.b16 %v5481
  %v5868 = vunpack.c.l.b16 %v5482
  %v5869 = vunpack.c.h.b16 %v5482
  %v5870 = vunpack.c.l.b16 %v5483
  %v5871 = vunpack.c.h.b16 %v5483
  %v5872 = vunpack.c.l.b16 %v5484
  %v5873 = vunpack.c.h.b16 %v5484
  %v5874 = vunpack.c.l.b16 %v5485
  %v5875 = vunpack.c.h.b16 %v5485
  %v5876 = vunpack.c.l.b16 %v5486
  %v5877 = vunpack.c.h.b16 %v5486
  %v5878 = vunpack.c.l.b16 %v5487
  %v5879 = vunpack.c.h.b16 %v5487
  %v5880 = vunpack.c.l.b16 %v5488
  %v5881 = vunpack.c.h.b16 %v5488
  %v5882 = vunpack.c.l.b16 %v5489
  %v5883 = vunpack.c.h.b16 %v5489
  %v5884 = vunpack.c.l.b16 %v5490
  %v5885 = vunpack.c.h.b16 %v5490
  %v5886 = vunpack.c.l.b16 %v5491
  %v5887 = vunpack.c.h.b16 %v5491
  %v5888 = vunpack.c.l.b16 %v5492
  %v5889 = vunpack.c.h.b16 %v5492
  %v5890 = vunpack.c.l.b16 %v5493
  %v5891 = vunpack.c.h.b16 %v5493
  %v5892 = vunpack.c.l.b16 %v5494
  %v5893 = vunpack.c.h.b16 %v5494
  %v5894 = vunpack.c.l.b16 %v5495
  %v5895 = vunpack.c.h.b16 %v5495
  %v5896 = vunpack.c.l.b16 %v5496
  %v5897 = vunpack.c.h.b16 %v5496
  %v5898 = vunpack.c.l.b16 %v5497
  %v5899 = vunpack.c.h.b16 %v5497
  %v5900 = vunpack.c.l.b16 %v5498
  %v5901 = vunpack.c.h.b16 %v5498
  %v5902 = vunpack.c.l.b16 %v5499
  %v5903 = vunpack.c.h.b16 %v5499
  %v5904 = vunpack.c.l.b16 %v5500
  %v5905 = vunpack.c.h.b16 %v5500
  %v5906 = vunpack.c.l.b16 %v5501
  %v5907 = vunpack.c.h.b16 %v5501
  %v5908 = vunpack.c.l.b16 %v5502
  %v5909 = vunpack.c.h.b16 %v5502
  %v5910 = vunpack.c.l.b16 %v5503
  %v5911 = vpack.c.b16 %v5640, %v5640
  %v5912 = vpack.c.b16 %v5641, %v5641
  %v5913 = vpack.c.b16 %v5642, %v5642
  %v5914 = vpack.c.b16 %v5643, %v5643
  %v5915 = vpack.c.b16 %v5644, %v5644
  %v5916 = vpack.c.b16 %v5645, %v5645
  %v5917 = vpack.c.b16 %v5646, %v5646
  %v5918 = vpack.c.b16 %v5647, %v5647
  %v5919 = vpack.c.b16 %v5648, %v5648
  %v5920 = vpack.c.b16 %v5649, %v5649
  %v5921 = vpack.c.b16 %v5650, %v5650
  %v5922 = vpack.c.b16 %v5651, %v5651
  %v5923 = vpack.c.b16 %v5652, %v5652
  %v5924 = vpack.c.b16 %v5653, %v5653
  %v5925 = vpack.c.b16 %v5654, %v5654
  %v5926 = vpack.c.b16 %v5655, %v5655
  %v5927 = vpack.c.b16 %v5656, %v5656
  %v5928 = vpack.c.b16 %v5657, %v5657
  %v5929 = vpack.c.b16 %v5658, %v5658
  %v5930 = vpack.c.b16 %v5659, %v5659
  %v5931 = vpack.c.b16 %v5660, %v5660
  %v5932 = vpack.c.b16 %v5661, %v5661
  %v5933 = vpack.c.b16 %v5662, %v5662
  %v5934 = vpack.c.b16 %v5663, %v5663
  %v5935 = vpack.c.b16 %v5664, %v5664
  %v5936 = vpack.c.b16 %v5665, %v5665
  %v5937 = vpack.c.b16 %v5666, %v5666
  %v5938 = vpack.c.b16 %v5667, %v5667
  %v5939 = vpack.c.b16 %v5668, %v5668
  %v5940 = vpack.c.b16 %v5669, %v5669
  %v5941 = vpack.c.b16 %v5670, %v5670
  %v5942 = vpack.c.b16 %v5671, %v5671
  %v5943 = vpack.c.b16 %v5672, %v5672
  %v5944 = vpack.c.b16 %v5673, %v5673
  %v5945 = vpack.c.b16 %v5674, %v5674
  %v5946 = vpack.c.b16 %v5675, %v5675
  %v5947 = vpack.c.b16 %v5676, %v5676
  %v5948 = vpack.c.b16 %v5677, %v5677
  %v5949 = vpack.c.b16 %v5678, %v5678
  %v5950 = vpack.c.b16 %v5679, %v5679
  %v5951 = vpack.c.b16 %v5680, %v5680
  %v5952 = vpack.c.b16 %v5681, %v5681
  %v5953 = vpack.c.b16 %v5682, %v5682
  %v5954 = vpack.c.b16 %v5683, %v5683
  %v5955 = vpack.c.b16 %v5684, %v5684
  %v5956 = vpack.c.b16 %v5685, %v5685
  %v5957 = vpack.c.b16 %v5686, %v5686
  %v5958 = vpack.c.b16 %v5687, %v5687
  %v5959 = vpack.c.b16 %v5688, %v5688
  %v5960 = vpack.c.b16 %v5689, %v5689
  %v5961 = vpack.c.b16 %v5690, %v5690
  %v5962 = vpack.c.b16 %v5691, %v5691
  %v5963 = vpack.c.b16 %v5692, %v5692
  %v5964 = vpack.c.b16 %v5693, %v5693
  %v5965 = vpack.c.b16 %v5694, %v5694
  %v5966 = vpack.c.b16 %v5695, %v5695
  %v5967 = vpack.c.b16 %v5696, %v5696
  %v5968 = vpack.c.b16 %v5697, %v5697
  %v5969 = vpack.c.b16 %v5698, %v5698
  %v5970 = vpack.c.b16 %v5699, %v5699
  %v5971 = vpack.c.b16 %v5700, %v5700
  %v5972 = vpack.c.b16 %v5701, %v5701
  %v5973 = vpack.c.b16 %v5702, %v5702
  %v5974 = vpack.c.b16 %v5703, %v5703
  %v5975 = vpack.c.b16 %v5704, %v5704
  %v5976 = vpack.c.b16 %v5705, %v5705
  %v5977 = vpack.c.b16 %v5706, %v5706
  %v5978 = vpack.c.b16 %v5707, %v5707
  %v5979 = vpack.c.b16 %v5708, %v5708
  %v5980 = vpack.c.b16 %v5709, %v5709
  %v5981 = vpack.c.b16 %v5710, %v5710
  %v5982 = vpack.c.b16 %v5711, %v5711
  %v5983 = vpack.c.b16 %v5712, %v5712
  %v5984 = vpack.c.b16 %v5713, %v5713
  %v5985 = vpack.c.b16 %v5714, %v5714
  %v5986 = vpack.c.b16 %v5715, %v5715
  %v5987 = vpack.c.b16 %v5716, %v5716
  %v5988 = vpack.c.b16 %v5717, %v5717
  %v5989 = vpack.c.b16 %v5718, %v5718
  %v5990 = vpack.c.b16 %v5719, %v5719
  %v5991 = vpack.c.b16 %v5720, %v5720
  %v5992 = vpack.c.b16 %v5721, %v5721
  %v5993 = vpack.c.b16 %v5722, %v5722
  %v5994 = vpack.c.b16 %v5723, %v5723
  %v5995 = vpack.c.b16 %v5724, %v5724
  %v5996 = vpack.c.b16 %v5725, %v5725
  %v5997 = vpack.c.b16 %v5726, %v5726
  %v5998 = vpack.c.b16 %v5727, %v5727
  %v5999 = vpack.c.b16 %v5728, %v5728
  %v6000 = vpack.c.b16 %v5729, %v5729
  %v6001 = vpack.c.b16 %v5730, %v5730
  %v6002 = vpack.c.b16 %v5731, %v5731
  %v6003 = vpack.c.b16 %v5732, %v5732
  %v6004 = vpack.c.b16 %v5733, %v5733
  %v6005 = vpack.c.b16 %v5734, %v5734
  %v6006 = vpack.c.b16 %v5735, %v5735
  %v6007 = vpack.c.b16 %v5736, %v5736
  %v6008 = vpack.c.b16 %v5737, %v5737
  %v6009 = vpack.c.b16 %v5738, %v5738
  %v6010 = vpack.c.b16 %v5739, %v5739
  %v6011 = vpack.c.b16 %v5740, %v5740
  %v6012 = vpack.c.b16 %v5741, %v5741
  %v6013 = vpack.c.b16 %v5742, %v5742
  %v6014 = vpack.c.b16 %v5743, %v5743
  %v6015 = vpack.c.b16 %v5744, %v5744
  %v6016 = vpack.c.b16 %v5745, %v5745
  %v6017 = vpack.c.b16 %v5746, %v5746
  %v6018 = vpack.c.b16 %v5747, %v5747
  %v6019 = vpack.c.b16 %v5748, %v5748
  %v6020 = vpack.c.b16 %v5749, %v5749
  %v6021 = vpack.c.b16 %v5750, %v5750
  %v6022 = vpack.c.b16 %v5751, %v5751
  %v6023 = vpack.c.b16 %v5752, %v5752
  %v6024 = vpack.c.b16 %v5753, %v5753
  %v6025 = vpack.c.b16 %v5754, %v5754
  %v6026 = vpack.c.b16 %v5755, %v5755
  %v6027 = vpack.c.b16 %v5756, %v5756
  %v6028 = vpack.c.b16 %v5757, %v5757
  %v6029 = vpack.c.b16 %v5758, %v5758
  %v6030 = vpack.c.b16 %v5759, %v5759
  %v6031 = vpack.c.b16 %v5760, %v5760
  %v6032 = vpack.c.b16 %v5761, %v5761
  %v6033 = vpack.c.b16 %v5762, %v5762
  %v6034 = vpack.c.b16 %v5763, %v5763
  %v6035 = vpack.c.b16 %v5764, %v5764
  %v6036 = vpack.c.b16 %v5765, %v5765
  %v6037 = vpack.c.b16 %v5766, %v5766
  %v6038 = vpack.c.b16 %v5767, %v5767
  %v6039 = vpack.c.b16 %v5768, %v5768
  %v6040 = vpack.c.b16 %v5769, %v5769
  %v6041 = vpack.c.b16 %v5770, %v5770
  %v6042 = vpack.c.b16 %v5771, %v5771
  %v6043 = vpack.c.b16 %v5772, %v5772
  %v6044 = vpack.c.b16 %v5773, %v5773
  %v6045 = vpack.c.b16 %v5774, %v5774
  %v6046 = vpack.c.b16 %v5775, %v5775
  %v6047 = vpack.c.b16 %v5776, %v5776
  %v6048 = vpack.c.b16 %v5777, %v5777
  %v6049 = vpack.c.b16 %v5778, %v5778
  %v6050 = vpack.c.b16 %v5779, %v5779
  %v6051 = vpack.c.b16 %v5780, %v5780
  %v6052 = vpack.c.b16 %v5781, %v5781
  %v6053 = vpack.c.b16 %v5782, %v5782
  %v6054 = vpack.c.b16 %v5783, %v5783
  %v6055 = vpack.c.b16 %v5784, %v5784
  %v6056 = vpack.c.b16 %v5785, %v5785
  %v6057 = vpack.c.b16 %v5786, %v5786
  %v6058 = vpack.c.b16 %v5787, %v5787
  %v6059 = vpack.c.b16 %v5788, %v5788
  %v6060 = vpack.c.b16 %v5789, %v5789
  %v6061 = vpack.c.b16 %v5790, %v5790
  %v6062 = vpack.c.b16 %v5791, %v5791
  %v6063 = vpack.c.b16 %v5792, %v5792
  %v6064 = vpack.c.b16 %v5793, %v5793
  %v6065 = vpack.c.b16 %v5794, %v5794
  %v6066 = vpack.c.b16 %v5795, %v5795
  %v6067 = vpack.c.b16 %v5796, %v5796
  %v6068 = vpack.c.b16 %v5797, %v5797
  %v6069 = vpack.c.b16 %v5798, %v5798
  %v6070 = vpack.c.b16 %v5799, %v5799
  %v6071 = vpack.c.b16 %v5800, %v5800
  %v6072 = vpack.c.b16 %v5801, %v5801
  %v6073 = vpack.c.b16 %v5802, %v5802
  %v6074 = vpack.c.b16 %v5803, %v5803
  %v6075 = vpack.c.b16 %v5804, %v5804
  %v6076 = vpack.c.b16 %v5805, %v5805
  %v6077 = vpack.c.b16 %v5806, %v5806
  %v6078 = vpack.c.b16 %v5807, %v5807
  %v6079 = vpack.c.b16 %v5808, %v5808
  %v6080 = vpack.c.b16 %v5809, %v5809
  %v6081 = vpack.c.b16 %v5810, %v5810
  %v6082 = vpack.c.b16 %v5811, %v5811
  %v6083 = vpack.c.b16 %v5812, %v5812
  %v6084 = vpack.c.b16 %v5813, %v5813
  %v6085 = vpack.c.b16 %v5814, %v5814
  %v6086 = vpack.c.b16 %v5815, %v5815
  %v6087 = vpack.c.b16 %v5816, %v5816
  %v6088 = vpack.c.b16 %v5817, %v5817
  %v6089 = vpack.c.b16 %v5818, %v5818
  %v6090 = vpack.c.b16 %v5819, %v5819
  %v6091 = vpack.c.b16 %v5820, %v5820
  %v6092 = vpack.c.b16 %v5821, %v5821
  %v6093 = vpack.c.b16 %v5822, %v5822
  %v6094 = vpack.c.b16 %v5823, %v5823
  %v6095 = vpack.c.b16 %v5824, %v5824
  %v6096 = vpack.c.b16 %v5825, %v5825
  %v6097 = vpack.c.b16 %v5826, %v5826
  %v6098 = vpack.c.b16 %v5827, %v5827
  %v6099 = vpack.c.b16 %v5828, %v5828
  %v6100 = vpack.c.b16 %v5829, %v5829
  %v6101 = vpack.c.b16 %v5830, %v5830
  %v6102 = vpack.c.b16 %v5831, %v5831
  %v6103 = vpack.c.b16 %v5832, %v5832
  %v6104 = vpack.c.b16 %v5833, %v5833
  %v6105 = vpack.c.b16 %v5834, %v5834
  %v6106 = vpack.c.b16 %v5835, %v5835
  %v6107 = vpack.c.b16 %v5836, %v5836
  %v6108 = vpack.c.b16 %v5837, %v5837
  %v6109 = vpack.c.b16 %v5838, %v5838
  %v6110 = vpack.c.b16 %v5839, %v5839
  %v6111 = vpack.c.b16 %v5840, %v5840
  %v6112 = vpack.c.b16 %v5841, %v5841
  %v6113 = vpack.c.b16 %v5842, %v5842
  %v6114 = vpack.c.b16 %v5843, %v5843
  %v6115 = vpack.c.b16 %v5844, %v5844
  %v6116 = vpack.c.b16 %v5845, %v5845
  %v6117 = vpack.c.b16 %v5846, %v5846
  %v6118 = vpack.c.b16 %v5847, %v5847
  %v6119 = vpack.c.b16 %v5848, %v5848
  %v6120 = vpack.c.b16 %v5849, %v5849
  %v6121 = vpack.c.b16 %v5850, %v5850
  %v6122 = vpack.c.b16 %v5851, %v5851
  %v6123 = vpack.c.b16 %v5852, %v5852
  %v6124 = vpack.c.b16 %v5853, %v5853
  %v6125 = vpack.c.b16 %v5854, %v5854
  %v6126 = vpack.c.b16 %v5855, %v5855
  %v6127 = vpack.c.b16 %v5856, %v5856
  %v6128 = vpack.c.b16 %v5857, %v5857
  %v6129 = vpack.c.b16 %v5858, %v5858
  %v6130 = vpack.c.b16 %v5859, %v5859
  %v6131 = vpack.c.b16 %v5860, %v5860
  %v6132 = vpack.c.b16 %v5861, %v5861
  %v6133 = vpack.c.b16 %v5862, %v5862
  %v6134 = vpack.c.b16 %v5863, %v5863
  %v6135 = vpack.c.b16 %v5864, %v5864
  %v6136 = vpack.c.b16 %v5865, %v5865
  %v6137 = vpack.c.b16 %v5866, %v5866
  %v6138 = vpack.c.b16 %v5867, %v5867
  %v6139 = vpack.c.b16 %v5868, %v5868
  %v6140 = vpack.c.b16 %v5869, %v5869
  %v6141 = vpack.c.b16 %v5870, %v5870
  %v6142 = vpack.c.b16 %v5871, %v5871
  %v6143 = vpack.c.b16 %v5872, %v5872
  %v6144 = vpack.c.b16 %v5873, %v5873
  %v6145 = vpack.c.b16 %v5874, %v5874
  %v6146 = vpack.c.b16 %v5875, %v5875
  %v6147 = vpack.c.b16 %v5876, %v5876
  %v6148 = vpack.c.b16 %v5877, %v5877
  %v6149 = vpack.c.b16 %v5878, %v5878
  %v6150 = vpack.c.b16 %v5879, %v5879
  %v6151 = vpack.c.b16 %v5880, %v5880
  %v6152 = vpack.c.b16 %v5881, %v5881
  %v6153 = vpack.c.b16 %v5882, %v5882
  %v6154 = vpack.c.b16 %v5883, %v5883
  %v6155 = vpack.c.b16 %v5884, %v5884
  %v6156 = vpack.c.b16 %v5885, %v5885
  %v6157 = vpack.c.b16 %v5886, %v5886
  %v6158 = vpack.c.b16 %v5887, %v5887
  %v6159 = vpack.c.b16 %v5888, %v5888
  %v6160 = vpack.c.b16 %v5889, %v5889
  %v6161 = vpack.c.b16 %v5890, %v5890
  %v6162 = vpack.c.b16 %v5891, %v5891
  %v6163 = vpack.c.b16 %v5892, %v5892
  %v6164 = vpack.c.b16 %v5893, %v5893
  %v6165 = vpack.c.b16 %v5894, %v5894
  %v6166 = vpack.c.b16 %v5895, %v5895
  %v6167 = vpack.c.b16 %v5896, %v5896
  %v6168 = vpack.c.b16 %v5897, %v5897
  %v6169 = vpack.c.b16 %v5898, %v5898
  %v6170 = vpack.c.b16 %v5899, %v5899
  %v6171 = vpack.c.b16 %v5900, %v5900
  %v6172 = vpack.c.b16 %v5901, %v5901
  %v6173 = vpack.c.b16 %v5902, %v5902
  %v6174 = vpack.c.b16 %v5903, %v5903
  %v6175 = vpack.c.b16 %v5904, %v5904
  %v6176 = vpack.c.b16 %v5905, %v5905
  %v6177 = vpack.c.b16 %v5906, %v5906
  %v6178 = vpack.c.b16 %v5907, %v5907
  %v6179 = vpack.c.b16 %v5908, %v5908
  %v6180 = vpack.c.b16 %v5909, %v5909
  %v6181 = vpack.c.b16 %v5910, %v5910
  %6453 = vst [vmem:[%s4] sm:$0xf] %v5911
  %6454 = vst [vmem:[%s4 + $0x4] sm:$0xf] %v5912
  %6455 = vst [vmem:[%s4 + $0x8] sm:$0xf] %v5913
  %6456 = vst [vmem:[%s4 + $0xc] sm:$0xf] %v5914
  %6457 = vst [vmem:[%s4 + $0x10] sm:$0xf] %v5915
  %6458 = vst [vmem:[%s4 + $0x14] sm:$0xf] %v5916
  %6459 = vst [vmem:[%s4 + $0x18] sm:$0xf] %v5917
  %6460 = vst [vmem:[%s4 + $0x1c] sm:$0xf] %v5918
  %6461 = vst [vmem:[%s4 + $0x20] sm:$0xf] %v5919
  %6462 = vst [vmem:[%s4 + $0x24] sm:$0xf] %v5920
  %6463 = vst [vmem:[%s4 + $0x28] sm:$0xf] %v5921
  %6464 = vst [vmem:[%s4 + $0x2c] sm:$0xf] %v5922
  %6465 = vst [vmem:[%s4 + $0x30] sm:$0xf] %v5923
  %6466 = vst [vmem:[%s4 + $0x34] sm:$0xf] %v5924
  %6467 = vst [vmem:[%s4 + $0x38] sm:$0xf] %v5925
  %6468 = vst [vmem:[%s4 + $0x3c] sm:$0xf] %v5926
  %6469 = vst [vmem:[%s4 + $0x40] sm:$0xf] %v5927
  %6470 = vst [vmem:[%s4 + $0x44] sm:$0xf] %v5928
  %6471 = vst [vmem:[%s4 + $0x48] sm:$0xf] %v5929
  %6472 = vst [vmem:[%s4 + $0x4c] sm:$0xf] %v5930
  %6473 = vst [vmem:[%s4 + $0x50] sm:$0xf] %v5931
  %6474 = vst [vmem:[%s4 + $0x54] sm:$0xf] %v5932
  %6475 = vst [vmem:[%s4 + $0x58] sm:$0xf] %v5933
  %6476 = vst [vmem:[%s4 + $0x5c] sm:$0xf] %v5934
  %6477 = vst [vmem:[%s4 + $0x60] sm:$0xf] %v5935
  %6478 = vst [vmem:[%s4 + $0x64] sm:$0xf] %v5936
  %6479 = vst [vmem:[%s4 + $0x68] sm:$0xf] %v5937
  %6480 = vst [vmem:[%s4 + $0x6c] sm:$0xf] %v5938
  %6481 = vst [vmem:[%s4 + $0x70] sm:$0xf] %v5939
  %6482 = vst [vmem:[%s4 + $0x74] sm:$0xf] %v5940
  %6483 = vst [vmem:[%s4 + $0x78] sm:$0xf] %v5941
  %6484 = vst [vmem:[%s4 + $0x7c] sm:$0xf] %v5942
  %6485 = vst [vmem:[%s4 + $0x80] sm:$0xf] %v5943
  %6486 = vst [vmem:[%s4 + $0x84] sm:$0xf] %v5944
  %6487 = vst [vmem:[%s4 + $0x88] sm:$0xf] %v5945
  %6488 = vst [vmem:[%s4 + $0x8c] sm:$0xf] %v5946
  %6489 = vst [vmem:[%s4 + $0x90] sm:$0xf] %v5947
  %6490 = vst [vmem:[%s4 + $0x94] sm:$0xf] %v5948
  %6491 = vst [vmem:[%s4 + $0x98] sm:$0xf] %v5949
  %6492 = vst [vmem:[%s4 + $0x9c] sm:$0xf] %v5950
  %6493 = vst [vmem:[%s4 + $0xa0] sm:$0xf] %v5951
  %6494 = vst [vmem:[%s4 + $0xa4] sm:$0xf] %v5952
  %6495 = vst [vmem:[%s4 + $0xa8] sm:$0xf] %v5953
  %6496 = vst [vmem:[%s4 + $0xac] sm:$0xf] %v5954
  %6497 = vst [vmem:[%s4 + $0xb0] sm:$0xf] %v5955
  %6498 = vst [vmem:[%s4 + $0xb4] sm:$0xf] %v5956
  %6499 = vst [vmem:[%s4 + $0xb8] sm:$0xf] %v5957
  %6500 = vst [vmem:[%s4 + $0xbc] sm:$0xf] %v5958
  %6501 = vst [vmem:[%s4 + $0xc0] sm:$0xf] %v5959
  %6502 = vst [vmem:[%s4 + $0xc4] sm:$0xf] %v5960
  %6503 = vst [vmem:[%s4 + $0xc8] sm:$0xf] %v5961
  %6504 = vst [vmem:[%s4 + $0xcc] sm:$0xf] %v5962
  %6505 = vst [vmem:[%s4 + $0xd0] sm:$0xf] %v5963
  %6506 = vst [vmem:[%s4 + $0xd4] sm:$0xf] %v5964
  %6507 = vst [vmem:[%s4 + $0xd8] sm:$0xf] %v5965
  %6508 = vst [vmem:[%s4 + $0xdc] sm:$0xf] %v5966
  %6509 = vst [vmem:[%s4 + $0xe0] sm:$0xf] %v5967
  %6510 = vst [vmem:[%s4 + $0xe4] sm:$0xf] %v5968
  %6511 = vst [vmem:[%s4 + $0xe8] sm:$0xf] %v5969
  %6512 = vst [vmem:[%s4 + $0xec] sm:$0xf] %v5970
  %6513 = vst [vmem:[%s4 + $0xf0] sm:$0xf] %v5971
  %6514 = vst [vmem:[%s4 + $0xf4] sm:$0xf] %v5972
  %6515 = vst [vmem:[%s4 + $0xf8] sm:$0xf] %v5973
  %6516 = vst [vmem:[%s4 + $0xfc] sm:$0xf] %v5974
  %6517 = vst [vmem:[%s4 + $0x100] sm:$0xf] %v5975
  %6518 = vst [vmem:[%s4 + $0x104] sm:$0xf] %v5976
  %6519 = vst [vmem:[%s4 + $0x108] sm:$0xf] %v5977
  %6520 = vst [vmem:[%s4 + $0x10c] sm:$0xf] %v5978
  %6521 = vst [vmem:[%s4 + $0x110] sm:$0xf] %v5979
  %6522 = vst [vmem:[%s4 + $0x114] sm:$0xf] %v5980
  %6523 = vst [vmem:[%s4 + $0x118] sm:$0xf] %v5981
  %6524 = vst [vmem:[%s4 + $0x11c] sm:$0xf] %v5982
  %6525 = vst [vmem:[%s4 + $0x120] sm:$0xf] %v5983
  %6526 = vst [vmem:[%s4 + $0x124] sm:$0xf] %v5984
  %6527 = vst [vmem:[%s4 + $0x128] sm:$0xf] %v5985
  %6528 = vst [vmem:[%s4 + $0x12c] sm:$0xf] %v5986
  %6529 = vst [vmem:[%s4 + $0x130] sm:$0xf] %v5987
  %6530 = vst [vmem:[%s4 + $0x134] sm:$0xf] %v5988
  %6531 = vst [vmem:[%s4 + $0x138] sm:$0xf] %v5989
  %6532 = vst [vmem:[%s4 + $0x13c] sm:$0xf] %v5990
  %6533 = vst [vmem:[%s4 + $0x140] sm:$0xf] %v5991
  %6534 = vst [vmem:[%s4 + $0x144] sm:$0xf] %v5992
  %6535 = vst [vmem:[%s4 + $0x148] sm:$0xf] %v5993
  %6536 = vst [vmem:[%s4 + $0x14c] sm:$0xf] %v5994
  %6537 = vst [vmem:[%s4 + $0x150] sm:$0xf] %v5995
  %6538 = vst [vmem:[%s4 + $0x154] sm:$0xf] %v5996
  %6539 = vst [vmem:[%s4 + $0x158] sm:$0xf] %v5997
  %6540 = vst [vmem:[%s4 + $0x15c] sm:$0xf] %v5998
  %6541 = vst [vmem:[%s4 + $0x160] sm:$0xf] %v5999
  %6542 = vst [vmem:[%s4 + $0x164] sm:$0xf] %v6000
  %6543 = vst [vmem:[%s4 + $0x168] sm:$0xf] %v6001
  %6544 = vst [vmem:[%s4 + $0x16c] sm:$0xf] %v6002
  %6545 = vst [vmem:[%s4 + $0x170] sm:$0xf] %v6003
  %6546 = vst [vmem:[%s4 + $0x174] sm:$0xf] %v6004
  %6547 = vst [vmem:[%s4 + $0x178] sm:$0xf] %v6005
  %6548 = vst [vmem:[%s4 + $0x17c] sm:$0xf] %v6006
  %6549 = vst [vmem:[%s4 + $0x180] sm:$0xf] %v6007
  %6550 = vst [vmem:[%s4 + $0x184] sm:$0xf] %v6008
  %6551 = vst [vmem:[%s4 + $0x188] sm:$0xf] %v6009
  %6552 = vst [vmem:[%s4 + $0x18c] sm:$0xf] %v6010
  %6553 = vst [vmem:[%s4 + $0x190] sm:$0xf] %v6011
  %6554 = vst [vmem:[%s4 + $0x194] sm:$0xf] %v6012
  %6555 = vst [vmem:[%s4 + $0x198] sm:$0xf] %v6013
  %6556 = vst [vmem:[%s4 + $0x19c] sm:$0xf] %v6014
  %6557 = vst [vmem:[%s4 + $0x1a0] sm:$0xf] %v6015
  %6558 = vst [vmem:[%s4 + $0x1a4] sm:$0xf] %v6016
  %6559 = vst [vmem:[%s4 + $0x1a8] sm:$0xf] %v6017
  %6560 = vst [vmem:[%s4 + $0x1ac] sm:$0xf] %v6018
  %6561 = vst [vmem:[%s4 + $0x1b0] sm:$0xf] %v6019
  %6562 = vst [vmem:[%s4 + $0x1b4] sm:$0xf] %v6020
  %6563 = vst [vmem:[%s4 + $0x1b8] sm:$0xf] %v6021
  %6564 = vst [vmem:[%s4 + $0x1bc] sm:$0xf] %v6022
  %6565 = vst [vmem:[%s4 + $0x1c0] sm:$0xf] %v6023
  %6566 = vst [vmem:[%s4 + $0x1c4] sm:$0xf] %v6024
  %6567 = vst [vmem:[%s4 + $0x1c8] sm:$0xf] %v6025
  %6568 = vst [vmem:[%s4 + $0x1cc] sm:$0xf] %v6026
  %6569 = vst [vmem:[%s4 + $0x1d0] sm:$0xf] %v6027
  %6570 = vst [vmem:[%s4 + $0x1d4] sm:$0xf] %v6028
  %6571 = vst [vmem:[%s4 + $0x1d8] sm:$0xf] %v6029
  %6572 = vst [vmem:[%s4 + $0x1dc] sm:$0xf] %v6030
  %6573 = vst [vmem:[%s4 + $0x1e0] sm:$0xf] %v6031
  %6574 = vst [vmem:[%s4 + $0x1e4] sm:$0xf] %v6032
  %6575 = vst [vmem:[%s4 + $0x1e8] sm:$0xf] %v6033
  %6576 = vst [vmem:[%s4 + $0x1ec] sm:$0xf] %v6034
  %6577 = vst [vmem:[%s4 + $0x1f0] sm:$0xf] %v6035
  %6578 = vst [vmem:[%s4 + $0x1f4] sm:$0xf] %v6036
  %6579 = vst [vmem:[%s4 + $0x1f8] sm:$0xf] %v6037
  %6580 = vst [vmem:[%s4 + $0x1fc] sm:$0xf] %v6038
  %6581 = vst [vmem:[%s4 + $0x200] sm:$0xf] %v6039
  %6582 = vst [vmem:[%s4 + $0x204] sm:$0xf] %v6040
  %6583 = vst [vmem:[%s4 + $0x208] sm:$0xf] %v6041
  %6584 = vst [vmem:[%s4 + $0x20c] sm:$0xf] %v6042
  %6585 = vst [vmem:[%s4 + $0x210] sm:$0xf] %v6043
  %6586 = vst [vmem:[%s4 + $0x214] sm:$0xf] %v6044
  %6587 = vst [vmem:[%s4 + $0x218] sm:$0xf] %v6045
  %6588 = vst [vmem:[%s4 + $0x21c] sm:$0xf] %v6046
  %6589 = vst [vmem:[%s4 + $0x220] sm:$0xf] %v6047
  %6590 = vst [vmem:[%s4 + $0x224] sm:$0xf] %v6048
  %6591 = vst [vmem:[%s4 + $0x228] sm:$0xf] %v6049
  %6592 = vst [vmem:[%s4 + $0x22c] sm:$0xf] %v6050
  %6593 = vst [vmem:[%s4 + $0x230] sm:$0xf] %v6051
  %6594 = vst [vmem:[%s4 + $0x234] sm:$0xf] %v6052
  %6595 = vst [vmem:[%s4 + $0x238] sm:$0xf] %v6053
  %6596 = vst [vmem:[%s4 + $0x23c] sm:$0xf] %v6054
  %6597 = vst [vmem:[%s4 + $0x240] sm:$0xf] %v6055
  %6598 = vst [vmem:[%s4 + $0x244] sm:$0xf] %v6056
  %6599 = vst [vmem:[%s4 + $0x248] sm:$0xf] %v6057
  %6600 = vst [vmem:[%s4 + $0x24c] sm:$0xf] %v6058
  %6601 = vst [vmem:[%s4 + $0x250] sm:$0xf] %v6059
  %6602 = vst [vmem:[%s4 + $0x254] sm:$0xf] %v6060
  %6603 = vst [vmem:[%s4 + $0x258] sm:$0xf] %v6061
  %6604 = vst [vmem:[%s4 + $0x25c] sm:$0xf] %v6062
  %6605 = vst [vmem:[%s4 + $0x260] sm:$0xf] %v6063
  %6606 = vst [vmem:[%s4 + $0x264] sm:$0xf] %v6064
  %6607 = vst [vmem:[%s4 + $0x268] sm:$0xf] %v6065
  %6608 = vst [vmem:[%s4 + $0x26c] sm:$0xf] %v6066
  %6609 = vst [vmem:[%s4 + $0x270] sm:$0xf] %v6067
  %6610 = vst [vmem:[%s4 + $0x274] sm:$0xf] %v6068
  %6611 = vst [vmem:[%s4 + $0x278] sm:$0xf] %v6069
  %6612 = vst [vmem:[%s4 + $0x27c] sm:$0xf] %v6070
  %6613 = vst [vmem:[%s4 + $0x280] sm:$0xf] %v6071
  %6614 = vst [vmem:[%s4 + $0x284] sm:$0xf] %v6072
  %6615 = vst [vmem:[%s4 + $0x288] sm:$0xf] %v6073
  %6616 = vst [vmem:[%s4 + $0x28c] sm:$0xf] %v6074
  %6617 = vst [vmem:[%s4 + $0x290] sm:$0xf] %v6075
  %6618 = vst [vmem:[%s4 + $0x294] sm:$0xf] %v6076
  %6619 = vst [vmem:[%s4 + $0x298] sm:$0xf] %v6077
  %6620 = vst [vmem:[%s4 + $0x29c] sm:$0xf] %v6078
  %6621 = vst [vmem:[%s4 + $0x2a0] sm:$0xf] %v6079
  %6622 = vst [vmem:[%s4 + $0x2a4] sm:$0xf] %v6080
  %6623 = vst [vmem:[%s4 + $0x2a8] sm:$0xf] %v6081
  %6624 = vst [vmem:[%s4 + $0x2ac] sm:$0xf] %v6082
  %6625 = vst [vmem:[%s4 + $0x2b0] sm:$0xf] %v6083
  %6626 = vst [vmem:[%s4 + $0x2b4] sm:$0xf] %v6084
  %6627 = vst [vmem:[%s4 + $0x2b8] sm:$0xf] %v6085
  %6628 = vst [vmem:[%s4 + $0x2bc] sm:$0xf] %v6086
  %6629 = vst [vmem:[%s4 + $0x2c0] sm:$0xf] %v6087
  %6630 = vst [vmem:[%s4 + $0x2c4] sm:$0xf] %v6088
  %6631 = vst [vmem:[%s4 + $0x2c8] sm:$0xf] %v6089
  %6632 = vst [vmem:[%s4 + $0x2cc] sm:$0xf] %v6090
  %6633 = vst [vmem:[%s4 + $0x2d0] sm:$0xf] %v6091
  %6634 = vst [vmem:[%s4 + $0x2d4] sm:$0xf] %v6092
  %6635 = vst [vmem:[%s4 + $0x2d8] sm:$0xf] %v6093
  %6636 = vst [vmem:[%s4 + $0x2dc] sm:$0xf] %v6094
  %6637 = vst [vmem:[%s4 + $0x2e0] sm:$0xf] %v6095
  %6638 = vst [vmem:[%s4 + $0x2e4] sm:$0xf] %v6096
  %6639 = vst [vmem:[%s4 + $0x2e8] sm:$0xf] %v6097
  %6640 = vst [vmem:[%s4 + $0x2ec] sm:$0xf] %v6098
  %6641 = vst [vmem:[%s4 + $0x2f0] sm:$0xf] %v6099
  %6642 = vst [vmem:[%s4 + $0x2f4] sm:$0xf] %v6100
  %6643 = vst [vmem:[%s4 + $0x2f8] sm:$0xf] %v6101
  %6644 = vst [vmem:[%s4 + $0x2fc] sm:$0xf] %v6102
  %6645 = vst [vmem:[%s4 + $0x300] sm:$0xf] %v6103
  %6646 = vst [vmem:[%s4 + $0x304] sm:$0xf] %v6104
  %6647 = vst [vmem:[%s4 + $0x308] sm:$0xf] %v6105
  %6648 = vst [vmem:[%s4 + $0x30c] sm:$0xf] %v6106
  %6649 = vst [vmem:[%s4 + $0x310] sm:$0xf] %v6107
  %6650 = vst [vmem:[%s4 + $0x314] sm:$0xf] %v6108
  %6651 = vst [vmem:[%s4 + $0x318] sm:$0xf] %v6109
  %6652 = vst [vmem:[%s4 + $0x31c] sm:$0xf] %v6110
  %6653 = vst [vmem:[%s4 + $0x320] sm:$0xf] %v6111
  %6654 = vst [vmem:[%s4 + $0x324] sm:$0xf] %v6112
  %6655 = vst [vmem:[%s4 + $0x328] sm:$0xf] %v6113
  %6656 = vst [vmem:[%s4 + $0x32c] sm:$0xf] %v6114
  %6657 = vst [vmem:[%s4 + $0x330] sm:$0xf] %v6115
  %6658 = vst [vmem:[%s4 + $0x334] sm:$0xf] %v6116
  %6659 = vst [vmem:[%s4 + $0x338] sm:$0xf] %v6117
  %6660 = vst [vmem:[%s4 + $0x33c] sm:$0xf] %v6118
  %6661 = vst [vmem:[%s4 + $0x340] sm:$0xf] %v6119
  %6662 = vst [vmem:[%s4 + $0x344] sm:$0xf] %v6120
  %6663 = vst [vmem:[%s4 + $0x348] sm:$0xf] %v6121
  %6664 = vst [vmem:[%s4 + $0x34c] sm:$0xf] %v6122
  %6665 = vst [vmem:[%s4 + $0x350] sm:$0xf] %v6123
  %6666 = vst [vmem:[%s4 + $0x354] sm:$0xf] %v6124
  %6667 = vst [vmem:[%s4 + $0x358] sm:$0xf] %v6125
  %6668 = vst [vmem:[%s4 + $0x35c] sm:$0xf] %v6126
  %6669 = vst [vmem:[%s4 + $0x360] sm:$0xf] %v6127
  %6670 = vst [vmem:[%s4 + $0x364] sm:$0xf] %v6128
  %6671 = vst [vmem:[%s4 + $0x368] sm:$0xf] %v6129
  %6672 = vst [vmem:[%s4 + $0x36c] sm:$0xf] %v6130
  %6673 = vst [vmem:[%s4 + $0x370] sm:$0xf] %v6131
  %6674 = vst [vmem:[%s4 + $0x374] sm:$0xf] %v6132
  %6675 = vst [vmem:[%s4 + $0x378] sm:$0xf] %v6133
  %6676 = vst [vmem:[%s4 + $0x37c] sm:$0xf] %v6134
  %6677 = vst [vmem:[%s4 + $0x380] sm:$0xf] %v6135
  %6678 = vst [vmem:[%s4 + $0x384] sm:$0xf] %v6136
  %6679 = vst [vmem:[%s4 + $0x388] sm:$0xf] %v6137
  %6680 = vst [vmem:[%s4 + $0x38c] sm:$0xf] %v6138
  %6681 = vst [vmem:[%s4 + $0x390] sm:$0xf] %v6139
  %6682 = vst [vmem:[%s4 + $0x394] sm:$0xf] %v6140
  %6683 = vst [vmem:[%s4 + $0x398] sm:$0xf] %v6141
  %6684 = vst [vmem:[%s4 + $0x39c] sm:$0xf] %v6142
  %6685 = vst [vmem:[%s4 + $0x3a0] sm:$0xf] %v6143
  %6686 = vst [vmem:[%s4 + $0x3a4] sm:$0xf] %v6144
  %6687 = vst [vmem:[%s4 + $0x3a8] sm:$0xf] %v6145
  %6688 = vst [vmem:[%s4 + $0x3ac] sm:$0xf] %v6146
  %6689 = vst [vmem:[%s4 + $0x3b0] sm:$0xf] %v6147
  %6690 = vst [vmem:[%s4 + $0x3b4] sm:$0xf] %v6148
  %6691 = vst [vmem:[%s4 + $0x3b8] sm:$0xf] %v6149
  %6692 = vst [vmem:[%s4 + $0x3bc] sm:$0xf] %v6150
  %6693 = vst [vmem:[%s4 + $0x3c0] sm:$0xf] %v6151
  %6694 = vst [vmem:[%s4 + $0x3c4] sm:$0xf] %v6152
  %6695 = vst [vmem:[%s4 + $0x3c8] sm:$0xf] %v6153
  %6696 = vst [vmem:[%s4 + $0x3cc] sm:$0xf] %v6154
  %6697 = vst [vmem:[%s4 + $0x3d0] sm:$0xf] %v6155
  %6698 = vst [vmem:[%s4 + $0x3d4] sm:$0xf] %v6156
  %6699 = vst [vmem:[%s4 + $0x3d8] sm:$0xf] %v6157
  %6700 = vst [vmem:[%s4 + $0x3dc] sm:$0xf] %v6158
  %6701 = vst [vmem:[%s4 + $0x3e0] sm:$0xf] %v6159
  %6702 = vst [vmem:[%s4 + $0x3e4] sm:$0xf] %v6160
  %6703 = vst [vmem:[%s4 + $0x3e8] sm:$0xf] %v6161
  %6704 = vst [vmem:[%s4 + $0x3ec] sm:$0xf] %v6162
  %6705 = vst [vmem:[%s4 + $0x3f0] sm:$0xf] %v6163
  %6706 = vst [vmem:[%s4 + $0x3f4] sm:$0xf] %v6164
  %6707 = vst [vmem:[%s4 + $0x3f8] sm:$0xf] %v6165
  %6708 = vst [vmem:[%s4 + $0x3fc] sm:$0xf] %v6166
  %6709 = vst [vmem:[%s4 + $0x400] sm:$0xf] %v6167
  %6710 = vst [vmem:[%s4 + $0x404] sm:$0xf] %v6168
  %6711 = vst [vmem:[%s4 + $0x408] sm:$0xf] %v6169
  %6712 = vst [vmem:[%s4 + $0x40c] sm:$0xf] %v6170
  %6713 = vst [vmem:[%s4 + $0x410] sm:$0xf] %v6171
  %6714 = vst [vmem:[%s4 + $0x414] sm:$0xf] %v6172
  %6715 = vst [vmem:[%s4 + $0x418] sm:$0xf] %v6173
  %6716 = vst [vmem:[%s4 + $0x41c] sm:$0xf] %v6174
  %6717 = vst [vmem:[%s4 + $0x420] sm:$0xf] %v6175
  %6718 = vst [vmem:[%s4 + $0x424] sm:$0xf] %v6176
  %6719 = vst [vmem:[%s4 + $0x428] sm:$0xf] %v6177
  %6720 = vst [vmem:[%s4 + $0x42c] sm:$0xf] %v6178
  %6721 = vst [vmem:[%s4 + $0x430] sm:$0xf] %v6179
  %6722 = vst [vmem:[%s4 + $0x434] sm:$0xf] %v6180
  %6723 = vst [vmem:[%s4 + $0x438] sm:$0xf] %v6181
  // Predicated region
  $region18: #{nn_forward.4} parent=0 // pred_check
    _
  $region19: #{nn_forward.4} parent=0 // pred_check_branch
    %6725 = sbr.rel (0) target = $region21
  $region20: #{nn_forward.4} parent=0 // pred_region
    _
  $region21: #{nn_forward.4} parent=0 // pred_fallthru
    _
  // Predicated region
  $region22: #{nn_forward.4} parent=0 // pred_check
    _
  $region23: #{nn_forward.4} parent=0 // pred_check_branch
    %6727 = sbr.rel (0) target = $region25
  $region24: #{nn_forward.4} parent=0 // pred_region
    _
  $region25: #{nn_forward.4} parent=0 // pred_fallthru
    _

// kernel: nn_forward.5
$region0: #{nn_forward.5}
  #allocation0 [shape = 'u32[]', space=smem, size = 0x4, offset = 0x4, fixed_abs, tag = 'smem constant byte address 0x4 - core index']
  #allocation1 [shape = 'u32[144,128]{1,0:T(1,128)}', space=vmem, size = 0x12000, scoped, tag = 'internal scratch']
  %s0 = inlined_call_operand.vmem [shape: bf16[576,256], index: 0, kind: input, shape index: {}]
  %s1 = inlined_call_operand.vmem [shape: bf16[256,128], index: 1, kind: input, shape index: {}]
  %s2 = inlined_call_operand.vmem [shape: f32[1,128], index: 2, kind: input, shape index: {}]
  %s3 = inlined_call_operand.vmem [shape: f32[1,128], index: 3, kind: input, shape index: {}]
  %s4 = inlined_call_operand.vmem [shape: bf16[576,128], index: 4, kind: output, shape index: {}]
  %s5 = sld [smem:[#allocation0]]
  $region26: #{nn_forward.5} parent=0
    _
  %s7 = ssub.s32 1, %s5
  %s8 = scalar_select 0, %s7, %s5
  // Predicated region
  $region2: #{nn_forward.5} parent=0 // pred_check
    _
  $region3: #{nn_forward.5} parent=0 // pred_check_branch
    %10 = sbr.rel (0) target = $region5
  $region4: #{nn_forward.5} parent=0 // pred_region
    _
  $region5: #{nn_forward.5} parent=0 // pred_fallthru
    _
  // Predicated region
  $region6: #{nn_forward.5} parent=0 // pred_check
    _
  $region7: #{nn_forward.5} parent=0 // pred_check_branch
    %12 = sbr.rel (0) target = $region9
  $region8: #{nn_forward.5} parent=0 // pred_region
    _
  $region9: #{nn_forward.5} parent=0 // pred_fallthru
    _
  // Predicated region
  $region10: #{nn_forward.5} parent=0 // pred_check
    _
  $region11: #{nn_forward.5} parent=0 // pred_check_branch
    %14 = sbr.rel (0) target = $region13
  $region12: #{nn_forward.5} parent=0 // pred_region
    _
  $region13: #{nn_forward.5} parent=0 // pred_fallthru
    _
  // Predicated region
  $region14: #{nn_forward.5} parent=0 // pred_check
    _
  $region15: #{nn_forward.5} parent=0 // pred_check_branch
    %16 = sbr.rel (0) target = $region17
  $region16: #{nn_forward.5} parent=0 // pred_region
    _
  $region17: #{nn_forward.5} parent=0 // pred_fallthru
    _
  %v18 = vld [vmem:[%s0] sm:$0xff]
  %v19 = vld [vmem:[%s0 + $0x8] sm:$0xff]
  %v20 = vld [vmem:[%s0 + $0x10] sm:$0xff]
  %v21 = vld [vmem:[%s0 + $0x18] sm:$0xff]
  %v22 = vld [vmem:[%s0 + $0x20] sm:$0xff]
  %v23 = vld [vmem:[%s0 + $0x28] sm:$0xff]
  %v24 = vld [vmem:[%s0 + $0x30] sm:$0xff]
  %v25 = vld [vmem:[%s0 + $0x38] sm:$0xff]
  %v26 = vld [vmem:[%s0 + $0x40] sm:$0xff]
  %v27 = vld [vmem:[%s0 + $0x48] sm:$0xff]
  %v28 = vld [vmem:[%s0 + $0x50] sm:$0xff]
  %v29 = vld [vmem:[%s0 + $0x58] sm:$0xff]
  %v30 = vld [vmem:[%s0 + $0x60] sm:$0xff]
  %v31 = vld [vmem:[%s0 + $0x68] sm:$0xff]
  %v32 = vld [vmem:[%s0 + $0x70] sm:$0xff]
  %v33 = vld [vmem:[%s0 + $0x78] sm:$0xff]
  %v34 = vld [vmem:[%s0 + $0x80] sm:$0xff]
  %v35 = vld [vmem:[%s0 + $0x88] sm:$0xff]
  %v36 = vld [vmem:[%s0 + $0x90] sm:$0xff]
  %v37 = vld [vmem:[%s0 + $0x98] sm:$0xff]
  %v38 = vld [vmem:[%s0 + $0xa0] sm:$0xff]
  %v39 = vld [vmem:[%s0 + $0xa8] sm:$0xff]
  %v40 = vld [vmem:[%s0 + $0xb0] sm:$0xff]
  %v41 = vld [vmem:[%s0 + $0xb8] sm:$0xff]
  %v42 = vld [vmem:[%s0 + $0xc0] sm:$0xff]
  %v43 = vld [vmem:[%s0 + $0xc8] sm:$0xff]
  %v44 = vld [vmem:[%s0 + $0xd0] sm:$0xff]
  %v45 = vld [vmem:[%s0 + $0xd8] sm:$0xff]
  %v46 = vld [vmem:[%s0 + $0xe0] sm:$0xff]
  %v47 = vld [vmem:[%s0 + $0xe8] sm:$0xff]
  %v48 = vld [vmem:[%s0 + $0xf0] sm:$0xff]
  %v49 = vld [vmem:[%s0 + $0xf8] sm:$0xff]
  %v50 = vld [vmem:[%s0 + $0x100] sm:$0xff]
  %v51 = vld [vmem:[%s0 + $0x108] sm:$0xff]
  %v52 = vld [vmem:[%s0 + $0x110] sm:$0xff]
  %v53 = vld [vmem:[%s0 + $0x118] sm:$0xff]
  %v54 = vld [vmem:[%s0 + $0x120] sm:$0xff]
  %v55 = vld [vmem:[%s0 + $0x128] sm:$0xff]
  %v56 = vld [vmem:[%s0 + $0x130] sm:$0xff]
  %v57 = vld [vmem:[%s0 + $0x138] sm:$0xff]
  %v58 = vld [vmem:[%s0 + $0x140] sm:$0xff]
  %v59 = vld [vmem:[%s0 + $0x148] sm:$0xff]
  %v60 = vld [vmem:[%s0 + $0x150] sm:$0xff]
  %v61 = vld [vmem:[%s0 + $0x158] sm:$0xff]
  %v62 = vld [vmem:[%s0 + $0x160] sm:$0xff]
  %v63 = vld [vmem:[%s0 + $0x168] sm:$0xff]
  %v64 = vld [vmem:[%s0 + $0x170] sm:$0xff]
  %v65 = vld [vmem:[%s0 + $0x178] sm:$0xff]
  %v66 = vld [vmem:[%s0 + $0x180] sm:$0xff]
  %v67 = vld [vmem:[%s0 + $0x188] sm:$0xff]
  %v68 = vld [vmem:[%s0 + $0x190] sm:$0xff]
  %v69 = vld [vmem:[%s0 + $0x198] sm:$0xff]
  %v70 = vld [vmem:[%s0 + $0x1a0] sm:$0xff]
  %v71 = vld [vmem:[%s0 + $0x1a8] sm:$0xff]
  %v72 = vld [vmem:[%s0 + $0x1b0] sm:$0xff]
  %v73 = vld [vmem:[%s0 + $0x1b8] sm:$0xff]
  %v74 = vld [vmem:[%s0 + $0x1c0] sm:$0xff]
  %v75 = vld [vmem:[%s0 + $0x1c8] sm:$0xff]
  %v76 = vld [vmem:[%s0 + $0x1d0] sm:$0xff]
  %v77 = vld [vmem:[%s0 + $0x1d8] sm:$0xff]
  %v78 = vld [vmem:[%s0 + $0x1e0] sm:$0xff]
  %v79 = vld [vmem:[%s0 + $0x1e8] sm:$0xff]
  %v80 = vld [vmem:[%s0 + $0x1f0] sm:$0xff]
  %v81 = vld [vmem:[%s0 + $0x1f8] sm:$0xff]
  %v82 = vld [vmem:[%s0 + $0x200] sm:$0xff]
  %v83 = vld [vmem:[%s0 + $0x208] sm:$0xff]
  %v84 = vld [vmem:[%s0 + $0x210] sm:$0xff]
  %v85 = vld [vmem:[%s0 + $0x218] sm:$0xff]
  %v86 = vld [vmem:[%s0 + $0x220] sm:$0xff]
  %v87 = vld [vmem:[%s0 + $0x228] sm:$0xff]
  %v88 = vld [vmem:[%s0 + $0x230] sm:$0xff]
  %v89 = vld [vmem:[%s0 + $0x238] sm:$0xff]
  %v90 = vld [vmem:[%s1] sm:$0xf]
  %v91 = vld [vmem:[%s1 + $0x4] sm:$0xf]
  %v92 = vld [vmem:[%s1 + $0x8] sm:$0xf]
  %v93 = vld [vmem:[%s1 + $0xc] sm:$0xf]
  %v94 = vld [vmem:[%s1 + $0x10] sm:$0xf]
  %v95 = vld [vmem:[%s1 + $0x14] sm:$0xf]
  %v96 = vld [vmem:[%s1 + $0x18] sm:$0xf]
  %v97 = vld [vmem:[%s1 + $0x1c] sm:$0xf]
  %v98 = vld [vmem:[%s1 + $0x20] sm:$0xf]
  %v99 = vld [vmem:[%s1 + $0x24] sm:$0xf]
  %v100 = vld [vmem:[%s1 + $0x28] sm:$0xf]
  %v101 = vld [vmem:[%s1 + $0x2c] sm:$0xf]
  %v102 = vld [vmem:[%s1 + $0x30] sm:$0xf]
  %v103 = vld [vmem:[%s1 + $0x34] sm:$0xf]
  %v104 = vld [vmem:[%s1 + $0x38] sm:$0xf]
  %v105 = vld [vmem:[%s1 + $0x3c] sm:$0xf]
  %v106 = vld [vmem:[%s1 + $0x40] sm:$0xf]
  %v107 = vld [vmem:[%s1 + $0x44] sm:$0xf]
  %v108 = vld [vmem:[%s1 + $0x48] sm:$0xf]
  %v109 = vld [vmem:[%s1 + $0x4c] sm:$0xf]
  %v110 = vld [vmem:[%s1 + $0x50] sm:$0xf]
  %v111 = vld [vmem:[%s1 + $0x54] sm:$0xf]
  %v112 = vld [vmem:[%s1 + $0x58] sm:$0xf]
  %v113 = vld [vmem:[%s1 + $0x5c] sm:$0xf]
  %v114 = vld [vmem:[%s1 + $0x60] sm:$0xf]
  %v115 = vld [vmem:[%s1 + $0x64] sm:$0xf]
  %v116 = vld [vmem:[%s1 + $0x68] sm:$0xf]
  %v117 = vld [vmem:[%s1 + $0x6c] sm:$0xf]
  %v118 = vld [vmem:[%s1 + $0x70] sm:$0xf]
  %v119 = vld [vmem:[%s1 + $0x74] sm:$0xf]
  %v120 = vld [vmem:[%s1 + $0x78] sm:$0xf]
  %v121 = vld [vmem:[%s1 + $0x7c] sm:$0xf]
  %v194 = vunpack.c.l.b16 %v18
  %v195 = vunpack.c.h.b16 %v18
  %v196 = vunpack.c.l.b16 %v19
  %v197 = vunpack.c.h.b16 %v19
  %v198 = vunpack.c.l.b16 %v20
  %v199 = vunpack.c.h.b16 %v20
  %v200 = vunpack.c.l.b16 %v21
  %v201 = vunpack.c.h.b16 %v21
  %v202 = vunpack.c.l.b16 %v22
  %v203 = vunpack.c.h.b16 %v22
  %v204 = vunpack.c.l.b16 %v23
  %v205 = vunpack.c.h.b16 %v23
  %v206 = vunpack.c.l.b16 %v24
  %v207 = vunpack.c.h.b16 %v24
  %v208 = vunpack.c.l.b16 %v25
  %v209 = vunpack.c.h.b16 %v25
  %v210 = vunpack.c.l.b16 %v26
  %v211 = vunpack.c.h.b16 %v26
  %v212 = vunpack.c.l.b16 %v27
  %v213 = vunpack.c.h.b16 %v27
  %v214 = vunpack.c.l.b16 %v28
  %v215 = vunpack.c.h.b16 %v28
  %v216 = vunpack.c.l.b16 %v29
  %v217 = vunpack.c.h.b16 %v29
  %v218 = vunpack.c.l.b16 %v30
  %v219 = vunpack.c.h.b16 %v30
  %v220 = vunpack.c.l.b16 %v31
  %v221 = vunpack.c.h.b16 %v31
  %v222 = vunpack.c.l.b16 %v32
  %v223 = vunpack.c.h.b16 %v32
  %v224 = vunpack.c.l.b16 %v33
  %v225 = vunpack.c.h.b16 %v33
  %v226 = vunpack.c.l.b16 %v34
  %v227 = vunpack.c.h.b16 %v34
  %v228 = vunpack.c.l.b16 %v35
  %v229 = vunpack.c.h.b16 %v35
  %v230 = vunpack.c.l.b16 %v36
  %v231 = vunpack.c.h.b16 %v36
  %v232 = vunpack.c.l.b16 %v37
  %v233 = vunpack.c.h.b16 %v37
  %v234 = vunpack.c.l.b16 %v38
  %v235 = vunpack.c.h.b16 %v38
  %v236 = vunpack.c.l.b16 %v39
  %v237 = vunpack.c.h.b16 %v39
  %v238 = vunpack.c.l.b16 %v40
  %v239 = vunpack.c.h.b16 %v40
  %v240 = vunpack.c.l.b16 %v41
  %v241 = vunpack.c.h.b16 %v41
  %v242 = vunpack.c.l.b16 %v42
  %v243 = vunpack.c.h.b16 %v42
  %v244 = vunpack.c.l.b16 %v43
  %v245 = vunpack.c.h.b16 %v43
  %v246 = vunpack.c.l.b16 %v44
  %v247 = vunpack.c.h.b16 %v44
  %v248 = vunpack.c.l.b16 %v45
  %v249 = vunpack.c.h.b16 %v45
  %v250 = vunpack.c.l.b16 %v46
  %v251 = vunpack.c.h.b16 %v46
  %v252 = vunpack.c.l.b16 %v47
  %v253 = vunpack.c.h.b16 %v47
  %v254 = vunpack.c.l.b16 %v48
  %v255 = vunpack.c.h.b16 %v48
  %v256 = vunpack.c.l.b16 %v49
  %v257 = vunpack.c.h.b16 %v49
  %v258 = vunpack.c.l.b16 %v50
  %v259 = vunpack.c.h.b16 %v50
  %v260 = vunpack.c.l.b16 %v51
  %v261 = vunpack.c.h.b16 %v51
  %v262 = vunpack.c.l.b16 %v52
  %v263 = vunpack.c.h.b16 %v52
  %v264 = vunpack.c.l.b16 %v53
  %v265 = vunpack.c.h.b16 %v53
  %v266 = vunpack.c.l.b16 %v54
  %v267 = vunpack.c.h.b16 %v54
  %v268 = vunpack.c.l.b16 %v55
  %v269 = vunpack.c.h.b16 %v55
  %v270 = vunpack.c.l.b16 %v56
  %v271 = vunpack.c.h.b16 %v56
  %v272 = vunpack.c.l.b16 %v57
  %v273 = vunpack.c.h.b16 %v57
  %v274 = vunpack.c.l.b16 %v58
  %v275 = vunpack.c.h.b16 %v58
  %v276 = vunpack.c.l.b16 %v59
  %v277 = vunpack.c.h.b16 %v59
  %v278 = vunpack.c.l.b16 %v60
  %v279 = vunpack.c.h.b16 %v60
  %v280 = vunpack.c.l.b16 %v61
  %v281 = vunpack.c.h.b16 %v61
  %v282 = vunpack.c.l.b16 %v62
  %v283 = vunpack.c.h.b16 %v62
  %v284 = vunpack.c.l.b16 %v63
  %v285 = vunpack.c.h.b16 %v63
  %v286 = vunpack.c.l.b16 %v64
  %v287 = vunpack.c.h.b16 %v64
  %v288 = vunpack.c.l.b16 %v65
  %v289 = vunpack.c.h.b16 %v65
  %v290 = vunpack.c.l.b16 %v66
  %v291 = vunpack.c.h.b16 %v66
  %v292 = vunpack.c.l.b16 %v67
  %v293 = vunpack.c.h.b16 %v67
  %v294 = vunpack.c.l.b16 %v68
  %v295 = vunpack.c.h.b16 %v68
  %v296 = vunpack.c.l.b16 %v69
  %v297 = vunpack.c.h.b16 %v69
  %v298 = vunpack.c.l.b16 %v70
  %v299 = vunpack.c.h.b16 %v70
  %v300 = vunpack.c.l.b16 %v71
  %v301 = vunpack.c.h.b16 %v71
  %v302 = vunpack.c.l.b16 %v72
  %v303 = vunpack.c.h.b16 %v72
  %v304 = vunpack.c.l.b16 %v73
  %v305 = vunpack.c.h.b16 %v73
  %v306 = vunpack.c.l.b16 %v74
  %v307 = vunpack.c.h.b16 %v74
  %v308 = vunpack.c.l.b16 %v75
  %v309 = vunpack.c.h.b16 %v75
  %v310 = vunpack.c.l.b16 %v76
  %v311 = vunpack.c.h.b16 %v76
  %v312 = vunpack.c.l.b16 %v77
  %v313 = vunpack.c.h.b16 %v77
  %v314 = vunpack.c.l.b16 %v78
  %v315 = vunpack.c.h.b16 %v78
  %v316 = vunpack.c.l.b16 %v79
  %v317 = vunpack.c.h.b16 %v79
  %v318 = vunpack.c.l.b16 %v80
  %v319 = vunpack.c.h.b16 %v80
  %v320 = vunpack.c.l.b16 %v81
  %v321 = vunpack.c.h.b16 %v81
  %v322 = vunpack.c.l.b16 %v82
  %v323 = vunpack.c.h.b16 %v82
  %v324 = vunpack.c.l.b16 %v83
  %v325 = vunpack.c.h.b16 %v83
  %v326 = vunpack.c.l.b16 %v84
  %v327 = vunpack.c.h.b16 %v84
  %v328 = vunpack.c.l.b16 %v85
  %v329 = vunpack.c.h.b16 %v85
  %v330 = vunpack.c.l.b16 %v86
  %v331 = vunpack.c.h.b16 %v86
  %v332 = vunpack.c.l.b16 %v87
  %v333 = vunpack.c.h.b16 %v87
  %v334 = vunpack.c.l.b16 %v88
  %v335 = vunpack.c.h.b16 %v88
  %v336 = vunpack.c.l.b16 %v89
  %v337 = vunpack.c.h.b16 %v89
  %v338 = vpack.c.b16 %v196, %v194
  %v339 = vpack.c.b16 %v197, %v195
  %v340 = vpack.c.b16 %v200, %v198
  %v341 = vpack.c.b16 %v201, %v199
  %v342 = vpack.c.b16 %v204, %v202
  %v343 = vpack.c.b16 %v205, %v203
  %v344 = vpack.c.b16 %v208, %v206
  %v345 = vpack.c.b16 %v209, %v207
  %v346 = vpack.c.b16 %v212, %v210
  %v347 = vpack.c.b16 %v213, %v211
  %v348 = vpack.c.b16 %v216, %v214
  %v349 = vpack.c.b16 %v217, %v215
  %v350 = vpack.c.b16 %v220, %v218
  %v351 = vpack.c.b16 %v221, %v219
  %v352 = vpack.c.b16 %v224, %v222
  %v353 = vpack.c.b16 %v225, %v223
  %v354 = vpack.c.b16 %v228, %v226
  %v355 = vpack.c.b16 %v229, %v227
  %v356 = vpack.c.b16 %v232, %v230
  %v357 = vpack.c.b16 %v233, %v231
  %v358 = vpack.c.b16 %v236, %v234
  %v359 = vpack.c.b16 %v237, %v235
  %v360 = vpack.c.b16 %v240, %v238
  %v361 = vpack.c.b16 %v241, %v239
  %v362 = vpack.c.b16 %v244, %v242
  %v363 = vpack.c.b16 %v245, %v243
  %v364 = vpack.c.b16 %v248, %v246
  %v365 = vpack.c.b16 %v249, %v247
  %v366 = vpack.c.b16 %v252, %v250
  %v367 = vpack.c.b16 %v253, %v251
  %v368 = vpack.c.b16 %v256, %v254
  %v369 = vpack.c.b16 %v257, %v255
  %v370 = vpack.c.b16 %v260, %v258
  %v371 = vpack.c.b16 %v261, %v259
  %v372 = vpack.c.b16 %v264, %v262
  %v373 = vpack.c.b16 %v265, %v263
  %v374 = vpack.c.b16 %v268, %v266
  %v375 = vpack.c.b16 %v269, %v267
  %v376 = vpack.c.b16 %v272, %v270
  %v377 = vpack.c.b16 %v273, %v271
  %v378 = vpack.c.b16 %v276, %v274
  %v379 = vpack.c.b16 %v277, %v275
  %v380 = vpack.c.b16 %v280, %v278
  %v381 = vpack.c.b16 %v281, %v279
  %v382 = vpack.c.b16 %v284, %v282
  %v383 = vpack.c.b16 %v285, %v283
  %v384 = vpack.c.b16 %v288, %v286
  %v385 = vpack.c.b16 %v289, %v287
  %v386 = vpack.c.b16 %v292, %v290
  %v387 = vpack.c.b16 %v293, %v291
  %v388 = vpack.c.b16 %v296, %v294
  %v389 = vpack.c.b16 %v297, %v295
  %v390 = vpack.c.b16 %v300, %v298
  %v391 = vpack.c.b16 %v301, %v299
  %v392 = vpack.c.b16 %v304, %v302
  %v393 = vpack.c.b16 %v305, %v303
  %v394 = vpack.c.b16 %v308, %v306
  %v395 = vpack.c.b16 %v309, %v307
  %v396 = vpack.c.b16 %v312, %v310
  %v397 = vpack.c.b16 %v313, %v311
  %v398 = vpack.c.b16 %v316, %v314
  %v399 = vpack.c.b16 %v317, %v315
  %v400 = vpack.c.b16 %v320, %v318
  %v401 = vpack.c.b16 %v321, %v319
  %v402 = vpack.c.b16 %v324, %v322
  %v403 = vpack.c.b16 %v325, %v323
  %v404 = vpack.c.b16 %v328, %v326
  %v405 = vpack.c.b16 %v329, %v327
  %v406 = vpack.c.b16 %v332, %v330
  %v407 = vpack.c.b16 %v333, %v331
  %v408 = vpack.c.b16 %v336, %v334
  %v409 = vpack.c.b16 %v337, %v335
  %v514 = vunpack.c.l.b16 %v90
  %v515 = vunpack.c.l.b16 %v91
  %v516 = vunpack.c.l.b16 %v92
  %v517 = vunpack.c.l.b16 %v93
  %v518 = vunpack.c.l.b16 %v94
  %v519 = vunpack.c.l.b16 %v95
  %v520 = vunpack.c.l.b16 %v96
  %v521 = vunpack.c.l.b16 %v97
  %v522 = vunpack.c.l.b16 %v98
  %v523 = vunpack.c.l.b16 %v99
  %v524 = vunpack.c.l.b16 %v100
  %v525 = vunpack.c.l.b16 %v101
  %v526 = vunpack.c.l.b16 %v102
  %v527 = vunpack.c.l.b16 %v103
  %v528 = vunpack.c.l.b16 %v104
  %v529 = vunpack.c.l.b16 %v105
  %v530 = vunpack.c.l.b16 %v106
  %v531 = vunpack.c.l.b16 %v107
  %v532 = vunpack.c.l.b16 %v108
  %v533 = vunpack.c.l.b16 %v109
  %v534 = vunpack.c.l.b16 %v110
  %v535 = vunpack.c.l.b16 %v111
  %v536 = vunpack.c.l.b16 %v112
  %v537 = vunpack.c.l.b16 %v113
  %v538 = vunpack.c.l.b16 %v114
  %v539 = vunpack.c.l.b16 %v115
  %v540 = vunpack.c.l.b16 %v116
  %v541 = vunpack.c.l.b16 %v117
  %v542 = vunpack.c.l.b16 %v118
  %v543 = vunpack.c.l.b16 %v119
  %v544 = vunpack.c.l.b16 %v120
  %v545 = vunpack.c.l.b16 %v121
  %v546 = vpack.c.b16 %v515, %v514
  %v547 = vpack.c.b16 %v517, %v516
  %v548 = vpack.c.b16 %v519, %v518
  %v549 = vpack.c.b16 %v521, %v520
  %v550 = vpack.c.b16 %v523, %v522
  %v551 = vpack.c.b16 %v525, %v524
  %v552 = vpack.c.b16 %v527, %v526
  %v553 = vpack.c.b16 %v529, %v528
  %v554 = vpack.c.b16 %v531, %v530
  %v555 = vpack.c.b16 %v533, %v532
  %v556 = vpack.c.b16 %v535, %v534
  %v557 = vpack.c.b16 %v537, %v536
  %v558 = vpack.c.b16 %v539, %v538
  %v559 = vpack.c.b16 %v541, %v540
  %v560 = vpack.c.b16 %v543, %v542
  %v561 = vpack.c.b16 %v545, %v544
  %578 = vmatprep.subr.bf16.mxu0 0
  %579 = vmatpush1.bf16.msra.mxu0 %v553
  %580 = vmatprep.subr.bf16.mxu0 0
  %581 = vmatpush1.bf16.msra.mxu0 %v552
  %582 = vmatprep.subr.bf16.mxu0 0
  %583 = vmatpush1.bf16.msra.mxu0 %v551
  %584 = vmatprep.subr.bf16.mxu0 0
  %585 = vmatpush1.bf16.msra.mxu0 %v550
  %586 = vmatprep.subr.bf16.mxu0 0
  %587 = vmatpush1.bf16.msra.mxu0 %v549
  %588 = vmatprep.subr.bf16.mxu0 0
  %589 = vmatpush1.bf16.msra.mxu0 %v548
  %590 = vmatprep.subr.bf16.mxu0 0
  %591 = vmatpush1.bf16.msra.mxu0 %v547
  %592 = vmatprep.subr.bf16.mxu0 0
  %593 = vmatpush1.bf16.msra.mxu0 %v546
  %594 = vmatprep.subr.bf16.mxu0 0
  %595 = vmatpush2.bf16.msra.mxu0 %v561
  %596 = vmatprep.subr.bf16.mxu0 0
  %597 = vmatpush2.bf16.msra.mxu0 %v560
  %598 = vmatprep.subr.bf16.mxu0 0
  %599 = vmatpush2.bf16.msra.mxu0 %v559
  %600 = vmatprep.subr.bf16.mxu0 0
  %601 = vmatpush2.bf16.msra.mxu0 %v558
  %602 = vmatprep.subr.bf16.mxu0 0
  %603 = vmatpush2.bf16.msra.mxu0 %v557
  %604 = vmatprep.subr.bf16.mxu0 0
  %605 = vmatpush2.bf16.msra.mxu0 %v556
  %606 = vmatprep.subr.bf16.mxu0 0
  %607 = vmatpush2.bf16.msra.mxu0 %v555
  %608 = vmatprep.subr.bf16.mxu0 0
  %609 = vmatpush2.bf16.msra.mxu0 %v554
  %610 = vmatprep.mubr.bf16.mxu0 %v339
  %611 = vmatmul.mubr.bf16.gmra.mxu0 %v338
  %v612 = vpop.f32.mrf.mxu0
  %v613 = vadd.f32 0.0, %v612
  %v614 = vpop.f32.mrf.mxu0
  %v615 = vpop.f32.mrf.mxu0
  %v616 = vadd.f32 0.0, %v615
  %v617 = vpop.f32.mrf.mxu0
  %618 = vmatprep.mubr.bf16.mxu0 %v341
  %619 = vmatmul.mubr.bf16.gmra.mxu0 %v340
  %v620 = vpop.f32.mrf.mxu0
  %v621 = vadd.f32 0.0, %v620
  %v622 = vpop.f32.mrf.mxu0
  %v623 = vpop.f32.mrf.mxu0
  %v624 = vadd.f32 0.0, %v623
  %v625 = vpop.f32.mrf.mxu0
  %626 = vmatprep.mubr.bf16.mxu0 %v343
  %627 = vmatmul.mubr.bf16.gmra.mxu0 %v342
  %v628 = vpop.f32.mrf.mxu0
  %v629 = vadd.f32 0.0, %v628
  %v630 = vpop.f32.mrf.mxu0
  %v631 = vpop.f32.mrf.mxu0
  %v632 = vadd.f32 0.0, %v631
  %v633 = vpop.f32.mrf.mxu0
  %634 = vmatprep.mubr.bf16.mxu0 %v345
  %635 = vmatmul.mubr.bf16.gmra.mxu0 %v344
  %v636 = vpop.f32.mrf.mxu0
  %v637 = vadd.f32 0.0, %v636
  %v638 = vpop.f32.mrf.mxu0
  %v639 = vpop.f32.mrf.mxu0
  %v640 = vadd.f32 0.0, %v639
  %v641 = vpop.f32.mrf.mxu0
  %642 = vmatprep.mubr.bf16.mxu0 %v347
  %643 = vmatmul.mubr.bf16.gmra.mxu0 %v346
  %v644 = vpop.f32.mrf.mxu0
  %v645 = vadd.f32 0.0, %v644
  %v646 = vpop.f32.mrf.mxu0
  %v647 = vpop.f32.mrf.mxu0
  %v648 = vadd.f32 0.0, %v647
  %v649 = vpop.f32.mrf.mxu0
  %650 = vmatprep.mubr.bf16.mxu0 %v349
  %651 = vmatmul.mubr.bf16.gmra.mxu0 %v348
  %v652 = vpop.f32.mrf.mxu0
  %v653 = vadd.f32 0.0, %v652
  %v654 = vpop.f32.mrf.mxu0
  %v655 = vpop.f32.mrf.mxu0
  %v656 = vadd.f32 0.0, %v655
  %v657 = vpop.f32.mrf.mxu0
  %658 = vmatprep.mubr.bf16.mxu0 %v351
  %659 = vmatmul.mubr.bf16.gmra.mxu0 %v350
  %v660 = vpop.f32.mrf.mxu0
  %v661 = vadd.f32 0.0, %v660
  %v662 = vpop.f32.mrf.mxu0
  %v663 = vpop.f32.mrf.mxu0
  %v664 = vadd.f32 0.0, %v663
  %v665 = vpop.f32.mrf.mxu0
  %666 = vmatprep.mubr.bf16.mxu0 %v353
  %667 = vmatmul.mubr.bf16.gmra.mxu0 %v352
  %v668 = vpop.f32.mrf.mxu0
  %v669 = vadd.f32 0.0, %v668
  %v670 = vpop.f32.mrf.mxu0
  %v671 = vpop.f32.mrf.mxu0
  %v672 = vadd.f32 0.0, %v671
  %v673 = vpop.f32.mrf.mxu0
  %674 = vmatprep.mubr.bf16.mxu0 %v355
  %675 = vmatmul.mubr.bf16.gmra.mxu0 %v354
  %v676 = vpop.f32.mrf.mxu0
  %v677 = vadd.f32 0.0, %v676
  %v678 = vpop.f32.mrf.mxu0
  %v679 = vpop.f32.mrf.mxu0
  %v680 = vadd.f32 0.0, %v679
  %v681 = vpop.f32.mrf.mxu0
  %682 = vmatprep.mubr.bf16.mxu0 %v357
  %683 = vmatmul.mubr.bf16.gmra.mxu0 %v356
  %v684 = vpop.f32.mrf.mxu0
  %v685 = vadd.f32 0.0, %v684
  %v686 = vpop.f32.mrf.mxu0
  %v687 = vpop.f32.mrf.mxu0
  %v688 = vadd.f32 0.0, %v687
  %v689 = vpop.f32.mrf.mxu0
  %690 = vmatprep.mubr.bf16.mxu0 %v359
  %691 = vmatmul.mubr.bf16.gmra.mxu0 %v358
  %v692 = vpop.f32.mrf.mxu0
  %v693 = vadd.f32 0.0, %v692
  %v694 = vpop.f32.mrf.mxu0
  %v695 = vpop.f32.mrf.mxu0
  %v696 = vadd.f32 0.0, %v695
  %v697 = vpop.f32.mrf.mxu0
  %698 = vmatprep.mubr.bf16.mxu0 %v361
  %699 = vmatmul.mubr.bf16.gmra.mxu0 %v360
  %v700 = vpop.f32.mrf.mxu0
  %v701 = vadd.f32 0.0, %v700
  %v702 = vpop.f32.mrf.mxu0
  %v703 = vpop.f32.mrf.mxu0
  %v704 = vadd.f32 0.0, %v703
  %v705 = vpop.f32.mrf.mxu0
  %706 = vmatprep.mubr.bf16.mxu0 %v363
  %707 = vmatmul.mubr.bf16.gmra.mxu0 %v362
  %v708 = vpop.f32.mrf.mxu0
  %v709 = vadd.f32 0.0, %v708
  %v710 = vpop.f32.mrf.mxu0
  %v711 = vpop.f32.mrf.mxu0
  %v712 = vadd.f32 0.0, %v711
  %v713 = vpop.f32.mrf.mxu0
  %714 = vmatprep.mubr.bf16.mxu0 %v365
  %715 = vmatmul.mubr.bf16.gmra.mxu0 %v364
  %v716 = vpop.f32.mrf.mxu0
  %v717 = vadd.f32 0.0, %v716
  %v718 = vpop.f32.mrf.mxu0
  %v719 = vpop.f32.mrf.mxu0
  %v720 = vadd.f32 0.0, %v719
  %v721 = vpop.f32.mrf.mxu0
  %722 = vmatprep.mubr.bf16.mxu0 %v367
  %723 = vmatmul.mubr.bf16.gmra.mxu0 %v366
  %v724 = vpop.f32.mrf.mxu0
  %v725 = vadd.f32 0.0, %v724
  %v726 = vpop.f32.mrf.mxu0
  %v727 = vpop.f32.mrf.mxu0
  %v728 = vadd.f32 0.0, %v727
  %v729 = vpop.f32.mrf.mxu0
  %730 = vmatprep.mubr.bf16.mxu0 %v369
  %731 = vmatmul.mubr.bf16.gmra.mxu0 %v368
  %v732 = vpop.f32.mrf.mxu0
  %v733 = vadd.f32 0.0, %v732
  %v734 = vpop.f32.mrf.mxu0
  %v735 = vpop.f32.mrf.mxu0
  %v736 = vadd.f32 0.0, %v735
  %v737 = vpop.f32.mrf.mxu0
  %738 = vmatprep.mubr.bf16.mxu0 %v371
  %739 = vmatmul.mubr.bf16.gmra.mxu0 %v370
  %v740 = vpop.f32.mrf.mxu0
  %v741 = vadd.f32 0.0, %v740
  %v742 = vpop.f32.mrf.mxu0
  %v743 = vpop.f32.mrf.mxu0
  %v744 = vadd.f32 0.0, %v743
  %v745 = vpop.f32.mrf.mxu0
  %746 = vmatprep.mubr.bf16.mxu0 %v373
  %747 = vmatmul.mubr.bf16.gmra.mxu0 %v372
  %v748 = vpop.f32.mrf.mxu0
  %v749 = vadd.f32 0.0, %v748
  %v750 = vpop.f32.mrf.mxu0
  %v751 = vpop.f32.mrf.mxu0
  %v752 = vadd.f32 0.0, %v751
  %v753 = vpop.f32.mrf.mxu0
  %754 = vmatprep.mubr.bf16.mxu0 %v375
  %755 = vmatmul.mubr.bf16.gmra.mxu0 %v374
  %v756 = vpop.f32.mrf.mxu0
  %v757 = vadd.f32 0.0, %v756
  %v758 = vpop.f32.mrf.mxu0
  %v759 = vpop.f32.mrf.mxu0
  %v760 = vadd.f32 0.0, %v759
  %v761 = vpop.f32.mrf.mxu0
  %762 = vmatprep.mubr.bf16.mxu0 %v377
  %763 = vmatmul.mubr.bf16.gmra.mxu0 %v376
  %v764 = vpop.f32.mrf.mxu0
  %v765 = vadd.f32 0.0, %v764
  %v766 = vpop.f32.mrf.mxu0
  %v767 = vpop.f32.mrf.mxu0
  %v768 = vadd.f32 0.0, %v767
  %v769 = vpop.f32.mrf.mxu0
  %770 = vmatprep.mubr.bf16.mxu0 %v379
  %771 = vmatmul.mubr.bf16.gmra.mxu0 %v378
  %v772 = vpop.f32.mrf.mxu0
  %v773 = vadd.f32 0.0, %v772
  %v774 = vpop.f32.mrf.mxu0
  %v775 = vpop.f32.mrf.mxu0
  %v776 = vadd.f32 0.0, %v775
  %v777 = vpop.f32.mrf.mxu0
  %778 = vmatprep.mubr.bf16.mxu0 %v381
  %779 = vmatmul.mubr.bf16.gmra.mxu0 %v380
  %v780 = vpop.f32.mrf.mxu0
  %v781 = vadd.f32 0.0, %v780
  %v782 = vpop.f32.mrf.mxu0
  %v783 = vpop.f32.mrf.mxu0
  %v784 = vadd.f32 0.0, %v783
  %v785 = vpop.f32.mrf.mxu0
  %786 = vmatprep.mubr.bf16.mxu0 %v383
  %787 = vmatmul.mubr.bf16.gmra.mxu0 %v382
  %v788 = vpop.f32.mrf.mxu0
  %v789 = vadd.f32 0.0, %v788
  %v790 = vpop.f32.mrf.mxu0
  %v791 = vpop.f32.mrf.mxu0
  %v792 = vadd.f32 0.0, %v791
  %v793 = vpop.f32.mrf.mxu0
  %794 = vmatprep.mubr.bf16.mxu0 %v385
  %795 = vmatmul.mubr.bf16.gmra.mxu0 %v384
  %v796 = vpop.f32.mrf.mxu0
  %v797 = vadd.f32 0.0, %v796
  %v798 = vpop.f32.mrf.mxu0
  %v799 = vpop.f32.mrf.mxu0
  %v800 = vadd.f32 0.0, %v799
  %v801 = vpop.f32.mrf.mxu0
  %802 = vmatprep.mubr.bf16.mxu0 %v387
  %803 = vmatmul.mubr.bf16.gmra.mxu0 %v386
  %v804 = vpop.f32.mrf.mxu0
  %v805 = vadd.f32 0.0, %v804
  %v806 = vpop.f32.mrf.mxu0
  %v807 = vpop.f32.mrf.mxu0
  %v808 = vadd.f32 0.0, %v807
  %v809 = vpop.f32.mrf.mxu0
  %810 = vmatprep.mubr.bf16.mxu0 %v389
  %811 = vmatmul.mubr.bf16.gmra.mxu0 %v388
  %v812 = vpop.f32.mrf.mxu0
  %v813 = vadd.f32 0.0, %v812
  %v814 = vpop.f32.mrf.mxu0
  %v815 = vpop.f32.mrf.mxu0
  %v816 = vadd.f32 0.0, %v815
  %v817 = vpop.f32.mrf.mxu0
  %818 = vmatprep.mubr.bf16.mxu0 %v391
  %819 = vmatmul.mubr.bf16.gmra.mxu0 %v390
  %v820 = vpop.f32.mrf.mxu0
  %v821 = vadd.f32 0.0, %v820
  %v822 = vpop.f32.mrf.mxu0
  %v823 = vpop.f32.mrf.mxu0
  %v824 = vadd.f32 0.0, %v823
  %v825 = vpop.f32.mrf.mxu0
  %826 = vmatprep.mubr.bf16.mxu0 %v393
  %827 = vmatmul.mubr.bf16.gmra.mxu0 %v392
  %v828 = vpop.f32.mrf.mxu0
  %v829 = vadd.f32 0.0, %v828
  %v830 = vpop.f32.mrf.mxu0
  %v831 = vpop.f32.mrf.mxu0
  %v832 = vadd.f32 0.0, %v831
  %v833 = vpop.f32.mrf.mxu0
  %834 = vmatprep.mubr.bf16.mxu0 %v395
  %835 = vmatmul.mubr.bf16.gmra.mxu0 %v394
  %v836 = vpop.f32.mrf.mxu0
  %v837 = vadd.f32 0.0, %v836
  %v838 = vpop.f32.mrf.mxu0
  %v839 = vpop.f32.mrf.mxu0
  %v840 = vadd.f32 0.0, %v839
  %v841 = vpop.f32.mrf.mxu0
  %842 = vmatprep.mubr.bf16.mxu0 %v397
  %843 = vmatmul.mubr.bf16.gmra.mxu0 %v396
  %v844 = vpop.f32.mrf.mxu0
  %v845 = vadd.f32 0.0, %v844
  %v846 = vpop.f32.mrf.mxu0
  %v847 = vpop.f32.mrf.mxu0
  %v848 = vadd.f32 0.0, %v847
  %v849 = vpop.f32.mrf.mxu0
  %850 = vmatprep.mubr.bf16.mxu0 %v399
  %851 = vmatmul.mubr.bf16.gmra.mxu0 %v398
  %v852 = vpop.f32.mrf.mxu0
  %v853 = vadd.f32 0.0, %v852
  %v854 = vpop.f32.mrf.mxu0
  %v855 = vpop.f32.mrf.mxu0
  %v856 = vadd.f32 0.0, %v855
  %v857 = vpop.f32.mrf.mxu0
  %858 = vmatprep.mubr.bf16.mxu0 %v401
  %859 = vmatmul.mubr.bf16.gmra.mxu0 %v400
  %v860 = vpop.f32.mrf.mxu0
  %v861 = vadd.f32 0.0, %v860
  %v862 = vpop.f32.mrf.mxu0
  %v863 = vpop.f32.mrf.mxu0
  %v864 = vadd.f32 0.0, %v863
  %v865 = vpop.f32.mrf.mxu0
  %866 = vmatprep.mubr.bf16.mxu0 %v403
  %867 = vmatmul.mubr.bf16.gmra.mxu0 %v402
  %v868 = vpop.f32.mrf.mxu0
  %v869 = vadd.f32 0.0, %v868
  %v870 = vpop.f32.mrf.mxu0
  %v871 = vpop.f32.mrf.mxu0
  %v872 = vadd.f32 0.0, %v871
  %v873 = vpop.f32.mrf.mxu0
  %874 = vmatprep.mubr.bf16.mxu0 %v405
  %875 = vmatmul.mubr.bf16.gmra.mxu0 %v404
  %v876 = vpop.f32.mrf.mxu0
  %v877 = vadd.f32 0.0, %v876
  %v878 = vpop.f32.mrf.mxu0
  %v879 = vpop.f32.mrf.mxu0
  %v880 = vadd.f32 0.0, %v879
  %v881 = vpop.f32.mrf.mxu0
  %882 = vmatprep.mubr.bf16.mxu0 %v407
  %883 = vmatmul.mubr.bf16.gmra.mxu0 %v406
  %v884 = vpop.f32.mrf.mxu0
  %v885 = vadd.f32 0.0, %v884
  %v886 = vpop.f32.mrf.mxu0
  %v887 = vpop.f32.mrf.mxu0
  %v888 = vadd.f32 0.0, %v887
  %v889 = vpop.f32.mrf.mxu0
  %890 = vmatprep.mubr.bf16.mxu0 %v409
  %891 = vmatmul.mubr.bf16.gmra.mxu0 %v408
  %v892 = vpop.f32.mrf.mxu0
  %v893 = vadd.f32 0.0, %v892
  %v894 = vpop.f32.mrf.mxu0
  %v895 = vpop.f32.mrf.mxu0
  %v896 = vadd.f32 0.0, %v895
  %v897 = vpop.f32.mrf.mxu0
  %898 = vdwg.mxu0
  %v899 = vlaneseq
  %v900 = vshrl.u32 %v899, 7
  %v901 = vadd.s32 %v900, 8
  %v902 = vadd.s32 %v900, 16
  %v903 = vadd.s32 %v900, 24
  %v904 = vadd.s32 %v900, 32
  %v905 = vadd.s32 %v900, 40
  %v906 = vadd.s32 %v900, 48
  %v907 = vadd.s32 %v900, 56
  %v908 = vadd.s32 %v900, 64
  %v909 = vadd.s32 %v900, 72
  %v910 = vadd.s32 %v900, 80
  %v911 = vadd.s32 %v900, 88
  %v912 = vadd.s32 %v900, 96
  %v913 = vadd.s32 %v900, 104
  %v914 = vadd.s32 %v900, 112
  %v915 = vadd.s32 %v900, 120
  %v916 = vadd.s32 %v900, 128
  %v917 = vadd.s32 %v900, 136
  %v918 = vadd.s32 %v900, 144
  %v919 = vadd.s32 %v900, 152
  %v920 = vadd.s32 %v900, 160
  %v921 = vadd.s32 %v900, 168
  %v922 = vadd.s32 %v900, 176
  %v923 = vadd.s32 %v900, 184
  %v924 = vadd.s32 %v900, 192
  %v925 = vadd.s32 %v900, 200
  %v926 = vadd.s32 %v900, 208
  %v927 = vadd.s32 %v900, 216
  %v928 = vadd.s32 %v900, 224
  %v929 = vadd.s32 %v900, 232
  %v930 = vadd.s32 %v900, 240
  %v931 = vadd.s32 %v900, 248
  %v932 = vadd.s32 %v900, 256
  %v933 = vadd.s32 %v900, 264
  %v934 = vadd.s32 %v900, 272
  %v935 = vadd.s32 %v900, 280
  %v936 = vadd.s32 %v900, 288
  %v937 = vadd.s32 %v900, 296
  %v938 = vadd.s32 %v900, 304
  %v939 = vadd.s32 %v900, 312
  %v940 = vadd.s32 %v900, 320
  %v941 = vadd.s32 %v900, 328
  %v942 = vadd.s32 %v900, 336
  %v943 = vadd.s32 %v900, 344
  %v944 = vadd.s32 %v900, 352
  %v945 = vadd.s32 %v900, 360
  %v946 = vadd.s32 %v900, 368
  %v947 = vadd.s32 %v900, 376
  %v948 = vadd.s32 %v900, 384
  %v949 = vadd.s32 %v900, 392
  %v950 = vadd.s32 %v900, 400
  %v951 = vadd.s32 %v900, 408
  %v952 = vadd.s32 %v900, 416
  %v953 = vadd.s32 %v900, 424
  %v954 = vadd.s32 %v900, 432
  %v955 = vadd.s32 %v900, 440
  %v956 = vadd.s32 %v900, 448
  %v957 = vadd.s32 %v900, 456
  %v958 = vadd.s32 %v900, 464
  %v959 = vadd.s32 %v900, 472
  %v960 = vadd.s32 %v900, 480
  %v961 = vadd.s32 %v900, 488
  %v962 = vadd.s32 %v900, 496
  %v963 = vadd.s32 %v900, 504
  %v964 = vadd.s32 %v900, 512
  %v965 = vadd.s32 %v900, 520
  %v966 = vadd.s32 %v900, 528
  %v967 = vadd.s32 %v900, 536
  %v968 = vadd.s32 %v900, 544
  %v969 = vadd.s32 %v900, 552
  %v970 = vadd.s32 %v900, 560
  %v971 = vadd.s32 %v900, 568
  %vm972 = vcmp.lt.s32.totalorder %v900, 576
  %vm973 = vcmp.lt.s32.totalorder %v901, 576
  %vm974 = vcmp.lt.s32.totalorder %v902, 576
  %vm975 = vcmp.lt.s32.totalorder %v903, 576
  %vm976 = vcmp.lt.s32.totalorder %v904, 576
  %vm977 = vcmp.lt.s32.totalorder %v905, 576
  %vm978 = vcmp.lt.s32.totalorder %v906, 576
  %vm979 = vcmp.lt.s32.totalorder %v907, 576
  %vm980 = vcmp.lt.s32.totalorder %v908, 576
  %vm981 = vcmp.lt.s32.totalorder %v909, 576
  %vm982 = vcmp.lt.s32.totalorder %v910, 576
  %vm983 = vcmp.lt.s32.totalorder %v911, 576
  %vm984 = vcmp.lt.s32.totalorder %v912, 576
  %vm985 = vcmp.lt.s32.totalorder %v913, 576
  %vm986 = vcmp.lt.s32.totalorder %v914, 576
  %vm987 = vcmp.lt.s32.totalorder %v915, 576
  %vm988 = vcmp.lt.s32.totalorder %v916, 576
  %vm989 = vcmp.lt.s32.totalorder %v917, 576
  %vm990 = vcmp.lt.s32.totalorder %v918, 576
  %vm991 = vcmp.lt.s32.totalorder %v919, 576
  %vm992 = vcmp.lt.s32.totalorder %v920, 576
  %vm993 = vcmp.lt.s32.totalorder %v921, 576
  %vm994 = vcmp.lt.s32.totalorder %v922, 576
  %vm995 = vcmp.lt.s32.totalorder %v923, 576
  %vm996 = vcmp.lt.s32.totalorder %v924, 576
  %vm997 = vcmp.lt.s32.totalorder %v925, 576
  %vm998 = vcmp.lt.s32.totalorder %v926, 576
  %vm999 = vcmp.lt.s32.totalorder %v927, 576
  %vm1000 = vcmp.lt.s32.totalorder %v928, 576
  %vm1001 = vcmp.lt.s32.totalorder %v929, 576
  %vm1002 = vcmp.lt.s32.totalorder %v930, 576
  %vm1003 = vcmp.lt.s32.totalorder %v931, 576
  %vm1004 = vcmp.lt.s32.totalorder %v932, 576
  %vm1005 = vcmp.lt.s32.totalorder %v933, 576
  %vm1006 = vcmp.lt.s32.totalorder %v934, 576
  %vm1007 = vcmp.lt.s32.totalorder %v935, 576
  %vm1008 = vcmp.lt.s32.totalorder %v936, 576
  %vm1009 = vcmp.lt.s32.totalorder %v937, 576
  %vm1010 = vcmp.lt.s32.totalorder %v938, 576
  %vm1011 = vcmp.lt.s32.totalorder %v939, 576
  %vm1012 = vcmp.lt.s32.totalorder %v940, 576
  %vm1013 = vcmp.lt.s32.totalorder %v941, 576
  %vm1014 = vcmp.lt.s32.totalorder %v942, 576
  %vm1015 = vcmp.lt.s32.totalorder %v943, 576
  %vm1016 = vcmp.lt.s32.totalorder %v944, 576
  %vm1017 = vcmp.lt.s32.totalorder %v945, 576
  %vm1018 = vcmp.lt.s32.totalorder %v946, 576
  %vm1019 = vcmp.lt.s32.totalorder %v947, 576
  %vm1020 = vcmp.lt.s32.totalorder %v948, 576
  %vm1021 = vcmp.lt.s32.totalorder %v949, 576
  %vm1022 = vcmp.lt.s32.totalorder %v950, 576
  %vm1023 = vcmp.lt.s32.totalorder %v951, 576
  %vm1024 = vcmp.lt.s32.totalorder %v952, 576
  %vm1025 = vcmp.lt.s32.totalorder %v953, 576
  %vm1026 = vcmp.lt.s32.totalorder %v954, 576
  %vm1027 = vcmp.lt.s32.totalorder %v955, 576
  %vm1028 = vcmp.lt.s32.totalorder %v956, 576
  %vm1029 = vcmp.lt.s32.totalorder %v957, 576
  %vm1030 = vcmp.lt.s32.totalorder %v958, 576
  %vm1031 = vcmp.lt.s32.totalorder %v959, 576
  %vm1032 = vcmp.lt.s32.totalorder %v960, 576
  %vm1033 = vcmp.lt.s32.totalorder %v961, 576
  %vm1034 = vcmp.lt.s32.totalorder %v962, 576
  %vm1035 = vcmp.lt.s32.totalorder %v963, 576
  %vm1036 = vcmp.lt.s32.totalorder %v964, 576
  %vm1037 = vcmp.lt.s32.totalorder %v965, 576
  %vm1038 = vcmp.lt.s32.totalorder %v966, 576
  %vm1039 = vcmp.lt.s32.totalorder %v967, 576
  %vm1040 = vcmp.lt.s32.totalorder %v968, 576
  %vm1041 = vcmp.lt.s32.totalorder %v969, 576
  %vm1042 = vcmp.lt.s32.totalorder %v970, 576
  %vm1043 = vcmp.lt.s32.totalorder %v971, 576
  %v1044 = vsel %vm972, %v613, 0.0
  %v1045 = vsel %vm973, %v616, 0.0
  %v1046 = vsel %vm974, %v621, 0.0
  %v1047 = vsel %vm975, %v624, 0.0
  %v1048 = vsel %vm976, %v629, 0.0
  %v1049 = vsel %vm977, %v632, 0.0
  %v1050 = vsel %vm978, %v637, 0.0
  %v1051 = vsel %vm979, %v640, 0.0
  %v1052 = vsel %vm980, %v645, 0.0
  %v1053 = vsel %vm981, %v648, 0.0
  %v1054 = vsel %vm982, %v653, 0.0
  %v1055 = vsel %vm983, %v656, 0.0
  %v1056 = vsel %vm984, %v661, 0.0
  %v1057 = vsel %vm985, %v664, 0.0
  %v1058 = vsel %vm986, %v669, 0.0
  %v1059 = vsel %vm987, %v672, 0.0
  %v1060 = vsel %vm988, %v677, 0.0
  %v1061 = vsel %vm989, %v680, 0.0
  %v1062 = vsel %vm990, %v685, 0.0
  %v1063 = vsel %vm991, %v688, 0.0
  %v1064 = vsel %vm992, %v693, 0.0
  %v1065 = vsel %vm993, %v696, 0.0
  %v1066 = vsel %vm994, %v701, 0.0
  %v1067 = vsel %vm995, %v704, 0.0
  %v1068 = vsel %vm996, %v709, 0.0
  %v1069 = vsel %vm997, %v712, 0.0
  %v1070 = vsel %vm998, %v717, 0.0
  %v1071 = vsel %vm999, %v720, 0.0
  %v1072 = vsel %vm1000, %v725, 0.0
  %v1073 = vsel %vm1001, %v728, 0.0
  %v1074 = vsel %vm1002, %v733, 0.0
  %v1075 = vsel %vm1003, %v736, 0.0
  %v1076 = vsel %vm1004, %v741, 0.0
  %v1077 = vsel %vm1005, %v744, 0.0
  %v1078 = vsel %vm1006, %v749, 0.0
  %v1079 = vsel %vm1007, %v752, 0.0
  %v1080 = vsel %vm1008, %v757, 0.0
  %v1081 = vsel %vm1009, %v760, 0.0
  %v1082 = vsel %vm1010, %v765, 0.0
  %v1083 = vsel %vm1011, %v768, 0.0
  %v1084 = vsel %vm1012, %v773, 0.0
  %v1085 = vsel %vm1013, %v776, 0.0
  %v1086 = vsel %vm1014, %v781, 0.0
  %v1087 = vsel %vm1015, %v784, 0.0
  %v1088 = vsel %vm1016, %v789, 0.0
  %v1089 = vsel %vm1017, %v792, 0.0
  %v1090 = vsel %vm1018, %v797, 0.0
  %v1091 = vsel %vm1019, %v800, 0.0
  %v1092 = vsel %vm1020, %v805, 0.0
  %v1093 = vsel %vm1021, %v808, 0.0
  %v1094 = vsel %vm1022, %v813, 0.0
  %v1095 = vsel %vm1023, %v816, 0.0
  %v1096 = vsel %vm1024, %v821, 0.0
  %v1097 = vsel %vm1025, %v824, 0.0
  %v1098 = vsel %vm1026, %v829, 0.0
  %v1099 = vsel %vm1027, %v832, 0.0
  %v1100 = vsel %vm1028, %v837, 0.0
  %v1101 = vsel %vm1029, %v840, 0.0
  %v1102 = vsel %vm1030, %v845, 0.0
  %v1103 = vsel %vm1031, %v848, 0.0
  %v1104 = vsel %vm1032, %v853, 0.0
  %v1105 = vsel %vm1033, %v856, 0.0
  %v1106 = vsel %vm1034, %v861, 0.0
  %v1107 = vsel %vm1035, %v864, 0.0
  %v1108 = vsel %vm1036, %v869, 0.0
  %v1109 = vsel %vm1037, %v872, 0.0
  %v1110 = vsel %vm1038, %v877, 0.0
  %v1111 = vsel %vm1039, %v880, 0.0
  %v1112 = vsel %vm1040, %v885, 0.0
  %v1113 = vsel %vm1041, %v888, 0.0
  %v1114 = vsel %vm1042, %v893, 0.0
  %v1115 = vsel %vm1043, %v896, 0.0
  %v1116 = vadd.f32 %v1044, %v1045
  %v1117 = vadd.f32 %v1116, %v1046
  %v1118 = vadd.f32 %v1117, %v1047
  %v1119 = vadd.f32 %v1118, %v1048
  %v1120 = vadd.f32 %v1119, %v1049
  %v1121 = vadd.f32 %v1120, %v1050
  %v1122 = vadd.f32 %v1121, %v1051
  %v1123 = vadd.f32 %v1122, %v1052
  %v1124 = vadd.f32 %v1123, %v1053
  %v1125 = vadd.f32 %v1124, %v1054
  %v1126 = vadd.f32 %v1125, %v1055
  %v1127 = vadd.f32 %v1126, %v1056
  %v1128 = vadd.f32 %v1127, %v1057
  %v1129 = vadd.f32 %v1128, %v1058
  %v1130 = vadd.f32 %v1129, %v1059
  %v1131 = vadd.f32 %v1130, %v1060
  %v1132 = vadd.f32 %v1131, %v1061
  %v1133 = vadd.f32 %v1132, %v1062
  %v1134 = vadd.f32 %v1133, %v1063
  %v1135 = vadd.f32 %v1134, %v1064
  %v1136 = vadd.f32 %v1135, %v1065
  %v1137 = vadd.f32 %v1136, %v1066
  %v1138 = vadd.f32 %v1137, %v1067
  %v1139 = vadd.f32 %v1138, %v1068
  %v1140 = vadd.f32 %v1139, %v1069
  %v1141 = vadd.f32 %v1140, %v1070
  %v1142 = vadd.f32 %v1141, %v1071
  %v1143 = vadd.f32 %v1142, %v1072
  %v1144 = vadd.f32 %v1143, %v1073
  %v1145 = vadd.f32 %v1144, %v1074
  %v1146 = vadd.f32 %v1145, %v1075
  %v1147 = vadd.f32 %v1146, %v1076
  %v1148 = vadd.f32 %v1147, %v1077
  %v1149 = vadd.f32 %v1148, %v1078
  %v1150 = vadd.f32 %v1149, %v1079
  %v1151 = vadd.f32 %v1150, %v1080
  %v1152 = vadd.f32 %v1151, %v1081
  %v1153 = vadd.f32 %v1152, %v1082
  %v1154 = vadd.f32 %v1153, %v1083
  %v1155 = vadd.f32 %v1154, %v1084
  %v1156 = vadd.f32 %v1155, %v1085
  %v1157 = vadd.f32 %v1156, %v1086
  %v1158 = vadd.f32 %v1157, %v1087
  %v1159 = vadd.f32 %v1158, %v1088
  %v1160 = vadd.f32 %v1159, %v1089
  %v1161 = vadd.f32 %v1160, %v1090
  %v1162 = vadd.f32 %v1161, %v1091
  %v1163 = vadd.f32 %v1162, %v1092
  %v1164 = vadd.f32 %v1163, %v1093
  %v1165 = vadd.f32 %v1164, %v1094
  %v1166 = vadd.f32 %v1165, %v1095
  %v1167 = vadd.f32 %v1166, %v1096
  %v1168 = vadd.f32 %v1167, %v1097
  %v1169 = vadd.f32 %v1168, %v1098
  %v1170 = vadd.f32 %v1169, %v1099
  %v1171 = vadd.f32 %v1170, %v1100
  %v1172 = vadd.f32 %v1171, %v1101
  %v1173 = vadd.f32 %v1172, %v1102
  %v1174 = vadd.f32 %v1173, %v1103
  %v1175 = vadd.f32 %v1174, %v1104
  %v1176 = vadd.f32 %v1175, %v1105
  %v1177 = vadd.f32 %v1176, %v1106
  %v1178 = vadd.f32 %v1177, %v1107
  %v1179 = vadd.f32 %v1178, %v1108
  %v1180 = vadd.f32 %v1179, %v1109
  %v1181 = vadd.f32 %v1180, %v1110
  %v1182 = vadd.f32 %v1181, %v1111
  %v1183 = vadd.f32 %v1182, %v1112
  %v1184 = vadd.f32 %v1183, %v1113
  %v1185 = vadd.f32 %v1184, %v1114
  %v1186 = vadd.f32 %v1185, %v1115
  %v1187 = vrot.slane %v1186, 4
  %v1188 = vadd.f32 %v1186, %v1187
  %v1189 = vrot.slane %v1188, 2
  %v1190 = vadd.f32 %v1188, %v1189
  %v1191 = vrot.slane %v1190, 1
  %v1192 = vadd.f32 %v1190, %v1191
  %v1193 = vmul.f32 %v1192, 0.0017361111
  %v1194 = vmul.f32 %v1044, %v1044
  %v1195 = vmul.f32 %v1045, %v1045
  %v1196 = vmul.f32 %v1046, %v1046
  %v1197 = vmul.f32 %v1047, %v1047
  %v1198 = vmul.f32 %v1048, %v1048
  %v1199 = vmul.f32 %v1049, %v1049
  %v1200 = vmul.f32 %v1050, %v1050
  %v1201 = vmul.f32 %v1051, %v1051
  %v1202 = vmul.f32 %v1052, %v1052
  %v1203 = vmul.f32 %v1053, %v1053
  %v1204 = vmul.f32 %v1054, %v1054
  %v1205 = vmul.f32 %v1055, %v1055
  %v1206 = vmul.f32 %v1056, %v1056
  %v1207 = vmul.f32 %v1057, %v1057
  %v1208 = vmul.f32 %v1058, %v1058
  %v1209 = vmul.f32 %v1059, %v1059
  %v1210 = vmul.f32 %v1060, %v1060
  %v1211 = vmul.f32 %v1061, %v1061
  %v1212 = vmul.f32 %v1062, %v1062
  %v1213 = vmul.f32 %v1063, %v1063
  %v1214 = vmul.f32 %v1064, %v1064
  %v1215 = vmul.f32 %v1065, %v1065
  %v1216 = vmul.f32 %v1066, %v1066
  %v1217 = vmul.f32 %v1067, %v1067
  %v1218 = vmul.f32 %v1068, %v1068
  %v1219 = vmul.f32 %v1069, %v1069
  %v1220 = vmul.f32 %v1070, %v1070
  %v1221 = vmul.f32 %v1071, %v1071
  %v1222 = vmul.f32 %v1072, %v1072
  %v1223 = vmul.f32 %v1073, %v1073
  %v1224 = vmul.f32 %v1074, %v1074
  %v1225 = vmul.f32 %v1075, %v1075
  %v1226 = vmul.f32 %v1076, %v1076
  %v1227 = vmul.f32 %v1077, %v1077
  %v1228 = vmul.f32 %v1078, %v1078
  %v1229 = vmul.f32 %v1079, %v1079
  %v1230 = vmul.f32 %v1080, %v1080
  %v1231 = vmul.f32 %v1081, %v1081
  %v1232 = vmul.f32 %v1082, %v1082
  %v1233 = vmul.f32 %v1083, %v1083
  %v1234 = vmul.f32 %v1084, %v1084
  %v1235 = vmul.f32 %v1085, %v1085
  %v1236 = vmul.f32 %v1086, %v1086
  %v1237 = vmul.f32 %v1087, %v1087
  %v1238 = vmul.f32 %v1088, %v1088
  %v1239 = vmul.f32 %v1089, %v1089
  %v1240 = vmul.f32 %v1090, %v1090
  %v1241 = vmul.f32 %v1091, %v1091
  %v1242 = vmul.f32 %v1092, %v1092
  %v1243 = vmul.f32 %v1093, %v1093
  %v1244 = vmul.f32 %v1094, %v1094
  %v1245 = vmul.f32 %v1095, %v1095
  %v1246 = vmul.f32 %v1096, %v1096
  %v1247 = vmul.f32 %v1097, %v1097
  %v1248 = vmul.f32 %v1098, %v1098
  %v1249 = vmul.f32 %v1099, %v1099
  %v1250 = vmul.f32 %v1100, %v1100
  %v1251 = vmul.f32 %v1101, %v1101
  %v1252 = vmul.f32 %v1102, %v1102
  %v1253 = vmul.f32 %v1103, %v1103
  %v1254 = vmul.f32 %v1104, %v1104
  %v1255 = vmul.f32 %v1105, %v1105
  %v1256 = vmul.f32 %v1106, %v1106
  %v1257 = vmul.f32 %v1107, %v1107
  %v1258 = vmul.f32 %v1108, %v1108
  %v1259 = vmul.f32 %v1109, %v1109
  %v1260 = vmul.f32 %v1110, %v1110
  %v1261 = vmul.f32 %v1111, %v1111
  %v1262 = vmul.f32 %v1112, %v1112
  %v1263 = vmul.f32 %v1113, %v1113
  %v1264 = vmul.f32 %v1114, %v1114
  %v1265 = vmul.f32 %v1115, %v1115
  %v1266 = vadd.f32 %v1194, %v1195
  %v1267 = vadd.f32 %v1266, %v1196
  %v1268 = vadd.f32 %v1267, %v1197
  %v1269 = vadd.f32 %v1268, %v1198
  %v1270 = vadd.f32 %v1269, %v1199
  %v1271 = vadd.f32 %v1270, %v1200
  %v1272 = vadd.f32 %v1271, %v1201
  %v1273 = vadd.f32 %v1272, %v1202
  %v1274 = vadd.f32 %v1273, %v1203
  %v1275 = vadd.f32 %v1274, %v1204
  %v1276 = vadd.f32 %v1275, %v1205
  %v1277 = vadd.f32 %v1276, %v1206
  %v1278 = vadd.f32 %v1277, %v1207
  %v1279 = vadd.f32 %v1278, %v1208
  %v1280 = vadd.f32 %v1279, %v1209
  %v1281 = vadd.f32 %v1280, %v1210
  %v1282 = vadd.f32 %v1281, %v1211
  %v1283 = vadd.f32 %v1282, %v1212
  %v1284 = vadd.f32 %v1283, %v1213
  %v1285 = vadd.f32 %v1284, %v1214
  %v1286 = vadd.f32 %v1285, %v1215
  %v1287 = vadd.f32 %v1286, %v1216
  %v1288 = vadd.f32 %v1287, %v1217
  %v1289 = vadd.f32 %v1288, %v1218
  %v1290 = vadd.f32 %v1289, %v1219
  %v1291 = vadd.f32 %v1290, %v1220
  %v1292 = vadd.f32 %v1291, %v1221
  %v1293 = vadd.f32 %v1292, %v1222
  %v1294 = vadd.f32 %v1293, %v1223
  %v1295 = vadd.f32 %v1294, %v1224
  %v1296 = vadd.f32 %v1295, %v1225
  %v1297 = vadd.f32 %v1296, %v1226
  %v1298 = vadd.f32 %v1297, %v1227
  %v1299 = vadd.f32 %v1298, %v1228
  %v1300 = vadd.f32 %v1299, %v1229
  %v1301 = vadd.f32 %v1300, %v1230
  %v1302 = vadd.f32 %v1301, %v1231
  %v1303 = vadd.f32 %v1302, %v1232
  %v1304 = vadd.f32 %v1303, %v1233
  %v1305 = vadd.f32 %v1304, %v1234
  %v1306 = vadd.f32 %v1305, %v1235
  %v1307 = vadd.f32 %v1306, %v1236
  %v1308 = vadd.f32 %v1307, %v1237
  %v1309 = vadd.f32 %v1308, %v1238
  %v1310 = vadd.f32 %v1309, %v1239
  %v1311 = vadd.f32 %v1310, %v1240
  %v1312 = vadd.f32 %v1311, %v1241
  %v1313 = vadd.f32 %v1312, %v1242
  %v1314 = vadd.f32 %v1313, %v1243
  %v1315 = vadd.f32 %v1314, %v1244
  %v1316 = vadd.f32 %v1315, %v1245
  %v1317 = vadd.f32 %v1316, %v1246
  %v1318 = vadd.f32 %v1317, %v1247
  %v1319 = vadd.f32 %v1318, %v1248
  %v1320 = vadd.f32 %v1319, %v1249
  %v1321 = vadd.f32 %v1320, %v1250
  %v1322 = vadd.f32 %v1321, %v1251
  %v1323 = vadd.f32 %v1322, %v1252
  %v1324 = vadd.f32 %v1323, %v1253
  %v1325 = vadd.f32 %v1324, %v1254
  %v1326 = vadd.f32 %v1325, %v1255
  %v1327 = vadd.f32 %v1326, %v1256
  %v1328 = vadd.f32 %v1327, %v1257
  %v1329 = vadd.f32 %v1328, %v1258
  %v1330 = vadd.f32 %v1329, %v1259
  %v1331 = vadd.f32 %v1330, %v1260
  %v1332 = vadd.f32 %v1331, %v1261
  %v1333 = vadd.f32 %v1332, %v1262
  %v1334 = vadd.f32 %v1333, %v1263
  %v1335 = vadd.f32 %v1334, %v1264
  %v1336 = vadd.f32 %v1335, %v1265
  %v1337 = vrot.slane %v1336, 4
  %v1338 = vadd.f32 %v1336, %v1337
  %v1339 = vrot.slane %v1338, 2
  %v1340 = vadd.f32 %v1338, %v1339
  %v1341 = vrot.slane %v1340, 1
  %v1342 = vadd.f32 %v1340, %v1341
  %v1343 = vmul.f32 %v1342, 0.0017361111
  %v1344 = vmul.f32 %v1193, %v1193
  %v1345 = vsub.f32 %v1343, %v1344
  %v1346 = vmax.f32 %v1345, 0.0
  %v1347 = vld [vmem:[%s2] sm:$0x1]
  %v1348 = vadd.f32 %v1346, 1e-05
  %v1349 = vrsqrt.pop %v1348
  %v1350 = vmul.f32 %v1347, %v1349
  %v1351 = vld [vmem:[%s3] sm:$0x1]
  %v1352 = vmul.f32 %v1193, %v1350
  %v1353 = vsub.f32 %v1351, %v1352
  %v1355 = vlaneseq
  %v1356 = vshrl.u32 %v1355, 7
  %v1357 = vsub.s32 0, %v1356
  %v1358 = vrot.slane %v1350, %v1357
  %v1360 = vmul.f32 %v613, %v1358
  %v1361 = vmul.f32 %v616, %v1358
  %v1362 = vmul.f32 %v621, %v1358
  %v1363 = vmul.f32 %v624, %v1358
  %v1364 = vmul.f32 %v629, %v1358
  %v1365 = vmul.f32 %v632, %v1358
  %v1366 = vmul.f32 %v637, %v1358
  %v1367 = vmul.f32 %v640, %v1358
  %v1368 = vmul.f32 %v645, %v1358
  %v1369 = vmul.f32 %v648, %v1358
  %v1370 = vmul.f32 %v653, %v1358
  %v1371 = vmul.f32 %v656, %v1358
  %v1372 = vmul.f32 %v661, %v1358
  %v1373 = vmul.f32 %v664, %v1358
  %v1374 = vmul.f32 %v669, %v1358
  %v1375 = vmul.f32 %v672, %v1358
  %v1376 = vmul.f32 %v677, %v1358
  %v1377 = vmul.f32 %v680, %v1358
  %v1378 = vmul.f32 %v685, %v1358
  %v1379 = vmul.f32 %v688, %v1358
  %v1380 = vmul.f32 %v693, %v1358
  %v1381 = vmul.f32 %v696, %v1358
  %v1382 = vmul.f32 %v701, %v1358
  %v1383 = vmul.f32 %v704, %v1358
  %v1384 = vmul.f32 %v709, %v1358
  %v1385 = vmul.f32 %v712, %v1358
  %v1386 = vmul.f32 %v717, %v1358
  %v1387 = vmul.f32 %v720, %v1358
  %v1388 = vmul.f32 %v725, %v1358
  %v1389 = vmul.f32 %v728, %v1358
  %v1390 = vmul.f32 %v733, %v1358
  %v1391 = vmul.f32 %v736, %v1358
  %v1392 = vmul.f32 %v741, %v1358
  %v1393 = vmul.f32 %v744, %v1358
  %v1394 = vmul.f32 %v749, %v1358
  %v1395 = vmul.f32 %v752, %v1358
  %v1396 = vmul.f32 %v757, %v1358
  %v1397 = vmul.f32 %v760, %v1358
  %v1398 = vmul.f32 %v765, %v1358
  %v1399 = vmul.f32 %v768, %v1358
  %v1400 = vmul.f32 %v773, %v1358
  %v1401 = vmul.f32 %v776, %v1358
  %v1402 = vmul.f32 %v781, %v1358
  %v1403 = vmul.f32 %v784, %v1358
  %v1404 = vmul.f32 %v789, %v1358
  %v1405 = vmul.f32 %v792, %v1358
  %v1406 = vmul.f32 %v797, %v1358
  %v1407 = vmul.f32 %v800, %v1358
  %v1408 = vmul.f32 %v805, %v1358
  %v1409 = vmul.f32 %v808, %v1358
  %v1410 = vmul.f32 %v813, %v1358
  %v1411 = vmul.f32 %v816, %v1358
  %v1412 = vmul.f32 %v821, %v1358
  %v1413 = vmul.f32 %v824, %v1358
  %v1414 = vmul.f32 %v829, %v1358
  %v1415 = vmul.f32 %v832, %v1358
  %v1416 = vmul.f32 %v837, %v1358
  %v1417 = vmul.f32 %v840, %v1358
  %v1418 = vmul.f32 %v845, %v1358
  %v1419 = vmul.f32 %v848, %v1358
  %v1420 = vmul.f32 %v853, %v1358
  %v1421 = vmul.f32 %v856, %v1358
  %v1422 = vmul.f32 %v861, %v1358
  %v1423 = vmul.f32 %v864, %v1358
  %v1424 = vmul.f32 %v869, %v1358
  %v1425 = vmul.f32 %v872, %v1358
  %v1426 = vmul.f32 %v877, %v1358
  %v1427 = vmul.f32 %v880, %v1358
  %v1428 = vmul.f32 %v885, %v1358
  %v1429 = vmul.f32 %v888, %v1358
  %v1430 = vmul.f32 %v893, %v1358
  %v1431 = vmul.f32 %v896, %v1358
  %v1433 = vlaneseq
  %v1434 = vshrl.u32 %v1433, 7
  %v1435 = vsub.s32 0, %v1434
  %v1436 = vrot.slane %v1353, %v1435
  %v1438 = vadd.f32 %v1360, %v1436
  %v1439 = vadd.f32 %v1361, %v1436
  %v1440 = vadd.f32 %v1362, %v1436
  %v1441 = vadd.f32 %v1363, %v1436
  %v1442 = vadd.f32 %v1364, %v1436
  %v1443 = vadd.f32 %v1365, %v1436
  %v1444 = vadd.f32 %v1366, %v1436
  %v1445 = vadd.f32 %v1367, %v1436
  %v1446 = vadd.f32 %v1368, %v1436
  %v1447 = vadd.f32 %v1369, %v1436
  %v1448 = vadd.f32 %v1370, %v1436
  %v1449 = vadd.f32 %v1371, %v1436
  %v1450 = vadd.f32 %v1372, %v1436
  %v1451 = vadd.f32 %v1373, %v1436
  %v1452 = vadd.f32 %v1374, %v1436
  %v1453 = vadd.f32 %v1375, %v1436
  %v1454 = vadd.f32 %v1376, %v1436
  %v1455 = vadd.f32 %v1377, %v1436
  %v1456 = vadd.f32 %v1378, %v1436
  %v1457 = vadd.f32 %v1379, %v1436
  %v1458 = vadd.f32 %v1380, %v1436
  %v1459 = vadd.f32 %v1381, %v1436
  %v1460 = vadd.f32 %v1382, %v1436
  %v1461 = vadd.f32 %v1383, %v1436
  %v1462 = vadd.f32 %v1384, %v1436
  %v1463 = vadd.f32 %v1385, %v1436
  %v1464 = vadd.f32 %v1386, %v1436
  %v1465 = vadd.f32 %v1387, %v1436
  %v1466 = vadd.f32 %v1388, %v1436
  %v1467 = vadd.f32 %v1389, %v1436
  %v1468 = vadd.f32 %v1390, %v1436
  %v1469 = vadd.f32 %v1391, %v1436
  %v1470 = vadd.f32 %v1392, %v1436
  %v1471 = vadd.f32 %v1393, %v1436
  %v1472 = vadd.f32 %v1394, %v1436
  %v1473 = vadd.f32 %v1395, %v1436
  %v1474 = vadd.f32 %v1396, %v1436
  %v1475 = vadd.f32 %v1397, %v1436
  %v1476 = vadd.f32 %v1398, %v1436
  %v1477 = vadd.f32 %v1399, %v1436
  %v1478 = vadd.f32 %v1400, %v1436
  %v1479 = vadd.f32 %v1401, %v1436
  %v1480 = vadd.f32 %v1402, %v1436
  %v1481 = vadd.f32 %v1403, %v1436
  %v1482 = vadd.f32 %v1404, %v1436
  %v1483 = vadd.f32 %v1405, %v1436
  %v1484 = vadd.f32 %v1406, %v1436
  %v1485 = vadd.f32 %v1407, %v1436
  %v1486 = vadd.f32 %v1408, %v1436
  %v1487 = vadd.f32 %v1409, %v1436
  %v1488 = vadd.f32 %v1410, %v1436
  %v1489 = vadd.f32 %v1411, %v1436
  %v1490 = vadd.f32 %v1412, %v1436
  %v1491 = vadd.f32 %v1413, %v1436
  %v1492 = vadd.f32 %v1414, %v1436
  %v1493 = vadd.f32 %v1415, %v1436
  %v1494 = vadd.f32 %v1416, %v1436
  %v1495 = vadd.f32 %v1417, %v1436
  %v1496 = vadd.f32 %v1418, %v1436
  %v1497 = vadd.f32 %v1419, %v1436
  %v1498 = vadd.f32 %v1420, %v1436
  %v1499 = vadd.f32 %v1421, %v1436
  %v1500 = vadd.f32 %v1422, %v1436
  %v1501 = vadd.f32 %v1423, %v1436
  %v1502 = vadd.f32 %v1424, %v1436
  %v1503 = vadd.f32 %v1425, %v1436
  %v1504 = vadd.f32 %v1426, %v1436
  %v1505 = vadd.f32 %v1427, %v1436
  %v1506 = vadd.f32 %v1428, %v1436
  %v1507 = vadd.f32 %v1429, %v1436
  %v1508 = vadd.f32 %v1430, %v1436
  %v1509 = vadd.f32 %v1431, %v1436
  %v1510 = vmax.f32 %v1438, 0.0
  %v1511 = vmax.f32 %v1439, 0.0
  %v1512 = vmax.f32 %v1440, 0.0
  %v1513 = vmax.f32 %v1441, 0.0
  %v1514 = vmax.f32 %v1442, 0.0
  %v1515 = vmax.f32 %v1443, 0.0
  %v1516 = vmax.f32 %v1444, 0.0
  %v1517 = vmax.f32 %v1445, 0.0
  %v1518 = vmax.f32 %v1446, 0.0
  %v1519 = vmax.f32 %v1447, 0.0
  %v1520 = vmax.f32 %v1448, 0.0
  %v1521 = vmax.f32 %v1449, 0.0
  %v1522 = vmax.f32 %v1450, 0.0
  %v1523 = vmax.f32 %v1451, 0.0
  %v1524 = vmax.f32 %v1452, 0.0
  %v1525 = vmax.f32 %v1453, 0.0
  %v1526 = vmax.f32 %v1454, 0.0
  %v1527 = vmax.f32 %v1455, 0.0
  %v1528 = vmax.f32 %v1456, 0.0
  %v1529 = vmax.f32 %v1457, 0.0
  %v1530 = vmax.f32 %v1458, 0.0
  %v1531 = vmax.f32 %v1459, 0.0
  %v1532 = vmax.f32 %v1460, 0.0
  %v1533 = vmax.f32 %v1461, 0.0
  %v1534 = vmax.f32 %v1462, 0.0
  %v1535 = vmax.f32 %v1463, 0.0
  %v1536 = vmax.f32 %v1464, 0.0
  %v1537 = vmax.f32 %v1465, 0.0
  %v1538 = vmax.f32 %v1466, 0.0
  %v1539 = vmax.f32 %v1467, 0.0
  %v1540 = vmax.f32 %v1468, 0.0
  %v1541 = vmax.f32 %v1469, 0.0
  %v1542 = vmax.f32 %v1470, 0.0
  %v1543 = vmax.f32 %v1471, 0.0
  %v1544 = vmax.f32 %v1472, 0.0
  %v1545 = vmax.f32 %v1473, 0.0
  %v1546 = vmax.f32 %v1474, 0.0
  %v1547 = vmax.f32 %v1475, 0.0
  %v1548 = vmax.f32 %v1476, 0.0
  %v1549 = vmax.f32 %v1477, 0.0
  %v1550 = vmax.f32 %v1478, 0.0
  %v1551 = vmax.f32 %v1479, 0.0
  %v1552 = vmax.f32 %v1480, 0.0
  %v1553 = vmax.f32 %v1481, 0.0
  %v1554 = vmax.f32 %v1482, 0.0
  %v1555 = vmax.f32 %v1483, 0.0
  %v1556 = vmax.f32 %v1484, 0.0
  %v1557 = vmax.f32 %v1485, 0.0
  %v1558 = vmax.f32 %v1486, 0.0
  %v1559 = vmax.f32 %v1487, 0.0
  %v1560 = vmax.f32 %v1488, 0.0
  %v1561 = vmax.f32 %v1489, 0.0
  %v1562 = vmax.f32 %v1490, 0.0
  %v1563 = vmax.f32 %v1491, 0.0
  %v1564 = vmax.f32 %v1492, 0.0
  %v1565 = vmax.f32 %v1493, 0.0
  %v1566 = vmax.f32 %v1494, 0.0
  %v1567 = vmax.f32 %v1495, 0.0
  %v1568 = vmax.f32 %v1496, 0.0
  %v1569 = vmax.f32 %v1497, 0.0
  %v1570 = vmax.f32 %v1498, 0.0
  %v1571 = vmax.f32 %v1499, 0.0
  %v1572 = vmax.f32 %v1500, 0.0
  %v1573 = vmax.f32 %v1501, 0.0
  %v1574 = vmax.f32 %v1502, 0.0
  %v1575 = vmax.f32 %v1503, 0.0
  %v1576 = vmax.f32 %v1504, 0.0
  %v1577 = vmax.f32 %v1505, 0.0
  %v1578 = vmax.f32 %v1506, 0.0
  %v1579 = vmax.f32 %v1507, 0.0
  %v1580 = vmax.f32 %v1508, 0.0
  %v1581 = vmax.f32 %v1509, 0.0
  %v1582 = vpack.c.bf16 %v1511, %v1510
  %v1583 = vpack.c.bf16 %v1513, %v1512
  %v1584 = vpack.c.bf16 %v1515, %v1514
  %v1585 = vpack.c.bf16 %v1517, %v1516
  %v1586 = vpack.c.bf16 %v1519, %v1518
  %v1587 = vpack.c.bf16 %v1521, %v1520
  %v1588 = vpack.c.bf16 %v1523, %v1522
  %v1589 = vpack.c.bf16 %v1525, %v1524
  %v1590 = vpack.c.bf16 %v1527, %v1526
  %v1591 = vpack.c.bf16 %v1529, %v1528
  %v1592 = vpack.c.bf16 %v1531, %v1530
  %v1593 = vpack.c.bf16 %v1533, %v1532
  %v1594 = vpack.c.bf16 %v1535, %v1534
  %v1595 = vpack.c.bf16 %v1537, %v1536
  %v1596 = vpack.c.bf16 %v1539, %v1538
  %v1597 = vpack.c.bf16 %v1541, %v1540
  %v1598 = vpack.c.bf16 %v1543, %v1542
  %v1599 = vpack.c.bf16 %v1545, %v1544
  %v1600 = vpack.c.bf16 %v1547, %v1546
  %v1601 = vpack.c.bf16 %v1549, %v1548
  %v1602 = vpack.c.bf16 %v1551, %v1550
  %v1603 = vpack.c.bf16 %v1553, %v1552
  %v1604 = vpack.c.bf16 %v1555, %v1554
  %v1605 = vpack.c.bf16 %v1557, %v1556
  %v1606 = vpack.c.bf16 %v1559, %v1558
  %v1607 = vpack.c.bf16 %v1561, %v1560
  %v1608 = vpack.c.bf16 %v1563, %v1562
  %v1609 = vpack.c.bf16 %v1565, %v1564
  %v1610 = vpack.c.bf16 %v1567, %v1566
  %v1611 = vpack.c.bf16 %v1569, %v1568
  %v1612 = vpack.c.bf16 %v1571, %v1570
  %v1613 = vpack.c.bf16 %v1573, %v1572
  %v1614 = vpack.c.bf16 %v1575, %v1574
  %v1615 = vpack.c.bf16 %v1577, %v1576
  %v1616 = vpack.c.bf16 %v1579, %v1578
  %v1617 = vpack.c.bf16 %v1581, %v1580
  %v1654 = vunpack.c.l.b16 %v1582
  %v1655 = vunpack.c.h.b16 %v1582
  %v1656 = vunpack.c.l.b16 %v1583
  %v1657 = vunpack.c.h.b16 %v1583
  %v1658 = vunpack.c.l.b16 %v1584
  %v1659 = vunpack.c.h.b16 %v1584
  %v1660 = vunpack.c.l.b16 %v1585
  %v1661 = vunpack.c.h.b16 %v1585
  %v1662 = vunpack.c.l.b16 %v1586
  %v1663 = vunpack.c.h.b16 %v1586
  %v1664 = vunpack.c.l.b16 %v1587
  %v1665 = vunpack.c.h.b16 %v1587
  %v1666 = vunpack.c.l.b16 %v1588
  %v1667 = vunpack.c.h.b16 %v1588
  %v1668 = vunpack.c.l.b16 %v1589
  %v1669 = vunpack.c.h.b16 %v1589
  %v1670 = vunpack.c.l.b16 %v1590
  %v1671 = vunpack.c.h.b16 %v1590
  %v1672 = vunpack.c.l.b16 %v1591
  %v1673 = vunpack.c.h.b16 %v1591
  %v1674 = vunpack.c.l.b16 %v1592
  %v1675 = vunpack.c.h.b16 %v1592
  %v1676 = vunpack.c.l.b16 %v1593
  %v1677 = vunpack.c.h.b16 %v1593
  %v1678 = vunpack.c.l.b16 %v1594
  %v1679 = vunpack.c.h.b16 %v1594
  %v1680 = vunpack.c.l.b16 %v1595
  %v1681 = vunpack.c.h.b16 %v1595
  %v1682 = vunpack.c.l.b16 %v1596
  %v1683 = vunpack.c.h.b16 %v1596
  %v1684 = vunpack.c.l.b16 %v1597
  %v1685 = vunpack.c.h.b16 %v1597
  %v1686 = vunpack.c.l.b16 %v1598
  %v1687 = vunpack.c.h.b16 %v1598
  %v1688 = vunpack.c.l.b16 %v1599
  %v1689 = vunpack.c.h.b16 %v1599
  %v1690 = vunpack.c.l.b16 %v1600
  %v1691 = vunpack.c.h.b16 %v1600
  %v1692 = vunpack.c.l.b16 %v1601
  %v1693 = vunpack.c.h.b16 %v1601
  %v1694 = vunpack.c.l.b16 %v1602
  %v1695 = vunpack.c.h.b16 %v1602
  %v1696 = vunpack.c.l.b16 %v1603
  %v1697 = vunpack.c.h.b16 %v1603
  %v1698 = vunpack.c.l.b16 %v1604
  %v1699 = vunpack.c.h.b16 %v1604
  %v1700 = vunpack.c.l.b16 %v1605
  %v1701 = vunpack.c.h.b16 %v1605
  %v1702 = vunpack.c.l.b16 %v1606
  %v1703 = vunpack.c.h.b16 %v1606
  %v1704 = vunpack.c.l.b16 %v1607
  %v1705 = vunpack.c.h.b16 %v1607
  %v1706 = vunpack.c.l.b16 %v1608
  %v1707 = vunpack.c.h.b16 %v1608
  %v1708 = vunpack.c.l.b16 %v1609
  %v1709 = vunpack.c.h.b16 %v1609
  %v1710 = vunpack.c.l.b16 %v1610
  %v1711 = vunpack.c.h.b16 %v1610
  %v1712 = vunpack.c.l.b16 %v1611
  %v1713 = vunpack.c.h.b16 %v1611
  %v1714 = vunpack.c.l.b16 %v1612
  %v1715 = vunpack.c.h.b16 %v1612
  %v1716 = vunpack.c.l.b16 %v1613
  %v1717 = vunpack.c.h.b16 %v1613
  %v1718 = vunpack.c.l.b16 %v1614
  %v1719 = vunpack.c.h.b16 %v1614
  %v1720 = vunpack.c.l.b16 %v1615
  %v1721 = vunpack.c.h.b16 %v1615
  %v1722 = vunpack.c.l.b16 %v1616
  %v1723 = vunpack.c.h.b16 %v1616
  %v1724 = vunpack.c.l.b16 %v1617
  %v1725 = vunpack.c.h.b16 %v1617
  %v1726 = vpack.c.b16 %v1654, %v1654
  %v1727 = vpack.c.b16 %v1655, %v1655
  %v1728 = vpack.c.b16 %v1656, %v1656
  %v1729 = vpack.c.b16 %v1657, %v1657
  %v1730 = vpack.c.b16 %v1658, %v1658
  %v1731 = vpack.c.b16 %v1659, %v1659
  %v1732 = vpack.c.b16 %v1660, %v1660
  %v1733 = vpack.c.b16 %v1661, %v1661
  %v1734 = vpack.c.b16 %v1662, %v1662
  %v1735 = vpack.c.b16 %v1663, %v1663
  %v1736 = vpack.c.b16 %v1664, %v1664
  %v1737 = vpack.c.b16 %v1665, %v1665
  %v1738 = vpack.c.b16 %v1666, %v1666
  %v1739 = vpack.c.b16 %v1667, %v1667
  %v1740 = vpack.c.b16 %v1668, %v1668
  %v1741 = vpack.c.b16 %v1669, %v1669
  %v1742 = vpack.c.b16 %v1670, %v1670
  %v1743 = vpack.c.b16 %v1671, %v1671
  %v1744 = vpack.c.b16 %v1672, %v1672
  %v1745 = vpack.c.b16 %v1673, %v1673
  %v1746 = vpack.c.b16 %v1674, %v1674
  %v1747 = vpack.c.b16 %v1675, %v1675
  %v1748 = vpack.c.b16 %v1676, %v1676
  %v1749 = vpack.c.b16 %v1677, %v1677
  %v1750 = vpack.c.b16 %v1678, %v1678
  %v1751 = vpack.c.b16 %v1679, %v1679
  %v1752 = vpack.c.b16 %v1680, %v1680
  %v1753 = vpack.c.b16 %v1681, %v1681
  %v1754 = vpack.c.b16 %v1682, %v1682
  %v1755 = vpack.c.b16 %v1683, %v1683
  %v1756 = vpack.c.b16 %v1684, %v1684
  %v1757 = vpack.c.b16 %v1685, %v1685
  %v1758 = vpack.c.b16 %v1686, %v1686
  %v1759 = vpack.c.b16 %v1687, %v1687
  %v1760 = vpack.c.b16 %v1688, %v1688
  %v1761 = vpack.c.b16 %v1689, %v1689
  %v1762 = vpack.c.b16 %v1690, %v1690
  %v1763 = vpack.c.b16 %v1691, %v1691
  %v1764 = vpack.c.b16 %v1692, %v1692
  %v1765 = vpack.c.b16 %v1693, %v1693
  %v1766 = vpack.c.b16 %v1694, %v1694
  %v1767 = vpack.c.b16 %v1695, %v1695
  %v1768 = vpack.c.b16 %v1696, %v1696
  %v1769 = vpack.c.b16 %v1697, %v1697
  %v1770 = vpack.c.b16 %v1698, %v1698
  %v1771 = vpack.c.b16 %v1699, %v1699
  %v1772 = vpack.c.b16 %v1700, %v1700
  %v1773 = vpack.c.b16 %v1701, %v1701
  %v1774 = vpack.c.b16 %v1702, %v1702
  %v1775 = vpack.c.b16 %v1703, %v1703
  %v1776 = vpack.c.b16 %v1704, %v1704
  %v1777 = vpack.c.b16 %v1705, %v1705
  %v1778 = vpack.c.b16 %v1706, %v1706
  %v1779 = vpack.c.b16 %v1707, %v1707
  %v1780 = vpack.c.b16 %v1708, %v1708
  %v1781 = vpack.c.b16 %v1709, %v1709
  %v1782 = vpack.c.b16 %v1710, %v1710
  %v1783 = vpack.c.b16 %v1711, %v1711
  %v1784 = vpack.c.b16 %v1712, %v1712
  %v1785 = vpack.c.b16 %v1713, %v1713
  %v1786 = vpack.c.b16 %v1714, %v1714
  %v1787 = vpack.c.b16 %v1715, %v1715
  %v1788 = vpack.c.b16 %v1716, %v1716
  %v1789 = vpack.c.b16 %v1717, %v1717
  %v1790 = vpack.c.b16 %v1718, %v1718
  %v1791 = vpack.c.b16 %v1719, %v1719
  %v1792 = vpack.c.b16 %v1720, %v1720
  %v1793 = vpack.c.b16 %v1721, %v1721
  %v1794 = vpack.c.b16 %v1722, %v1722
  %v1795 = vpack.c.b16 %v1723, %v1723
  %v1796 = vpack.c.b16 %v1724, %v1724
  %v1797 = vpack.c.b16 %v1725, %v1725
  %1870 = vst [vmem:[%s4] sm:$0xf] %v1726
  %1871 = vst [vmem:[%s4 + $0x4] sm:$0xf] %v1727
  %1872 = vst [vmem:[%s4 + $0x8] sm:$0xf] %v1728
  %1873 = vst [vmem:[%s4 + $0xc] sm:$0xf] %v1729
  %1874 = vst [vmem:[%s4 + $0x10] sm:$0xf] %v1730
  %1875 = vst [vmem:[%s4 + $0x14] sm:$0xf] %v1731
  %1876 = vst [vmem:[%s4 + $0x18] sm:$0xf] %v1732
  %1877 = vst [vmem:[%s4 + $0x1c] sm:$0xf] %v1733
  %1878 = vst [vmem:[%s4 + $0x20] sm:$0xf] %v1734
  %1879 = vst [vmem:[%s4 + $0x24] sm:$0xf] %v1735
  %1880 = vst [vmem:[%s4 + $0x28] sm:$0xf] %v1736
  %1881 = vst [vmem:[%s4 + $0x2c] sm:$0xf] %v1737
  %1882 = vst [vmem:[%s4 + $0x30] sm:$0xf] %v1738
  %1883 = vst [vmem:[%s4 + $0x34] sm:$0xf] %v1739
  %1884 = vst [vmem:[%s4 + $0x38] sm:$0xf] %v1740
  %1885 = vst [vmem:[%s4 + $0x3c] sm:$0xf] %v1741
  %1886 = vst [vmem:[%s4 + $0x40] sm:$0xf] %v1742
  %1887 = vst [vmem:[%s4 + $0x44] sm:$0xf] %v1743
  %1888 = vst [vmem:[%s4 + $0x48] sm:$0xf] %v1744
  %1889 = vst [vmem:[%s4 + $0x4c] sm:$0xf] %v1745
  %1890 = vst [vmem:[%s4 + $0x50] sm:$0xf] %v1746
  %1891 = vst [vmem:[%s4 + $0x54] sm:$0xf] %v1747
  %1892 = vst [vmem:[%s4 + $0x58] sm:$0xf] %v1748
  %1893 = vst [vmem:[%s4 + $0x5c] sm:$0xf] %v1749
  %1894 = vst [vmem:[%s4 + $0x60] sm:$0xf] %v1750
  %1895 = vst [vmem:[%s4 + $0x64] sm:$0xf] %v1751
  %1896 = vst [vmem:[%s4 + $0x68] sm:$0xf] %v1752
  %1897 = vst [vmem:[%s4 + $0x6c] sm:$0xf] %v1753
  %1898 = vst [vmem:[%s4 + $0x70] sm:$0xf] %v1754
  %1899 = vst [vmem:[%s4 + $0x74] sm:$0xf] %v1755
  %1900 = vst [vmem:[%s4 + $0x78] sm:$0xf] %v1756
  %1901 = vst [vmem:[%s4 + $0x7c] sm:$0xf] %v1757
  %1902 = vst [vmem:[%s4 + $0x80] sm:$0xf] %v1758
  %1903 = vst [vmem:[%s4 + $0x84] sm:$0xf] %v1759
  %1904 = vst [vmem:[%s4 + $0x88] sm:$0xf] %v1760
  %1905 = vst [vmem:[%s4 + $0x8c] sm:$0xf] %v1761
  %1906 = vst [vmem:[%s4 + $0x90] sm:$0xf] %v1762
  %1907 = vst [vmem:[%s4 + $0x94] sm:$0xf] %v1763
  %1908 = vst [vmem:[%s4 + $0x98] sm:$0xf] %v1764
  %1909 = vst [vmem:[%s4 + $0x9c] sm:$0xf] %v1765
  %1910 = vst [vmem:[%s4 + $0xa0] sm:$0xf] %v1766
  %1911 = vst [vmem:[%s4 + $0xa4] sm:$0xf] %v1767
  %1912 = vst [vmem:[%s4 + $0xa8] sm:$0xf] %v1768
  %1913 = vst [vmem:[%s4 + $0xac] sm:$0xf] %v1769
  %1914 = vst [vmem:[%s4 + $0xb0] sm:$0xf] %v1770
  %1915 = vst [vmem:[%s4 + $0xb4] sm:$0xf] %v1771
  %1916 = vst [vmem:[%s4 + $0xb8] sm:$0xf] %v1772
  %1917 = vst [vmem:[%s4 + $0xbc] sm:$0xf] %v1773
  %1918 = vst [vmem:[%s4 + $0xc0] sm:$0xf] %v1774
  %1919 = vst [vmem:[%s4 + $0xc4] sm:$0xf] %v1775
  %1920 = vst [vmem:[%s4 + $0xc8] sm:$0xf] %v1776
  %1921 = vst [vmem:[%s4 + $0xcc] sm:$0xf] %v1777
  %1922 = vst [vmem:[%s4 + $0xd0] sm:$0xf] %v1778
  %1923 = vst [vmem:[%s4 + $0xd4] sm:$0xf] %v1779
  %1924 = vst [vmem:[%s4 + $0xd8] sm:$0xf] %v1780
  %1925 = vst [vmem:[%s4 + $0xdc] sm:$0xf] %v1781
  %1926 = vst [vmem:[%s4 + $0xe0] sm:$0xf] %v1782
  %1927 = vst [vmem:[%s4 + $0xe4] sm:$0xf] %v1783
  %1928 = vst [vmem:[%s4 + $0xe8] sm:$0xf] %v1784
  %1929 = vst [vmem:[%s4 + $0xec] sm:$0xf] %v1785
  %1930 = vst [vmem:[%s4 + $0xf0] sm:$0xf] %v1786
  %1931 = vst [vmem:[%s4 + $0xf4] sm:$0xf] %v1787
  %1932 = vst [vmem:[%s4 + $0xf8] sm:$0xf] %v1788
  %1933 = vst [vmem:[%s4 + $0xfc] sm:$0xf] %v1789
  %1934 = vst [vmem:[%s4 + $0x100] sm:$0xf] %v1790
  %1935 = vst [vmem:[%s4 + $0x104] sm:$0xf] %v1791
  %1936 = vst [vmem:[%s4 + $0x108] sm:$0xf] %v1792
  %1937 = vst [vmem:[%s4 + $0x10c] sm:$0xf] %v1793
  %1938 = vst [vmem:[%s4 + $0x110] sm:$0xf] %v1794
  %1939 = vst [vmem:[%s4 + $0x114] sm:$0xf] %v1795
  %1940 = vst [vmem:[%s4 + $0x118] sm:$0xf] %v1796
  %1941 = vst [vmem:[%s4 + $0x11c] sm:$0xf] %v1797
  // Predicated region
  $region18: #{nn_forward.5} parent=0 // pred_check
    _
  $region19: #{nn_forward.5} parent=0 // pred_check_branch
    %1943 = sbr.rel (0) target = $region21
  $region20: #{nn_forward.5} parent=0 // pred_region
    _
  $region21: #{nn_forward.5} parent=0 // pred_fallthru
    _
  // Predicated region
  $region22: #{nn_forward.5} parent=0 // pred_check
    _
  $region23: #{nn_forward.5} parent=0 // pred_check_branch
    %1945 = sbr.rel (0) target = $region25
  $region24: #{nn_forward.5} parent=0 // pred_region
    _
  $region25: #{nn_forward.5} parent=0 // pred_fallthru
    _

// kernel: nn_forward.6
$region0: #{nn_forward.6}
  #allocation0 [shape = 'u32[]', space=smem, size = 0x4, offset = 0x4, fixed_abs, tag = 'smem constant byte address 0x4 - core index']
  #allocation1 [shape = 'u32[144,128]{1,0:T(1,128)}', space=vmem, size = 0x12000, scoped, tag = 'internal scratch']
  %s0 = inlined_call_operand.vmem [shape: bf16[64,384], index: 0, kind: input, shape index: {}]
  %s1 = inlined_call_operand.vmem [shape: bf16[384,128], index: 1, kind: input, shape index: {}]
  %s2 = inlined_call_operand.vmem [shape: f32[1,128], index: 2, kind: input, shape index: {}]
  %s3 = inlined_call_operand.vmem [shape: f32[1,128], index: 3, kind: input, shape index: {}]
  %s4 = inlined_call_operand.vmem [shape: bf16[64,128], index: 4, kind: output, shape index: {}]
  %s5 = sld [smem:[#allocation0]]
  $region26: #{nn_forward.6} parent=0
    _
  %s7 = ssub.s32 1, %s5
  %s8 = scalar_select 0, %s7, %s5
  // Predicated region
  $region2: #{nn_forward.6} parent=0 // pred_check
    _
  $region3: #{nn_forward.6} parent=0 // pred_check_branch
    %10 = sbr.rel (0) target = $region5
  $region4: #{nn_forward.6} parent=0 // pred_region
    _
  $region5: #{nn_forward.6} parent=0 // pred_fallthru
    _
  // Predicated region
  $region6: #{nn_forward.6} parent=0 // pred_check
    _
  $region7: #{nn_forward.6} parent=0 // pred_check_branch
    %12 = sbr.rel (0) target = $region9
  $region8: #{nn_forward.6} parent=0 // pred_region
    _
  $region9: #{nn_forward.6} parent=0 // pred_fallthru
    _
  // Predicated region
  $region10: #{nn_forward.6} parent=0 // pred_check
    _
  $region11: #{nn_forward.6} parent=0 // pred_check_branch
    %14 = sbr.rel (0) target = $region13
  $region12: #{nn_forward.6} parent=0 // pred_region
    _
  $region13: #{nn_forward.6} parent=0 // pred_fallthru
    _
  // Predicated region
  $region14: #{nn_forward.6} parent=0 // pred_check
    _
  $region15: #{nn_forward.6} parent=0 // pred_check_branch
    %16 = sbr.rel (0) target = $region17
  $region16: #{nn_forward.6} parent=0 // pred_region
    _
  $region17: #{nn_forward.6} parent=0 // pred_fallthru
    _
  %v18 = vld [vmem:[%s0] sm:$0xff]
  %v19 = vld [vmem:[%s0 + $0x8] sm:$0xf]
  %v20 = vld [vmem:[%s0 + $0xc] sm:$0xff]
  %v21 = vld [vmem:[%s0 + $0x14] sm:$0xf]
  %v22 = vld [vmem:[%s0 + $0x18] sm:$0xff]
  %v23 = vld [vmem:[%s0 + $0x20] sm:$0xf]
  %v24 = vld [vmem:[%s0 + $0x24] sm:$0xff]
  %v25 = vld [vmem:[%s0 + $0x2c] sm:$0xf]
  %v26 = vld [vmem:[%s0 + $0x30] sm:$0xff]
  %v27 = vld [vmem:[%s0 + $0x38] sm:$0xf]
  %v28 = vld [vmem:[%s0 + $0x3c] sm:$0xff]
  %v29 = vld [vmem:[%s0 + $0x44] sm:$0xf]
  %v30 = vld [vmem:[%s0 + $0x48] sm:$0xff]
  %v31 = vld [vmem:[%s0 + $0x50] sm:$0xf]
  %v32 = vld [vmem:[%s0 + $0x54] sm:$0xff]
  %v33 = vld [vmem:[%s0 + $0x5c] sm:$0xf]
  %v34 = vld [vmem:[%s1] sm:$0xf]
  %v35 = vld [vmem:[%s1 + $0x4] sm:$0xf]
  %v36 = vld [vmem:[%s1 + $0x8] sm:$0xf]
  %v37 = vld [vmem:[%s1 + $0xc] sm:$0xf]
  %v38 = vld [vmem:[%s1 + $0x10] sm:$0xf]
  %v39 = vld [vmem:[%s1 + $0x14] sm:$0xf]
  %v40 = vld [vmem:[%s1 + $0x18] sm:$0xf]
  %v41 = vld [vmem:[%s1 + $0x1c] sm:$0xf]
  %v42 = vld [vmem:[%s1 + $0x20] sm:$0xf]
  %v43 = vld [vmem:[%s1 + $0x24] sm:$0xf]
  %v44 = vld [vmem:[%s1 + $0x28] sm:$0xf]
  %v45 = vld [vmem:[%s1 + $0x2c] sm:$0xf]
  %v46 = vld [vmem:[%s1 + $0x30] sm:$0xf]
  %v47 = vld [vmem:[%s1 + $0x34] sm:$0xf]
  %v48 = vld [vmem:[%s1 + $0x38] sm:$0xf]
  %v49 = vld [vmem:[%s1 + $0x3c] sm:$0xf]
  %v50 = vld [vmem:[%s1 + $0x40] sm:$0xf]
  %v51 = vld [vmem:[%s1 + $0x44] sm:$0xf]
  %v52 = vld [vmem:[%s1 + $0x48] sm:$0xf]
  %v53 = vld [vmem:[%s1 + $0x4c] sm:$0xf]
  %v54 = vld [vmem:[%s1 + $0x50] sm:$0xf]
  %v55 = vld [vmem:[%s1 + $0x54] sm:$0xf]
  %v56 = vld [vmem:[%s1 + $0x58] sm:$0xf]
  %v57 = vld [vmem:[%s1 + $0x5c] sm:$0xf]
  %v58 = vld [vmem:[%s1 + $0x60] sm:$0xf]
  %v59 = vld [vmem:[%s1 + $0x64] sm:$0xf]
  %v60 = vld [vmem:[%s1 + $0x68] sm:$0xf]
  %v61 = vld [vmem:[%s1 + $0x6c] sm:$0xf]
  %v62 = vld [vmem:[%s1 + $0x70] sm:$0xf]
  %v63 = vld [vmem:[%s1 + $0x74] sm:$0xf]
  %v64 = vld [vmem:[%s1 + $0x78] sm:$0xf]
  %v65 = vld [vmem:[%s1 + $0x7c] sm:$0xf]
  %v66 = vld [vmem:[%s1 + $0x80] sm:$0xf]
  %v67 = vld [vmem:[%s1 + $0x84] sm:$0xf]
  %v68 = vld [vmem:[%s1 + $0x88] sm:$0xf]
  %v69 = vld [vmem:[%s1 + $0x8c] sm:$0xf]
  %v70 = vld [vmem:[%s1 + $0x90] sm:$0xf]
  %v71 = vld [vmem:[%s1 + $0x94] sm:$0xf]
  %v72 = vld [vmem:[%s1 + $0x98] sm:$0xf]
  %v73 = vld [vmem:[%s1 + $0x9c] sm:$0xf]
  %v74 = vld [vmem:[%s1 + $0xa0] sm:$0xf]
  %v75 = vld [vmem:[%s1 + $0xa4] sm:$0xf]
  %v76 = vld [vmem:[%s1 + $0xa8] sm:$0xf]
  %v77 = vld [vmem:[%s1 + $0xac] sm:$0xf]
  %v78 = vld [vmem:[%s1 + $0xb0] sm:$0xf]
  %v79 = vld [vmem:[%s1 + $0xb4] sm:$0xf]
  %v80 = vld [vmem:[%s1 + $0xb8] sm:$0xf]
  %v81 = vld [vmem:[%s1 + $0xbc] sm:$0xf]
  %v98 = vunpack.c.l.b16 %v18
  %v99 = vunpack.c.h.b16 %v18
  %v100 = vunpack.c.l.b16 %v19
  %v101 = vunpack.c.l.b16 %v20
  %v102 = vunpack.c.h.b16 %v20
  %v103 = vunpack.c.l.b16 %v21
  %v104 = vunpack.c.l.b16 %v22
  %v105 = vunpack.c.h.b16 %v22
  %v106 = vunpack.c.l.b16 %v23
  %v107 = vunpack.c.l.b16 %v24
  %v108 = vunpack.c.h.b16 %v24
  %v109 = vunpack.c.l.b16 %v25
  %v110 = vunpack.c.l.b16 %v26
  %v111 = vunpack.c.h.b16 %v26
  %v112 = vunpack.c.l.b16 %v27
  %v113 = vunpack.c.l.b16 %v28
  %v114 = vunpack.c.h.b16 %v28
  %v115 = vunpack.c.l.b16 %v29
  %v116 = vunpack.c.l.b16 %v30
  %v117 = vunpack.c.h.b16 %v30
  %v118 = vunpack.c.l.b16 %v31
  %v119 = vunpack.c.l.b16 %v32
  %v120 = vunpack.c.h.b16 %v32
  %v121 = vunpack.c.l.b16 %v33
  %v122 = vpack.c.b16 %v101, %v98
  %v123 = vpack.c.b16 %v102, %v99
  %v124 = vpack.c.b16 %v103, %v100
  %v125 = vpack.c.b16 %v107, %v104
  %v126 = vpack.c.b16 %v108, %v105
  %v127 = vpack.c.b16 %v109, %v106
  %v128 = vpack.c.b16 %v113, %v110
  %v129 = vpack.c.b16 %v114, %v111
  %v130 = vpack.c.b16 %v115, %v112
  %v131 = vpack.c.b16 %v119, %v116
  %v132 = vpack.c.b16 %v120, %v117
  %v133 = vpack.c.b16 %v121, %v118
  %v194 = vunpack.c.l.b16 %v34
  %v195 = vunpack.c.l.b16 %v35
  %v196 = vunpack.c.l.b16 %v36
  %v197 = vunpack.c.l.b16 %v37
  %v198 = vunpack.c.l.b16 %v38
  %v199 = vunpack.c.l.b16 %v39
  %v200 = vunpack.c.l.b16 %v40
  %v201 = vunpack.c.l.b16 %v41
  %v202 = vunpack.c.l.b16 %v42
  %v203 = vunpack.c.l.b16 %v43
  %v204 = vunpack.c.l.b16 %v44
  %v205 = vunpack.c.l.b16 %v45
  %v206 = vunpack.c.l.b16 %v46
  %v207 = vunpack.c.l.b16 %v47
  %v208 = vunpack.c.l.b16 %v48
  %v209 = vunpack.c.l.b16 %v49
  %v210 = vunpack.c.l.b16 %v50
  %v211 = vunpack.c.l.b16 %v51
  %v212 = vunpack.c.l.b16 %v52
  %v213 = vunpack.c.l.b16 %v53
  %v214 = vunpack.c.l.b16 %v54
  %v215 = vunpack.c.l.b16 %v55
  %v216 = vunpack.c.l.b16 %v56
  %v217 = vunpack.c.l.b16 %v57
  %v218 = vunpack.c.l.b16 %v58
  %v219 = vunpack.c.l.b16 %v59
  %v220 = vunpack.c.l.b16 %v60
  %v221 = vunpack.c.l.b16 %v61
  %v222 = vunpack.c.l.b16 %v62
  %v223 = vunpack.c.l.b16 %v63
  %v224 = vunpack.c.l.b16 %v64
  %v225 = vunpack.c.l.b16 %v65
  %v226 = vunpack.c.l.b16 %v66
  %v227 = vunpack.c.l.b16 %v67
  %v228 = vunpack.c.l.b16 %v68
  %v229 = vunpack.c.l.b16 %v69
  %v230 = vunpack.c.l.b16 %v70
  %v231 = vunpack.c.l.b16 %v71
  %v232 = vunpack.c.l.b16 %v72
  %v233 = vunpack.c.l.b16 %v73
  %v234 = vunpack.c.l.b16 %v74
  %v235 = vunpack.c.l.b16 %v75
  %v236 = vunpack.c.l.b16 %v76
  %v237 = vunpack.c.l.b16 %v77
  %v238 = vunpack.c.l.b16 %v78
  %v239 = vunpack.c.l.b16 %v79
  %v240 = vunpack.c.l.b16 %v80
  %v241 = vunpack.c.l.b16 %v81
  %v242 = vpack.c.b16 %v195, %v194
  %v243 = vpack.c.b16 %v197, %v196
  %v244 = vpack.c.b16 %v199, %v198
  %v245 = vpack.c.b16 %v201, %v200
  %v246 = vpack.c.b16 %v203, %v202
  %v247 = vpack.c.b16 %v205, %v204
  %v248 = vpack.c.b16 %v207, %v206
  %v249 = vpack.c.b16 %v209, %v208
  %v250 = vpack.c.b16 %v211, %v210
  %v251 = vpack.c.b16 %v213, %v212
  %v252 = vpack.c.b16 %v215, %v214
  %v253 = vpack.c.b16 %v217, %v216
  %v254 = vpack.c.b16 %v219, %v218
  %v255 = vpack.c.b16 %v221, %v220
  %v256 = vpack.c.b16 %v223, %v222
  %v257 = vpack.c.b16 %v225, %v224
  %v258 = vpack.c.b16 %v227, %v226
  %v259 = vpack.c.b16 %v229, %v228
  %v260 = vpack.c.b16 %v231, %v230
  %v261 = vpack.c.b16 %v233, %v232
  %v262 = vpack.c.b16 %v235, %v234
  %v263 = vpack.c.b16 %v237, %v236
  %v264 = vpack.c.b16 %v239, %v238
  %v265 = vpack.c.b16 %v241, %v240
  %290 = vmatprep.subr.bf16.mxu0 0
  %291 = vmatpush1.bf16.msra.mxu0 %v249
  %292 = vmatprep.subr.bf16.mxu0 0
  %293 = vmatpush1.bf16.msra.mxu0 %v248
  %294 = vmatprep.subr.bf16.mxu0 0
  %295 = vmatpush1.bf16.msra.mxu0 %v247
  %296 = vmatprep.subr.bf16.mxu0 0
  %297 = vmatpush1.bf16.msra.mxu0 %v246
  %298 = vmatprep.subr.bf16.mxu0 0
  %299 = vmatpush1.bf16.msra.mxu0 %v245
  %300 = vmatprep.subr.bf16.mxu0 0
  %301 = vmatpush1.bf16.msra.mxu0 %v244
  %302 = vmatprep.subr.bf16.mxu0 0
  %303 = vmatpush1.bf16.msra.mxu0 %v243
  %304 = vmatprep.subr.bf16.mxu0 0
  %305 = vmatpush1.bf16.msra.mxu0 %v242
  %306 = vmatprep.subr.bf16.mxu0 0
  %307 = vmatpush2.bf16.msra.mxu0 %v257
  %308 = vmatprep.subr.bf16.mxu0 0
  %309 = vmatpush2.bf16.msra.mxu0 %v256
  %310 = vmatprep.subr.bf16.mxu0 0
  %311 = vmatpush2.bf16.msra.mxu0 %v255
  %312 = vmatprep.subr.bf16.mxu0 0
  %313 = vmatpush2.bf16.msra.mxu0 %v254
  %314 = vmatprep.subr.bf16.mxu0 0
  %315 = vmatpush2.bf16.msra.mxu0 %v253
  %316 = vmatprep.subr.bf16.mxu0 0
  %317 = vmatpush2.bf16.msra.mxu0 %v252
  %318 = vmatprep.subr.bf16.mxu0 0
  %319 = vmatpush2.bf16.msra.mxu0 %v251
  %320 = vmatprep.subr.bf16.mxu0 0
  %321 = vmatpush2.bf16.msra.mxu0 %v250
  %322 = vmatprep.mubr.bf16.mxu0 %v123
  %323 = vmatmul.mubr.bf16.gmra.mxu0 %v122
  %v324 = vpop.f32.mrf.mxu0
  %v325 = vadd.f32 0.0, %v324
  %v326 = vpop.f32.mrf.mxu0
  %v327 = vpop.f32.mrf.mxu0
  %v328 = vadd.f32 0.0, %v327
  %v329 = vpop.f32.mrf.mxu0
  %330 = vmatprep.mubr.bf16.mxu0 %v126
  %331 = vmatmul.mubr.bf16.gmra.mxu0 %v125
  %v332 = vpop.f32.mrf.mxu0
  %v333 = vadd.f32 0.0, %v332
  %v334 = vpop.f32.mrf.mxu0
  %v335 = vpop.f32.mrf.mxu0
  %v336 = vadd.f32 0.0, %v335
  %v337 = vpop.f32.mrf.mxu0
  %338 = vmatprep.mubr.bf16.mxu0 %v129
  %339 = vmatmul.mubr.bf16.gmra.mxu0 %v128
  %v340 = vpop.f32.mrf.mxu0
  %v341 = vadd.f32 0.0, %v340
  %v342 = vpop.f32.mrf.mxu0
  %v343 = vpop.f32.mrf.mxu0
  %v344 = vadd.f32 0.0, %v343
  %v345 = vpop.f32.mrf.mxu0
  %346 = vmatprep.mubr.bf16.mxu0 %v132
  %347 = vmatmul.mubr.bf16.gmra.mxu0 %v131
  %v348 = vpop.f32.mrf.mxu0
  %v349 = vadd.f32 0.0, %v348
  %v350 = vpop.f32.mrf.mxu0
  %v351 = vpop.f32.mrf.mxu0
  %v352 = vadd.f32 0.0, %v351
  %v353 = vpop.f32.mrf.mxu0
  %354 = vdwg.mxu0
  %355 = vmatprep.subr.bf16.mxu0 0
  %356 = vmatpush1.bf16.msra.mxu0 %v265
  %357 = vmatprep.subr.bf16.mxu0 0
  %358 = vmatpush1.bf16.msra.mxu0 %v264
  %359 = vmatprep.subr.bf16.mxu0 0
  %360 = vmatpush1.bf16.msra.mxu0 %v263
  %361 = vmatprep.subr.bf16.mxu0 0
  %362 = vmatpush1.bf16.msra.mxu0 %v262
  %363 = vmatprep.subr.bf16.mxu0 0
  %364 = vmatpush1.bf16.msra.mxu0 %v261
  %365 = vmatprep.subr.bf16.mxu0 0
  %366 = vmatpush1.bf16.msra.mxu0 %v260
  %367 = vmatprep.subr.bf16.mxu0 0
  %368 = vmatpush1.bf16.msra.mxu0 %v259
  %369 = vmatprep.subr.bf16.mxu0 0
  %370 = vmatpush1.bf16.msra.mxu0 %v258
  %371 = vmatprep.subr.bf16.mxu0 0
  %372 = vmatpush2.bf16.msra.mxu0 0
  %373 = vmatprep.subr.bf16.mxu0 0
  %374 = vmatpush2.bf16.msra.mxu0 0
  %375 = vmatprep.subr.bf16.mxu0 0
  %376 = vmatpush2.bf16.msra.mxu0 0
  %377 = vmatprep.subr.bf16.mxu0 0
  %378 = vmatpush2.bf16.msra.mxu0 0
  %379 = vmatprep.subr.bf16.mxu0 0
  %380 = vmatpush2.bf16.msra.mxu0 0
  %381 = vmatprep.subr.bf16.mxu0 0
  %382 = vmatpush2.bf16.msra.mxu0 0
  %383 = vmatprep.subr.bf16.mxu0 0
  %384 = vmatpush2.bf16.msra.mxu0 0
  %385 = vmatprep.subr.bf16.mxu0 0
  %386 = vmatpush2.bf16.msra.mxu0 0
  %387 = vmatprep.mubr.bf16.mxu0 0
  %388 = vmatmul.mubr.bf16.gmra.mxu0 %v124
  %v389 = vpop.f32.mrf.mxu0
  %v390 = vadd.f32 %v325, %v389
  %v391 = vpop.f32.mrf.mxu0
  %v392 = vpop.f32.mrf.mxu0
  %v393 = vadd.f32 %v328, %v392
  %v394 = vpop.f32.mrf.mxu0
  %395 = vmatprep.mubr.bf16.mxu0 0
  %396 = vmatmul.mubr.bf16.gmra.mxu0 %v127
  %v397 = vpop.f32.mrf.mxu0
  %v398 = vadd.f32 %v333, %v397
  %v399 = vpop.f32.mrf.mxu0
  %v400 = vpop.f32.mrf.mxu0
  %v401 = vadd.f32 %v336, %v400
  %v402 = vpop.f32.mrf.mxu0
  %403 = vmatprep.mubr.bf16.mxu0 0
  %404 = vmatmul.mubr.bf16.gmra.mxu0 %v130
  %v405 = vpop.f32.mrf.mxu0
  %v406 = vadd.f32 %v341, %v405
  %v407 = vpop.f32.mrf.mxu0
  %v408 = vpop.f32.mrf.mxu0
  %v409 = vadd.f32 %v344, %v408
  %v410 = vpop.f32.mrf.mxu0
  %411 = vmatprep.mubr.bf16.mxu0 0
  %412 = vmatmul.mubr.bf16.gmra.mxu0 %v133
  %v413 = vpop.f32.mrf.mxu0
  %v414 = vadd.f32 %v349, %v413
  %v415 = vpop.f32.mrf.mxu0
  %v416 = vpop.f32.mrf.mxu0
  %v417 = vadd.f32 %v352, %v416
  %v418 = vpop.f32.mrf.mxu0
  %419 = vdwg.mxu0
  %v420 = vlaneseq
  %v421 = vshrl.u32 %v420, 7
  %v422 = vadd.s32 %v421, 8
  %v423 = vadd.s32 %v421, 16
  %v424 = vadd.s32 %v421, 24
  %v425 = vadd.s32 %v421, 32
  %v426 = vadd.s32 %v421, 40
  %v427 = vadd.s32 %v421, 48
  %v428 = vadd.s32 %v421, 56
  %vm429 = vcmp.lt.s32.totalorder %v421, 64
  %vm430 = vcmp.lt.s32.totalorder %v422, 64
  %vm431 = vcmp.lt.s32.totalorder %v423, 64
  %vm432 = vcmp.lt.s32.totalorder %v424, 64
  %vm433 = vcmp.lt.s32.totalorder %v425, 64
  %vm434 = vcmp.lt.s32.totalorder %v426, 64
  %vm435 = vcmp.lt.s32.totalorder %v427, 64
  %vm436 = vcmp.lt.s32.totalorder %v428, 64
  %v437 = vsel %vm429, %v390, 0.0
  %v438 = vsel %vm430, %v393, 0.0
  %v439 = vsel %vm431, %v398, 0.0
  %v440 = vsel %vm432, %v401, 0.0
  %v441 = vsel %vm433, %v406, 0.0
  %v442 = vsel %vm434, %v409, 0.0
  %v443 = vsel %vm435, %v414, 0.0
  %v444 = vsel %vm436, %v417, 0.0
  %v445 = vadd.f32 %v437, %v438
  %v446 = vadd.f32 %v445, %v439
  %v447 = vadd.f32 %v446, %v440
  %v448 = vadd.f32 %v447, %v441
  %v449 = vadd.f32 %v448, %v442
  %v450 = vadd.f32 %v449, %v443
  %v451 = vadd.f32 %v450, %v444
  %v452 = vrot.slane %v451, 4
  %v453 = vadd.f32 %v451, %v452
  %v454 = vrot.slane %v453, 2
  %v455 = vadd.f32 %v453, %v454
  %v456 = vrot.slane %v455, 1
  %v457 = vadd.f32 %v455, %v456
  %v458 = vmul.f32 %v457, 0.015625
  %v459 = vmul.f32 %v437, %v437
  %v460 = vmul.f32 %v438, %v438
  %v461 = vmul.f32 %v439, %v439
  %v462 = vmul.f32 %v440, %v440
  %v463 = vmul.f32 %v441, %v441
  %v464 = vmul.f32 %v442, %v442
  %v465 = vmul.f32 %v443, %v443
  %v466 = vmul.f32 %v444, %v444
  %v467 = vadd.f32 %v459, %v460
  %v468 = vadd.f32 %v467, %v461
  %v469 = vadd.f32 %v468, %v462
  %v470 = vadd.f32 %v469, %v463
  %v471 = vadd.f32 %v470, %v464
  %v472 = vadd.f32 %v471, %v465
  %v473 = vadd.f32 %v472, %v466
  %v474 = vrot.slane %v473, 4
  %v475 = vadd.f32 %v473, %v474
  %v476 = vrot.slane %v475, 2
  %v477 = vadd.f32 %v475, %v476
  %v478 = vrot.slane %v477, 1
  %v479 = vadd.f32 %v477, %v478
  %v480 = vmul.f32 %v479, 0.015625
  %v481 = vmul.f32 %v458, %v458
  %v482 = vsub.f32 %v480, %v481
  %v483 = vmax.f32 %v482, 0.0
  %v484 = vld [vmem:[%s2] sm:$0x1]
  %v485 = vadd.f32 %v483, 1e-05
  %v486 = vrsqrt.pop %v485
  %v487 = vmul.f32 %v484, %v486
  %v488 = vld [vmem:[%s3] sm:$0x1]
  %v489 = vmul.f32 %v458, %v487
  %v490 = vsub.f32 %v488, %v489
  %v492 = vlaneseq
  %v493 = vshrl.u32 %v492, 7
  %v494 = vsub.s32 0, %v493
  %v495 = vrot.slane %v487, %v494
  %v497 = vmul.f32 %v390, %v495
  %v498 = vmul.f32 %v393, %v495
  %v499 = vmul.f32 %v398, %v495
  %v500 = vmul.f32 %v401, %v495
  %v501 = vmul.f32 %v406, %v495
  %v502 = vmul.f32 %v409, %v495
  %v503 = vmul.f32 %v414, %v495
  %v504 = vmul.f32 %v417, %v495
  %v506 = vlaneseq
  %v507 = vshrl.u32 %v506, 7
  %v508 = vsub.s32 0, %v507
  %v509 = vrot.slane %v490, %v508
  %v511 = vadd.f32 %v497, %v509
  %v512 = vadd.f32 %v498, %v509
  %v513 = vadd.f32 %v499, %v509
  %v514 = vadd.f32 %v500, %v509
  %v515 = vadd.f32 %v501, %v509
  %v516 = vadd.f32 %v502, %v509
  %v517 = vadd.f32 %v503, %v509
  %v518 = vadd.f32 %v504, %v509
  %v519 = vmax.f32 %v511, 0.0
  %v520 = vmax.f32 %v512, 0.0
  %v521 = vmax.f32 %v513, 0.0
  %v522 = vmax.f32 %v514, 0.0
  %v523 = vmax.f32 %v515, 0.0
  %v524 = vmax.f32 %v516, 0.0
  %v525 = vmax.f32 %v517, 0.0
  %v526 = vmax.f32 %v518, 0.0
  %v527 = vpack.c.bf16 %v520, %v519
  %v528 = vpack.c.bf16 %v522, %v521
  %v529 = vpack.c.bf16 %v524, %v523
  %v530 = vpack.c.bf16 %v526, %v525
  %v535 = vunpack.c.l.b16 %v527
  %v536 = vunpack.c.h.b16 %v527
  %v537 = vunpack.c.l.b16 %v528
  %v538 = vunpack.c.h.b16 %v528
  %v539 = vunpack.c.l.b16 %v529
  %v540 = vunpack.c.h.b16 %v529
  %v541 = vunpack.c.l.b16 %v530
  %v542 = vunpack.c.h.b16 %v530
  %v543 = vpack.c.b16 %v535, %v535
  %v544 = vpack.c.b16 %v536, %v536
  %v545 = vpack.c.b16 %v537, %v537
  %v546 = vpack.c.b16 %v538, %v538
  %v547 = vpack.c.b16 %v539, %v539
  %v548 = vpack.c.b16 %v540, %v540
  %v549 = vpack.c.b16 %v541, %v541
  %v550 = vpack.c.b16 %v542, %v542
  %559 = vst [vmem:[%s4] sm:$0xf] %v543
  %560 = vst [vmem:[%s4 + $0x4] sm:$0xf] %v544
  %561 = vst [vmem:[%s4 + $0x8] sm:$0xf] %v545
  %562 = vst [vmem:[%s4 + $0xc] sm:$0xf] %v546
  %563 = vst [vmem:[%s4 + $0x10] sm:$0xf] %v547
  %564 = vst [vmem:[%s4 + $0x14] sm:$0xf] %v548
  %565 = vst [vmem:[%s4 + $0x18] sm:$0xf] %v549
  %566 = vst [vmem:[%s4 + $0x1c] sm:$0xf] %v550
  // Predicated region
  $region18: #{nn_forward.6} parent=0 // pred_check
    _
  $region19: #{nn_forward.6} parent=0 // pred_check_branch
    %568 = sbr.rel (0) target = $region21
  $region20: #{nn_forward.6} parent=0 // pred_region
    _
  $region21: #{nn_forward.6} parent=0 // pred_fallthru
    _
  // Predicated region
  $region22: #{nn_forward.6} parent=0 // pred_check
    _
  $region23: #{nn_forward.6} parent=0 // pred_check_branch
    %570 = sbr.rel (0) target = $region25
  $region24: #{nn_forward.6} parent=0 // pred_region
    _
  $region25: #{nn_forward.6} parent=0 // pred_fallthru
    _

// kernel: nn_forward.7
$region0: #{nn_forward.7}
  #allocation0 [shape = 'u32[]', space=smem, size = 0x4, offset = 0x4, fixed_abs, tag = 'smem constant byte address 0x4 - core index']
  #allocation1 [shape = 'u32[144,128]{1,0:T(1,128)}', space=vmem, size = 0x12000, scoped, tag = 'internal scratch']
  %s0 = inlined_call_operand.vmem [shape: bf16[8,1024], index: 0, kind: input, shape index: {}]
  %s1 = inlined_call_operand.vmem [shape: bf16[1024,128], index: 1, kind: input, shape index: {}]
  %s2 = inlined_call_operand.vmem [shape: f32[1,128], index: 2, kind: input, shape index: {}]
  %s3 = inlined_call_operand.vmem [shape: bf16[128,128], index: 3, kind: input, shape index: {}]
  %s4 = inlined_call_operand.vmem [shape: f32[1,128], index: 4, kind: input, shape index: {}]
  %s5 = inlined_call_operand.vmem [shape: f32[8,128], index: 5, kind: output, shape index: {}]
  %s6 = sld [smem:[#allocation0]]
  $region30: #{nn_forward.7} parent=0
    _
  %s8 = ssub.s32 1, %s6
  %s9 = scalar_select 0, %s8, %s6
  // Predicated region
  $region2: #{nn_forward.7} parent=0 // pred_check
    _
  $region3: #{nn_forward.7} parent=0 // pred_check_branch
    %11 = sbr.rel (0) target = $region5
  $region4: #{nn_forward.7} parent=0 // pred_region
    _
  $region5: #{nn_forward.7} parent=0 // pred_fallthru
    _
  // Predicated region
  $region6: #{nn_forward.7} parent=0 // pred_check
    _
  $region7: #{nn_forward.7} parent=0 // pred_check_branch
    %13 = sbr.rel (0) target = $region9
  $region8: #{nn_forward.7} parent=0 // pred_region
    _
  $region9: #{nn_forward.7} parent=0 // pred_fallthru
    _
  // Predicated region
  $region10: #{nn_forward.7} parent=0 // pred_check
    _
  $region11: #{nn_forward.7} parent=0 // pred_check_branch
    %15 = sbr.rel (0) target = $region13
  $region12: #{nn_forward.7} parent=0 // pred_region
    _
  $region13: #{nn_forward.7} parent=0 // pred_fallthru
    _
  // Predicated region
  $region14: #{nn_forward.7} parent=0 // pred_check
    _
  $region15: #{nn_forward.7} parent=0 // pred_check_branch
    %17 = sbr.rel (0) target = $region17
  $region16: #{nn_forward.7} parent=0 // pred_region
    _
  $region17: #{nn_forward.7} parent=0 // pred_fallthru
    _
  // Predicated region
  $region18: #{nn_forward.7} parent=0 // pred_check
    _
  $region19: #{nn_forward.7} parent=0 // pred_check_branch
    %19 = sbr.rel (0) target = $region21
  $region20: #{nn_forward.7} parent=0 // pred_region
    _
  $region21: #{nn_forward.7} parent=0 // pred_fallthru
    _
  %v21 = vld [vmem:[%s0] sm:$0xff]
  %v22 = vld [vmem:[%s0 + $0x8] sm:$0xff]
  %v23 = vld [vmem:[%s0 + $0x10] sm:$0xff]
  %v24 = vld [vmem:[%s0 + $0x18] sm:$0xff]
  %v25 = vld [vmem:[%s1] sm:$0xf]
  %v26 = vld [vmem:[%s1 + $0x4] sm:$0xf]
  %v27 = vld [vmem:[%s1 + $0x8] sm:$0xf]
  %v28 = vld [vmem:[%s1 + $0xc] sm:$0xf]
  %v29 = vld [vmem:[%s1 + $0x10] sm:$0xf]
  %v30 = vld [vmem:[%s1 + $0x14] sm:$0xf]
  %v31 = vld [vmem:[%s1 + $0x18] sm:$0xf]
  %v32 = vld [vmem:[%s1 + $0x1c] sm:$0xf]
  %v33 = vld [vmem:[%s1 + $0x20] sm:$0xf]
  %v34 = vld [vmem:[%s1 + $0x24] sm:$0xf]
  %v35 = vld [vmem:[%s1 + $0x28] sm:$0xf]
  %v36 = vld [vmem:[%s1 + $0x2c] sm:$0xf]
  %v37 = vld [vmem:[%s1 + $0x30] sm:$0xf]
  %v38 = vld [vmem:[%s1 + $0x34] sm:$0xf]
  %v39 = vld [vmem:[%s1 + $0x38] sm:$0xf]
  %v40 = vld [vmem:[%s1 + $0x3c] sm:$0xf]
  %v41 = vld [vmem:[%s1 + $0x40] sm:$0xf]
  %v42 = vld [vmem:[%s1 + $0x44] sm:$0xf]
  %v43 = vld [vmem:[%s1 + $0x48] sm:$0xf]
  %v44 = vld [vmem:[%s1 + $0x4c] sm:$0xf]
  %v45 = vld [vmem:[%s1 + $0x50] sm:$0xf]
  %v46 = vld [vmem:[%s1 + $0x54] sm:$0xf]
  %v47 = vld [vmem:[%s1 + $0x58] sm:$0xf]
  %v48 = vld [vmem:[%s1 + $0x5c] sm:$0xf]
  %v49 = vld [vmem:[%s1 + $0x60] sm:$0xf]
  %v50 = vld [vmem:[%s1 + $0x64] sm:$0xf]
  %v51 = vld [vmem:[%s1 + $0x68] sm:$0xf]
  %v52 = vld [vmem:[%s1 + $0x6c] sm:$0xf]
  %v53 = vld [vmem:[%s1 + $0x70] sm:$0xf]
  %v54 = vld [vmem:[%s1 + $0x74] sm:$0xf]
  %v55 = vld [vmem:[%s1 + $0x78] sm:$0xf]
  %v56 = vld [vmem:[%s1 + $0x7c] sm:$0xf]
  %v57 = vld [vmem:[%s1 + $0x80] sm:$0xf]
  %v58 = vld [vmem:[%s1 + $0x84] sm:$0xf]
  %v59 = vld [vmem:[%s1 + $0x88] sm:$0xf]
  %v60 = vld [vmem:[%s1 + $0x8c] sm:$0xf]
  %v61 = vld [vmem:[%s1 + $0x90] sm:$0xf]
  %v62 = vld [vmem:[%s1 + $0x94] sm:$0xf]
  %v63 = vld [vmem:[%s1 + $0x98] sm:$0xf]
  %v64 = vld [vmem:[%s1 + $0x9c] sm:$0xf]
  %v65 = vld [vmem:[%s1 + $0xa0] sm:$0xf]
  %v66 = vld [vmem:[%s1 + $0xa4] sm:$0xf]
  %v67 = vld [vmem:[%s1 + $0xa8] sm:$0xf]
  %v68 = vld [vmem:[%s1 + $0xac] sm:$0xf]
  %v69 = vld [vmem:[%s1 + $0xb0] sm:$0xf]
  %v70 = vld [vmem:[%s1 + $0xb4] sm:$0xf]
  %v71 = vld [vmem:[%s1 + $0xb8] sm:$0xf]
  %v72 = vld [vmem:[%s1 + $0xbc] sm:$0xf]
  %v73 = vld [vmem:[%s1 + $0xc0] sm:$0xf]
  %v74 = vld [vmem:[%s1 + $0xc4] sm:$0xf]
  %v75 = vld [vmem:[%s1 + $0xc8] sm:$0xf]
  %v76 = vld [vmem:[%s1 + $0xcc] sm:$0xf]
  %v77 = vld [vmem:[%s1 + $0xd0] sm:$0xf]
  %v78 = vld [vmem:[%s1 + $0xd4] sm:$0xf]
  %v79 = vld [vmem:[%s1 + $0xd8] sm:$0xf]
  %v80 = vld [vmem:[%s1 + $0xdc] sm:$0xf]
  %v81 = vld [vmem:[%s1 + $0xe0] sm:$0xf]
  %v82 = vld [vmem:[%s1 + $0xe4] sm:$0xf]
  %v83 = vld [vmem:[%s1 + $0xe8] sm:$0xf]
  %v84 = vld [vmem:[%s1 + $0xec] sm:$0xf]
  %v85 = vld [vmem:[%s1 + $0xf0] sm:$0xf]
  %v86 = vld [vmem:[%s1 + $0xf4] sm:$0xf]
  %v87 = vld [vmem:[%s1 + $0xf8] sm:$0xf]
  %v88 = vld [vmem:[%s1 + $0xfc] sm:$0xf]
  %v89 = vld [vmem:[%s1 + $0x100] sm:$0xf]
  %v90 = vld [vmem:[%s1 + $0x104] sm:$0xf]
  %v91 = vld [vmem:[%s1 + $0x108] sm:$0xf]
  %v92 = vld [vmem:[%s1 + $0x10c] sm:$0xf]
  %v93 = vld [vmem:[%s1 + $0x110] sm:$0xf]
  %v94 = vld [vmem:[%s1 + $0x114] sm:$0xf]
  %v95 = vld [vmem:[%s1 + $0x118] sm:$0xf]
  %v96 = vld [vmem:[%s1 + $0x11c] sm:$0xf]
  %v97 = vld [vmem:[%s1 + $0x120] sm:$0xf]
  %v98 = vld [vmem:[%s1 + $0x124] sm:$0xf]
  %v99 = vld [vmem:[%s1 + $0x128] sm:$0xf]
  %v100 = vld [vmem:[%s1 + $0x12c] sm:$0xf]
  %v101 = vld [vmem:[%s1 + $0x130] sm:$0xf]
  %v102 = vld [vmem:[%s1 + $0x134] sm:$0xf]
  %v103 = vld [vmem:[%s1 + $0x138] sm:$0xf]
  %v104 = vld [vmem:[%s1 + $0x13c] sm:$0xf]
  %v105 = vld [vmem:[%s1 + $0x140] sm:$0xf]
  %v106 = vld [vmem:[%s1 + $0x144] sm:$0xf]
  %v107 = vld [vmem:[%s1 + $0x148] sm:$0xf]
  %v108 = vld [vmem:[%s1 + $0x14c] sm:$0xf]
  %v109 = vld [vmem:[%s1 + $0x150] sm:$0xf]
  %v110 = vld [vmem:[%s1 + $0x154] sm:$0xf]
  %v111 = vld [vmem:[%s1 + $0x158] sm:$0xf]
  %v112 = vld [vmem:[%s1 + $0x15c] sm:$0xf]
  %v113 = vld [vmem:[%s1 + $0x160] sm:$0xf]
  %v114 = vld [vmem:[%s1 + $0x164] sm:$0xf]
  %v115 = vld [vmem:[%s1 + $0x168] sm:$0xf]
  %v116 = vld [vmem:[%s1 + $0x16c] sm:$0xf]
  %v117 = vld [vmem:[%s1 + $0x170] sm:$0xf]
  %v118 = vld [vmem:[%s1 + $0x174] sm:$0xf]
  %v119 = vld [vmem:[%s1 + $0x178] sm:$0xf]
  %v120 = vld [vmem:[%s1 + $0x17c] sm:$0xf]
  %v121 = vld [vmem:[%s1 + $0x180] sm:$0xf]
  %v122 = vld [vmem:[%s1 + $0x184] sm:$0xf]
  %v123 = vld [vmem:[%s1 + $0x188] sm:$0xf]
  %v124 = vld [vmem:[%s1 + $0x18c] sm:$0xf]
  %v125 = vld [vmem:[%s1 + $0x190] sm:$0xf]
  %v126 = vld [vmem:[%s1 + $0x194] sm:$0xf]
  %v127 = vld [vmem:[%s1 + $0x198] sm:$0xf]
  %v128 = vld [vmem:[%s1 + $0x19c] sm:$0xf]
  %v129 = vld [vmem:[%s1 + $0x1a0] sm:$0xf]
  %v130 = vld [vmem:[%s1 + $0x1a4] sm:$0xf]
  %v131 = vld [vmem:[%s1 + $0x1a8] sm:$0xf]
  %v132 = vld [vmem:[%s1 + $0x1ac] sm:$0xf]
  %v133 = vld [vmem:[%s1 + $0x1b0] sm:$0xf]
  %v134 = vld [vmem:[%s1 + $0x1b4] sm:$0xf]
  %v135 = vld [vmem:[%s1 + $0x1b8] sm:$0xf]
  %v136 = vld [vmem:[%s1 + $0x1bc] sm:$0xf]
  %v137 = vld [vmem:[%s1 + $0x1c0] sm:$0xf]
  %v138 = vld [vmem:[%s1 + $0x1c4] sm:$0xf]
  %v139 = vld [vmem:[%s1 + $0x1c8] sm:$0xf]
  %v140 = vld [vmem:[%s1 + $0x1cc] sm:$0xf]
  %v141 = vld [vmem:[%s1 + $0x1d0] sm:$0xf]
  %v142 = vld [vmem:[%s1 + $0x1d4] sm:$0xf]
  %v143 = vld [vmem:[%s1 + $0x1d8] sm:$0xf]
  %v144 = vld [vmem:[%s1 + $0x1dc] sm:$0xf]
  %v145 = vld [vmem:[%s1 + $0x1e0] sm:$0xf]
  %v146 = vld [vmem:[%s1 + $0x1e4] sm:$0xf]
  %v147 = vld [vmem:[%s1 + $0x1e8] sm:$0xf]
  %v148 = vld [vmem:[%s1 + $0x1ec] sm:$0xf]
  %v149 = vld [vmem:[%s1 + $0x1f0] sm:$0xf]
  %v150 = vld [vmem:[%s1 + $0x1f4] sm:$0xf]
  %v151 = vld [vmem:[%s1 + $0x1f8] sm:$0xf]
  %v152 = vld [vmem:[%s1 + $0x1fc] sm:$0xf]
  %v153 = vld [vmem:[%s2] sm:$0x1]
  %v155 = vlaneseq
  %v156 = vshrl.u32 %v155, 7
  %v157 = vsub.s32 0, %v156
  %v158 = vrot.slane %v153, %v157
  %v164 = vunpack.c.l.b16 %v21
  %v165 = vunpack.c.h.b16 %v21
  %v166 = vunpack.c.l.b16 %v22
  %v167 = vunpack.c.h.b16 %v22
  %v168 = vunpack.c.l.b16 %v23
  %v169 = vunpack.c.h.b16 %v23
  %v170 = vunpack.c.l.b16 %v24
  %v171 = vunpack.c.h.b16 %v24
  %v172 = vpack.c.b16 %v164, %v164
  %v173 = vpack.c.b16 %v165, %v165
  %v174 = vpack.c.b16 %v166, %v166
  %v175 = vpack.c.b16 %v167, %v167
  %v176 = vpack.c.b16 %v168, %v168
  %v177 = vpack.c.b16 %v169, %v169
  %v178 = vpack.c.b16 %v170, %v170
  %v179 = vpack.c.b16 %v171, %v171
  %v316 = vunpack.c.l.b16 %v25
  %v317 = vunpack.c.l.b16 %v26
  %v318 = vunpack.c.l.b16 %v27
  %v319 = vunpack.c.l.b16 %v28
  %v320 = vunpack.c.l.b16 %v29
  %v321 = vunpack.c.l.b16 %v30
  %v322 = vunpack.c.l.b16 %v31
  %v323 = vunpack.c.l.b16 %v32
  %v324 = vunpack.c.l.b16 %v33
  %v325 = vunpack.c.l.b16 %v34
  %v326 = vunpack.c.l.b16 %v35
  %v327 = vunpack.c.l.b16 %v36
  %v328 = vunpack.c.l.b16 %v37
  %v329 = vunpack.c.l.b16 %v38
  %v330 = vunpack.c.l.b16 %v39
  %v331 = vunpack.c.l.b16 %v40
  %v332 = vunpack.c.l.b16 %v41
  %v333 = vunpack.c.l.b16 %v42
  %v334 = vunpack.c.l.b16 %v43
  %v335 = vunpack.c.l.b16 %v44
  %v336 = vunpack.c.l.b16 %v45
  %v337 = vunpack.c.l.b16 %v46
  %v338 = vunpack.c.l.b16 %v47
  %v339 = vunpack.c.l.b16 %v48
  %v340 = vunpack.c.l.b16 %v49
  %v341 = vunpack.c.l.b16 %v50
  %v342 = vunpack.c.l.b16 %v51
  %v343 = vunpack.c.l.b16 %v52
  %v344 = vunpack.c.l.b16 %v53
  %v345 = vunpack.c.l.b16 %v54
  %v346 = vunpack.c.l.b16 %v55
  %v347 = vunpack.c.l.b16 %v56
  %v348 = vunpack.c.l.b16 %v57
  %v349 = vunpack.c.l.b16 %v58
  %v350 = vunpack.c.l.b16 %v59
  %v351 = vunpack.c.l.b16 %v60
  %v352 = vunpack.c.l.b16 %v61
  %v353 = vunpack.c.l.b16 %v62
  %v354 = vunpack.c.l.b16 %v63
  %v355 = vunpack.c.l.b16 %v64
  %v356 = vunpack.c.l.b16 %v65
  %v357 = vunpack.c.l.b16 %v66
  %v358 = vunpack.c.l.b16 %v67
  %v359 = vunpack.c.l.b16 %v68
  %v360 = vunpack.c.l.b16 %v69
  %v361 = vunpack.c.l.b16 %v70
  %v362 = vunpack.c.l.b16 %v71
  %v363 = vunpack.c.l.b16 %v72
  %v364 = vunpack.c.l.b16 %v73
  %v365 = vunpack.c.l.b16 %v74
  %v366 = vunpack.c.l.b16 %v75
  %v367 = vunpack.c.l.b16 %v76
  %v368 = vunpack.c.l.b16 %v77
  %v369 = vunpack.c.l.b16 %v78
  %v370 = vunpack.c.l.b16 %v79
  %v371 = vunpack.c.l.b16 %v80
  %v372 = vunpack.c.l.b16 %v81
  %v373 = vunpack.c.l.b16 %v82
  %v374 = vunpack.c.l.b16 %v83
  %v375 = vunpack.c.l.b16 %v84
  %v376 = vunpack.c.l.b16 %v85
  %v377 = vunpack.c.l.b16 %v86
  %v378 = vunpack.c.l.b16 %v87
  %v379 = vunpack.c.l.b16 %v88
  %v380 = vunpack.c.l.b16 %v89
  %v381 = vunpack.c.l.b16 %v90
  %v382 = vunpack.c.l.b16 %v91
  %v383 = vunpack.c.l.b16 %v92
  %v384 = vunpack.c.l.b16 %v93
  %v385 = vunpack.c.l.b16 %v94
  %v386 = vunpack.c.l.b16 %v95
  %v387 = vunpack.c.l.b16 %v96
  %v388 = vunpack.c.l.b16 %v97
  %v389 = vunpack.c.l.b16 %v98
  %v390 = vunpack.c.l.b16 %v99
  %v391 = vunpack.c.l.b16 %v100
  %v392 = vunpack.c.l.b16 %v101
  %v393 = vunpack.c.l.b16 %v102
  %v394 = vunpack.c.l.b16 %v103
  %v395 = vunpack.c.l.b16 %v104
  %v396 = vunpack.c.l.b16 %v105
  %v397 = vunpack.c.l.b16 %v106
  %v398 = vunpack.c.l.b16 %v107
  %v399 = vunpack.c.l.b16 %v108
  %v400 = vunpack.c.l.b16 %v109
  %v401 = vunpack.c.l.b16 %v110
  %v402 = vunpack.c.l.b16 %v111
  %v403 = vunpack.c.l.b16 %v112
  %v404 = vunpack.c.l.b16 %v113
  %v405 = vunpack.c.l.b16 %v114
  %v406 = vunpack.c.l.b16 %v115
  %v407 = vunpack.c.l.b16 %v116
  %v408 = vunpack.c.l.b16 %v117
  %v409 = vunpack.c.l.b16 %v118
  %v410 = vunpack.c.l.b16 %v119
  %v411 = vunpack.c.l.b16 %v120
  %v412 = vunpack.c.l.b16 %v121
  %v413 = vunpack.c.l.b16 %v122
  %v414 = vunpack.c.l.b16 %v123
  %v415 = vunpack.c.l.b16 %v124
  %v416 = vunpack.c.l.b16 %v125
  %v417 = vunpack.c.l.b16 %v126
  %v418 = vunpack.c.l.b16 %v127
  %v419 = vunpack.c.l.b16 %v128
  %v420 = vunpack.c.l.b16 %v129
  %v421 = vunpack.c.l.b16 %v130
  %v422 = vunpack.c.l.b16 %v131
  %v423 = vunpack.c.l.b16 %v132
  %v424 = vunpack.c.l.b16 %v133
  %v425 = vunpack.c.l.b16 %v134
  %v426 = vunpack.c.l.b16 %v135
  %v427 = vunpack.c.l.b16 %v136
  %v428 = vunpack.c.l.b16 %v137
  %v429 = vunpack.c.l.b16 %v138
  %v430 = vunpack.c.l.b16 %v139
  %v431 = vunpack.c.l.b16 %v140
  %v432 = vunpack.c.l.b16 %v141
  %v433 = vunpack.c.l.b16 %v142
  %v434 = vunpack.c.l.b16 %v143
  %v435 = vunpack.c.l.b16 %v144
  %v436 = vunpack.c.l.b16 %v145
  %v437 = vunpack.c.l.b16 %v146
  %v438 = vunpack.c.l.b16 %v147
  %v439 = vunpack.c.l.b16 %v148
  %v440 = vunpack.c.l.b16 %v149
  %v441 = vunpack.c.l.b16 %v150
  %v442 = vunpack.c.l.b16 %v151
  %v443 = vunpack.c.l.b16 %v152
  %v444 = vpack.c.b16 %v317, %v316
  %v445 = vpack.c.b16 %v319, %v318
  %v446 = vpack.c.b16 %v321, %v320
  %v447 = vpack.c.b16 %v323, %v322
  %v448 = vpack.c.b16 %v325, %v324
  %v449 = vpack.c.b16 %v327, %v326
  %v450 = vpack.c.b16 %v329, %v328
  %v451 = vpack.c.b16 %v331, %v330
  %v452 = vpack.c.b16 %v333, %v332
  %v453 = vpack.c.b16 %v335, %v334
  %v454 = vpack.c.b16 %v337, %v336
  %v455 = vpack.c.b16 %v339, %v338
  %v456 = vpack.c.b16 %v341, %v340
  %v457 = vpack.c.b16 %v343, %v342
  %v458 = vpack.c.b16 %v345, %v344
  %v459 = vpack.c.b16 %v347, %v346
  %v460 = vpack.c.b16 %v349, %v348
  %v461 = vpack.c.b16 %v351, %v350
  %v462 = vpack.c.b16 %v353, %v352
  %v463 = vpack.c.b16 %v355, %v354
  %v464 = vpack.c.b16 %v357, %v356
  %v465 = vpack.c.b16 %v359, %v358
  %v466 = vpack.c.b16 %v361, %v360
  %v467 = vpack.c.b16 %v363, %v362
  %v468 = vpack.c.b16 %v365, %v364
  %v469 = vpack.c.b16 %v367, %v366
  %v470 = vpack.c.b16 %v369, %v368
  %v471 = vpack.c.b16 %v371, %v370
  %v472 = vpack.c.b16 %v373, %v372
  %v473 = vpack.c.b16 %v375, %v374
  %v474 = vpack.c.b16 %v377, %v376
  %v475 = vpack.c.b16 %v379, %v378
  %v476 = vpack.c.b16 %v381, %v380
  %v477 = vpack.c.b16 %v383, %v382
  %v478 = vpack.c.b16 %v385, %v384
  %v479 = vpack.c.b16 %v387, %v386
  %v480 = vpack.c.b16 %v389, %v388
  %v481 = vpack.c.b16 %v391, %v390
  %v482 = vpack.c.b16 %v393, %v392
  %v483 = vpack.c.b16 %v395, %v394
  %v484 = vpack.c.b16 %v397, %v396
  %v485 = vpack.c.b16 %v399, %v398
  %v486 = vpack.c.b16 %v401, %v400
  %v487 = vpack.c.b16 %v403, %v402
  %v488 = vpack.c.b16 %v405, %v404
  %v489 = vpack.c.b16 %v407, %v406
  %v490 = vpack.c.b16 %v409, %v408
  %v491 = vpack.c.b16 %v411, %v410
  %v492 = vpack.c.b16 %v413, %v412
  %v493 = vpack.c.b16 %v415, %v414
  %v494 = vpack.c.b16 %v417, %v416
  %v495 = vpack.c.b16 %v419, %v418
  %v496 = vpack.c.b16 %v421, %v420
  %v497 = vpack.c.b16 %v423, %v422
  %v498 = vpack.c.b16 %v425, %v424
  %v499 = vpack.c.b16 %v427, %v426
  %v500 = vpack.c.b16 %v429, %v428
  %v501 = vpack.c.b16 %v431, %v430
  %v502 = vpack.c.b16 %v433, %v432
  %v503 = vpack.c.b16 %v435, %v434
  %v504 = vpack.c.b16 %v437, %v436
  %v505 = vpack.c.b16 %v439, %v438
  %v506 = vpack.c.b16 %v441, %v440
  %v507 = vpack.c.b16 %v443, %v442
  %572 = vmatprep.subr.bf16.mxu0 0
  %573 = vmatpush1.bf16.msra.mxu0 %v451
  %574 = vmatprep.subr.bf16.mxu0 0
  %575 = vmatpush1.bf16.msra.mxu0 %v450
  %576 = vmatprep.subr.bf16.mxu0 0
  %577 = vmatpush1.bf16.msra.mxu0 %v449
  %578 = vmatprep.subr.bf16.mxu0 0
  %579 = vmatpush1.bf16.msra.mxu0 %v448
  %580 = vmatprep.subr.bf16.mxu0 0
  %581 = vmatpush1.bf16.msra.mxu0 %v447
  %582 = vmatprep.subr.bf16.mxu0 0
  %583 = vmatpush1.bf16.msra.mxu0 %v446
  %584 = vmatprep.subr.bf16.mxu0 0
  %585 = vmatpush1.bf16.msra.mxu0 %v445
  %586 = vmatprep.subr.bf16.mxu0 0
  %587 = vmatpush1.bf16.msra.mxu0 %v444
  %588 = vmatprep.subr.bf16.mxu0 0
  %589 = vmatpush2.bf16.msra.mxu0 %v459
  %590 = vmatprep.subr.bf16.mxu0 0
  %591 = vmatpush2.bf16.msra.mxu0 %v458
  %592 = vmatprep.subr.bf16.mxu0 0
  %593 = vmatpush2.bf16.msra.mxu0 %v457
  %594 = vmatprep.subr.bf16.mxu0 0
  %595 = vmatpush2.bf16.msra.mxu0 %v456
  %596 = vmatprep.subr.bf16.mxu0 0
  %597 = vmatpush2.bf16.msra.mxu0 %v455
  %598 = vmatprep.subr.bf16.mxu0 0
  %599 = vmatpush2.bf16.msra.mxu0 %v454
  %600 = vmatprep.subr.bf16.mxu0 0
  %601 = vmatpush2.bf16.msra.mxu0 %v453
  %602 = vmatprep.subr.bf16.mxu0 0
  %603 = vmatpush2.bf16.msra.mxu0 %v452
  %604 = vmatprep.mubr.bf16.mxu0 %v173
  %605 = vmatmul.mubr.bf16.gmra.mxu0 %v172
  %v606 = vpop.f32.mrf.mxu0
  %v607 = vadd.f32 %v158, %v606
  %v608 = vpop.f32.mrf.mxu0
  %v609 = vpop.f32.mrf.mxu0
  %v610 = vpop.f32.mrf.mxu0
  %611 = vdwg.mxu0
  %612 = vmatprep.subr.bf16.mxu0 0
  %613 = vmatpush1.bf16.msra.mxu0 %v467
  %614 = vmatprep.subr.bf16.mxu0 0
  %615 = vmatpush1.bf16.msra.mxu0 %v466
  %616 = vmatprep.subr.bf16.mxu0 0
  %617 = vmatpush1.bf16.msra.mxu0 %v465
  %618 = vmatprep.subr.bf16.mxu0 0
  %619 = vmatpush1.bf16.msra.mxu0 %v464
  %620 = vmatprep.subr.bf16.mxu0 0
  %621 = vmatpush1.bf16.msra.mxu0 %v463
  %622 = vmatprep.subr.bf16.mxu0 0
  %623 = vmatpush1.bf16.msra.mxu0 %v462
  %624 = vmatprep.subr.bf16.mxu0 0
  %625 = vmatpush1.bf16.msra.mxu0 %v461
  %626 = vmatprep.subr.bf16.mxu0 0
  %627 = vmatpush1.bf16.msra.mxu0 %v460
  %628 = vmatprep.subr.bf16.mxu0 0
  %629 = vmatpush2.bf16.msra.mxu0 %v475
  %630 = vmatprep.subr.bf16.mxu0 0
  %631 = vmatpush2.bf16.msra.mxu0 %v474
  %632 = vmatprep.subr.bf16.mxu0 0
  %633 = vmatpush2.bf16.msra.mxu0 %v473
  %634 = vmatprep.subr.bf16.mxu0 0
  %635 = vmatpush2.bf16.msra.mxu0 %v472
  %636 = vmatprep.subr.bf16.mxu0 0
  %637 = vmatpush2.bf16.msra.mxu0 %v471
  %638 = vmatprep.subr.bf16.mxu0 0
  %639 = vmatpush2.bf16.msra.mxu0 %v470
  %640 = vmatprep.subr.bf16.mxu0 0
  %641 = vmatpush2.bf16.msra.mxu0 %v469
  %642 = vmatprep.subr.bf16.mxu0 0
  %643 = vmatpush2.bf16.msra.mxu0 %v468
  %644 = vmatprep.mubr.bf16.mxu0 %v175
  %645 = vmatmul.mubr.bf16.gmra.mxu0 %v174
  %v646 = vpop.f32.mrf.mxu0
  %v647 = vadd.f32 %v607, %v646
  %v648 = vpop.f32.mrf.mxu0
  %v649 = vpop.f32.mrf.mxu0
  %v650 = vpop.f32.mrf.mxu0
  %651 = vdwg.mxu0
  %652 = vmatprep.subr.bf16.mxu0 0
  %653 = vmatpush1.bf16.msra.mxu0 %v483
  %654 = vmatprep.subr.bf16.mxu0 0
  %655 = vmatpush1.bf16.msra.mxu0 %v482
  %656 = vmatprep.subr.bf16.mxu0 0
  %657 = vmatpush1.bf16.msra.mxu0 %v481
  %658 = vmatprep.subr.bf16.mxu0 0
  %659 = vmatpush1.bf16.msra.mxu0 %v480
  %660 = vmatprep.subr.bf16.mxu0 0
  %661 = vmatpush1.bf16.msra.mxu0 %v479
  %662 = vmatprep.subr.bf16.mxu0 0
  %663 = vmatpush1.bf16.msra.mxu0 %v478
  %664 = vmatprep.subr.bf16.mxu0 0
  %665 = vmatpush1.bf16.msra.mxu0 %v477
  %666 = vmatprep.subr.bf16.mxu0 0
  %667 = vmatpush1.bf16.msra.mxu0 %v476
  %668 = vmatprep.subr.bf16.mxu0 0
  %669 = vmatpush2.bf16.msra.mxu0 %v491
  %670 = vmatprep.subr.bf16.mxu0 0
  %671 = vmatpush2.bf16.msra.mxu0 %v490
  %672 = vmatprep.subr.bf16.mxu0 0
  %673 = vmatpush2.bf16.msra.mxu0 %v489
  %674 = vmatprep.subr.bf16.mxu0 0
  %675 = vmatpush2.bf16.msra.mxu0 %v488
  %676 = vmatprep.subr.bf16.mxu0 0
  %677 = vmatpush2.bf16.msra.mxu0 %v487
  %678 = vmatprep.subr.bf16.mxu0 0
  %679 = vmatpush2.bf16.msra.mxu0 %v486
  %680 = vmatprep.subr.bf16.mxu0 0
  %681 = vmatpush2.bf16.msra.mxu0 %v485
  %682 = vmatprep.subr.bf16.mxu0 0
  %683 = vmatpush2.bf16.msra.mxu0 %v484
  %684 = vmatprep.mubr.bf16.mxu0 %v177
  %685 = vmatmul.mubr.bf16.gmra.mxu0 %v176
  %v686 = vpop.f32.mrf.mxu0
  %v687 = vadd.f32 %v647, %v686
  %v688 = vpop.f32.mrf.mxu0
  %v689 = vpop.f32.mrf.mxu0
  %v690 = vpop.f32.mrf.mxu0
  %691 = vdwg.mxu0
  %692 = vmatprep.subr.bf16.mxu0 0
  %693 = vmatpush1.bf16.msra.mxu0 %v499
  %694 = vmatprep.subr.bf16.mxu0 0
  %695 = vmatpush1.bf16.msra.mxu0 %v498
  %696 = vmatprep.subr.bf16.mxu0 0
  %697 = vmatpush1.bf16.msra.mxu0 %v497
  %698 = vmatprep.subr.bf16.mxu0 0
  %699 = vmatpush1.bf16.msra.mxu0 %v496
  %700 = vmatprep.subr.bf16.mxu0 0
  %701 = vmatpush1.bf16.msra.mxu0 %v495
  %702 = vmatprep.subr.bf16.mxu0 0
  %703 = vmatpush1.bf16.msra.mxu0 %v494
  %704 = vmatprep.subr.bf16.mxu0 0
  %705 = vmatpush1.bf16.msra.mxu0 %v493
  %706 = vmatprep.subr.bf16.mxu0 0
  %707 = vmatpush1.bf16.msra.mxu0 %v492
  %708 = vmatprep.subr.bf16.mxu0 0
  %709 = vmatpush2.bf16.msra.mxu0 %v507
  %710 = vmatprep.subr.bf16.mxu0 0
  %711 = vmatpush2.bf16.msra.mxu0 %v506
  %712 = vmatprep.subr.bf16.mxu0 0
  %713 = vmatpush2.bf16.msra.mxu0 %v505
  %714 = vmatprep.subr.bf16.mxu0 0
  %715 = vmatpush2.bf16.msra.mxu0 %v504
  %716 = vmatprep.subr.bf16.mxu0 0
  %717 = vmatpush2.bf16.msra.mxu0 %v503
  %718 = vmatprep.subr.bf16.mxu0 0
  %719 = vmatpush2.bf16.msra.mxu0 %v502
  %720 = vmatprep.subr.bf16.mxu0 0
  %721 = vmatpush2.bf16.msra.mxu0 %v501
  %722 = vmatprep.subr.bf16.mxu0 0
  %723 = vmatpush2.bf16.msra.mxu0 %v500
  %724 = vmatprep.mubr.bf16.mxu0 %v179
  %725 = vmatmul.mubr.bf16.gmra.mxu0 %v178
  %v726 = vpop.f32.mrf.mxu0
  %v727 = vadd.f32 %v687, %v726
  %v728 = vpop.f32.mrf.mxu0
  %v729 = vpop.f32.mrf.mxu0
  %v730 = vpop.f32.mrf.mxu0
  %731 = vdwg.mxu0
  %v732 = vmax.f32 %v727, 0.0
  %v733 = vpack.c.bf16 %v732, %v732
  %v734 = vld [vmem:[%s3] sm:$0xf]
  %v735 = vld [vmem:[%s3 + $0x4] sm:$0xf]
  %v736 = vld [vmem:[%s3 + $0x8] sm:$0xf]
  %v737 = vld [vmem:[%s3 + $0xc] sm:$0xf]
  %v738 = vld [vmem:[%s3 + $0x10] sm:$0xf]
  %v739 = vld [vmem:[%s3 + $0x14] sm:$0xf]
  %v740 = vld [vmem:[%s3 + $0x18] sm:$0xf]
  %v741 = vld [vmem:[%s3 + $0x1c] sm:$0xf]
  %v742 = vld [vmem:[%s3 + $0x20] sm:$0xf]
  %v743 = vld [vmem:[%s3 + $0x24] sm:$0xf]
  %v744 = vld [vmem:[%s3 + $0x28] sm:$0xf]
  %v745 = vld [vmem:[%s3 + $0x2c] sm:$0xf]
  %v746 = vld [vmem:[%s3 + $0x30] sm:$0xf]
  %v747 = vld [vmem:[%s3 + $0x34] sm:$0xf]
  %v748 = vld [vmem:[%s3 + $0x38] sm:$0xf]
  %v749 = vld [vmem:[%s3 + $0x3c] sm:$0xf]
  %v750 = vld [vmem:[%s4] sm:$0x1]
  %v752 = vlaneseq
  %v753 = vshrl.u32 %v752, 7
  %v754 = vsub.s32 0, %v753
  %v755 = vrot.slane %v750, %v754
  %v773 = vunpack.c.l.b16 %v734
  %v774 = vunpack.c.l.b16 %v735
  %v775 = vunpack.c.l.b16 %v736
  %v776 = vunpack.c.l.b16 %v737
  %v777 = vunpack.c.l.b16 %v738
  %v778 = vunpack.c.l.b16 %v739
  %v779 = vunpack.c.l.b16 %v740
  %v780 = vunpack.c.l.b16 %v741
  %v781 = vunpack.c.l.b16 %v742
  %v782 = vunpack.c.l.b16 %v743
  %v783 = vunpack.c.l.b16 %v744
  %v784 = vunpack.c.l.b16 %v745
  %v785 = vunpack.c.l.b16 %v746
  %v786 = vunpack.c.l.b16 %v747
  %v787 = vunpack.c.l.b16 %v748
  %v788 = vunpack.c.l.b16 %v749
  %v789 = vpack.c.b16 %v774, %v773
  %v790 = vpack.c.b16 %v776, %v775
  %v791 = vpack.c.b16 %v778, %v777
  %v792 = vpack.c.b16 %v780, %v779
  %v793 = vpack.c.b16 %v782, %v781
  %v794 = vpack.c.b16 %v784, %v783
  %v795 = vpack.c.b16 %v786, %v785
  %v796 = vpack.c.b16 %v788, %v787
  %805 = vmatprep.subr.bf16.mxu0 0
  %806 = vmatpush1.bf16.msra.mxu0 %v796
  %807 = vmatprep.subr.bf16.mxu0 0
  %808 = vmatpush1.bf16.msra.mxu0 %v795
  %809 = vmatprep.subr.bf16.mxu0 0
  %810 = vmatpush1.bf16.msra.mxu0 %v794
  %811 = vmatprep.subr.bf16.mxu0 0
  %812 = vmatpush1.bf16.msra.mxu0 %v793
  %813 = vmatprep.subr.bf16.mxu0 0
  %814 = vmatpush1.bf16.msra.mxu0 %v792
  %815 = vmatprep.subr.bf16.mxu0 0
  %816 = vmatpush1.bf16.msra.mxu0 %v791
  %817 = vmatprep.subr.bf16.mxu0 0
  %818 = vmatpush1.bf16.msra.mxu0 %v790
  %819 = vmatprep.subr.bf16.mxu0 0
  %820 = vmatpush1.bf16.msra.mxu0 %v789
  %821 = vmatprep.subr.bf16.mxu0 0
  %822 = vmatpush2.bf16.msra.mxu0 0
  %823 = vmatprep.subr.bf16.mxu0 0
  %824 = vmatpush2.bf16.msra.mxu0 0
  %825 = vmatprep.subr.bf16.mxu0 0
  %826 = vmatpush2.bf16.msra.mxu0 0
  %827 = vmatprep.subr.bf16.mxu0 0
  %828 = vmatpush2.bf16.msra.mxu0 0
  %829 = vmatprep.subr.bf16.mxu0 0
  %830 = vmatpush2.bf16.msra.mxu0 0
  %831 = vmatprep.subr.bf16.mxu0 0
  %832 = vmatpush2.bf16.msra.mxu0 0
  %833 = vmatprep.subr.bf16.mxu0 0
  %834 = vmatpush2.bf16.msra.mxu0 0
  %835 = vmatprep.subr.bf16.mxu0 0
  %836 = vmatpush2.bf16.msra.mxu0 0
  %837 = vmatprep.mubr.bf16.mxu0 0
  %838 = vmatmul.mubr.bf16.gmra.mxu0 %v733
  %v839 = vpop.f32.mrf.mxu0
  %v840 = vadd.f32 %v755, %v839
  %v841 = vpop.f32.mrf.mxu0
  %v842 = vpop.f32.mrf.mxu0
  %v843 = vpop.f32.mrf.mxu0
  %844 = vdwg.mxu0
  %v845 = vlaneseq
  %v846 = vand.u32 %v845, 127
  %vm847 = vcmp.lt.s32.totalorder %v846, 2
  %v848 = vsel %vm847, %v840, -inf
  %849 = vmax.xlane.f32.xlu0 %v848
  %v850 = vpop.xlane.xlu0 %849
  %v851 = vsub.f32 %v848, %v850
  %v852 = vmul.f32 %v851, 1.442695
  %v853 = vpow.pop %v852
  %854 = vadd.xlane.f32.xlu0 %v853
  %v855 = vpop.xlane.xlu0 %854
  %v856 = vrcp.pop %v855
  %v857 = vmul.f32 %v853, %v856
  %858 = vst [vmem:[%s5] sm:$0xff] %v857
  // Predicated region
  $region22: #{nn_forward.7} parent=0 // pred_check
    _
  $region23: #{nn_forward.7} parent=0 // pred_check_branch
    %860 = sbr.rel (0) target = $region25
  $region24: #{nn_forward.7} parent=0 // pred_region
    _
  $region25: #{nn_forward.7} parent=0 // pred_fallthru
    _
  // Predicated region
  $region26: #{nn_forward.7} parent=0 // pred_check
    _
  $region27: #{nn_forward.7} parent=0 // pred_check_branch
    %862 = sbr.rel (0) target = $region29
  $region28: #{nn_forward.7} parent=0 // pred_region
    _
  $region29: #{nn_forward.7} parent=0 // pred_fallthru
    _

</llo_original>
